<compile_context>
chip_gen: v7x
topology: tpu7x:2x2x1
jax: 0.10.0
libtpu: 0.0.40
codegen_flags: <defaults>
</compile_context>

<pallas_src>
import math
from functools import partial

import jax
import jax.numpy as jnp
from jax.experimental import pallas as pl
from jax.experimental.pallas import tpu as pltpu

EPS = 1e-5
NEG_SLOPE = 0.01  # default negative slope of F.leaky_relu / nn.LeakyReLU


def _leaky(x):
    return jnp.where(x > 0, x, NEG_SLOPE * x)


def _full_spec(shape):
    # whole-array block, no grid
    return pl.BlockSpec(shape, lambda: (0,) * len(shape))


# ---------------------------------------------------------------------------
# Single fused kernel: full STAG forward (eval mode).
# Inputs:  x, edge_attr, src[E,1], tgt[E,1], batch[N,1], 50 parameter arrays.
# Output:  [num_graphs, 1] graph-level predictions.
# ---------------------------------------------------------------------------
def _stag_kernel(*refs, num_graphs):
    o_ref = refs[-1]
    it = iter(refs[:-1])
    x_ref = next(it)
    ea_ref = next(it)
    src_ref = next(it)
    tgt_ref = next(it)
    bat_ref = next(it)

    def P():  # next parameter, loaded into registers/VMEM values
        return next(it)[...]

    f32 = jnp.float32
    x = x_ref[...]                       # [N, 19]
    ea = ea_ref[...]                     # [E, 19]
    src = src_ref[...]                   # [E, 1] int32
    tgt = tgt_ref[...]                   # [E, 1] int32
    bat = bat_ref[...]                   # [N, 1] int32
    n = x.shape[0]
    e = ea.shape[0]
    c = 32

    # --- one-hot masks, computed once and reused everywhere -----------------
    niota = jax.lax.broadcasted_iota(jnp.int32, (e, n), 1)
    S = (src == niota).astype(f32)       # [E, N] one-hot source
    T = (tgt == niota).astype(f32)       # [E, N] one-hot target
    giota = jax.lax.broadcasted_iota(jnp.int32, (n, num_graphs), 1)
    G = (bat == giota).astype(f32)       # [N, B] one-hot graph id
    cnt = jnp.maximum(jnp.sum(G, axis=0, keepdims=True), 1.0)   # [1, B] nodes per graph

    # --- helpers -------------------------------------------------------------
    def lin(h, w, b):
        return jnp.dot(h, w, preferred_element_type=f32) + b

    def row_ln(h, g, b):                 # nn.LayerNorm over the feature axis
        mu = jnp.mean(h, axis=-1, keepdims=True)
        hc = h - mu
        var = jnp.mean(hc * hc, axis=-1, keepdims=True)
        return hc * jax.lax.rsqrt(var + EPS) * g + b

    def graph_ln(h, g, b):               # PyG LayerNorm(mode='graph'): per-graph over nodes+channels
        norm = cnt * h.shape[1]                                          # [1, B]
        row_sum = jnp.sum(h, axis=1, keepdims=True)                      # [N, 1]
        mean_g = jnp.sum(G * row_sum, axis=0, keepdims=True) / norm      # [1, B]
        mean_n = jnp.sum(G * mean_g, axis=1, keepdims=True)              # [N, 1]
        hc = h - mean_n
        sq = jnp.sum(hc * hc, axis=1, keepdims=True)                     # [N, 1]
        var_g = jnp.sum(G * sq, axis=0, keepdims=True) / norm            # [1, B]
        var_n = jnp.sum(G * var_g, axis=1, keepdims=True)                # [N, 1]
        return hc * jax.lax.rsqrt(var_n + EPS) * g + b

    # --- node MLP 1 ----------------------------------------------------------
    h = lin(x, P(), P())                                  # Linear(19, 32)
    h = _leaky(graph_ln(h, P(), P()))                     # graph LayerNorm + LeakyReLU
    h = lin(h, P(), P())                                  # Linear(32, 32)

    # --- edge MLP 1 (gather via MXU, split matmul replaces the 83-wide concat)
    h_src = jnp.dot(S, h, preferred_element_type=f32)     # h[row], [E, 32]
    h_tgt = jnp.dot(T, h, preferred_element_type=f32)     # h[col], [E, 32]
    w_s, w_t, w_e, b1 = P(), P(), P(), P()
    ef = (jnp.dot(h_src, w_s, preferred_element_type=f32)
          + jnp.dot(h_tgt, w_t, preferred_element_type=f32)
          + jnp.dot(ea, w_e, preferred_element_type=f32) + b1)           # [E, 16]
    ef = _leaky(row_ln(ef, P(), P()))
    ef = lin(ef, P(), P())                                               # [E, 16]

    scale = 1.0 / math.sqrt(c)

    # --- one EVTConv block (heads=1, concat=False, beta=False, root_weight=True)
    def evt_block(h_in):
        # per-edge weight matrices: nn.Sequential(Linear, LayerNorm, LeakyReLU, Dropout(id), Linear)
        t = lin(ef, P(), P())
        t = _leaky(row_ln(t, P(), P()))
        w_flat = lin(t, P(), P())                          # [E, 1024] lane-dense (no reshape)

        # fused q | k | skip projection
        proj = lin(h_in, P(), P())                         # [N, 96]
        q = proj[:, 0:c]
        k = proj[:, c:2 * c]
        xr = proj[:, 2 * c:3 * c]

        q_i = jnp.dot(T, q, preferred_element_type=f32)    # gather query_i   [E, 32]
        k_j = jnp.dot(S, k, preferred_element_type=f32)    # gather key_j     [E, 32]
        v_j = jnp.dot(S, h_in, preferred_element_type=f32) # value_j = raw x  [E, 32]

        alpha = jnp.sum(q_i * k_j, axis=-1, keepdims=True) * scale       # [E, 1]
        # segment softmax over edges sharing a target node
        masked = jnp.where(T > 0, alpha, f32(-1e30))                     # [E, N]
        m_node = jnp.max(masked, axis=0, keepdims=True)                  # [1, N]
        m_e = jnp.sum(T * m_node, axis=1, keepdims=True)                 # [E, 1]
        pexp = jnp.exp(alpha - m_e)                                      # [E, 1]
        d_node = jnp.sum(T * pexp, axis=0, keepdims=True)                # [1, N]
        d_e = jnp.sum(T * d_node, axis=1, keepdims=True)                 # [E, 1]
        a = pexp / d_e                                                   # [E, 1]

        # per-edge matvec on lane-dense W: msg[e, co] = sum_ci v_j[e, ci] * W[e, ci*32 + co]
        msg = jnp.zeros((e, c), f32)
        for ci in range(c):
            msg = msg + v_j[:, ci:ci + 1] * w_flat[:, ci * c:(ci + 1) * c]
        msg = msg * a
        # scatter-add into target nodes + skip connection
        return jnp.dot(T.T, msg, preferred_element_type=f32) + xr        # [N, 32]

    # --- 3 EVTConv blocks with graph-LayerNorm (+ leaky after the first two) -
    h = evt_block(h)
    h = _leaky(graph_ln(h, P(), P()))
    h = evt_block(h)
    h = _leaky(graph_ln(h, P(), P()))
    h = evt_block(h)
    h = graph_ln(h, P(), P())

    # --- global head: mean pool (MXU) + Linear + LayerNorm + LeakyReLU + Linear
    w_pool = G / cnt                                                     # [N, B]
    pooled = jnp.dot(w_pool.T, h, preferred_element_type=f32)            # [B, 32]
    g1 = lin(pooled, P(), P())
    g1 = _leaky(row_ln(g1, P(), P()))
    o_ref[...] = lin(g1, P(), P())                                       # [B, 1]


# ---------------------------------------------------------------------------
# Parameter flattening (fixed order must match the kernel's consumption order)
# ---------------------------------------------------------------------------
def flatten_params(p):
    flat = [p["node_lin1_w"], p["node_lin1_b"],
            p["node_norm_w"], p["node_norm_b"],
            p["node_lin2_w"], p["node_lin2_b"],
            p["edge_lin1_ws"], p["edge_lin1_wt"], p["edge_lin1_we"], p["edge_lin1_b"],
            p["edge_norm_w"], p["edge_norm_b"],
            p["edge_lin2_w"], p["edge_lin2_b"]]
    for i in (1, 2, 3):
        cp = p[f"conv{i}"]
        flat += [cp["nn_lin1_w"], cp["nn_lin1_b"],
                 cp["nn_ln_w"], cp["nn_ln_b"],
                 cp["nn_lin2_w"], cp["nn_lin2_b"],
                 cp["qks_w"], cp["qks_b"],
                 p[f"conv{i}_norm_w"], p[f"conv{i}_norm_b"]]
    flat += [p["glob_lin1_w"], p["glob_lin1_b"],
             p["glob_norm_w"], p["glob_norm_b"],
             p["glob_lin2_w"], p["glob_lin2_b"]]
    return flat


# ---------------------------------------------------------------------------
# Full STAG forward (eval mode: all dropout is identity) — one pallas_call
# ---------------------------------------------------------------------------
def stag_forward(params, x, edge_index, edge_attr, batch, num_graphs):
    src2d = edge_index[0].reshape(-1, 1).astype(jnp.int32)
    tgt2d = edge_index[1].reshape(-1, 1).astype(jnp.int32)
    batch2d = batch.reshape(-1, 1).astype(jnp.int32)
    flat = flatten_params(params)
    args = (x, edge_attr, src2d, tgt2d, batch2d, *flat)
    out = pl.pallas_call(
        partial(_stag_kernel, num_graphs=num_graphs),
        out_shape=jax.ShapeDtypeStruct((num_graphs, 1), jnp.float32),
        in_specs=[_full_spec(a.shape) for a in args],
        out_specs=_full_spec((num_graphs, 1)),
        compiler_params=pltpu.CompilerParams(vmem_limit_bytes=32 * 1024 * 1024),
    )(*args)
    return jnp.squeeze(out)                                              # .squeeze()


# ---------------------------------------------------------------------------
# Deterministic parameter init (synthetic — matches shapes in STAG.__init__)
# ---------------------------------------------------------------------------
def init_params(key):
    keys = iter(jax.random.split(key, 80))

    def lin_wb(fan_in, fan_out):
        k1, k2 = next(keys), next(keys)
        bound = 1.0 / math.sqrt(fan_in)
        w = jax.random.uniform(k1, (fan_in, fan_out), jnp.float32, -bound, bound)
        b = jax.random.uniform(k2, (1, fan_out), jnp.float32, -bound, bound)
        return w, b

    def norm(dim):
        return jnp.ones((1, dim), jnp.float32), jnp.zeros((1, dim), jnp.float32)

    p = {}
    p["node_lin1_w"], p["node_lin1_b"] = lin_wb(19, 32)
    p["node_norm_w"], p["node_norm_b"] = norm(32)
    p["node_lin2_w"], p["node_lin2_b"] = lin_wb(32, 32)
    # edge_mlp1_lin1: Linear(83, 16) stored as three row-blocks (src / tgt / edge_attr)
    e1_w, e1_b = lin_wb(32 * 2 + 19, 16)
    p["edge_lin1_ws"] = e1_w[:32]
    p["edge_lin1_wt"] = e1_w[32:64]
    p["edge_lin1_we"] = e1_w[64:]
    p["edge_lin1_b"] = e1_b
    p["edge_norm_w"], p["edge_norm_b"] = norm(16)
    p["edge_lin2_w"], p["edge_lin2_b"] = lin_wb(16, 16)
    for i in (1, 2, 3):
        cp = {}
        cp["nn_lin1_w"], cp["nn_lin1_b"] = lin_wb(16, 16)
        cp["nn_ln_w"], cp["nn_ln_b"] = norm(16)
        cp["nn_lin2_w"], cp["nn_lin2_b"] = lin_wb(16, 32 * 32)
        q_w, q_b = lin_wb(32, 32)
        k_w, k_b = lin_wb(32, 32)
        s_w, s_b = lin_wb(32, 32)
        cp["qks_w"] = jnp.concatenate([q_w, k_w, s_w], axis=1)   # fused q|k|skip [32, 96]
        cp["qks_b"] = jnp.concatenate([q_b, k_b, s_b], axis=1)   # [1, 96]
        p[f"conv{i}"] = cp
        p[f"conv{i}_norm_w"], p[f"conv{i}_norm_b"] = norm(32)
    p["glob_lin1_w"], p["glob_lin1_b"] = lin_wb(32, 32)
    p["glob_norm_w"], p["glob_norm_b"] = norm(32)
    p["glob_lin2_w"], p["glob_lin2_b"] = lin_wb(32, 1)
    return p


if __name__ == "__main__":
    key = jax.random.PRNGKey(0)
    pkey, xkey, ekey, k1, k2 = jax.random.split(key, 5)

    N, E, B = 8, 16, 2   # 8 nodes, 16 edges, 2 graphs (4 nodes each)
    params = init_params(pkey)
    x = jax.random.normal(xkey, (N, 19), jnp.float32)
    edge_attr = jax.random.normal(ekey, (E, 19), jnp.float32)

    # edges stay within their graph: graph 0 owns nodes 0..3, graph 1 owns 4..7
    graph_of_edge = (jnp.arange(E) % B).astype(jnp.int32)
    src = jax.random.randint(k1, (E,), 0, N // B, jnp.int32) + graph_of_edge * (N // B)
    tgt = jax.random.randint(k2, (E,), 0, N // B, jnp.int32) + graph_of_edge * (N // B)
    edge_index = jnp.stack([src, tgt]).astype(jnp.int32)
    batch = jnp.repeat(jnp.arange(B, dtype=jnp.int32), N // B)

    fwd = jax.jit(stag_forward, static_argnames=("num_graphs",))
    out = fwd(params, x, edge_index, edge_attr, batch, num_graphs=B)
    jax.block_until_ready(out)
    assert out.shape == (B,)
    print("KERNEL_OK")
</pallas_src>

<mosaic_0001>
module attributes {stable_mosaic.version = 11 : i64} {
  func.func @_stag_kernel(%arg0: memref<8x19xf32, #tpu.memory_space<vmem>>, %arg1: memref<16x19xf32, #tpu.memory_space<vmem>>, %arg2: memref<16x1xi32, #tpu.memory_space<vmem>>, %arg3: memref<16x1xi32, #tpu.memory_space<vmem>>, %arg4: memref<8x1xi32, #tpu.memory_space<vmem>>, %arg5: memref<19x32xf32, #tpu.memory_space<vmem>>, %arg6: memref<1x32xf32, #tpu.memory_space<vmem>>, %arg7: memref<1x32xf32, #tpu.memory_space<vmem>>, %arg8: memref<1x32xf32, #tpu.memory_space<vmem>>, %arg9: memref<32x32xf32, #tpu.memory_space<vmem>>, %arg10: memref<1x32xf32, #tpu.memory_space<vmem>>, %arg11: memref<32x16xf32, #tpu.memory_space<vmem>>, %arg12: memref<32x16xf32, #tpu.memory_space<vmem>>, %arg13: memref<19x16xf32, #tpu.memory_space<vmem>>, %arg14: memref<1x16xf32, #tpu.memory_space<vmem>>, %arg15: memref<1x16xf32, #tpu.memory_space<vmem>>, %arg16: memref<1x16xf32, #tpu.memory_space<vmem>>, %arg17: memref<16x16xf32, #tpu.memory_space<vmem>>, %arg18: memref<1x16xf32, #tpu.memory_space<vmem>>, %arg19: memref<16x16xf32, #tpu.memory_space<vmem>>, %arg20: memref<1x16xf32, #tpu.memory_space<vmem>>, %arg21: memref<1x16xf32, #tpu.memory_space<vmem>>, %arg22: memref<1x16xf32, #tpu.memory_space<vmem>>, %arg23: memref<16x1024xf32, #tpu.memory_space<vmem>>, %arg24: memref<1x1024xf32, #tpu.memory_space<vmem>>, %arg25: memref<32x96xf32, #tpu.memory_space<vmem>>, %arg26: memref<1x96xf32, #tpu.memory_space<vmem>>, %arg27: memref<1x32xf32, #tpu.memory_space<vmem>>, %arg28: memref<1x32xf32, #tpu.memory_space<vmem>>, %arg29: memref<16x16xf32, #tpu.memory_space<vmem>>, %arg30: memref<1x16xf32, #tpu.memory_space<vmem>>, %arg31: memref<1x16xf32, #tpu.memory_space<vmem>>, %arg32: memref<1x16xf32, #tpu.memory_space<vmem>>, %arg33: memref<16x1024xf32, #tpu.memory_space<vmem>>, %arg34: memref<1x1024xf32, #tpu.memory_space<vmem>>, %arg35: memref<32x96xf32, #tpu.memory_space<vmem>>, %arg36: memref<1x96xf32, #tpu.memory_space<vmem>>, %arg37: memref<1x32xf32, #tpu.memory_space<vmem>>, %arg38: memref<1x32xf32, #tpu.memory_space<vmem>>, %arg39: memref<16x16xf32, #tpu.memory_space<vmem>>, %arg40: memref<1x16xf32, #tpu.memory_space<vmem>>, %arg41: memref<1x16xf32, #tpu.memory_space<vmem>>, %arg42: memref<1x16xf32, #tpu.memory_space<vmem>>, %arg43: memref<16x1024xf32, #tpu.memory_space<vmem>>, %arg44: memref<1x1024xf32, #tpu.memory_space<vmem>>, %arg45: memref<32x96xf32, #tpu.memory_space<vmem>>, %arg46: memref<1x96xf32, #tpu.memory_space<vmem>>, %arg47: memref<1x32xf32, #tpu.memory_space<vmem>>, %arg48: memref<1x32xf32, #tpu.memory_space<vmem>>, %arg49: memref<32x32xf32, #tpu.memory_space<vmem>>, %arg50: memref<1x32xf32, #tpu.memory_space<vmem>>, %arg51: memref<1x32xf32, #tpu.memory_space<vmem>>, %arg52: memref<1x32xf32, #tpu.memory_space<vmem>>, %arg53: memref<32x1xf32, #tpu.memory_space<vmem>>, %arg54: memref<1x1xf32, #tpu.memory_space<vmem>>, %arg55: memref<2x1xf32, #tpu.memory_space<vmem>>) attributes {dimension_semantics = [], scalar_prefetch = 0 : i64, scratch_operands = 0 : i64, tpu.core_type = #tpu.core_type<tc>} {
    %c0 = arith.constant 0 : index
    %c0_0 = arith.constant 0 : index
    %0 = vector.load %arg0[%c0, %c0_0] : memref<8x19xf32, #tpu.memory_space<vmem>>, vector<8x19xf32>
    %c0_1 = arith.constant 0 : index
    %c0_2 = arith.constant 0 : index
    %1 = vector.load %arg1[%c0_1, %c0_2] : memref<16x19xf32, #tpu.memory_space<vmem>>, vector<16x19xf32>
    %c0_3 = arith.constant 0 : index
    %c0_4 = arith.constant 0 : index
    %2 = vector.load %arg2[%c0_3, %c0_4] : memref<16x1xi32, #tpu.memory_space<vmem>>, vector<16x1xi32>
    %c0_5 = arith.constant 0 : index
    %c0_6 = arith.constant 0 : index
    %3 = vector.load %arg3[%c0_5, %c0_6] : memref<16x1xi32, #tpu.memory_space<vmem>>, vector<16x1xi32>
    %c0_7 = arith.constant 0 : index
    %c0_8 = arith.constant 0 : index
    %4 = vector.load %arg4[%c0_7, %c0_8] : memref<8x1xi32, #tpu.memory_space<vmem>>, vector<8x1xi32>
    %5 = tpu.iota {dimensions = array<i32: 1>} : vector<16x8xi32>
    %6 = vector.broadcast %2 : vector<16x1xi32> to vector<16x8xi32>
    %7 = arith.cmpi eq, %6, %5 : vector<16x8xi32>
    %8 = arith.extui %7 : vector<16x8xi1> to vector<16x8xi32>
    %9 = arith.sitofp %8 : vector<16x8xi32> to vector<16x8xf32>
    %10 = vector.broadcast %3 : vector<16x1xi32> to vector<16x8xi32>
    %11 = arith.cmpi eq, %10, %5 : vector<16x8xi32>
    %12 = arith.extui %11 : vector<16x8xi1> to vector<16x8xi32>
    %13 = arith.sitofp %12 : vector<16x8xi32> to vector<16x8xf32>
    %14 = tpu.iota {dimensions = array<i32: 1>} : vector<8x2xi32>
    %15 = vector.broadcast %4 : vector<8x1xi32> to vector<8x2xi32>
    %16 = arith.cmpi eq, %15, %14 : vector<8x2xi32>
    %17 = arith.extui %16 : vector<8x2xi1> to vector<8x2xi32>
    %18 = arith.sitofp %17 : vector<8x2xi32> to vector<8x2xf32>
    %cst = arith.constant dense<0.000000e+00> : vector<2xf32>
    %19 = vector.multi_reduction <add>, %18, %cst [0] : vector<8x2xf32> to vector<2xf32>
    %20 = vector.shape_cast %19 : vector<2xf32> to vector<1x2xf32>
    %cst_9 = arith.constant 1.000000e+00 : f32
    %21 = vector.broadcast %cst_9 : f32 to vector<1x2xf32>
    %22 = arith.maximumf %20, %21 : vector<1x2xf32>
    %c0_10 = arith.constant 0 : index
    %c0_11 = arith.constant 0 : index
    %23 = vector.load %arg5[%c0_10, %c0_11] : memref<19x32xf32, #tpu.memory_space<vmem>>, vector<19x32xf32>
    %c0_12 = arith.constant 0 : index
    %c0_13 = arith.constant 0 : index
    %24 = vector.load %arg6[%c0_12, %c0_13] : memref<1x32xf32, #tpu.memory_space<vmem>>, vector<1x32xf32>
    %cst_14 = arith.constant dense<0.000000e+00> : vector<8x32xf32>
    %25 = tpu.matmul %0, %23, %cst_14 {dimension_numbers = #tpu.dot_dimension_numbers<[1], [0], [0], [1], [0, 0, 1, 1], [], []>} : vector<8x19xf32>, vector<19x32xf32>, vector<8x32xf32> -> vector<8x32xf32>
    %26 = vector.broadcast %24 : vector<1x32xf32> to vector<8x32xf32>
    %27 = arith.addf %25, %26 : vector<8x32xf32>
    %c0_15 = arith.constant 0 : index
    %c0_16 = arith.constant 0 : index
    %28 = vector.load %arg7[%c0_15, %c0_16] : memref<1x32xf32, #tpu.memory_space<vmem>>, vector<1x32xf32>
    %c0_17 = arith.constant 0 : index
    %c0_18 = arith.constant 0 : index
    %29 = vector.load %arg8[%c0_17, %c0_18] : memref<1x32xf32, #tpu.memory_space<vmem>>, vector<1x32xf32>
    %cst_19 = arith.constant 3.200000e+01 : f32
    %30 = vector.broadcast %cst_19 : f32 to vector<1x2xf32>
    %31 = arith.mulf %22, %30 : vector<1x2xf32>
    %cst_20 = arith.constant dense<0.000000e+00> : vector<8xf32>
    %32 = vector.multi_reduction <add>, %27, %cst_20 [1] : vector<8x32xf32> to vector<8xf32>
    %33 = vector.shape_cast %32 : vector<8xf32> to vector<8x1xf32>
    %34 = vector.broadcast %33 : vector<8x1xf32> to vector<8x2xf32>
    %35 = arith.mulf %18, %34 : vector<8x2xf32>
    %cst_21 = arith.constant dense<0.000000e+00> : vector<2xf32>
    %36 = vector.multi_reduction <add>, %35, %cst_21 [0] : vector<8x2xf32> to vector<2xf32>
    %37 = vector.shape_cast %36 : vector<2xf32> to vector<1x2xf32>
    %38 = arith.divf %37, %31 : vector<1x2xf32>
    %39 = vector.broadcast %38 : vector<1x2xf32> to vector<8x2xf32>
    %40 = arith.mulf %18, %39 : vector<8x2xf32>
    %cst_22 = arith.constant dense<0.000000e+00> : vector<8xf32>
    %41 = vector.multi_reduction <add>, %40, %cst_22 [1] : vector<8x2xf32> to vector<8xf32>
    %42 = vector.shape_cast %41 : vector<8xf32> to vector<8x1xf32>
    %43 = vector.broadcast %42 : vector<8x1xf32> to vector<8x32xf32>
    %44 = arith.subf %27, %43 : vector<8x32xf32>
    %45 = arith.mulf %44, %44 : vector<8x32xf32>
    %cst_23 = arith.constant dense<0.000000e+00> : vector<8xf32>
    %46 = vector.multi_reduction <add>, %45, %cst_23 [1] : vector<8x32xf32> to vector<8xf32>
    %47 = vector.shape_cast %46 : vector<8xf32> to vector<8x1xf32>
    %48 = vector.broadcast %47 : vector<8x1xf32> to vector<8x2xf32>
    %49 = arith.mulf %18, %48 : vector<8x2xf32>
    %cst_24 = arith.constant dense<0.000000e+00> : vector<2xf32>
    %50 = vector.multi_reduction <add>, %49, %cst_24 [0] : vector<8x2xf32> to vector<2xf32>
    %51 = vector.shape_cast %50 : vector<2xf32> to vector<1x2xf32>
    %52 = arith.divf %51, %31 : vector<1x2xf32>
    %53 = vector.broadcast %52 : vector<1x2xf32> to vector<8x2xf32>
    %54 = arith.mulf %18, %53 : vector<8x2xf32>
    %cst_25 = arith.constant dense<0.000000e+00> : vector<8xf32>
    %55 = vector.multi_reduction <add>, %54, %cst_25 [1] : vector<8x2xf32> to vector<8xf32>
    %56 = vector.shape_cast %55 : vector<8xf32> to vector<8x1xf32>
    %cst_26 = arith.constant 9.99999974E-6 : f32
    %57 = vector.broadcast %cst_26 : f32 to vector<8x1xf32>
    %58 = arith.addf %56, %57 : vector<8x1xf32>
    %59 = math.rsqrt %58 : vector<8x1xf32>
    %60 = vector.broadcast %59 : vector<8x1xf32> to vector<8x32xf32>
    %61 = arith.mulf %44, %60 : vector<8x32xf32>
    %62 = vector.broadcast %28 : vector<1x32xf32> to vector<8x32xf32>
    %63 = arith.mulf %61, %62 : vector<8x32xf32>
    %64 = vector.broadcast %29 : vector<1x32xf32> to vector<8x32xf32>
    %65 = arith.addf %63, %64 : vector<8x32xf32>
    %cst_27 = arith.constant 0.000000e+00 : f32
    %66 = vector.broadcast %cst_27 : f32 to vector<8x32xf32>
    %67 = arith.cmpf ogt, %65, %66 : vector<8x32xf32>
    %cst_28 = arith.constant 0.00999999977 : f32
    %68 = vector.broadcast %cst_28 : f32 to vector<8x32xf32>
    %69 = arith.mulf %68, %65 : vector<8x32xf32>
    %70 = arith.select %67, %65, %69 : vector<8x32xi1>, vector<8x32xf32>
    %c0_29 = arith.constant 0 : index
    %c0_30 = arith.constant 0 : index
    %71 = vector.load %arg9[%c0_29, %c0_30] : memref<32x32xf32, #tpu.memory_space<vmem>>, vector<32x32xf32>
    %c0_31 = arith.constant 0 : index
    %c0_32 = arith.constant 0 : index
    %72 = vector.load %arg10[%c0_31, %c0_32] : memref<1x32xf32, #tpu.memory_space<vmem>>, vector<1x32xf32>
    %cst_33 = arith.constant dense<0.000000e+00> : vector<8x32xf32>
    %73 = tpu.matmul %70, %71, %cst_33 {dimension_numbers = #tpu.dot_dimension_numbers<[1], [0], [0], [1], [0, 0, 1, 1], [], []>} : vector<8x32xf32>, vector<32x32xf32>, vector<8x32xf32> -> vector<8x32xf32>
    %74 = vector.broadcast %72 : vector<1x32xf32> to vector<8x32xf32>
    %75 = arith.addf %73, %74 : vector<8x32xf32>
    %cst_34 = arith.constant dense<0.000000e+00> : vector<16x32xf32>
    %76 = tpu.matmul %9, %75, %cst_34 {dimension_numbers = #tpu.dot_dimension_numbers<[1], [0], [0], [1], [0, 0, 1, 1], [], []>} : vector<16x8xf32>, vector<8x32xf32>, vector<16x32xf32> -> vector<16x32xf32>
    %cst_35 = arith.constant dense<0.000000e+00> : vector<16x32xf32>
    %77 = tpu.matmul %13, %75, %cst_35 {dimension_numbers = #tpu.dot_dimension_numbers<[1], [0], [0], [1], [0, 0, 1, 1], [], []>} : vector<16x8xf32>, vector<8x32xf32>, vector<16x32xf32> -> vector<16x32xf32>
    %c0_36 = arith.constant 0 : index
    %c0_37 = arith.constant 0 : index
    %78 = vector.load %arg11[%c0_36, %c0_37] : memref<32x16xf32, #tpu.memory_space<vmem>>, vector<32x16xf32>
    %c0_38 = arith.constant 0 : index
    %c0_39 = arith.constant 0 : index
    %79 = vector.load %arg12[%c0_38, %c0_39] : memref<32x16xf32, #tpu.memory_space<vmem>>, vector<32x16xf32>
    %c0_40 = arith.constant 0 : index
    %c0_41 = arith.constant 0 : index
    %80 = vector.load %arg13[%c0_40, %c0_41] : memref<19x16xf32, #tpu.memory_space<vmem>>, vector<19x16xf32>
    %c0_42 = arith.constant 0 : index
    %c0_43 = arith.constant 0 : index
    %81 = vector.load %arg14[%c0_42, %c0_43] : memref<1x16xf32, #tpu.memory_space<vmem>>, vector<1x16xf32>
    %cst_44 = arith.constant dense<0.000000e+00> : vector<16x16xf32>
    %82 = tpu.matmul %76, %78, %cst_44 {dimension_numbers = #tpu.dot_dimension_numbers<[1], [0], [0], [1], [0, 0, 1, 1], [], []>} : vector<16x32xf32>, vector<32x16xf32>, vector<16x16xf32> -> vector<16x16xf32>
    %cst_45 = arith.constant dense<0.000000e+00> : vector<16x16xf32>
    %83 = tpu.matmul %77, %79, %cst_45 {dimension_numbers = #tpu.dot_dimension_numbers<[1], [0], [0], [1], [0, 0, 1, 1], [], []>} : vector<16x32xf32>, vector<32x16xf32>, vector<16x16xf32> -> vector<16x16xf32>
    %84 = arith.addf %82, %83 : vector<16x16xf32>
    %cst_46 = arith.constant dense<0.000000e+00> : vector<16x16xf32>
    %85 = tpu.matmul %1, %80, %cst_46 {dimension_numbers = #tpu.dot_dimension_numbers<[1], [0], [0], [1], [0, 0, 1, 1], [], []>} : vector<16x19xf32>, vector<19x16xf32>, vector<16x16xf32> -> vector<16x16xf32>
    %86 = arith.addf %84, %85 : vector<16x16xf32>
    %87 = vector.broadcast %81 : vector<1x16xf32> to vector<16x16xf32>
    %88 = arith.addf %86, %87 : vector<16x16xf32>
    %c0_47 = arith.constant 0 : index
    %c0_48 = arith.constant 0 : index
    %89 = vector.load %arg15[%c0_47, %c0_48] : memref<1x16xf32, #tpu.memory_space<vmem>>, vector<1x16xf32>
    %c0_49 = arith.constant 0 : index
    %c0_50 = arith.constant 0 : index
    %90 = vector.load %arg16[%c0_49, %c0_50] : memref<1x16xf32, #tpu.memory_space<vmem>>, vector<1x16xf32>
    %cst_51 = arith.constant dense<0.000000e+00> : vector<16xf32>
    %91 = vector.multi_reduction <add>, %88, %cst_51 [1] : vector<16x16xf32> to vector<16xf32>
    %92 = vector.shape_cast %91 : vector<16xf32> to vector<16x1xf32>
    %cst_52 = arith.constant 1.600000e+01 : f32
    %93 = vector.broadcast %cst_52 : f32 to vector<16x1xf32>
    %94 = arith.divf %92, %93 : vector<16x1xf32>
    %95 = vector.broadcast %94 : vector<16x1xf32> to vector<16x16xf32>
    %96 = arith.subf %88, %95 : vector<16x16xf32>
    %97 = arith.mulf %96, %96 : vector<16x16xf32>
    %cst_53 = arith.constant dense<0.000000e+00> : vector<16xf32>
    %98 = vector.multi_reduction <add>, %97, %cst_53 [1] : vector<16x16xf32> to vector<16xf32>
    %99 = vector.shape_cast %98 : vector<16xf32> to vector<16x1xf32>
    %cst_54 = arith.constant 1.600000e+01 : f32
    %100 = vector.broadcast %cst_54 : f32 to vector<16x1xf32>
    %101 = arith.divf %99, %100 : vector<16x1xf32>
    %cst_55 = arith.constant 9.99999974E-6 : f32
    %102 = vector.broadcast %cst_55 : f32 to vector<16x1xf32>
    %103 = arith.addf %101, %102 : vector<16x1xf32>
    %104 = math.rsqrt %103 : vector<16x1xf32>
    %105 = vector.broadcast %104 : vector<16x1xf32> to vector<16x16xf32>
    %106 = arith.mulf %96, %105 : vector<16x16xf32>
    %107 = vector.broadcast %89 : vector<1x16xf32> to vector<16x16xf32>
    %108 = arith.mulf %106, %107 : vector<16x16xf32>
    %109 = vector.broadcast %90 : vector<1x16xf32> to vector<16x16xf32>
    %110 = arith.addf %108, %109 : vector<16x16xf32>
    %cst_56 = arith.constant 0.000000e+00 : f32
    %111 = vector.broadcast %cst_56 : f32 to vector<16x16xf32>
    %112 = arith.cmpf ogt, %110, %111 : vector<16x16xf32>
    %cst_57 = arith.constant 0.00999999977 : f32
    %113 = vector.broadcast %cst_57 : f32 to vector<16x16xf32>
    %114 = arith.mulf %113, %110 : vector<16x16xf32>
    %115 = arith.select %112, %110, %114 : vector<16x16xi1>, vector<16x16xf32>
    %c0_58 = arith.constant 0 : index
    %c0_59 = arith.constant 0 : index
    %116 = vector.load %arg17[%c0_58, %c0_59] : memref<16x16xf32, #tpu.memory_space<vmem>>, vector<16x16xf32>
    %c0_60 = arith.constant 0 : index
    %c0_61 = arith.constant 0 : index
    %117 = vector.load %arg18[%c0_60, %c0_61] : memref<1x16xf32, #tpu.memory_space<vmem>>, vector<1x16xf32>
    %cst_62 = arith.constant dense<0.000000e+00> : vector<16x16xf32>
    %118 = tpu.matmul %115, %116, %cst_62 {dimension_numbers = #tpu.dot_dimension_numbers<[1], [0], [0], [1], [0, 0, 1, 1], [], []>} : vector<16x16xf32>, vector<16x16xf32>, vector<16x16xf32> -> vector<16x16xf32>
    %119 = vector.broadcast %117 : vector<1x16xf32> to vector<16x16xf32>
    %120 = arith.addf %118, %119 : vector<16x16xf32>
    %c0_63 = arith.constant 0 : index
    %c0_64 = arith.constant 0 : index
    %121 = vector.load %arg19[%c0_63, %c0_64] : memref<16x16xf32, #tpu.memory_space<vmem>>, vector<16x16xf32>
    %c0_65 = arith.constant 0 : index
    %c0_66 = arith.constant 0 : index
    %122 = vector.load %arg20[%c0_65, %c0_66] : memref<1x16xf32, #tpu.memory_space<vmem>>, vector<1x16xf32>
    %cst_67 = arith.constant dense<0.000000e+00> : vector<16x16xf32>
    %123 = tpu.matmul %120, %121, %cst_67 {dimension_numbers = #tpu.dot_dimension_numbers<[1], [0], [0], [1], [0, 0, 1, 1], [], []>} : vector<16x16xf32>, vector<16x16xf32>, vector<16x16xf32> -> vector<16x16xf32>
    %124 = vector.broadcast %122 : vector<1x16xf32> to vector<16x16xf32>
    %125 = arith.addf %123, %124 : vector<16x16xf32>
    %c0_68 = arith.constant 0 : index
    %c0_69 = arith.constant 0 : index
    %126 = vector.load %arg21[%c0_68, %c0_69] : memref<1x16xf32, #tpu.memory_space<vmem>>, vector<1x16xf32>
    %c0_70 = arith.constant 0 : index
    %c0_71 = arith.constant 0 : index
    %127 = vector.load %arg22[%c0_70, %c0_71] : memref<1x16xf32, #tpu.memory_space<vmem>>, vector<1x16xf32>
    %cst_72 = arith.constant dense<0.000000e+00> : vector<16xf32>
    %128 = vector.multi_reduction <add>, %125, %cst_72 [1] : vector<16x16xf32> to vector<16xf32>
    %129 = vector.shape_cast %128 : vector<16xf32> to vector<16x1xf32>
    %cst_73 = arith.constant 1.600000e+01 : f32
    %130 = vector.broadcast %cst_73 : f32 to vector<16x1xf32>
    %131 = arith.divf %129, %130 : vector<16x1xf32>
    %132 = vector.broadcast %131 : vector<16x1xf32> to vector<16x16xf32>
    %133 = arith.subf %125, %132 : vector<16x16xf32>
    %134 = arith.mulf %133, %133 : vector<16x16xf32>
    %cst_74 = arith.constant dense<0.000000e+00> : vector<16xf32>
    %135 = vector.multi_reduction <add>, %134, %cst_74 [1] : vector<16x16xf32> to vector<16xf32>
    %136 = vector.shape_cast %135 : vector<16xf32> to vector<16x1xf32>
    %cst_75 = arith.constant 1.600000e+01 : f32
    %137 = vector.broadcast %cst_75 : f32 to vector<16x1xf32>
    %138 = arith.divf %136, %137 : vector<16x1xf32>
    %cst_76 = arith.constant 9.99999974E-6 : f32
    %139 = vector.broadcast %cst_76 : f32 to vector<16x1xf32>
    %140 = arith.addf %138, %139 : vector<16x1xf32>
    %141 = math.rsqrt %140 : vector<16x1xf32>
    %142 = vector.broadcast %141 : vector<16x1xf32> to vector<16x16xf32>
    %143 = arith.mulf %133, %142 : vector<16x16xf32>
    %144 = vector.broadcast %126 : vector<1x16xf32> to vector<16x16xf32>
    %145 = arith.mulf %143, %144 : vector<16x16xf32>
    %146 = vector.broadcast %127 : vector<1x16xf32> to vector<16x16xf32>
    %147 = arith.addf %145, %146 : vector<16x16xf32>
    %cst_77 = arith.constant 0.000000e+00 : f32
    %148 = vector.broadcast %cst_77 : f32 to vector<16x16xf32>
    %149 = arith.cmpf ogt, %147, %148 : vector<16x16xf32>
    %cst_78 = arith.constant 0.00999999977 : f32
    %150 = vector.broadcast %cst_78 : f32 to vector<16x16xf32>
    %151 = arith.mulf %150, %147 : vector<16x16xf32>
    %152 = arith.select %149, %147, %151 : vector<16x16xi1>, vector<16x16xf32>
    %c0_79 = arith.constant 0 : index
    %c0_80 = arith.constant 0 : index
    %153 = vector.load %arg23[%c0_79, %c0_80] : memref<16x1024xf32, #tpu.memory_space<vmem>>, vector<16x1024xf32>
    %c0_81 = arith.constant 0 : index
    %c0_82 = arith.constant 0 : index
    %154 = vector.load %arg24[%c0_81, %c0_82] : memref<1x1024xf32, #tpu.memory_space<vmem>>, vector<1x1024xf32>
    %cst_83 = arith.constant dense<0.000000e+00> : vector<16x1024xf32>
    %155 = tpu.matmul %152, %153, %cst_83 {dimension_numbers = #tpu.dot_dimension_numbers<[1], [0], [0], [1], [0, 0, 1, 1], [], []>} : vector<16x16xf32>, vector<16x1024xf32>, vector<16x1024xf32> -> vector<16x1024xf32>
    %156 = vector.broadcast %154 : vector<1x1024xf32> to vector<16x1024xf32>
    %157 = arith.addf %155, %156 : vector<16x1024xf32>
    %c0_84 = arith.constant 0 : index
    %c0_85 = arith.constant 0 : index
    %158 = vector.load %arg25[%c0_84, %c0_85] : memref<32x96xf32, #tpu.memory_space<vmem>>, vector<32x96xf32>
    %c0_86 = arith.constant 0 : index
    %c0_87 = arith.constant 0 : index
    %159 = vector.load %arg26[%c0_86, %c0_87] : memref<1x96xf32, #tpu.memory_space<vmem>>, vector<1x96xf32>
    %cst_88 = arith.constant dense<0.000000e+00> : vector<8x96xf32>
    %160 = tpu.matmul %75, %158, %cst_88 {dimension_numbers = #tpu.dot_dimension_numbers<[1], [0], [0], [1], [0, 0, 1, 1], [], []>} : vector<8x32xf32>, vector<32x96xf32>, vector<8x96xf32> -> vector<8x96xf32>
    %161 = vector.broadcast %159 : vector<1x96xf32> to vector<8x96xf32>
    %162 = arith.addf %160, %161 : vector<8x96xf32>
    %163 = vector.extract_strided_slice %162 {offsets = [0, 0], sizes = [8, 32], strides = [1, 1]} : vector<8x96xf32> to vector<8x32xf32>
    %164 = vector.extract_strided_slice %162 {offsets = [0, 32], sizes = [8, 32], strides = [1, 1]} : vector<8x96xf32> to vector<8x32xf32>
    %165 = vector.extract_strided_slice %162 {offsets = [0, 64], sizes = [8, 32], strides = [1, 1]} : vector<8x96xf32> to vector<8x32xf32>
    %cst_89 = arith.constant dense<0.000000e+00> : vector<16x32xf32>
    %166 = tpu.matmul %13, %163, %cst_89 {dimension_numbers = #tpu.dot_dimension_numbers<[1], [0], [0], [1], [0, 0, 1, 1], [], []>} : vector<16x8xf32>, vector<8x32xf32>, vector<16x32xf32> -> vector<16x32xf32>
    %cst_90 = arith.constant dense<0.000000e+00> : vector<16x32xf32>
    %167 = tpu.matmul %9, %164, %cst_90 {dimension_numbers = #tpu.dot_dimension_numbers<[1], [0], [0], [1], [0, 0, 1, 1], [], []>} : vector<16x8xf32>, vector<8x32xf32>, vector<16x32xf32> -> vector<16x32xf32>
    %cst_91 = arith.constant dense<0.000000e+00> : vector<16x32xf32>
    %168 = tpu.matmul %9, %75, %cst_91 {dimension_numbers = #tpu.dot_dimension_numbers<[1], [0], [0], [1], [0, 0, 1, 1], [], []>} : vector<16x8xf32>, vector<8x32xf32>, vector<16x32xf32> -> vector<16x32xf32>
    %169 = arith.mulf %166, %167 : vector<16x32xf32>
    %cst_92 = arith.constant dense<0.000000e+00> : vector<16xf32>
    %170 = vector.multi_reduction <add>, %169, %cst_92 [1] : vector<16x32xf32> to vector<16xf32>
    %171 = vector.shape_cast %170 : vector<16xf32> to vector<16x1xf32>
    %cst_93 = arith.constant 0.176776692 : f32
    %172 = vector.broadcast %cst_93 : f32 to vector<16x1xf32>
    %173 = arith.mulf %171, %172 : vector<16x1xf32>
    %cst_94 = arith.constant 0.000000e+00 : f32
    %174 = vector.broadcast %cst_94 : f32 to vector<16x8xf32>
    %175 = arith.cmpf ogt, %13, %174 : vector<16x8xf32>
    %cst_95 = arith.constant -1.000000e+30 : f32
    %176 = vector.shape_cast %173 : vector<16x1xf32> to vector<16x1xf32>
    %177 = vector.broadcast %176 : vector<16x1xf32> to vector<16x8xf32>
    %178 = vector.broadcast %cst_95 : f32 to vector<16x8xf32>
    %179 = arith.select %175, %177, %178 : vector<16x8xi1>, vector<16x8xf32>
    %cst_96 = arith.constant dense<0xFF800000> : vector<8xf32>
    %180 = vector.multi_reduction <maximumf>, %179, %cst_96 [0] : vector<16x8xf32> to vector<8xf32>
    %181 = vector.shape_cast %180 : vector<8xf32> to vector<1x8xf32>
    %182 = vector.broadcast %181 : vector<1x8xf32> to vector<16x8xf32>
    %183 = arith.mulf %13, %182 : vector<16x8xf32>
    %cst_97 = arith.constant dense<0.000000e+00> : vector<16xf32>
    %184 = vector.multi_reduction <add>, %183, %cst_97 [1] : vector<16x8xf32> to vector<16xf32>
    %185 = vector.shape_cast %184 : vector<16xf32> to vector<16x1xf32>
    %186 = arith.subf %173, %185 : vector<16x1xf32>
    %187 = math.exp %186 : vector<16x1xf32>
    %188 = vector.broadcast %187 : vector<16x1xf32> to vector<16x8xf32>
    %189 = arith.mulf %13, %188 : vector<16x8xf32>
    %cst_98 = arith.constant dense<0.000000e+00> : vector<8xf32>
    %190 = vector.multi_reduction <add>, %189, %cst_98 [0] : vector<16x8xf32> to vector<8xf32>
    %191 = vector.shape_cast %190 : vector<8xf32> to vector<1x8xf32>
    %192 = vector.broadcast %191 : vector<1x8xf32> to vector<16x8xf32>
    %193 = arith.mulf %13, %192 : vector<16x8xf32>
    %cst_99 = arith.constant dense<0.000000e+00> : vector<16xf32>
    %194 = vector.multi_reduction <add>, %193, %cst_99 [1] : vector<16x8xf32> to vector<16xf32>
    %195 = vector.shape_cast %194 : vector<16xf32> to vector<16x1xf32>
    %196 = arith.divf %187, %195 : vector<16x1xf32>
    %cst_100 = arith.constant 0.000000e+00 : f32
    %197 = vector.broadcast %cst_100 : f32 to vector<16x32xf32>
    %198 = vector.extract_strided_slice %168 {offsets = [0, 0], sizes = [16, 1], strides = [1, 1]} : vector<16x32xf32> to vector<16x1xf32>
    %199 = vector.extract_strided_slice %157 {offsets = [0, 0], sizes = [16, 32], strides = [1, 1]} : vector<16x1024xf32> to vector<16x32xf32>
    %200 = vector.broadcast %198 : vector<16x1xf32> to vector<16x32xf32>
    %201 = arith.mulf %200, %199 : vector<16x32xf32>
    %202 = arith.addf %197, %201 : vector<16x32xf32>
    %203 = vector.extract_strided_slice %168 {offsets = [0, 1], sizes = [16, 1], strides = [1, 1]} : vector<16x32xf32> to vector<16x1xf32>
    %204 = vector.extract_strided_slice %157 {offsets = [0, 32], sizes = [16, 32], strides = [1, 1]} : vector<16x1024xf32> to vector<16x32xf32>
    %205 = vector.broadcast %203 : vector<16x1xf32> to vector<16x32xf32>
    %206 = arith.mulf %205, %204 : vector<16x32xf32>
    %207 = arith.addf %202, %206 : vector<16x32xf32>
    %208 = vector.extract_strided_slice %168 {offsets = [0, 2], sizes = [16, 1], strides = [1, 1]} : vector<16x32xf32> to vector<16x1xf32>
    %209 = vector.extract_strided_slice %157 {offsets = [0, 64], sizes = [16, 32], strides = [1, 1]} : vector<16x1024xf32> to vector<16x32xf32>
    %210 = vector.broadcast %208 : vector<16x1xf32> to vector<16x32xf32>
    %211 = arith.mulf %210, %209 : vector<16x32xf32>
    %212 = arith.addf %207, %211 : vector<16x32xf32>
    %213 = vector.extract_strided_slice %168 {offsets = [0, 3], sizes = [16, 1], strides = [1, 1]} : vector<16x32xf32> to vector<16x1xf32>
    %214 = vector.extract_strided_slice %157 {offsets = [0, 96], sizes = [16, 32], strides = [1, 1]} : vector<16x1024xf32> to vector<16x32xf32>
    %215 = vector.broadcast %213 : vector<16x1xf32> to vector<16x32xf32>
    %216 = arith.mulf %215, %214 : vector<16x32xf32>
    %217 = arith.addf %212, %216 : vector<16x32xf32>
    %218 = vector.extract_strided_slice %168 {offsets = [0, 4], sizes = [16, 1], strides = [1, 1]} : vector<16x32xf32> to vector<16x1xf32>
    %219 = vector.extract_strided_slice %157 {offsets = [0, 128], sizes = [16, 32], strides = [1, 1]} : vector<16x1024xf32> to vector<16x32xf32>
    %220 = vector.broadcast %218 : vector<16x1xf32> to vector<16x32xf32>
    %221 = arith.mulf %220, %219 : vector<16x32xf32>
    %222 = arith.addf %217, %221 : vector<16x32xf32>
    %223 = vector.extract_strided_slice %168 {offsets = [0, 5], sizes = [16, 1], strides = [1, 1]} : vector<16x32xf32> to vector<16x1xf32>
    %224 = vector.extract_strided_slice %157 {offsets = [0, 160], sizes = [16, 32], strides = [1, 1]} : vector<16x1024xf32> to vector<16x32xf32>
    %225 = vector.broadcast %223 : vector<16x1xf32> to vector<16x32xf32>
    %226 = arith.mulf %225, %224 : vector<16x32xf32>
    %227 = arith.addf %222, %226 : vector<16x32xf32>
    %228 = vector.extract_strided_slice %168 {offsets = [0, 6], sizes = [16, 1], strides = [1, 1]} : vector<16x32xf32> to vector<16x1xf32>
    %229 = vector.extract_strided_slice %157 {offsets = [0, 192], sizes = [16, 32], strides = [1, 1]} : vector<16x1024xf32> to vector<16x32xf32>
    %230 = vector.broadcast %228 : vector<16x1xf32> to vector<16x32xf32>
    %231 = arith.mulf %230, %229 : vector<16x32xf32>
    %232 = arith.addf %227, %231 : vector<16x32xf32>
    %233 = vector.extract_strided_slice %168 {offsets = [0, 7], sizes = [16, 1], strides = [1, 1]} : vector<16x32xf32> to vector<16x1xf32>
    %234 = vector.extract_strided_slice %157 {offsets = [0, 224], sizes = [16, 32], strides = [1, 1]} : vector<16x1024xf32> to vector<16x32xf32>
    %235 = vector.broadcast %233 : vector<16x1xf32> to vector<16x32xf32>
    %236 = arith.mulf %235, %234 : vector<16x32xf32>
    %237 = arith.addf %232, %236 : vector<16x32xf32>
    %238 = vector.extract_strided_slice %168 {offsets = [0, 8], sizes = [16, 1], strides = [1, 1]} : vector<16x32xf32> to vector<16x1xf32>
    %239 = vector.extract_strided_slice %157 {offsets = [0, 256], sizes = [16, 32], strides = [1, 1]} : vector<16x1024xf32> to vector<16x32xf32>
    %240 = vector.broadcast %238 : vector<16x1xf32> to vector<16x32xf32>
    %241 = arith.mulf %240, %239 : vector<16x32xf32>
    %242 = arith.addf %237, %241 : vector<16x32xf32>
    %243 = vector.extract_strided_slice %168 {offsets = [0, 9], sizes = [16, 1], strides = [1, 1]} : vector<16x32xf32> to vector<16x1xf32>
    %244 = vector.extract_strided_slice %157 {offsets = [0, 288], sizes = [16, 32], strides = [1, 1]} : vector<16x1024xf32> to vector<16x32xf32>
    %245 = vector.broadcast %243 : vector<16x1xf32> to vector<16x32xf32>
    %246 = arith.mulf %245, %244 : vector<16x32xf32>
    %247 = arith.addf %242, %246 : vector<16x32xf32>
    %248 = vector.extract_strided_slice %168 {offsets = [0, 10], sizes = [16, 1], strides = [1, 1]} : vector<16x32xf32> to vector<16x1xf32>
    %249 = vector.extract_strided_slice %157 {offsets = [0, 320], sizes = [16, 32], strides = [1, 1]} : vector<16x1024xf32> to vector<16x32xf32>
    %250 = vector.broadcast %248 : vector<16x1xf32> to vector<16x32xf32>
    %251 = arith.mulf %250, %249 : vector<16x32xf32>
    %252 = arith.addf %247, %251 : vector<16x32xf32>
    %253 = vector.extract_strided_slice %168 {offsets = [0, 11], sizes = [16, 1], strides = [1, 1]} : vector<16x32xf32> to vector<16x1xf32>
    %254 = vector.extract_strided_slice %157 {offsets = [0, 352], sizes = [16, 32], strides = [1, 1]} : vector<16x1024xf32> to vector<16x32xf32>
    %255 = vector.broadcast %253 : vector<16x1xf32> to vector<16x32xf32>
    %256 = arith.mulf %255, %254 : vector<16x32xf32>
    %257 = arith.addf %252, %256 : vector<16x32xf32>
    %258 = vector.extract_strided_slice %168 {offsets = [0, 12], sizes = [16, 1], strides = [1, 1]} : vector<16x32xf32> to vector<16x1xf32>
    %259 = vector.extract_strided_slice %157 {offsets = [0, 384], sizes = [16, 32], strides = [1, 1]} : vector<16x1024xf32> to vector<16x32xf32>
    %260 = vector.broadcast %258 : vector<16x1xf32> to vector<16x32xf32>
    %261 = arith.mulf %260, %259 : vector<16x32xf32>
    %262 = arith.addf %257, %261 : vector<16x32xf32>
    %263 = vector.extract_strided_slice %168 {offsets = [0, 13], sizes = [16, 1], strides = [1, 1]} : vector<16x32xf32> to vector<16x1xf32>
    %264 = vector.extract_strided_slice %157 {offsets = [0, 416], sizes = [16, 32], strides = [1, 1]} : vector<16x1024xf32> to vector<16x32xf32>
    %265 = vector.broadcast %263 : vector<16x1xf32> to vector<16x32xf32>
    %266 = arith.mulf %265, %264 : vector<16x32xf32>
    %267 = arith.addf %262, %266 : vector<16x32xf32>
    %268 = vector.extract_strided_slice %168 {offsets = [0, 14], sizes = [16, 1], strides = [1, 1]} : vector<16x32xf32> to vector<16x1xf32>
    %269 = vector.extract_strided_slice %157 {offsets = [0, 448], sizes = [16, 32], strides = [1, 1]} : vector<16x1024xf32> to vector<16x32xf32>
    %270 = vector.broadcast %268 : vector<16x1xf32> to vector<16x32xf32>
    %271 = arith.mulf %270, %269 : vector<16x32xf32>
    %272 = arith.addf %267, %271 : vector<16x32xf32>
    %273 = vector.extract_strided_slice %168 {offsets = [0, 15], sizes = [16, 1], strides = [1, 1]} : vector<16x32xf32> to vector<16x1xf32>
    %274 = vector.extract_strided_slice %157 {offsets = [0, 480], sizes = [16, 32], strides = [1, 1]} : vector<16x1024xf32> to vector<16x32xf32>
    %275 = vector.broadcast %273 : vector<16x1xf32> to vector<16x32xf32>
    %276 = arith.mulf %275, %274 : vector<16x32xf32>
    %277 = arith.addf %272, %276 : vector<16x32xf32>
    %278 = vector.extract_strided_slice %168 {offsets = [0, 16], sizes = [16, 1], strides = [1, 1]} : vector<16x32xf32> to vector<16x1xf32>
    %279 = vector.extract_strided_slice %157 {offsets = [0, 512], sizes = [16, 32], strides = [1, 1]} : vector<16x1024xf32> to vector<16x32xf32>
    %280 = vector.broadcast %278 : vector<16x1xf32> to vector<16x32xf32>
    %281 = arith.mulf %280, %279 : vector<16x32xf32>
    %282 = arith.addf %277, %281 : vector<16x32xf32>
    %283 = vector.extract_strided_slice %168 {offsets = [0, 17], sizes = [16, 1], strides = [1, 1]} : vector<16x32xf32> to vector<16x1xf32>
    %284 = vector.extract_strided_slice %157 {offsets = [0, 544], sizes = [16, 32], strides = [1, 1]} : vector<16x1024xf32> to vector<16x32xf32>
    %285 = vector.broadcast %283 : vector<16x1xf32> to vector<16x32xf32>
    %286 = arith.mulf %285, %284 : vector<16x32xf32>
    %287 = arith.addf %282, %286 : vector<16x32xf32>
    %288 = vector.extract_strided_slice %168 {offsets = [0, 18], sizes = [16, 1], strides = [1, 1]} : vector<16x32xf32> to vector<16x1xf32>
    %289 = vector.extract_strided_slice %157 {offsets = [0, 576], sizes = [16, 32], strides = [1, 1]} : vector<16x1024xf32> to vector<16x32xf32>
    %290 = vector.broadcast %288 : vector<16x1xf32> to vector<16x32xf32>
    %291 = arith.mulf %290, %289 : vector<16x32xf32>
    %292 = arith.addf %287, %291 : vector<16x32xf32>
    %293 = vector.extract_strided_slice %168 {offsets = [0, 19], sizes = [16, 1], strides = [1, 1]} : vector<16x32xf32> to vector<16x1xf32>
    %294 = vector.extract_strided_slice %157 {offsets = [0, 608], sizes = [16, 32], strides = [1, 1]} : vector<16x1024xf32> to vector<16x32xf32>
    %295 = vector.broadcast %293 : vector<16x1xf32> to vector<16x32xf32>
    %296 = arith.mulf %295, %294 : vector<16x32xf32>
    %297 = arith.addf %292, %296 : vector<16x32xf32>
    %298 = vector.extract_strided_slice %168 {offsets = [0, 20], sizes = [16, 1], strides = [1, 1]} : vector<16x32xf32> to vector<16x1xf32>
    %299 = vector.extract_strided_slice %157 {offsets = [0, 640], sizes = [16, 32], strides = [1, 1]} : vector<16x1024xf32> to vector<16x32xf32>
    %300 = vector.broadcast %298 : vector<16x1xf32> to vector<16x32xf32>
    %301 = arith.mulf %300, %299 : vector<16x32xf32>
    %302 = arith.addf %297, %301 : vector<16x32xf32>
    %303 = vector.extract_strided_slice %168 {offsets = [0, 21], sizes = [16, 1], strides = [1, 1]} : vector<16x32xf32> to vector<16x1xf32>
    %304 = vector.extract_strided_slice %157 {offsets = [0, 672], sizes = [16, 32], strides = [1, 1]} : vector<16x1024xf32> to vector<16x32xf32>
    %305 = vector.broadcast %303 : vector<16x1xf32> to vector<16x32xf32>
    %306 = arith.mulf %305, %304 : vector<16x32xf32>
    %307 = arith.addf %302, %306 : vector<16x32xf32>
    %308 = vector.extract_strided_slice %168 {offsets = [0, 22], sizes = [16, 1], strides = [1, 1]} : vector<16x32xf32> to vector<16x1xf32>
    %309 = vector.extract_strided_slice %157 {offsets = [0, 704], sizes = [16, 32], strides = [1, 1]} : vector<16x1024xf32> to vector<16x32xf32>
    %310 = vector.broadcast %308 : vector<16x1xf32> to vector<16x32xf32>
    %311 = arith.mulf %310, %309 : vector<16x32xf32>
    %312 = arith.addf %307, %311 : vector<16x32xf32>
    %313 = vector.extract_strided_slice %168 {offsets = [0, 23], sizes = [16, 1], strides = [1, 1]} : vector<16x32xf32> to vector<16x1xf32>
    %314 = vector.extract_strided_slice %157 {offsets = [0, 736], sizes = [16, 32], strides = [1, 1]} : vector<16x1024xf32> to vector<16x32xf32>
    %315 = vector.broadcast %313 : vector<16x1xf32> to vector<16x32xf32>
    %316 = arith.mulf %315, %314 : vector<16x32xf32>
    %317 = arith.addf %312, %316 : vector<16x32xf32>
    %318 = vector.extract_strided_slice %168 {offsets = [0, 24], sizes = [16, 1], strides = [1, 1]} : vector<16x32xf32> to vector<16x1xf32>
    %319 = vector.extract_strided_slice %157 {offsets = [0, 768], sizes = [16, 32], strides = [1, 1]} : vector<16x1024xf32> to vector<16x32xf32>
    %320 = vector.broadcast %318 : vector<16x1xf32> to vector<16x32xf32>
    %321 = arith.mulf %320, %319 : vector<16x32xf32>
    %322 = arith.addf %317, %321 : vector<16x32xf32>
    %323 = vector.extract_strided_slice %168 {offsets = [0, 25], sizes = [16, 1], strides = [1, 1]} : vector<16x32xf32> to vector<16x1xf32>
    %324 = vector.extract_strided_slice %157 {offsets = [0, 800], sizes = [16, 32], strides = [1, 1]} : vector<16x1024xf32> to vector<16x32xf32>
    %325 = vector.broadcast %323 : vector<16x1xf32> to vector<16x32xf32>
    %326 = arith.mulf %325, %324 : vector<16x32xf32>
    %327 = arith.addf %322, %326 : vector<16x32xf32>
    %328 = vector.extract_strided_slice %168 {offsets = [0, 26], sizes = [16, 1], strides = [1, 1]} : vector<16x32xf32> to vector<16x1xf32>
    %329 = vector.extract_strided_slice %157 {offsets = [0, 832], sizes = [16, 32], strides = [1, 1]} : vector<16x1024xf32> to vector<16x32xf32>
    %330 = vector.broadcast %328 : vector<16x1xf32> to vector<16x32xf32>
    %331 = arith.mulf %330, %329 : vector<16x32xf32>
    %332 = arith.addf %327, %331 : vector<16x32xf32>
    %333 = vector.extract_strided_slice %168 {offsets = [0, 27], sizes = [16, 1], strides = [1, 1]} : vector<16x32xf32> to vector<16x1xf32>
    %334 = vector.extract_strided_slice %157 {offsets = [0, 864], sizes = [16, 32], strides = [1, 1]} : vector<16x1024xf32> to vector<16x32xf32>
    %335 = vector.broadcast %333 : vector<16x1xf32> to vector<16x32xf32>
    %336 = arith.mulf %335, %334 : vector<16x32xf32>
    %337 = arith.addf %332, %336 : vector<16x32xf32>
    %338 = vector.extract_strided_slice %168 {offsets = [0, 28], sizes = [16, 1], strides = [1, 1]} : vector<16x32xf32> to vector<16x1xf32>
    %339 = vector.extract_strided_slice %157 {offsets = [0, 896], sizes = [16, 32], strides = [1, 1]} : vector<16x1024xf32> to vector<16x32xf32>
    %340 = vector.broadcast %338 : vector<16x1xf32> to vector<16x32xf32>
    %341 = arith.mulf %340, %339 : vector<16x32xf32>
    %342 = arith.addf %337, %341 : vector<16x32xf32>
    %343 = vector.extract_strided_slice %168 {offsets = [0, 29], sizes = [16, 1], strides = [1, 1]} : vector<16x32xf32> to vector<16x1xf32>
    %344 = vector.extract_strided_slice %157 {offsets = [0, 928], sizes = [16, 32], strides = [1, 1]} : vector<16x1024xf32> to vector<16x32xf32>
    %345 = vector.broadcast %343 : vector<16x1xf32> to vector<16x32xf32>
    %346 = arith.mulf %345, %344 : vector<16x32xf32>
    %347 = arith.addf %342, %346 : vector<16x32xf32>
    %348 = vector.extract_strided_slice %168 {offsets = [0, 30], sizes = [16, 1], strides = [1, 1]} : vector<16x32xf32> to vector<16x1xf32>
    %349 = vector.extract_strided_slice %157 {offsets = [0, 960], sizes = [16, 32], strides = [1, 1]} : vector<16x1024xf32> to vector<16x32xf32>
    %350 = vector.broadcast %348 : vector<16x1xf32> to vector<16x32xf32>
    %351 = arith.mulf %350, %349 : vector<16x32xf32>
    %352 = arith.addf %347, %351 : vector<16x32xf32>
    %353 = vector.extract_strided_slice %168 {offsets = [0, 31], sizes = [16, 1], strides = [1, 1]} : vector<16x32xf32> to vector<16x1xf32>
    %354 = vector.extract_strided_slice %157 {offsets = [0, 992], sizes = [16, 32], strides = [1, 1]} : vector<16x1024xf32> to vector<16x32xf32>
    %355 = vector.broadcast %353 : vector<16x1xf32> to vector<16x32xf32>
    %356 = arith.mulf %355, %354 : vector<16x32xf32>
    %357 = arith.addf %352, %356 : vector<16x32xf32>
    %358 = vector.broadcast %196 : vector<16x1xf32> to vector<16x32xf32>
    %359 = arith.mulf %357, %358 : vector<16x32xf32>
    %360 = tpu.transpose %13, [1, 0] : vector<16x8xf32> -> vector<8x16xf32>
    %cst_101 = arith.constant dense<0.000000e+00> : vector<8x32xf32>
    %361 = tpu.matmul %360, %359, %cst_101 {dimension_numbers = #tpu.dot_dimension_numbers<[1], [0], [0], [1], [0, 0, 1, 1], [], []>} : vector<8x16xf32>, vector<16x32xf32>, vector<8x32xf32> -> vector<8x32xf32>
    %362 = arith.addf %361, %165 : vector<8x32xf32>
    %c0_102 = arith.constant 0 : index
    %c0_103 = arith.constant 0 : index
    %363 = vector.load %arg27[%c0_102, %c0_103] : memref<1x32xf32, #tpu.memory_space<vmem>>, vector<1x32xf32>
    %c0_104 = arith.constant 0 : index
    %c0_105 = arith.constant 0 : index
    %364 = vector.load %arg28[%c0_104, %c0_105] : memref<1x32xf32, #tpu.memory_space<vmem>>, vector<1x32xf32>
    %cst_106 = arith.constant 3.200000e+01 : f32
    %365 = vector.broadcast %cst_106 : f32 to vector<1x2xf32>
    %366 = arith.mulf %22, %365 : vector<1x2xf32>
    %cst_107 = arith.constant dense<0.000000e+00> : vector<8xf32>
    %367 = vector.multi_reduction <add>, %362, %cst_107 [1] : vector<8x32xf32> to vector<8xf32>
    %368 = vector.shape_cast %367 : vector<8xf32> to vector<8x1xf32>
    %369 = vector.broadcast %368 : vector<8x1xf32> to vector<8x2xf32>
    %370 = arith.mulf %18, %369 : vector<8x2xf32>
    %cst_108 = arith.constant dense<0.000000e+00> : vector<2xf32>
    %371 = vector.multi_reduction <add>, %370, %cst_108 [0] : vector<8x2xf32> to vector<2xf32>
    %372 = vector.shape_cast %371 : vector<2xf32> to vector<1x2xf32>
    %373 = arith.divf %372, %366 : vector<1x2xf32>
    %374 = vector.broadcast %373 : vector<1x2xf32> to vector<8x2xf32>
    %375 = arith.mulf %18, %374 : vector<8x2xf32>
    %cst_109 = arith.constant dense<0.000000e+00> : vector<8xf32>
    %376 = vector.multi_reduction <add>, %375, %cst_109 [1] : vector<8x2xf32> to vector<8xf32>
    %377 = vector.shape_cast %376 : vector<8xf32> to vector<8x1xf32>
    %378 = vector.broadcast %377 : vector<8x1xf32> to vector<8x32xf32>
    %379 = arith.subf %362, %378 : vector<8x32xf32>
    %380 = arith.mulf %379, %379 : vector<8x32xf32>
    %cst_110 = arith.constant dense<0.000000e+00> : vector<8xf32>
    %381 = vector.multi_reduction <add>, %380, %cst_110 [1] : vector<8x32xf32> to vector<8xf32>
    %382 = vector.shape_cast %381 : vector<8xf32> to vector<8x1xf32>
    %383 = vector.broadcast %382 : vector<8x1xf32> to vector<8x2xf32>
    %384 = arith.mulf %18, %383 : vector<8x2xf32>
    %cst_111 = arith.constant dense<0.000000e+00> : vector<2xf32>
    %385 = vector.multi_reduction <add>, %384, %cst_111 [0] : vector<8x2xf32> to vector<2xf32>
    %386 = vector.shape_cast %385 : vector<2xf32> to vector<1x2xf32>
    %387 = arith.divf %386, %366 : vector<1x2xf32>
    %388 = vector.broadcast %387 : vector<1x2xf32> to vector<8x2xf32>
    %389 = arith.mulf %18, %388 : vector<8x2xf32>
    %cst_112 = arith.constant dense<0.000000e+00> : vector<8xf32>
    %390 = vector.multi_reduction <add>, %389, %cst_112 [1] : vector<8x2xf32> to vector<8xf32>
    %391 = vector.shape_cast %390 : vector<8xf32> to vector<8x1xf32>
    %cst_113 = arith.constant 9.99999974E-6 : f32
    %392 = vector.broadcast %cst_113 : f32 to vector<8x1xf32>
    %393 = arith.addf %391, %392 : vector<8x1xf32>
    %394 = math.rsqrt %393 : vector<8x1xf32>
    %395 = vector.broadcast %394 : vector<8x1xf32> to vector<8x32xf32>
    %396 = arith.mulf %379, %395 : vector<8x32xf32>
    %397 = vector.broadcast %363 : vector<1x32xf32> to vector<8x32xf32>
    %398 = arith.mulf %396, %397 : vector<8x32xf32>
    %399 = vector.broadcast %364 : vector<1x32xf32> to vector<8x32xf32>
    %400 = arith.addf %398, %399 : vector<8x32xf32>
    %cst_114 = arith.constant 0.000000e+00 : f32
    %401 = vector.broadcast %cst_114 : f32 to vector<8x32xf32>
    %402 = arith.cmpf ogt, %400, %401 : vector<8x32xf32>
    %cst_115 = arith.constant 0.00999999977 : f32
    %403 = vector.broadcast %cst_115 : f32 to vector<8x32xf32>
    %404 = arith.mulf %403, %400 : vector<8x32xf32>
    %405 = arith.select %402, %400, %404 : vector<8x32xi1>, vector<8x32xf32>
    %c0_116 = arith.constant 0 : index
    %c0_117 = arith.constant 0 : index
    %406 = vector.load %arg29[%c0_116, %c0_117] : memref<16x16xf32, #tpu.memory_space<vmem>>, vector<16x16xf32>
    %c0_118 = arith.constant 0 : index
    %c0_119 = arith.constant 0 : index
    %407 = vector.load %arg30[%c0_118, %c0_119] : memref<1x16xf32, #tpu.memory_space<vmem>>, vector<1x16xf32>
    %cst_120 = arith.constant dense<0.000000e+00> : vector<16x16xf32>
    %408 = tpu.matmul %120, %406, %cst_120 {dimension_numbers = #tpu.dot_dimension_numbers<[1], [0], [0], [1], [0, 0, 1, 1], [], []>} : vector<16x16xf32>, vector<16x16xf32>, vector<16x16xf32> -> vector<16x16xf32>
    %409 = vector.broadcast %407 : vector<1x16xf32> to vector<16x16xf32>
    %410 = arith.addf %408, %409 : vector<16x16xf32>
    %c0_121 = arith.constant 0 : index
    %c0_122 = arith.constant 0 : index
    %411 = vector.load %arg31[%c0_121, %c0_122] : memref<1x16xf32, #tpu.memory_space<vmem>>, vector<1x16xf32>
    %c0_123 = arith.constant 0 : index
    %c0_124 = arith.constant 0 : index
    %412 = vector.load %arg32[%c0_123, %c0_124] : memref<1x16xf32, #tpu.memory_space<vmem>>, vector<1x16xf32>
    %cst_125 = arith.constant dense<0.000000e+00> : vector<16xf32>
    %413 = vector.multi_reduction <add>, %410, %cst_125 [1] : vector<16x16xf32> to vector<16xf32>
    %414 = vector.shape_cast %413 : vector<16xf32> to vector<16x1xf32>
    %cst_126 = arith.constant 1.600000e+01 : f32
    %415 = vector.broadcast %cst_126 : f32 to vector<16x1xf32>
    %416 = arith.divf %414, %415 : vector<16x1xf32>
    %417 = vector.broadcast %416 : vector<16x1xf32> to vector<16x16xf32>
    %418 = arith.subf %410, %417 : vector<16x16xf32>
    %419 = arith.mulf %418, %418 : vector<16x16xf32>
    %cst_127 = arith.constant dense<0.000000e+00> : vector<16xf32>
    %420 = vector.multi_reduction <add>, %419, %cst_127 [1] : vector<16x16xf32> to vector<16xf32>
    %421 = vector.shape_cast %420 : vector<16xf32> to vector<16x1xf32>
    %cst_128 = arith.constant 1.600000e+01 : f32
    %422 = vector.broadcast %cst_128 : f32 to vector<16x1xf32>
    %423 = arith.divf %421, %422 : vector<16x1xf32>
    %cst_129 = arith.constant 9.99999974E-6 : f32
    %424 = vector.broadcast %cst_129 : f32 to vector<16x1xf32>
    %425 = arith.addf %423, %424 : vector<16x1xf32>
    %426 = math.rsqrt %425 : vector<16x1xf32>
    %427 = vector.broadcast %426 : vector<16x1xf32> to vector<16x16xf32>
    %428 = arith.mulf %418, %427 : vector<16x16xf32>
    %429 = vector.broadcast %411 : vector<1x16xf32> to vector<16x16xf32>
    %430 = arith.mulf %428, %429 : vector<16x16xf32>
    %431 = vector.broadcast %412 : vector<1x16xf32> to vector<16x16xf32>
    %432 = arith.addf %430, %431 : vector<16x16xf32>
    %cst_130 = arith.constant 0.000000e+00 : f32
    %433 = vector.broadcast %cst_130 : f32 to vector<16x16xf32>
    %434 = arith.cmpf ogt, %432, %433 : vector<16x16xf32>
    %cst_131 = arith.constant 0.00999999977 : f32
    %435 = vector.broadcast %cst_131 : f32 to vector<16x16xf32>
    %436 = arith.mulf %435, %432 : vector<16x16xf32>
    %437 = arith.select %434, %432, %436 : vector<16x16xi1>, vector<16x16xf32>
    %c0_132 = arith.constant 0 : index
    %c0_133 = arith.constant 0 : index
    %438 = vector.load %arg33[%c0_132, %c0_133] : memref<16x1024xf32, #tpu.memory_space<vmem>>, vector<16x1024xf32>
    %c0_134 = arith.constant 0 : index
    %c0_135 = arith.constant 0 : index
    %439 = vector.load %arg34[%c0_134, %c0_135] : memref<1x1024xf32, #tpu.memory_space<vmem>>, vector<1x1024xf32>
    %cst_136 = arith.constant dense<0.000000e+00> : vector<16x1024xf32>
    %440 = tpu.matmul %437, %438, %cst_136 {dimension_numbers = #tpu.dot_dimension_numbers<[1], [0], [0], [1], [0, 0, 1, 1], [], []>} : vector<16x16xf32>, vector<16x1024xf32>, vector<16x1024xf32> -> vector<16x1024xf32>
    %441 = vector.broadcast %439 : vector<1x1024xf32> to vector<16x1024xf32>
    %442 = arith.addf %440, %441 : vector<16x1024xf32>
    %c0_137 = arith.constant 0 : index
    %c0_138 = arith.constant 0 : index
    %443 = vector.load %arg35[%c0_137, %c0_138] : memref<32x96xf32, #tpu.memory_space<vmem>>, vector<32x96xf32>
    %c0_139 = arith.constant 0 : index
    %c0_140 = arith.constant 0 : index
    %444 = vector.load %arg36[%c0_139, %c0_140] : memref<1x96xf32, #tpu.memory_space<vmem>>, vector<1x96xf32>
    %cst_141 = arith.constant dense<0.000000e+00> : vector<8x96xf32>
    %445 = tpu.matmul %405, %443, %cst_141 {dimension_numbers = #tpu.dot_dimension_numbers<[1], [0], [0], [1], [0, 0, 1, 1], [], []>} : vector<8x32xf32>, vector<32x96xf32>, vector<8x96xf32> -> vector<8x96xf32>
    %446 = vector.broadcast %444 : vector<1x96xf32> to vector<8x96xf32>
    %447 = arith.addf %445, %446 : vector<8x96xf32>
    %448 = vector.extract_strided_slice %447 {offsets = [0, 0], sizes = [8, 32], strides = [1, 1]} : vector<8x96xf32> to vector<8x32xf32>
    %449 = vector.extract_strided_slice %447 {offsets = [0, 32], sizes = [8, 32], strides = [1, 1]} : vector<8x96xf32> to vector<8x32xf32>
    %450 = vector.extract_strided_slice %447 {offsets = [0, 64], sizes = [8, 32], strides = [1, 1]} : vector<8x96xf32> to vector<8x32xf32>
    %cst_142 = arith.constant dense<0.000000e+00> : vector<16x32xf32>
    %451 = tpu.matmul %13, %448, %cst_142 {dimension_numbers = #tpu.dot_dimension_numbers<[1], [0], [0], [1], [0, 0, 1, 1], [], []>} : vector<16x8xf32>, vector<8x32xf32>, vector<16x32xf32> -> vector<16x32xf32>
    %cst_143 = arith.constant dense<0.000000e+00> : vector<16x32xf32>
    %452 = tpu.matmul %9, %449, %cst_143 {dimension_numbers = #tpu.dot_dimension_numbers<[1], [0], [0], [1], [0, 0, 1, 1], [], []>} : vector<16x8xf32>, vector<8x32xf32>, vector<16x32xf32> -> vector<16x32xf32>
    %cst_144 = arith.constant dense<0.000000e+00> : vector<16x32xf32>
    %453 = tpu.matmul %9, %405, %cst_144 {dimension_numbers = #tpu.dot_dimension_numbers<[1], [0], [0], [1], [0, 0, 1, 1], [], []>} : vector<16x8xf32>, vector<8x32xf32>, vector<16x32xf32> -> vector<16x32xf32>
    %454 = arith.mulf %451, %452 : vector<16x32xf32>
    %cst_145 = arith.constant dense<0.000000e+00> : vector<16xf32>
    %455 = vector.multi_reduction <add>, %454, %cst_145 [1] : vector<16x32xf32> to vector<16xf32>
    %456 = vector.shape_cast %455 : vector<16xf32> to vector<16x1xf32>
    %cst_146 = arith.constant 0.176776692 : f32
    %457 = vector.broadcast %cst_146 : f32 to vector<16x1xf32>
    %458 = arith.mulf %456, %457 : vector<16x1xf32>
    %cst_147 = arith.constant 0.000000e+00 : f32
    %459 = vector.broadcast %cst_147 : f32 to vector<16x8xf32>
    %460 = arith.cmpf ogt, %13, %459 : vector<16x8xf32>
    %cst_148 = arith.constant -1.000000e+30 : f32
    %461 = vector.shape_cast %458 : vector<16x1xf32> to vector<16x1xf32>
    %462 = vector.broadcast %461 : vector<16x1xf32> to vector<16x8xf32>
    %463 = vector.broadcast %cst_148 : f32 to vector<16x8xf32>
    %464 = arith.select %460, %462, %463 : vector<16x8xi1>, vector<16x8xf32>
    %cst_149 = arith.constant dense<0xFF800000> : vector<8xf32>
    %465 = vector.multi_reduction <maximumf>, %464, %cst_149 [0] : vector<16x8xf32> to vector<8xf32>
    %466 = vector.shape_cast %465 : vector<8xf32> to vector<1x8xf32>
    %467 = vector.broadcast %466 : vector<1x8xf32> to vector<16x8xf32>
    %468 = arith.mulf %13, %467 : vector<16x8xf32>
    %cst_150 = arith.constant dense<0.000000e+00> : vector<16xf32>
    %469 = vector.multi_reduction <add>, %468, %cst_150 [1] : vector<16x8xf32> to vector<16xf32>
    %470 = vector.shape_cast %469 : vector<16xf32> to vector<16x1xf32>
    %471 = arith.subf %458, %470 : vector<16x1xf32>
    %472 = math.exp %471 : vector<16x1xf32>
    %473 = vector.broadcast %472 : vector<16x1xf32> to vector<16x8xf32>
    %474 = arith.mulf %13, %473 : vector<16x8xf32>
    %cst_151 = arith.constant dense<0.000000e+00> : vector<8xf32>
    %475 = vector.multi_reduction <add>, %474, %cst_151 [0] : vector<16x8xf32> to vector<8xf32>
    %476 = vector.shape_cast %475 : vector<8xf32> to vector<1x8xf32>
    %477 = vector.broadcast %476 : vector<1x8xf32> to vector<16x8xf32>
    %478 = arith.mulf %13, %477 : vector<16x8xf32>
    %cst_152 = arith.constant dense<0.000000e+00> : vector<16xf32>
    %479 = vector.multi_reduction <add>, %478, %cst_152 [1] : vector<16x8xf32> to vector<16xf32>
    %480 = vector.shape_cast %479 : vector<16xf32> to vector<16x1xf32>
    %481 = arith.divf %472, %480 : vector<16x1xf32>
    %cst_153 = arith.constant 0.000000e+00 : f32
    %482 = vector.broadcast %cst_153 : f32 to vector<16x32xf32>
    %483 = vector.extract_strided_slice %453 {offsets = [0, 0], sizes = [16, 1], strides = [1, 1]} : vector<16x32xf32> to vector<16x1xf32>
    %484 = vector.extract_strided_slice %442 {offsets = [0, 0], sizes = [16, 32], strides = [1, 1]} : vector<16x1024xf32> to vector<16x32xf32>
    %485 = vector.broadcast %483 : vector<16x1xf32> to vector<16x32xf32>
    %486 = arith.mulf %485, %484 : vector<16x32xf32>
    %487 = arith.addf %482, %486 : vector<16x32xf32>
    %488 = vector.extract_strided_slice %453 {offsets = [0, 1], sizes = [16, 1], strides = [1, 1]} : vector<16x32xf32> to vector<16x1xf32>
    %489 = vector.extract_strided_slice %442 {offsets = [0, 32], sizes = [16, 32], strides = [1, 1]} : vector<16x1024xf32> to vector<16x32xf32>
    %490 = vector.broadcast %488 : vector<16x1xf32> to vector<16x32xf32>
    %491 = arith.mulf %490, %489 : vector<16x32xf32>
    %492 = arith.addf %487, %491 : vector<16x32xf32>
    %493 = vector.extract_strided_slice %453 {offsets = [0, 2], sizes = [16, 1], strides = [1, 1]} : vector<16x32xf32> to vector<16x1xf32>
    %494 = vector.extract_strided_slice %442 {offsets = [0, 64], sizes = [16, 32], strides = [1, 1]} : vector<16x1024xf32> to vector<16x32xf32>
    %495 = vector.broadcast %493 : vector<16x1xf32> to vector<16x32xf32>
    %496 = arith.mulf %495, %494 : vector<16x32xf32>
    %497 = arith.addf %492, %496 : vector<16x32xf32>
    %498 = vector.extract_strided_slice %453 {offsets = [0, 3], sizes = [16, 1], strides = [1, 1]} : vector<16x32xf32> to vector<16x1xf32>
    %499 = vector.extract_strided_slice %442 {offsets = [0, 96], sizes = [16, 32], strides = [1, 1]} : vector<16x1024xf32> to vector<16x32xf32>
    %500 = vector.broadcast %498 : vector<16x1xf32> to vector<16x32xf32>
    %501 = arith.mulf %500, %499 : vector<16x32xf32>
    %502 = arith.addf %497, %501 : vector<16x32xf32>
    %503 = vector.extract_strided_slice %453 {offsets = [0, 4], sizes = [16, 1], strides = [1, 1]} : vector<16x32xf32> to vector<16x1xf32>
    %504 = vector.extract_strided_slice %442 {offsets = [0, 128], sizes = [16, 32], strides = [1, 1]} : vector<16x1024xf32> to vector<16x32xf32>
    %505 = vector.broadcast %503 : vector<16x1xf32> to vector<16x32xf32>
    %506 = arith.mulf %505, %504 : vector<16x32xf32>
    %507 = arith.addf %502, %506 : vector<16x32xf32>
    %508 = vector.extract_strided_slice %453 {offsets = [0, 5], sizes = [16, 1], strides = [1, 1]} : vector<16x32xf32> to vector<16x1xf32>
    %509 = vector.extract_strided_slice %442 {offsets = [0, 160], sizes = [16, 32], strides = [1, 1]} : vector<16x1024xf32> to vector<16x32xf32>
    %510 = vector.broadcast %508 : vector<16x1xf32> to vector<16x32xf32>
    %511 = arith.mulf %510, %509 : vector<16x32xf32>
    %512 = arith.addf %507, %511 : vector<16x32xf32>
    %513 = vector.extract_strided_slice %453 {offsets = [0, 6], sizes = [16, 1], strides = [1, 1]} : vector<16x32xf32> to vector<16x1xf32>
    %514 = vector.extract_strided_slice %442 {offsets = [0, 192], sizes = [16, 32], strides = [1, 1]} : vector<16x1024xf32> to vector<16x32xf32>
    %515 = vector.broadcast %513 : vector<16x1xf32> to vector<16x32xf32>
    %516 = arith.mulf %515, %514 : vector<16x32xf32>
    %517 = arith.addf %512, %516 : vector<16x32xf32>
    %518 = vector.extract_strided_slice %453 {offsets = [0, 7], sizes = [16, 1], strides = [1, 1]} : vector<16x32xf32> to vector<16x1xf32>
    %519 = vector.extract_strided_slice %442 {offsets = [0, 224], sizes = [16, 32], strides = [1, 1]} : vector<16x1024xf32> to vector<16x32xf32>
    %520 = vector.broadcast %518 : vector<16x1xf32> to vector<16x32xf32>
    %521 = arith.mulf %520, %519 : vector<16x32xf32>
    %522 = arith.addf %517, %521 : vector<16x32xf32>
    %523 = vector.extract_strided_slice %453 {offsets = [0, 8], sizes = [16, 1], strides = [1, 1]} : vector<16x32xf32> to vector<16x1xf32>
    %524 = vector.extract_strided_slice %442 {offsets = [0, 256], sizes = [16, 32], strides = [1, 1]} : vector<16x1024xf32> to vector<16x32xf32>
    %525 = vector.broadcast %523 : vector<16x1xf32> to vector<16x32xf32>
    %526 = arith.mulf %525, %524 : vector<16x32xf32>
    %527 = arith.addf %522, %526 : vector<16x32xf32>
    %528 = vector.extract_strided_slice %453 {offsets = [0, 9], sizes = [16, 1], strides = [1, 1]} : vector<16x32xf32> to vector<16x1xf32>
    %529 = vector.extract_strided_slice %442 {offsets = [0, 288], sizes = [16, 32], strides = [1, 1]} : vector<16x1024xf32> to vector<16x32xf32>
    %530 = vector.broadcast %528 : vector<16x1xf32> to vector<16x32xf32>
    %531 = arith.mulf %530, %529 : vector<16x32xf32>
    %532 = arith.addf %527, %531 : vector<16x32xf32>
    %533 = vector.extract_strided_slice %453 {offsets = [0, 10], sizes = [16, 1], strides = [1, 1]} : vector<16x32xf32> to vector<16x1xf32>
    %534 = vector.extract_strided_slice %442 {offsets = [0, 320], sizes = [16, 32], strides = [1, 1]} : vector<16x1024xf32> to vector<16x32xf32>
    %535 = vector.broadcast %533 : vector<16x1xf32> to vector<16x32xf32>
    %536 = arith.mulf %535, %534 : vector<16x32xf32>
    %537 = arith.addf %532, %536 : vector<16x32xf32>
    %538 = vector.extract_strided_slice %453 {offsets = [0, 11], sizes = [16, 1], strides = [1, 1]} : vector<16x32xf32> to vector<16x1xf32>
    %539 = vector.extract_strided_slice %442 {offsets = [0, 352], sizes = [16, 32], strides = [1, 1]} : vector<16x1024xf32> to vector<16x32xf32>
    %540 = vector.broadcast %538 : vector<16x1xf32> to vector<16x32xf32>
    %541 = arith.mulf %540, %539 : vector<16x32xf32>
    %542 = arith.addf %537, %541 : vector<16x32xf32>
    %543 = vector.extract_strided_slice %453 {offsets = [0, 12], sizes = [16, 1], strides = [1, 1]} : vector<16x32xf32> to vector<16x1xf32>
    %544 = vector.extract_strided_slice %442 {offsets = [0, 384], sizes = [16, 32], strides = [1, 1]} : vector<16x1024xf32> to vector<16x32xf32>
    %545 = vector.broadcast %543 : vector<16x1xf32> to vector<16x32xf32>
    %546 = arith.mulf %545, %544 : vector<16x32xf32>
    %547 = arith.addf %542, %546 : vector<16x32xf32>
    %548 = vector.extract_strided_slice %453 {offsets = [0, 13], sizes = [16, 1], strides = [1, 1]} : vector<16x32xf32> to vector<16x1xf32>
    %549 = vector.extract_strided_slice %442 {offsets = [0, 416], sizes = [16, 32], strides = [1, 1]} : vector<16x1024xf32> to vector<16x32xf32>
    %550 = vector.broadcast %548 : vector<16x1xf32> to vector<16x32xf32>
    %551 = arith.mulf %550, %549 : vector<16x32xf32>
    %552 = arith.addf %547, %551 : vector<16x32xf32>
    %553 = vector.extract_strided_slice %453 {offsets = [0, 14], sizes = [16, 1], strides = [1, 1]} : vector<16x32xf32> to vector<16x1xf32>
    %554 = vector.extract_strided_slice %442 {offsets = [0, 448], sizes = [16, 32], strides = [1, 1]} : vector<16x1024xf32> to vector<16x32xf32>
    %555 = vector.broadcast %553 : vector<16x1xf32> to vector<16x32xf32>
    %556 = arith.mulf %555, %554 : vector<16x32xf32>
    %557 = arith.addf %552, %556 : vector<16x32xf32>
    %558 = vector.extract_strided_slice %453 {offsets = [0, 15], sizes = [16, 1], strides = [1, 1]} : vector<16x32xf32> to vector<16x1xf32>
    %559 = vector.extract_strided_slice %442 {offsets = [0, 480], sizes = [16, 32], strides = [1, 1]} : vector<16x1024xf32> to vector<16x32xf32>
    %560 = vector.broadcast %558 : vector<16x1xf32> to vector<16x32xf32>
    %561 = arith.mulf %560, %559 : vector<16x32xf32>
    %562 = arith.addf %557, %561 : vector<16x32xf32>
    %563 = vector.extract_strided_slice %453 {offsets = [0, 16], sizes = [16, 1], strides = [1, 1]} : vector<16x32xf32> to vector<16x1xf32>
    %564 = vector.extract_strided_slice %442 {offsets = [0, 512], sizes = [16, 32], strides = [1, 1]} : vector<16x1024xf32> to vector<16x32xf32>
    %565 = vector.broadcast %563 : vector<16x1xf32> to vector<16x32xf32>
    %566 = arith.mulf %565, %564 : vector<16x32xf32>
    %567 = arith.addf %562, %566 : vector<16x32xf32>
    %568 = vector.extract_strided_slice %453 {offsets = [0, 17], sizes = [16, 1], strides = [1, 1]} : vector<16x32xf32> to vector<16x1xf32>
    %569 = vector.extract_strided_slice %442 {offsets = [0, 544], sizes = [16, 32], strides = [1, 1]} : vector<16x1024xf32> to vector<16x32xf32>
    %570 = vector.broadcast %568 : vector<16x1xf32> to vector<16x32xf32>
    %571 = arith.mulf %570, %569 : vector<16x32xf32>
    %572 = arith.addf %567, %571 : vector<16x32xf32>
    %573 = vector.extract_strided_slice %453 {offsets = [0, 18], sizes = [16, 1], strides = [1, 1]} : vector<16x32xf32> to vector<16x1xf32>
    %574 = vector.extract_strided_slice %442 {offsets = [0, 576], sizes = [16, 32], strides = [1, 1]} : vector<16x1024xf32> to vector<16x32xf32>
    %575 = vector.broadcast %573 : vector<16x1xf32> to vector<16x32xf32>
    %576 = arith.mulf %575, %574 : vector<16x32xf32>
    %577 = arith.addf %572, %576 : vector<16x32xf32>
    %578 = vector.extract_strided_slice %453 {offsets = [0, 19], sizes = [16, 1], strides = [1, 1]} : vector<16x32xf32> to vector<16x1xf32>
    %579 = vector.extract_strided_slice %442 {offsets = [0, 608], sizes = [16, 32], strides = [1, 1]} : vector<16x1024xf32> to vector<16x32xf32>
    %580 = vector.broadcast %578 : vector<16x1xf32> to vector<16x32xf32>
    %581 = arith.mulf %580, %579 : vector<16x32xf32>
    %582 = arith.addf %577, %581 : vector<16x32xf32>
    %583 = vector.extract_strided_slice %453 {offsets = [0, 20], sizes = [16, 1], strides = [1, 1]} : vector<16x32xf32> to vector<16x1xf32>
    %584 = vector.extract_strided_slice %442 {offsets = [0, 640], sizes = [16, 32], strides = [1, 1]} : vector<16x1024xf32> to vector<16x32xf32>
    %585 = vector.broadcast %583 : vector<16x1xf32> to vector<16x32xf32>
    %586 = arith.mulf %585, %584 : vector<16x32xf32>
    %587 = arith.addf %582, %586 : vector<16x32xf32>
    %588 = vector.extract_strided_slice %453 {offsets = [0, 21], sizes = [16, 1], strides = [1, 1]} : vector<16x32xf32> to vector<16x1xf32>
    %589 = vector.extract_strided_slice %442 {offsets = [0, 672], sizes = [16, 32], strides = [1, 1]} : vector<16x1024xf32> to vector<16x32xf32>
    %590 = vector.broadcast %588 : vector<16x1xf32> to vector<16x32xf32>
    %591 = arith.mulf %590, %589 : vector<16x32xf32>
    %592 = arith.addf %587, %591 : vector<16x32xf32>
    %593 = vector.extract_strided_slice %453 {offsets = [0, 22], sizes = [16, 1], strides = [1, 1]} : vector<16x32xf32> to vector<16x1xf32>
    %594 = vector.extract_strided_slice %442 {offsets = [0, 704], sizes = [16, 32], strides = [1, 1]} : vector<16x1024xf32> to vector<16x32xf32>
    %595 = vector.broadcast %593 : vector<16x1xf32> to vector<16x32xf32>
    %596 = arith.mulf %595, %594 : vector<16x32xf32>
    %597 = arith.addf %592, %596 : vector<16x32xf32>
    %598 = vector.extract_strided_slice %453 {offsets = [0, 23], sizes = [16, 1], strides = [1, 1]} : vector<16x32xf32> to vector<16x1xf32>
    %599 = vector.extract_strided_slice %442 {offsets = [0, 736], sizes = [16, 32], strides = [1, 1]} : vector<16x1024xf32> to vector<16x32xf32>
    %600 = vector.broadcast %598 : vector<16x1xf32> to vector<16x32xf32>
    %601 = arith.mulf %600, %599 : vector<16x32xf32>
    %602 = arith.addf %597, %601 : vector<16x32xf32>
    %603 = vector.extract_strided_slice %453 {offsets = [0, 24], sizes = [16, 1], strides = [1, 1]} : vector<16x32xf32> to vector<16x1xf32>
    %604 = vector.extract_strided_slice %442 {offsets = [0, 768], sizes = [16, 32], strides = [1, 1]} : vector<16x1024xf32> to vector<16x32xf32>
    %605 = vector.broadcast %603 : vector<16x1xf32> to vector<16x32xf32>
    %606 = arith.mulf %605, %604 : vector<16x32xf32>
    %607 = arith.addf %602, %606 : vector<16x32xf32>
    %608 = vector.extract_strided_slice %453 {offsets = [0, 25], sizes = [16, 1], strides = [1, 1]} : vector<16x32xf32> to vector<16x1xf32>
    %609 = vector.extract_strided_slice %442 {offsets = [0, 800], sizes = [16, 32], strides = [1, 1]} : vector<16x1024xf32> to vector<16x32xf32>
    %610 = vector.broadcast %608 : vector<16x1xf32> to vector<16x32xf32>
    %611 = arith.mulf %610, %609 : vector<16x32xf32>
    %612 = arith.addf %607, %611 : vector<16x32xf32>
    %613 = vector.extract_strided_slice %453 {offsets = [0, 26], sizes = [16, 1], strides = [1, 1]} : vector<16x32xf32> to vector<16x1xf32>
    %614 = vector.extract_strided_slice %442 {offsets = [0, 832], sizes = [16, 32], strides = [1, 1]} : vector<16x1024xf32> to vector<16x32xf32>
    %615 = vector.broadcast %613 : vector<16x1xf32> to vector<16x32xf32>
    %616 = arith.mulf %615, %614 : vector<16x32xf32>
    %617 = arith.addf %612, %616 : vector<16x32xf32>
    %618 = vector.extract_strided_slice %453 {offsets = [0, 27], sizes = [16, 1], strides = [1, 1]} : vector<16x32xf32> to vector<16x1xf32>
    %619 = vector.extract_strided_slice %442 {offsets = [0, 864], sizes = [16, 32], strides = [1, 1]} : vector<16x1024xf32> to vector<16x32xf32>
    %620 = vector.broadcast %618 : vector<16x1xf32> to vector<16x32xf32>
    %621 = arith.mulf %620, %619 : vector<16x32xf32>
    %622 = arith.addf %617, %621 : vector<16x32xf32>
    %623 = vector.extract_strided_slice %453 {offsets = [0, 28], sizes = [16, 1], strides = [1, 1]} : vector<16x32xf32> to vector<16x1xf32>
    %624 = vector.extract_strided_slice %442 {offsets = [0, 896], sizes = [16, 32], strides = [1, 1]} : vector<16x1024xf32> to vector<16x32xf32>
    %625 = vector.broadcast %623 : vector<16x1xf32> to vector<16x32xf32>
    %626 = arith.mulf %625, %624 : vector<16x32xf32>
    %627 = arith.addf %622, %626 : vector<16x32xf32>
    %628 = vector.extract_strided_slice %453 {offsets = [0, 29], sizes = [16, 1], strides = [1, 1]} : vector<16x32xf32> to vector<16x1xf32>
    %629 = vector.extract_strided_slice %442 {offsets = [0, 928], sizes = [16, 32], strides = [1, 1]} : vector<16x1024xf32> to vector<16x32xf32>
    %630 = vector.broadcast %628 : vector<16x1xf32> to vector<16x32xf32>
    %631 = arith.mulf %630, %629 : vector<16x32xf32>
    %632 = arith.addf %627, %631 : vector<16x32xf32>
    %633 = vector.extract_strided_slice %453 {offsets = [0, 30], sizes = [16, 1], strides = [1, 1]} : vector<16x32xf32> to vector<16x1xf32>
    %634 = vector.extract_strided_slice %442 {offsets = [0, 960], sizes = [16, 32], strides = [1, 1]} : vector<16x1024xf32> to vector<16x32xf32>
    %635 = vector.broadcast %633 : vector<16x1xf32> to vector<16x32xf32>
    %636 = arith.mulf %635, %634 : vector<16x32xf32>
    %637 = arith.addf %632, %636 : vector<16x32xf32>
    %638 = vector.extract_strided_slice %453 {offsets = [0, 31], sizes = [16, 1], strides = [1, 1]} : vector<16x32xf32> to vector<16x1xf32>
    %639 = vector.extract_strided_slice %442 {offsets = [0, 992], sizes = [16, 32], strides = [1, 1]} : vector<16x1024xf32> to vector<16x32xf32>
    %640 = vector.broadcast %638 : vector<16x1xf32> to vector<16x32xf32>
    %641 = arith.mulf %640, %639 : vector<16x32xf32>
    %642 = arith.addf %637, %641 : vector<16x32xf32>
    %643 = vector.broadcast %481 : vector<16x1xf32> to vector<16x32xf32>
    %644 = arith.mulf %642, %643 : vector<16x32xf32>
    %645 = tpu.transpose %13, [1, 0] : vector<16x8xf32> -> vector<8x16xf32>
    %cst_154 = arith.constant dense<0.000000e+00> : vector<8x32xf32>
    %646 = tpu.matmul %645, %644, %cst_154 {dimension_numbers = #tpu.dot_dimension_numbers<[1], [0], [0], [1], [0, 0, 1, 1], [], []>} : vector<8x16xf32>, vector<16x32xf32>, vector<8x32xf32> -> vector<8x32xf32>
    %647 = arith.addf %646, %450 : vector<8x32xf32>
    %c0_155 = arith.constant 0 : index
    %c0_156 = arith.constant 0 : index
    %648 = vector.load %arg37[%c0_155, %c0_156] : memref<1x32xf32, #tpu.memory_space<vmem>>, vector<1x32xf32>
    %c0_157 = arith.constant 0 : index
    %c0_158 = arith.constant 0 : index
    %649 = vector.load %arg38[%c0_157, %c0_158] : memref<1x32xf32, #tpu.memory_space<vmem>>, vector<1x32xf32>
    %cst_159 = arith.constant 3.200000e+01 : f32
    %650 = vector.broadcast %cst_159 : f32 to vector<1x2xf32>
    %651 = arith.mulf %22, %650 : vector<1x2xf32>
    %cst_160 = arith.constant dense<0.000000e+00> : vector<8xf32>
    %652 = vector.multi_reduction <add>, %647, %cst_160 [1] : vector<8x32xf32> to vector<8xf32>
    %653 = vector.shape_cast %652 : vector<8xf32> to vector<8x1xf32>
    %654 = vector.broadcast %653 : vector<8x1xf32> to vector<8x2xf32>
    %655 = arith.mulf %18, %654 : vector<8x2xf32>
    %cst_161 = arith.constant dense<0.000000e+00> : vector<2xf32>
    %656 = vector.multi_reduction <add>, %655, %cst_161 [0] : vector<8x2xf32> to vector<2xf32>
    %657 = vector.shape_cast %656 : vector<2xf32> to vector<1x2xf32>
    %658 = arith.divf %657, %651 : vector<1x2xf32>
    %659 = vector.broadcast %658 : vector<1x2xf32> to vector<8x2xf32>
    %660 = arith.mulf %18, %659 : vector<8x2xf32>
    %cst_162 = arith.constant dense<0.000000e+00> : vector<8xf32>
    %661 = vector.multi_reduction <add>, %660, %cst_162 [1] : vector<8x2xf32> to vector<8xf32>
    %662 = vector.shape_cast %661 : vector<8xf32> to vector<8x1xf32>
    %663 = vector.broadcast %662 : vector<8x1xf32> to vector<8x32xf32>
    %664 = arith.subf %647, %663 : vector<8x32xf32>
    %665 = arith.mulf %664, %664 : vector<8x32xf32>
    %cst_163 = arith.constant dense<0.000000e+00> : vector<8xf32>
    %666 = vector.multi_reduction <add>, %665, %cst_163 [1] : vector<8x32xf32> to vector<8xf32>
    %667 = vector.shape_cast %666 : vector<8xf32> to vector<8x1xf32>
    %668 = vector.broadcast %667 : vector<8x1xf32> to vector<8x2xf32>
    %669 = arith.mulf %18, %668 : vector<8x2xf32>
    %cst_164 = arith.constant dense<0.000000e+00> : vector<2xf32>
    %670 = vector.multi_reduction <add>, %669, %cst_164 [0] : vector<8x2xf32> to vector<2xf32>
    %671 = vector.shape_cast %670 : vector<2xf32> to vector<1x2xf32>
    %672 = arith.divf %671, %651 : vector<1x2xf32>
    %673 = vector.broadcast %672 : vector<1x2xf32> to vector<8x2xf32>
    %674 = arith.mulf %18, %673 : vector<8x2xf32>
    %cst_165 = arith.constant dense<0.000000e+00> : vector<8xf32>
    %675 = vector.multi_reduction <add>, %674, %cst_165 [1] : vector<8x2xf32> to vector<8xf32>
    %676 = vector.shape_cast %675 : vector<8xf32> to vector<8x1xf32>
    %cst_166 = arith.constant 9.99999974E-6 : f32
    %677 = vector.broadcast %cst_166 : f32 to vector<8x1xf32>
    %678 = arith.addf %676, %677 : vector<8x1xf32>
    %679 = math.rsqrt %678 : vector<8x1xf32>
    %680 = vector.broadcast %679 : vector<8x1xf32> to vector<8x32xf32>
    %681 = arith.mulf %664, %680 : vector<8x32xf32>
    %682 = vector.broadcast %648 : vector<1x32xf32> to vector<8x32xf32>
    %683 = arith.mulf %681, %682 : vector<8x32xf32>
    %684 = vector.broadcast %649 : vector<1x32xf32> to vector<8x32xf32>
    %685 = arith.addf %683, %684 : vector<8x32xf32>
    %cst_167 = arith.constant 0.000000e+00 : f32
    %686 = vector.broadcast %cst_167 : f32 to vector<8x32xf32>
    %687 = arith.cmpf ogt, %685, %686 : vector<8x32xf32>
    %cst_168 = arith.constant 0.00999999977 : f32
    %688 = vector.broadcast %cst_168 : f32 to vector<8x32xf32>
    %689 = arith.mulf %688, %685 : vector<8x32xf32>
    %690 = arith.select %687, %685, %689 : vector<8x32xi1>, vector<8x32xf32>
    %c0_169 = arith.constant 0 : index
    %c0_170 = arith.constant 0 : index
    %691 = vector.load %arg39[%c0_169, %c0_170] : memref<16x16xf32, #tpu.memory_space<vmem>>, vector<16x16xf32>
    %c0_171 = arith.constant 0 : index
    %c0_172 = arith.constant 0 : index
    %692 = vector.load %arg40[%c0_171, %c0_172] : memref<1x16xf32, #tpu.memory_space<vmem>>, vector<1x16xf32>
    %cst_173 = arith.constant dense<0.000000e+00> : vector<16x16xf32>
    %693 = tpu.matmul %120, %691, %cst_173 {dimension_numbers = #tpu.dot_dimension_numbers<[1], [0], [0], [1], [0, 0, 1, 1], [], []>} : vector<16x16xf32>, vector<16x16xf32>, vector<16x16xf32> -> vector<16x16xf32>
    %694 = vector.broadcast %692 : vector<1x16xf32> to vector<16x16xf32>
    %695 = arith.addf %693, %694 : vector<16x16xf32>
    %c0_174 = arith.constant 0 : index
    %c0_175 = arith.constant 0 : index
    %696 = vector.load %arg41[%c0_174, %c0_175] : memref<1x16xf32, #tpu.memory_space<vmem>>, vector<1x16xf32>
    %c0_176 = arith.constant 0 : index
    %c0_177 = arith.constant 0 : index
    %697 = vector.load %arg42[%c0_176, %c0_177] : memref<1x16xf32, #tpu.memory_space<vmem>>, vector<1x16xf32>
    %cst_178 = arith.constant dense<0.000000e+00> : vector<16xf32>
    %698 = vector.multi_reduction <add>, %695, %cst_178 [1] : vector<16x16xf32> to vector<16xf32>
    %699 = vector.shape_cast %698 : vector<16xf32> to vector<16x1xf32>
    %cst_179 = arith.constant 1.600000e+01 : f32
    %700 = vector.broadcast %cst_179 : f32 to vector<16x1xf32>
    %701 = arith.divf %699, %700 : vector<16x1xf32>
    %702 = vector.broadcast %701 : vector<16x1xf32> to vector<16x16xf32>
    %703 = arith.subf %695, %702 : vector<16x16xf32>
    %704 = arith.mulf %703, %703 : vector<16x16xf32>
    %cst_180 = arith.constant dense<0.000000e+00> : vector<16xf32>
    %705 = vector.multi_reduction <add>, %704, %cst_180 [1] : vector<16x16xf32> to vector<16xf32>
    %706 = vector.shape_cast %705 : vector<16xf32> to vector<16x1xf32>
    %cst_181 = arith.constant 1.600000e+01 : f32
    %707 = vector.broadcast %cst_181 : f32 to vector<16x1xf32>
    %708 = arith.divf %706, %707 : vector<16x1xf32>
    %cst_182 = arith.constant 9.99999974E-6 : f32
    %709 = vector.broadcast %cst_182 : f32 to vector<16x1xf32>
    %710 = arith.addf %708, %709 : vector<16x1xf32>
    %711 = math.rsqrt %710 : vector<16x1xf32>
    %712 = vector.broadcast %711 : vector<16x1xf32> to vector<16x16xf32>
    %713 = arith.mulf %703, %712 : vector<16x16xf32>
    %714 = vector.broadcast %696 : vector<1x16xf32> to vector<16x16xf32>
    %715 = arith.mulf %713, %714 : vector<16x16xf32>
    %716 = vector.broadcast %697 : vector<1x16xf32> to vector<16x16xf32>
    %717 = arith.addf %715, %716 : vector<16x16xf32>
    %cst_183 = arith.constant 0.000000e+00 : f32
    %718 = vector.broadcast %cst_183 : f32 to vector<16x16xf32>
    %719 = arith.cmpf ogt, %717, %718 : vector<16x16xf32>
    %cst_184 = arith.constant 0.00999999977 : f32
    %720 = vector.broadcast %cst_184 : f32 to vector<16x16xf32>
    %721 = arith.mulf %720, %717 : vector<16x16xf32>
    %722 = arith.select %719, %717, %721 : vector<16x16xi1>, vector<16x16xf32>
    %c0_185 = arith.constant 0 : index
    %c0_186 = arith.constant 0 : index
    %723 = vector.load %arg43[%c0_185, %c0_186] : memref<16x1024xf32, #tpu.memory_space<vmem>>, vector<16x1024xf32>
    %c0_187 = arith.constant 0 : index
    %c0_188 = arith.constant 0 : index
    %724 = vector.load %arg44[%c0_187, %c0_188] : memref<1x1024xf32, #tpu.memory_space<vmem>>, vector<1x1024xf32>
    %cst_189 = arith.constant dense<0.000000e+00> : vector<16x1024xf32>
    %725 = tpu.matmul %722, %723, %cst_189 {dimension_numbers = #tpu.dot_dimension_numbers<[1], [0], [0], [1], [0, 0, 1, 1], [], []>} : vector<16x16xf32>, vector<16x1024xf32>, vector<16x1024xf32> -> vector<16x1024xf32>
    %726 = vector.broadcast %724 : vector<1x1024xf32> to vector<16x1024xf32>
    %727 = arith.addf %725, %726 : vector<16x1024xf32>
    %c0_190 = arith.constant 0 : index
    %c0_191 = arith.constant 0 : index
    %728 = vector.load %arg45[%c0_190, %c0_191] : memref<32x96xf32, #tpu.memory_space<vmem>>, vector<32x96xf32>
    %c0_192 = arith.constant 0 : index
    %c0_193 = arith.constant 0 : index
    %729 = vector.load %arg46[%c0_192, %c0_193] : memref<1x96xf32, #tpu.memory_space<vmem>>, vector<1x96xf32>
    %cst_194 = arith.constant dense<0.000000e+00> : vector<8x96xf32>
    %730 = tpu.matmul %690, %728, %cst_194 {dimension_numbers = #tpu.dot_dimension_numbers<[1], [0], [0], [1], [0, 0, 1, 1], [], []>} : vector<8x32xf32>, vector<32x96xf32>, vector<8x96xf32> -> vector<8x96xf32>
    %731 = vector.broadcast %729 : vector<1x96xf32> to vector<8x96xf32>
    %732 = arith.addf %730, %731 : vector<8x96xf32>
    %733 = vector.extract_strided_slice %732 {offsets = [0, 0], sizes = [8, 32], strides = [1, 1]} : vector<8x96xf32> to vector<8x32xf32>
    %734 = vector.extract_strided_slice %732 {offsets = [0, 32], sizes = [8, 32], strides = [1, 1]} : vector<8x96xf32> to vector<8x32xf32>
    %735 = vector.extract_strided_slice %732 {offsets = [0, 64], sizes = [8, 32], strides = [1, 1]} : vector<8x96xf32> to vector<8x32xf32>
    %cst_195 = arith.constant dense<0.000000e+00> : vector<16x32xf32>
    %736 = tpu.matmul %13, %733, %cst_195 {dimension_numbers = #tpu.dot_dimension_numbers<[1], [0], [0], [1], [0, 0, 1, 1], [], []>} : vector<16x8xf32>, vector<8x32xf32>, vector<16x32xf32> -> vector<16x32xf32>
    %cst_196 = arith.constant dense<0.000000e+00> : vector<16x32xf32>
    %737 = tpu.matmul %9, %734, %cst_196 {dimension_numbers = #tpu.dot_dimension_numbers<[1], [0], [0], [1], [0, 0, 1, 1], [], []>} : vector<16x8xf32>, vector<8x32xf32>, vector<16x32xf32> -> vector<16x32xf32>
    %cst_197 = arith.constant dense<0.000000e+00> : vector<16x32xf32>
    %738 = tpu.matmul %9, %690, %cst_197 {dimension_numbers = #tpu.dot_dimension_numbers<[1], [0], [0], [1], [0, 0, 1, 1], [], []>} : vector<16x8xf32>, vector<8x32xf32>, vector<16x32xf32> -> vector<16x32xf32>
    %739 = arith.mulf %736, %737 : vector<16x32xf32>
    %cst_198 = arith.constant dense<0.000000e+00> : vector<16xf32>
    %740 = vector.multi_reduction <add>, %739, %cst_198 [1] : vector<16x32xf32> to vector<16xf32>
    %741 = vector.shape_cast %740 : vector<16xf32> to vector<16x1xf32>
    %cst_199 = arith.constant 0.176776692 : f32
    %742 = vector.broadcast %cst_199 : f32 to vector<16x1xf32>
    %743 = arith.mulf %741, %742 : vector<16x1xf32>
    %cst_200 = arith.constant 0.000000e+00 : f32
    %744 = vector.broadcast %cst_200 : f32 to vector<16x8xf32>
    %745 = arith.cmpf ogt, %13, %744 : vector<16x8xf32>
    %cst_201 = arith.constant -1.000000e+30 : f32
    %746 = vector.shape_cast %743 : vector<16x1xf32> to vector<16x1xf32>
    %747 = vector.broadcast %746 : vector<16x1xf32> to vector<16x8xf32>
    %748 = vector.broadcast %cst_201 : f32 to vector<16x8xf32>
    %749 = arith.select %745, %747, %748 : vector<16x8xi1>, vector<16x8xf32>
    %cst_202 = arith.constant dense<0xFF800000> : vector<8xf32>
    %750 = vector.multi_reduction <maximumf>, %749, %cst_202 [0] : vector<16x8xf32> to vector<8xf32>
    %751 = vector.shape_cast %750 : vector<8xf32> to vector<1x8xf32>
    %752 = vector.broadcast %751 : vector<1x8xf32> to vector<16x8xf32>
    %753 = arith.mulf %13, %752 : vector<16x8xf32>
    %cst_203 = arith.constant dense<0.000000e+00> : vector<16xf32>
    %754 = vector.multi_reduction <add>, %753, %cst_203 [1] : vector<16x8xf32> to vector<16xf32>
    %755 = vector.shape_cast %754 : vector<16xf32> to vector<16x1xf32>
    %756 = arith.subf %743, %755 : vector<16x1xf32>
    %757 = math.exp %756 : vector<16x1xf32>
    %758 = vector.broadcast %757 : vector<16x1xf32> to vector<16x8xf32>
    %759 = arith.mulf %13, %758 : vector<16x8xf32>
    %cst_204 = arith.constant dense<0.000000e+00> : vector<8xf32>
    %760 = vector.multi_reduction <add>, %759, %cst_204 [0] : vector<16x8xf32> to vector<8xf32>
    %761 = vector.shape_cast %760 : vector<8xf32> to vector<1x8xf32>
    %762 = vector.broadcast %761 : vector<1x8xf32> to vector<16x8xf32>
    %763 = arith.mulf %13, %762 : vector<16x8xf32>
    %cst_205 = arith.constant dense<0.000000e+00> : vector<16xf32>
    %764 = vector.multi_reduction <add>, %763, %cst_205 [1] : vector<16x8xf32> to vector<16xf32>
    %765 = vector.shape_cast %764 : vector<16xf32> to vector<16x1xf32>
    %766 = arith.divf %757, %765 : vector<16x1xf32>
    %cst_206 = arith.constant 0.000000e+00 : f32
    %767 = vector.broadcast %cst_206 : f32 to vector<16x32xf32>
    %768 = vector.extract_strided_slice %738 {offsets = [0, 0], sizes = [16, 1], strides = [1, 1]} : vector<16x32xf32> to vector<16x1xf32>
    %769 = vector.extract_strided_slice %727 {offsets = [0, 0], sizes = [16, 32], strides = [1, 1]} : vector<16x1024xf32> to vector<16x32xf32>
    %770 = vector.broadcast %768 : vector<16x1xf32> to vector<16x32xf32>
    %771 = arith.mulf %770, %769 : vector<16x32xf32>
    %772 = arith.addf %767, %771 : vector<16x32xf32>
    %773 = vector.extract_strided_slice %738 {offsets = [0, 1], sizes = [16, 1], strides = [1, 1]} : vector<16x32xf32> to vector<16x1xf32>
    %774 = vector.extract_strided_slice %727 {offsets = [0, 32], sizes = [16, 32], strides = [1, 1]} : vector<16x1024xf32> to vector<16x32xf32>
    %775 = vector.broadcast %773 : vector<16x1xf32> to vector<16x32xf32>
    %776 = arith.mulf %775, %774 : vector<16x32xf32>
    %777 = arith.addf %772, %776 : vector<16x32xf32>
    %778 = vector.extract_strided_slice %738 {offsets = [0, 2], sizes = [16, 1], strides = [1, 1]} : vector<16x32xf32> to vector<16x1xf32>
    %779 = vector.extract_strided_slice %727 {offsets = [0, 64], sizes = [16, 32], strides = [1, 1]} : vector<16x1024xf32> to vector<16x32xf32>
    %780 = vector.broadcast %778 : vector<16x1xf32> to vector<16x32xf32>
    %781 = arith.mulf %780, %779 : vector<16x32xf32>
    %782 = arith.addf %777, %781 : vector<16x32xf32>
    %783 = vector.extract_strided_slice %738 {offsets = [0, 3], sizes = [16, 1], strides = [1, 1]} : vector<16x32xf32> to vector<16x1xf32>
    %784 = vector.extract_strided_slice %727 {offsets = [0, 96], sizes = [16, 32], strides = [1, 1]} : vector<16x1024xf32> to vector<16x32xf32>
    %785 = vector.broadcast %783 : vector<16x1xf32> to vector<16x32xf32>
    %786 = arith.mulf %785, %784 : vector<16x32xf32>
    %787 = arith.addf %782, %786 : vector<16x32xf32>
    %788 = vector.extract_strided_slice %738 {offsets = [0, 4], sizes = [16, 1], strides = [1, 1]} : vector<16x32xf32> to vector<16x1xf32>
    %789 = vector.extract_strided_slice %727 {offsets = [0, 128], sizes = [16, 32], strides = [1, 1]} : vector<16x1024xf32> to vector<16x32xf32>
    %790 = vector.broadcast %788 : vector<16x1xf32> to vector<16x32xf32>
    %791 = arith.mulf %790, %789 : vector<16x32xf32>
    %792 = arith.addf %787, %791 : vector<16x32xf32>
    %793 = vector.extract_strided_slice %738 {offsets = [0, 5], sizes = [16, 1], strides = [1, 1]} : vector<16x32xf32> to vector<16x1xf32>
    %794 = vector.extract_strided_slice %727 {offsets = [0, 160], sizes = [16, 32], strides = [1, 1]} : vector<16x1024xf32> to vector<16x32xf32>
    %795 = vector.broadcast %793 : vector<16x1xf32> to vector<16x32xf32>
    %796 = arith.mulf %795, %794 : vector<16x32xf32>
    %797 = arith.addf %792, %796 : vector<16x32xf32>
    %798 = vector.extract_strided_slice %738 {offsets = [0, 6], sizes = [16, 1], strides = [1, 1]} : vector<16x32xf32> to vector<16x1xf32>
    %799 = vector.extract_strided_slice %727 {offsets = [0, 192], sizes = [16, 32], strides = [1, 1]} : vector<16x1024xf32> to vector<16x32xf32>
    %800 = vector.broadcast %798 : vector<16x1xf32> to vector<16x32xf32>
    %801 = arith.mulf %800, %799 : vector<16x32xf32>
    %802 = arith.addf %797, %801 : vector<16x32xf32>
    %803 = vector.extract_strided_slice %738 {offsets = [0, 7], sizes = [16, 1], strides = [1, 1]} : vector<16x32xf32> to vector<16x1xf32>
    %804 = vector.extract_strided_slice %727 {offsets = [0, 224], sizes = [16, 32], strides = [1, 1]} : vector<16x1024xf32> to vector<16x32xf32>
    %805 = vector.broadcast %803 : vector<16x1xf32> to vector<16x32xf32>
    %806 = arith.mulf %805, %804 : vector<16x32xf32>
    %807 = arith.addf %802, %806 : vector<16x32xf32>
    %808 = vector.extract_strided_slice %738 {offsets = [0, 8], sizes = [16, 1], strides = [1, 1]} : vector<16x32xf32> to vector<16x1xf32>
    %809 = vector.extract_strided_slice %727 {offsets = [0, 256], sizes = [16, 32], strides = [1, 1]} : vector<16x1024xf32> to vector<16x32xf32>
    %810 = vector.broadcast %808 : vector<16x1xf32> to vector<16x32xf32>
    %811 = arith.mulf %810, %809 : vector<16x32xf32>
    %812 = arith.addf %807, %811 : vector<16x32xf32>
    %813 = vector.extract_strided_slice %738 {offsets = [0, 9], sizes = [16, 1], strides = [1, 1]} : vector<16x32xf32> to vector<16x1xf32>
    %814 = vector.extract_strided_slice %727 {offsets = [0, 288], sizes = [16, 32], strides = [1, 1]} : vector<16x1024xf32> to vector<16x32xf32>
    %815 = vector.broadcast %813 : vector<16x1xf32> to vector<16x32xf32>
    %816 = arith.mulf %815, %814 : vector<16x32xf32>
    %817 = arith.addf %812, %816 : vector<16x32xf32>
    %818 = vector.extract_strided_slice %738 {offsets = [0, 10], sizes = [16, 1], strides = [1, 1]} : vector<16x32xf32> to vector<16x1xf32>
    %819 = vector.extract_strided_slice %727 {offsets = [0, 320], sizes = [16, 32], strides = [1, 1]} : vector<16x1024xf32> to vector<16x32xf32>
    %820 = vector.broadcast %818 : vector<16x1xf32> to vector<16x32xf32>
    %821 = arith.mulf %820, %819 : vector<16x32xf32>
    %822 = arith.addf %817, %821 : vector<16x32xf32>
    %823 = vector.extract_strided_slice %738 {offsets = [0, 11], sizes = [16, 1], strides = [1, 1]} : vector<16x32xf32> to vector<16x1xf32>
    %824 = vector.extract_strided_slice %727 {offsets = [0, 352], sizes = [16, 32], strides = [1, 1]} : vector<16x1024xf32> to vector<16x32xf32>
    %825 = vector.broadcast %823 : vector<16x1xf32> to vector<16x32xf32>
    %826 = arith.mulf %825, %824 : vector<16x32xf32>
    %827 = arith.addf %822, %826 : vector<16x32xf32>
    %828 = vector.extract_strided_slice %738 {offsets = [0, 12], sizes = [16, 1], strides = [1, 1]} : vector<16x32xf32> to vector<16x1xf32>
    %829 = vector.extract_strided_slice %727 {offsets = [0, 384], sizes = [16, 32], strides = [1, 1]} : vector<16x1024xf32> to vector<16x32xf32>
    %830 = vector.broadcast %828 : vector<16x1xf32> to vector<16x32xf32>
    %831 = arith.mulf %830, %829 : vector<16x32xf32>
    %832 = arith.addf %827, %831 : vector<16x32xf32>
    %833 = vector.extract_strided_slice %738 {offsets = [0, 13], sizes = [16, 1], strides = [1, 1]} : vector<16x32xf32> to vector<16x1xf32>
    %834 = vector.extract_strided_slice %727 {offsets = [0, 416], sizes = [16, 32], strides = [1, 1]} : vector<16x1024xf32> to vector<16x32xf32>
    %835 = vector.broadcast %833 : vector<16x1xf32> to vector<16x32xf32>
    %836 = arith.mulf %835, %834 : vector<16x32xf32>
    %837 = arith.addf %832, %836 : vector<16x32xf32>
    %838 = vector.extract_strided_slice %738 {offsets = [0, 14], sizes = [16, 1], strides = [1, 1]} : vector<16x32xf32> to vector<16x1xf32>
    %839 = vector.extract_strided_slice %727 {offsets = [0, 448], sizes = [16, 32], strides = [1, 1]} : vector<16x1024xf32> to vector<16x32xf32>
    %840 = vector.broadcast %838 : vector<16x1xf32> to vector<16x32xf32>
    %841 = arith.mulf %840, %839 : vector<16x32xf32>
    %842 = arith.addf %837, %841 : vector<16x32xf32>
    %843 = vector.extract_strided_slice %738 {offsets = [0, 15], sizes = [16, 1], strides = [1, 1]} : vector<16x32xf32> to vector<16x1xf32>
    %844 = vector.extract_strided_slice %727 {offsets = [0, 480], sizes = [16, 32], strides = [1, 1]} : vector<16x1024xf32> to vector<16x32xf32>
    %845 = vector.broadcast %843 : vector<16x1xf32> to vector<16x32xf32>
    %846 = arith.mulf %845, %844 : vector<16x32xf32>
    %847 = arith.addf %842, %846 : vector<16x32xf32>
    %848 = vector.extract_strided_slice %738 {offsets = [0, 16], sizes = [16, 1], strides = [1, 1]} : vector<16x32xf32> to vector<16x1xf32>
    %849 = vector.extract_strided_slice %727 {offsets = [0, 512], sizes = [16, 32], strides = [1, 1]} : vector<16x1024xf32> to vector<16x32xf32>
    %850 = vector.broadcast %848 : vector<16x1xf32> to vector<16x32xf32>
    %851 = arith.mulf %850, %849 : vector<16x32xf32>
    %852 = arith.addf %847, %851 : vector<16x32xf32>
    %853 = vector.extract_strided_slice %738 {offsets = [0, 17], sizes = [16, 1], strides = [1, 1]} : vector<16x32xf32> to vector<16x1xf32>
    %854 = vector.extract_strided_slice %727 {offsets = [0, 544], sizes = [16, 32], strides = [1, 1]} : vector<16x1024xf32> to vector<16x32xf32>
    %855 = vector.broadcast %853 : vector<16x1xf32> to vector<16x32xf32>
    %856 = arith.mulf %855, %854 : vector<16x32xf32>
    %857 = arith.addf %852, %856 : vector<16x32xf32>
    %858 = vector.extract_strided_slice %738 {offsets = [0, 18], sizes = [16, 1], strides = [1, 1]} : vector<16x32xf32> to vector<16x1xf32>
    %859 = vector.extract_strided_slice %727 {offsets = [0, 576], sizes = [16, 32], strides = [1, 1]} : vector<16x1024xf32> to vector<16x32xf32>
    %860 = vector.broadcast %858 : vector<16x1xf32> to vector<16x32xf32>
    %861 = arith.mulf %860, %859 : vector<16x32xf32>
    %862 = arith.addf %857, %861 : vector<16x32xf32>
    %863 = vector.extract_strided_slice %738 {offsets = [0, 19], sizes = [16, 1], strides = [1, 1]} : vector<16x32xf32> to vector<16x1xf32>
    %864 = vector.extract_strided_slice %727 {offsets = [0, 608], sizes = [16, 32], strides = [1, 1]} : vector<16x1024xf32> to vector<16x32xf32>
    %865 = vector.broadcast %863 : vector<16x1xf32> to vector<16x32xf32>
    %866 = arith.mulf %865, %864 : vector<16x32xf32>
    %867 = arith.addf %862, %866 : vector<16x32xf32>
    %868 = vector.extract_strided_slice %738 {offsets = [0, 20], sizes = [16, 1], strides = [1, 1]} : vector<16x32xf32> to vector<16x1xf32>
    %869 = vector.extract_strided_slice %727 {offsets = [0, 640], sizes = [16, 32], strides = [1, 1]} : vector<16x1024xf32> to vector<16x32xf32>
    %870 = vector.broadcast %868 : vector<16x1xf32> to vector<16x32xf32>
    %871 = arith.mulf %870, %869 : vector<16x32xf32>
    %872 = arith.addf %867, %871 : vector<16x32xf32>
    %873 = vector.extract_strided_slice %738 {offsets = [0, 21], sizes = [16, 1], strides = [1, 1]} : vector<16x32xf32> to vector<16x1xf32>
    %874 = vector.extract_strided_slice %727 {offsets = [0, 672], sizes = [16, 32], strides = [1, 1]} : vector<16x1024xf32> to vector<16x32xf32>
    %875 = vector.broadcast %873 : vector<16x1xf32> to vector<16x32xf32>
    %876 = arith.mulf %875, %874 : vector<16x32xf32>
    %877 = arith.addf %872, %876 : vector<16x32xf32>
    %878 = vector.extract_strided_slice %738 {offsets = [0, 22], sizes = [16, 1], strides = [1, 1]} : vector<16x32xf32> to vector<16x1xf32>
    %879 = vector.extract_strided_slice %727 {offsets = [0, 704], sizes = [16, 32], strides = [1, 1]} : vector<16x1024xf32> to vector<16x32xf32>
    %880 = vector.broadcast %878 : vector<16x1xf32> to vector<16x32xf32>
    %881 = arith.mulf %880, %879 : vector<16x32xf32>
    %882 = arith.addf %877, %881 : vector<16x32xf32>
    %883 = vector.extract_strided_slice %738 {offsets = [0, 23], sizes = [16, 1], strides = [1, 1]} : vector<16x32xf32> to vector<16x1xf32>
    %884 = vector.extract_strided_slice %727 {offsets = [0, 736], sizes = [16, 32], strides = [1, 1]} : vector<16x1024xf32> to vector<16x32xf32>
    %885 = vector.broadcast %883 : vector<16x1xf32> to vector<16x32xf32>
    %886 = arith.mulf %885, %884 : vector<16x32xf32>
    %887 = arith.addf %882, %886 : vector<16x32xf32>
    %888 = vector.extract_strided_slice %738 {offsets = [0, 24], sizes = [16, 1], strides = [1, 1]} : vector<16x32xf32> to vector<16x1xf32>
    %889 = vector.extract_strided_slice %727 {offsets = [0, 768], sizes = [16, 32], strides = [1, 1]} : vector<16x1024xf32> to vector<16x32xf32>
    %890 = vector.broadcast %888 : vector<16x1xf32> to vector<16x32xf32>
    %891 = arith.mulf %890, %889 : vector<16x32xf32>
    %892 = arith.addf %887, %891 : vector<16x32xf32>
    %893 = vector.extract_strided_slice %738 {offsets = [0, 25], sizes = [16, 1], strides = [1, 1]} : vector<16x32xf32> to vector<16x1xf32>
    %894 = vector.extract_strided_slice %727 {offsets = [0, 800], sizes = [16, 32], strides = [1, 1]} : vector<16x1024xf32> to vector<16x32xf32>
    %895 = vector.broadcast %893 : vector<16x1xf32> to vector<16x32xf32>
    %896 = arith.mulf %895, %894 : vector<16x32xf32>
    %897 = arith.addf %892, %896 : vector<16x32xf32>
    %898 = vector.extract_strided_slice %738 {offsets = [0, 26], sizes = [16, 1], strides = [1, 1]} : vector<16x32xf32> to vector<16x1xf32>
    %899 = vector.extract_strided_slice %727 {offsets = [0, 832], sizes = [16, 32], strides = [1, 1]} : vector<16x1024xf32> to vector<16x32xf32>
    %900 = vector.broadcast %898 : vector<16x1xf32> to vector<16x32xf32>
    %901 = arith.mulf %900, %899 : vector<16x32xf32>
    %902 = arith.addf %897, %901 : vector<16x32xf32>
    %903 = vector.extract_strided_slice %738 {offsets = [0, 27], sizes = [16, 1], strides = [1, 1]} : vector<16x32xf32> to vector<16x1xf32>
    %904 = vector.extract_strided_slice %727 {offsets = [0, 864], sizes = [16, 32], strides = [1, 1]} : vector<16x1024xf32> to vector<16x32xf32>
    %905 = vector.broadcast %903 : vector<16x1xf32> to vector<16x32xf32>
    %906 = arith.mulf %905, %904 : vector<16x32xf32>
    %907 = arith.addf %902, %906 : vector<16x32xf32>
    %908 = vector.extract_strided_slice %738 {offsets = [0, 28], sizes = [16, 1], strides = [1, 1]} : vector<16x32xf32> to vector<16x1xf32>
    %909 = vector.extract_strided_slice %727 {offsets = [0, 896], sizes = [16, 32], strides = [1, 1]} : vector<16x1024xf32> to vector<16x32xf32>
    %910 = vector.broadcast %908 : vector<16x1xf32> to vector<16x32xf32>
    %911 = arith.mulf %910, %909 : vector<16x32xf32>
    %912 = arith.addf %907, %911 : vector<16x32xf32>
    %913 = vector.extract_strided_slice %738 {offsets = [0, 29], sizes = [16, 1], strides = [1, 1]} : vector<16x32xf32> to vector<16x1xf32>
    %914 = vector.extract_strided_slice %727 {offsets = [0, 928], sizes = [16, 32], strides = [1, 1]} : vector<16x1024xf32> to vector<16x32xf32>
    %915 = vector.broadcast %913 : vector<16x1xf32> to vector<16x32xf32>
    %916 = arith.mulf %915, %914 : vector<16x32xf32>
    %917 = arith.addf %912, %916 : vector<16x32xf32>
    %918 = vector.extract_strided_slice %738 {offsets = [0, 30], sizes = [16, 1], strides = [1, 1]} : vector<16x32xf32> to vector<16x1xf32>
    %919 = vector.extract_strided_slice %727 {offsets = [0, 960], sizes = [16, 32], strides = [1, 1]} : vector<16x1024xf32> to vector<16x32xf32>
    %920 = vector.broadcast %918 : vector<16x1xf32> to vector<16x32xf32>
    %921 = arith.mulf %920, %919 : vector<16x32xf32>
    %922 = arith.addf %917, %921 : vector<16x32xf32>
    %923 = vector.extract_strided_slice %738 {offsets = [0, 31], sizes = [16, 1], strides = [1, 1]} : vector<16x32xf32> to vector<16x1xf32>
    %924 = vector.extract_strided_slice %727 {offsets = [0, 992], sizes = [16, 32], strides = [1, 1]} : vector<16x1024xf32> to vector<16x32xf32>
    %925 = vector.broadcast %923 : vector<16x1xf32> to vector<16x32xf32>
    %926 = arith.mulf %925, %924 : vector<16x32xf32>
    %927 = arith.addf %922, %926 : vector<16x32xf32>
    %928 = vector.broadcast %766 : vector<16x1xf32> to vector<16x32xf32>
    %929 = arith.mulf %927, %928 : vector<16x32xf32>
    %930 = tpu.transpose %13, [1, 0] : vector<16x8xf32> -> vector<8x16xf32>
    %cst_207 = arith.constant dense<0.000000e+00> : vector<8x32xf32>
    %931 = tpu.matmul %930, %929, %cst_207 {dimension_numbers = #tpu.dot_dimension_numbers<[1], [0], [0], [1], [0, 0, 1, 1], [], []>} : vector<8x16xf32>, vector<16x32xf32>, vector<8x32xf32> -> vector<8x32xf32>
    %932 = arith.addf %931, %735 : vector<8x32xf32>
    %c0_208 = arith.constant 0 : index
    %c0_209 = arith.constant 0 : index
    %933 = vector.load %arg47[%c0_208, %c0_209] : memref<1x32xf32, #tpu.memory_space<vmem>>, vector<1x32xf32>
    %c0_210 = arith.constant 0 : index
    %c0_211 = arith.constant 0 : index
    %934 = vector.load %arg48[%c0_210, %c0_211] : memref<1x32xf32, #tpu.memory_space<vmem>>, vector<1x32xf32>
    %cst_212 = arith.constant 3.200000e+01 : f32
    %935 = vector.broadcast %cst_212 : f32 to vector<1x2xf32>
    %936 = arith.mulf %22, %935 : vector<1x2xf32>
    %cst_213 = arith.constant dense<0.000000e+00> : vector<8xf32>
    %937 = vector.multi_reduction <add>, %932, %cst_213 [1] : vector<8x32xf32> to vector<8xf32>
    %938 = vector.shape_cast %937 : vector<8xf32> to vector<8x1xf32>
    %939 = vector.broadcast %938 : vector<8x1xf32> to vector<8x2xf32>
    %940 = arith.mulf %18, %939 : vector<8x2xf32>
    %cst_214 = arith.constant dense<0.000000e+00> : vector<2xf32>
    %941 = vector.multi_reduction <add>, %940, %cst_214 [0] : vector<8x2xf32> to vector<2xf32>
    %942 = vector.shape_cast %941 : vector<2xf32> to vector<1x2xf32>
    %943 = arith.divf %942, %936 : vector<1x2xf32>
    %944 = vector.broadcast %943 : vector<1x2xf32> to vector<8x2xf32>
    %945 = arith.mulf %18, %944 : vector<8x2xf32>
    %cst_215 = arith.constant dense<0.000000e+00> : vector<8xf32>
    %946 = vector.multi_reduction <add>, %945, %cst_215 [1] : vector<8x2xf32> to vector<8xf32>
    %947 = vector.shape_cast %946 : vector<8xf32> to vector<8x1xf32>
    %948 = vector.broadcast %947 : vector<8x1xf32> to vector<8x32xf32>
    %949 = arith.subf %932, %948 : vector<8x32xf32>
    %950 = arith.mulf %949, %949 : vector<8x32xf32>
    %cst_216 = arith.constant dense<0.000000e+00> : vector<8xf32>
    %951 = vector.multi_reduction <add>, %950, %cst_216 [1] : vector<8x32xf32> to vector<8xf32>
    %952 = vector.shape_cast %951 : vector<8xf32> to vector<8x1xf32>
    %953 = vector.broadcast %952 : vector<8x1xf32> to vector<8x2xf32>
    %954 = arith.mulf %18, %953 : vector<8x2xf32>
    %cst_217 = arith.constant dense<0.000000e+00> : vector<2xf32>
    %955 = vector.multi_reduction <add>, %954, %cst_217 [0] : vector<8x2xf32> to vector<2xf32>
    %956 = vector.shape_cast %955 : vector<2xf32> to vector<1x2xf32>
    %957 = arith.divf %956, %936 : vector<1x2xf32>
    %958 = vector.broadcast %957 : vector<1x2xf32> to vector<8x2xf32>
    %959 = arith.mulf %18, %958 : vector<8x2xf32>
    %cst_218 = arith.constant dense<0.000000e+00> : vector<8xf32>
    %960 = vector.multi_reduction <add>, %959, %cst_218 [1] : vector<8x2xf32> to vector<8xf32>
    %961 = vector.shape_cast %960 : vector<8xf32> to vector<8x1xf32>
    %cst_219 = arith.constant 9.99999974E-6 : f32
    %962 = vector.broadcast %cst_219 : f32 to vector<8x1xf32>
    %963 = arith.addf %961, %962 : vector<8x1xf32>
    %964 = math.rsqrt %963 : vector<8x1xf32>
    %965 = vector.broadcast %964 : vector<8x1xf32> to vector<8x32xf32>
    %966 = arith.mulf %949, %965 : vector<8x32xf32>
    %967 = vector.broadcast %933 : vector<1x32xf32> to vector<8x32xf32>
    %968 = arith.mulf %966, %967 : vector<8x32xf32>
    %969 = vector.broadcast %934 : vector<1x32xf32> to vector<8x32xf32>
    %970 = arith.addf %968, %969 : vector<8x32xf32>
    %971 = vector.broadcast %22 : vector<1x2xf32> to vector<8x2xf32>
    %972 = arith.divf %18, %971 : vector<8x2xf32>
    %973 = tpu.transpose %972, [1, 0] : vector<8x2xf32> -> vector<2x8xf32>
    %cst_220 = arith.constant dense<0.000000e+00> : vector<2x32xf32>
    %974 = tpu.matmul %973, %970, %cst_220 {dimension_numbers = #tpu.dot_dimension_numbers<[1], [0], [0], [1], [0, 0, 1, 1], [], []>} : vector<2x8xf32>, vector<8x32xf32>, vector<2x32xf32> -> vector<2x32xf32>
    %c0_221 = arith.constant 0 : index
    %c0_222 = arith.constant 0 : index
    %975 = vector.load %arg49[%c0_221, %c0_222] : memref<32x32xf32, #tpu.memory_space<vmem>>, vector<32x32xf32>
    %c0_223 = arith.constant 0 : index
    %c0_224 = arith.constant 0 : index
    %976 = vector.load %arg50[%c0_223, %c0_224] : memref<1x32xf32, #tpu.memory_space<vmem>>, vector<1x32xf32>
    %cst_225 = arith.constant dense<0.000000e+00> : vector<2x32xf32>
    %977 = tpu.matmul %974, %975, %cst_225 {dimension_numbers = #tpu.dot_dimension_numbers<[1], [0], [0], [1], [0, 0, 1, 1], [], []>} : vector<2x32xf32>, vector<32x32xf32>, vector<2x32xf32> -> vector<2x32xf32>
    %978 = vector.broadcast %976 : vector<1x32xf32> to vector<2x32xf32>
    %979 = arith.addf %977, %978 : vector<2x32xf32>
    %c0_226 = arith.constant 0 : index
    %c0_227 = arith.constant 0 : index
    %980 = vector.load %arg51[%c0_226, %c0_227] : memref<1x32xf32, #tpu.memory_space<vmem>>, vector<1x32xf32>
    %c0_228 = arith.constant 0 : index
    %c0_229 = arith.constant 0 : index
    %981 = vector.load %arg52[%c0_228, %c0_229] : memref<1x32xf32, #tpu.memory_space<vmem>>, vector<1x32xf32>
    %cst_230 = arith.constant dense<0.000000e+00> : vector<2xf32>
    %982 = vector.multi_reduction <add>, %979, %cst_230 [1] : vector<2x32xf32> to vector<2xf32>
    %983 = vector.shape_cast %982 : vector<2xf32> to vector<2x1xf32>
    %cst_231 = arith.constant 3.200000e+01 : f32
    %984 = vector.broadcast %cst_231 : f32 to vector<2x1xf32>
    %985 = arith.divf %983, %984 : vector<2x1xf32>
    %986 = vector.broadcast %985 : vector<2x1xf32> to vector<2x32xf32>
    %987 = arith.subf %979, %986 : vector<2x32xf32>
    %988 = arith.mulf %987, %987 : vector<2x32xf32>
    %cst_232 = arith.constant dense<0.000000e+00> : vector<2xf32>
    %989 = vector.multi_reduction <add>, %988, %cst_232 [1] : vector<2x32xf32> to vector<2xf32>
    %990 = vector.shape_cast %989 : vector<2xf32> to vector<2x1xf32>
    %cst_233 = arith.constant 3.200000e+01 : f32
    %991 = vector.broadcast %cst_233 : f32 to vector<2x1xf32>
    %992 = arith.divf %990, %991 : vector<2x1xf32>
    %cst_234 = arith.constant 9.99999974E-6 : f32
    %993 = vector.broadcast %cst_234 : f32 to vector<2x1xf32>
    %994 = arith.addf %992, %993 : vector<2x1xf32>
    %995 = math.rsqrt %994 : vector<2x1xf32>
    %996 = vector.broadcast %995 : vector<2x1xf32> to vector<2x32xf32>
    %997 = arith.mulf %987, %996 : vector<2x32xf32>
    %998 = vector.broadcast %980 : vector<1x32xf32> to vector<2x32xf32>
    %999 = arith.mulf %997, %998 : vector<2x32xf32>
    %1000 = vector.broadcast %981 : vector<1x32xf32> to vector<2x32xf32>
    %1001 = arith.addf %999, %1000 : vector<2x32xf32>
    %cst_235 = arith.constant 0.000000e+00 : f32
    %1002 = vector.broadcast %cst_235 : f32 to vector<2x32xf32>
    %1003 = arith.cmpf ogt, %1001, %1002 : vector<2x32xf32>
    %cst_236 = arith.constant 0.00999999977 : f32
    %1004 = vector.broadcast %cst_236 : f32 to vector<2x32xf32>
    %1005 = arith.mulf %1004, %1001 : vector<2x32xf32>
    %1006 = arith.select %1003, %1001, %1005 : vector<2x32xi1>, vector<2x32xf32>
    %c0_237 = arith.constant 0 : index
    %c0_238 = arith.constant 0 : index
    %1007 = vector.load %arg53[%c0_237, %c0_238] : memref<32x1xf32, #tpu.memory_space<vmem>>, vector<32x1xf32>
    %c0_239 = arith.constant 0 : index
    %c0_240 = arith.constant 0 : index
    %1008 = vector.load %arg54[%c0_239, %c0_240] : memref<1x1xf32, #tpu.memory_space<vmem>>, vector<1x1xf32>
    %cst_241 = arith.constant dense<0.000000e+00> : vector<2x1xf32>
    %1009 = tpu.matmul %1006, %1007, %cst_241 {dimension_numbers = #tpu.dot_dimension_numbers<[1], [0], [0], [1], [0, 0, 1, 1], [], []>} : vector<2x32xf32>, vector<32x1xf32>, vector<2x1xf32> -> vector<2x1xf32>
    %1010 = vector.broadcast %1008 : vector<1x1xf32> to vector<2x1xf32>
    %1011 = arith.addf %1009, %1010 : vector<2x1xf32>
    %c0_242 = arith.constant 0 : index
    %c0_243 = arith.constant 0 : index
    %1012 = vector.load %arg55[%c0_242, %c0_243] : memref<2x1xf32, #tpu.memory_space<vmem>>, vector<2x1xf32>
    tpu.vector_store %arg55[%c0_242, %c0_243], %1011 {strides = array<i32>} : memref<2x1xf32, #tpu.memory_space<vmem>>, vector<2x1xf32>,
    return
  }
}

</mosaic_0001>

<llo_original>
// kernel: stag_forward.1
$region0: #{stag_forward.1}
  #allocation0 [shape = 'u32[]', space=smem, size = 0x4, offset = 0x4, fixed_abs, tag = 'smem constant byte address 0x4 - core index']
  #allocation1 [shape = 'u32[144,128]{1,0:T(1,128)}', space=vmem, size = 0x12000, scoped, tag = 'internal scratch']
  #allocation2 [shape = 'f32[1,1]{1,0:T(1,128)S(1)}', space=vmem, size = 0x200, scoped, tag = 'scoped memory for stag_forward.1']
  %s0 = inlined_call_operand.smem [shape: u32[56], index: -1, kind: input, shape index: {}]
  %s1 = sld [smem:[%s0]]
  %s2 = scalar_lea.smem %s0, 1
  %s3 = sld [smem:[%s2]]
  %s4 = scalar_lea.smem %s0, 2
  %s5 = sld [smem:[%s4]]
  %s6 = scalar_lea.smem %s0, 3
  %s7 = sld [smem:[%s6]]
  %s8 = scalar_lea.smem %s0, 4
  %s9 = sld [smem:[%s8]]
  %s10 = scalar_lea.smem %s0, 5
  %s11 = sld [smem:[%s10]]
  %s12 = scalar_lea.smem %s0, 6
  %s13 = sld [smem:[%s12]]
  %s14 = scalar_lea.smem %s0, 7
  %s15 = sld [smem:[%s14]]
  %s16 = scalar_lea.smem %s0, 8
  %s17 = sld [smem:[%s16]]
  %s18 = scalar_lea.smem %s0, 9
  %s19 = sld [smem:[%s18]]
  %s20 = scalar_lea.smem %s0, 10
  %s21 = sld [smem:[%s20]]
  %s22 = scalar_lea.smem %s0, 11
  %s23 = sld [smem:[%s22]]
  %s24 = scalar_lea.smem %s0, 12
  %s25 = sld [smem:[%s24]]
  %s26 = scalar_lea.smem %s0, 13
  %s27 = sld [smem:[%s26]]
  %s28 = scalar_lea.smem %s0, 14
  %s29 = sld [smem:[%s28]]
  %s30 = scalar_lea.smem %s0, 15
  %s31 = sld [smem:[%s30]]
  %s32 = scalar_lea.smem %s0, 16
  %s33 = sld [smem:[%s32]]
  %s34 = scalar_lea.smem %s0, 17
  %s35 = sld [smem:[%s34]]
  %s36 = scalar_lea.smem %s0, 18
  %s37 = sld [smem:[%s36]]
  %s38 = scalar_lea.smem %s0, 19
  %s39 = sld [smem:[%s38]]
  %s40 = scalar_lea.smem %s0, 20
  %s41 = sld [smem:[%s40]]
  %s42 = scalar_lea.smem %s0, 21
  %s43 = sld [smem:[%s42]]
  %s44 = scalar_lea.smem %s0, 22
  %s45 = sld [smem:[%s44]]
  %s46 = scalar_lea.smem %s0, 23
  %s47 = sld [smem:[%s46]]
  %s48 = scalar_lea.smem %s0, 24
  %s49 = sld [smem:[%s48]]
  %s50 = scalar_lea.smem %s0, 25
  %s51 = sld [smem:[%s50]]
  %s52 = scalar_lea.smem %s0, 26
  %s53 = sld [smem:[%s52]]
  %s54 = scalar_lea.smem %s0, 27
  %s55 = sld [smem:[%s54]]
  %s56 = scalar_lea.smem %s0, 28
  %s57 = sld [smem:[%s56]]
  %s58 = scalar_lea.smem %s0, 29
  %s59 = sld [smem:[%s58]]
  %s60 = scalar_lea.smem %s0, 30
  %s61 = sld [smem:[%s60]]
  %s62 = scalar_lea.smem %s0, 31
  %s63 = sld [smem:[%s62]]
  %s64 = scalar_lea.smem %s0, 32
  %s65 = sld [smem:[%s64]]
  %s66 = scalar_lea.smem %s0, 33
  %s67 = sld [smem:[%s66]]
  %s68 = scalar_lea.smem %s0, 34
  %s69 = sld [smem:[%s68]]
  %s70 = scalar_lea.smem %s0, 35
  %s71 = sld [smem:[%s70]]
  %s72 = scalar_lea.smem %s0, 36
  %s73 = sld [smem:[%s72]]
  %s74 = scalar_lea.smem %s0, 37
  %s75 = sld [smem:[%s74]]
  %s76 = scalar_lea.smem %s0, 38
  %s77 = sld [smem:[%s76]]
  %s78 = scalar_lea.smem %s0, 39
  %s79 = sld [smem:[%s78]]
  %s80 = scalar_lea.smem %s0, 40
  %s81 = sld [smem:[%s80]]
  %s82 = scalar_lea.smem %s0, 41
  %s83 = sld [smem:[%s82]]
  %s84 = scalar_lea.smem %s0, 42
  %s85 = sld [smem:[%s84]]
  %s86 = scalar_lea.smem %s0, 43
  %s87 = sld [smem:[%s86]]
  %s88 = scalar_lea.smem %s0, 44
  %s89 = sld [smem:[%s88]]
  %s90 = scalar_lea.smem %s0, 45
  %s91 = sld [smem:[%s90]]
  %s92 = scalar_lea.smem %s0, 46
  %s93 = sld [smem:[%s92]]
  %s94 = scalar_lea.smem %s0, 47
  %s95 = sld [smem:[%s94]]
  %s96 = scalar_lea.smem %s0, 48
  %s97 = sld [smem:[%s96]]
  %s98 = scalar_lea.smem %s0, 49
  %s99 = sld [smem:[%s98]]
  %s100 = scalar_lea.smem %s0, 50
  %s101 = sld [smem:[%s100]]
  %s102 = scalar_lea.smem %s0, 51
  %s103 = sld [smem:[%s102]]
  %s104 = scalar_lea.smem %s0, 52
  %s105 = sld [smem:[%s104]]
  %s106 = scalar_lea.smem %s0, 53
  %s107 = sld [smem:[%s106]]
  %s108 = scalar_lea.smem %s0, 54
  %s109 = sld [smem:[%s108]]
  %s110 = scalar_lea.smem %s0, 55
  %s111 = sld [smem:[%s110]]
  %s112 = sld [smem:[#allocation0]]
  $region374: #{stag_forward.1} parent=0
    _
  %s114 = ssub.s32 1, %s112
  %s115 = scalar_select 0, %s114, %s112
  %v116 = vstv %s109
  %117 = vst [vmem:[#allocation2] sm:$0x1] %v116
  $region1: #{stag_forward.1} parent=0
    #allocation3 [shape = 'u8[512]{0}', space=vmem, size = 0x400, scoped, tag = 'input window, operand 10, single buffered']
    #allocation4 [shape = 's32[1]{0}', space=sflag, size = 0x4, scoped, tag = 'scoped memory for stag_forward.1']
    #allocation5 [shape = 'u8[512]{0}', space=vmem, size = 0x400, scoped, tag = 'input window, operand 14, single buffered']
    #allocation6 [shape = 's32[1]{0}', space=sflag, size = 0x4, scoped, tag = 'scoped memory for stag_forward.1']
    #allocation7 [shape = 'u8[512]{0}', space=vmem, size = 0x400, scoped, tag = 'input window, operand 15, single buffered']
    #allocation8 [shape = 'u8[512]{0}', space=vmem, size = 0x400, scoped, tag = 'input window, operand 16, single buffered']
    #allocation9 [shape = 's32[1]{0}', space=sflag, size = 0x4, scoped, tag = 'scoped memory for stag_forward.1']
    #allocation10 [shape = 'u8[8192]{0}', space=vmem, size = 0x2000, scoped, tag = 'input window, operand 17, single buffered']
    #allocation11 [shape = 'u8[512]{0}', space=vmem, size = 0x400, scoped, tag = 'input window, operand 18, single buffered']
    #allocation12 [shape = 's32[1]{0}', space=sflag, size = 0x4, scoped, tag = 'scoped memory for stag_forward.1']
    #allocation13 [shape = 'u8[8192]{0}', space=vmem, size = 0x2000, scoped, tag = 'input window, operand 19, single buffered']
    #allocation14 [shape = 'u8[512]{0}', space=vmem, size = 0x400, scoped, tag = 'input window, operand 20, single buffered']
    #allocation15 [shape = 's32[1]{0}', space=sflag, size = 0x4, scoped, tag = 'scoped memory for stag_forward.1']
    #allocation16 [shape = 'u8[512]{0}', space=vmem, size = 0x400, scoped, tag = 'input window, operand 21, single buffered']
    #allocation17 [shape = 'u8[512]{0}', space=vmem, size = 0x400, scoped, tag = 'input window, operand 22, single buffered']
    #allocation18 [shape = 's32[1]{0}', space=sflag, size = 0x4, scoped, tag = 'scoped memory for stag_forward.1']
    #allocation19 [shape = 'u8[4096]{0}', space=vmem, size = 0x1000, scoped, tag = 'input window, operand 24, single buffered']
    #allocation20 [shape = 'u8[16384]{0}', space=vmem, size = 0x4000, scoped, tag = 'input window, operand 25, single buffered']
    #allocation21 [shape = 's32[1]{0}', space=sflag, size = 0x4, scoped, tag = 'scoped memory for stag_forward.1']
    #allocation22 [shape = 'u8[512]{0}', space=vmem, size = 0x400, scoped, tag = 'input window, operand 26, single buffered']
    #allocation23 [shape = 'u8[512]{0}', space=vmem, size = 0x400, scoped, tag = 'input window, operand 27, single buffered']
    #allocation24 [shape = 's32[1]{0}', space=sflag, size = 0x4, scoped, tag = 'scoped memory for stag_forward.1']
    #allocation25 [shape = 'u8[512]{0}', space=vmem, size = 0x400, scoped, tag = 'input window, operand 28, single buffered']
    #allocation26 [shape = 'u8[8192]{0}', space=vmem, size = 0x2000, scoped, tag = 'input window, operand 29, single buffered']
    #allocation27 [shape = 's32[1]{0}', space=sflag, size = 0x4, scoped, tag = 'scoped memory for stag_forward.1']
    #allocation28 [shape = 'u8[512]{0}', space=vmem, size = 0x400, scoped, tag = 'input window, operand 30, single buffered']
    #allocation29 [shape = 'u8[512]{0}', space=vmem, size = 0x400, scoped, tag = 'input window, operand 31, single buffered']
    #allocation30 [shape = 's32[1]{0}', space=sflag, size = 0x4, scoped, tag = 'scoped memory for stag_forward.1']
    #allocation31 [shape = 'u8[512]{0}', space=vmem, size = 0x400, scoped, tag = 'input window, operand 32, single buffered']
    #allocation32 [shape = 'u8[4096]{0}', space=vmem, size = 0x1000, scoped, tag = 'input window, operand 34, single buffered']
    #allocation33 [shape = 's32[1]{0}', space=sflag, size = 0x4, scoped, tag = 'scoped memory for stag_forward.1']
    #allocation34 [shape = 'u8[16384]{0}', space=vmem, size = 0x4000, scoped, tag = 'input window, operand 35, single buffered']
    #allocation35 [shape = 'u8[512]{0}', space=vmem, size = 0x400, scoped, tag = 'input window, operand 36, single buffered']
    #allocation36 [shape = 's32[1]{0}', space=sflag, size = 0x4, scoped, tag = 'scoped memory for stag_forward.1']
    #allocation37 [shape = 'u8[512]{0}', space=vmem, size = 0x400, scoped, tag = 'input window, operand 37, single buffered']
    #allocation38 [shape = 'u8[512]{0}', space=vmem, size = 0x400, scoped, tag = 'input window, operand 38, single buffered']
    #allocation39 [shape = 's32[1]{0}', space=sflag, size = 0x4, scoped, tag = 'scoped memory for stag_forward.1']
    #allocation40 [shape = 'u8[8192]{0}', space=vmem, size = 0x2000, scoped, tag = 'input window, operand 39, single buffered']
    #allocation41 [shape = 'u8[512]{0}', space=vmem, size = 0x400, scoped, tag = 'input window, operand 40, single buffered']
    #allocation42 [shape = 's32[1]{0}', space=sflag, size = 0x4, scoped, tag = 'scoped memory for stag_forward.1']
    #allocation43 [shape = 'u8[512]{0}', space=vmem, size = 0x400, scoped, tag = 'input window, operand 41, single buffered']
    #allocation44 [shape = 'u8[512]{0}', space=vmem, size = 0x400, scoped, tag = 'input window, operand 42, single buffered']
    #allocation45 [shape = 's32[1]{0}', space=sflag, size = 0x4, scoped, tag = 'scoped memory for stag_forward.1']
    #allocation46 [shape = 'u8[65536]{0}', space=vmem, size = 0x10000, scoped, tag = 'input window, operand 43, single buffered']
    #allocation47 [shape = 'u8[4096]{0}', space=vmem, size = 0x1000, scoped, tag = 'input window, operand 44, single buffered']
    #allocation48 [shape = 's32[1]{0}', space=sflag, size = 0x4, scoped, tag = 'scoped memory for stag_forward.1']
    #allocation49 [shape = 'u8[512]{0}', space=vmem, size = 0x400, scoped, tag = 'input window, operand 46, single buffered']
    #allocation50 [shape = 'u8[512]{0}', space=vmem, size = 0x400, scoped, tag = 'input window, operand 47, single buffered']
    #allocation51 [shape = 's32[1]{0}', space=sflag, size = 0x4, scoped, tag = 'scoped memory for stag_forward.1']
    #allocation52 [shape = 'u8[512]{0}', space=vmem, size = 0x400, scoped, tag = 'input window, operand 48, single buffered']
    #allocation53 [shape = 'u8[512]{0}', space=vmem, size = 0x400, scoped, tag = 'input window, operand 50, single buffered']
    #allocation54 [shape = 's32[1]{0}', space=sflag, size = 0x4, scoped, tag = 'scoped memory for stag_forward.1']
    #allocation55 [shape = 'u8[512]{0}', space=vmem, size = 0x400, scoped, tag = 'input window, operand 51, single buffered']
    #allocation56 [shape = 'u8[512]{0}', space=vmem, size = 0x400, scoped, tag = 'input window, operand 52, single buffered']
    #allocation57 [shape = 's32[1]{0}', space=sflag, size = 0x4, scoped, tag = 'scoped memory for stag_forward.1']
    %118 = vsyncpa [#allocation4], 0
    %119 = vsyncpa [#allocation6], 0
    %120 = vsyncpa [#allocation9], 0
    %121 = vsyncpa [#allocation12], 0
    %122 = vsyncpa [#allocation15], 0
    %123 = vsyncpa [#allocation18], 0
    %124 = vsyncpa [#allocation21], 0
    %125 = vsyncpa [#allocation24], 0
    %126 = vsyncpa [#allocation27], 0
    %127 = vsyncpa [#allocation30], 0
    %128 = vsyncpa [#allocation33], 0
    %129 = vsyncpa [#allocation36], 0
    %130 = vsyncpa [#allocation39], 0
    %131 = vsyncpa [#allocation42], 0
    %132 = vsyncpa [#allocation45], 0
    %133 = vsyncpa [#allocation48], 0
    %134 = vsyncpa [#allocation51], 0
    %135 = vsyncpa [#allocation54], 0
    %136 = vsyncpa [#allocation57], 0
    // Predicated region
    $region2: #{stag_forward.1} parent=1 // pred_check
      _
    $region3: #{stag_forward.1} parent=1 // pred_check_branch
      %138 = sbr.rel (0) target = $region5
    $region4: #{stag_forward.1} parent=1 // pred_region
      _
    $region5: #{stag_forward.1} parent=1 // pred_fallthru
      _
    // Predicated region
    $region6: #{stag_forward.1} parent=1 // pred_check
      _
    $region7: #{stag_forward.1} parent=1 // pred_check_branch
      %140 = sbr.rel (0) target = $region9
    $region8: #{stag_forward.1} parent=1 // pred_region
      _
    $region9: #{stag_forward.1} parent=1 // pred_fallthru
      _
    // Predicated region
    $region10: #{stag_forward.1} parent=1 // pred_check
      _
    $region11: #{stag_forward.1} parent=1 // pred_check_branch
      %142 = sbr.rel (0) target = $region13
    $region12: #{stag_forward.1} parent=1 // pred_region
      _
    $region13: #{stag_forward.1} parent=1 // pred_fallthru
      _
    // Predicated region
    $region14: #{stag_forward.1} parent=1 // pred_check
      _
    $region15: #{stag_forward.1} parent=1 // pred_check_branch
      %144 = sbr.rel (0) target = $region17
    $region16: #{stag_forward.1} parent=1 // pred_region
      _
    $region17: #{stag_forward.1} parent=1 // pred_fallthru
      _
    // Predicated region
    $region18: #{stag_forward.1} parent=1 // pred_check
      _
    $region19: #{stag_forward.1} parent=1 // pred_check_branch
      %146 = sbr.rel (0) target = $region21
    $region20: #{stag_forward.1} parent=1 // pred_region
      _
    $region21: #{stag_forward.1} parent=1 // pred_fallthru
      _
    // Predicated region
    $region22: #{stag_forward.1} parent=1 // pred_check
      _
    $region23: #{stag_forward.1} parent=1 // pred_check_branch
      %148 = sbr.rel (0) target = $region25
    $region24: #{stag_forward.1} parent=1 // pred_region
      _
    $region25: #{stag_forward.1} parent=1 // pred_fallthru
      _
    // Predicated region
    $region26: #{stag_forward.1} parent=1 // pred_check
      _
    $region27: #{stag_forward.1} parent=1 // pred_check_branch
      %150 = sbr.rel (0) target = $region29
    $region28: #{stag_forward.1} parent=1 // pred_region
      _
    $region29: #{stag_forward.1} parent=1 // pred_fallthru
      _
    // Predicated region
    $region30: #{stag_forward.1} parent=1 // pred_check
      _
    $region31: #{stag_forward.1} parent=1 // pred_check_branch
      %152 = sbr.rel (0) target = $region33
    $region32: #{stag_forward.1} parent=1 // pred_region
      _
    $region33: #{stag_forward.1} parent=1 // pred_fallthru
      _
    // Predicated region
    $region34: #{stag_forward.1} parent=1 // pred_check
      _
    $region35: #{stag_forward.1} parent=1 // pred_check_branch
      %154 = sbr.rel (0) target = $region37
    $region36: #{stag_forward.1} parent=1 // pred_region
      _
    $region37: #{stag_forward.1} parent=1 // pred_fallthru
      _
    // Predicated region
    $region38: #{stag_forward.1} parent=1 // pred_check
      _
    $region39: #{stag_forward.1} parent=1 // pred_check_branch
      %156 = sbr.rel (0) target = $region41
    $region40: #{stag_forward.1} parent=1 // pred_region
      _
    $region41: #{stag_forward.1} parent=1 // pred_fallthru
      _
    // Predicated region
    $region42: #{stag_forward.1} parent=1 // pred_check
      _
    $region43: #{stag_forward.1} parent=1 // pred_check_branch
      %158 = sbr.rel (0) target = $region45
    $region44: #{stag_forward.1} parent=1 // pred_region
      %s160 = ssub.s32 16, 16
      %161 = vsyncadd [#allocation4], %s160
      %s163 = sshll.u32 [#allocation3], 4
      %s164 = int_to_ptr.vmem [resolvable:$true] %s163
      %166 = dma.hbm_to_vmem [thread:$0]  %s21, 16, %s164, [#allocation4]
    $region45: #{stag_forward.1} parent=1 // pred_fallthru
      _
    // Predicated region
    $region46: #{stag_forward.1} parent=1 // pred_check
      _
    $region47: #{stag_forward.1} parent=1 // pred_check_branch
      %168 = sbr.rel (0) target = $region49
    $region48: #{stag_forward.1} parent=1 // pred_region
      _
    $region49: #{stag_forward.1} parent=1 // pred_fallthru
      _
    // Predicated region
    $region50: #{stag_forward.1} parent=1 // pred_check
      _
    $region51: #{stag_forward.1} parent=1 // pred_check_branch
      %170 = sbr.rel (0) target = $region53
    $region52: #{stag_forward.1} parent=1 // pred_region
      _
    $region53: #{stag_forward.1} parent=1 // pred_fallthru
      _
    // Predicated region
    $region54: #{stag_forward.1} parent=1 // pred_check
      _
    $region55: #{stag_forward.1} parent=1 // pred_check_branch
      %172 = sbr.rel (0) target = $region57
    $region56: #{stag_forward.1} parent=1 // pred_region
      _
    $region57: #{stag_forward.1} parent=1 // pred_fallthru
      _
    // Predicated region
    $region58: #{stag_forward.1} parent=1 // pred_check
      _
    $region59: #{stag_forward.1} parent=1 // pred_check_branch
      %174 = sbr.rel (0) target = $region61
    $region60: #{stag_forward.1} parent=1 // pred_region
      %s176 = ssub.s32 16, 16
      %177 = vsyncadd [#allocation6], %s176
      %s179 = sshll.u32 [#allocation5], 4
      %s180 = int_to_ptr.vmem [resolvable:$true] %s179
      %182 = dma.hbm_to_vmem [thread:$0]  %s29, 16, %s180, [#allocation6]
    $region61: #{stag_forward.1} parent=1 // pred_fallthru
      _
    // Predicated region
    $region62: #{stag_forward.1} parent=1 // pred_check
      _
    $region63: #{stag_forward.1} parent=1 // pred_check_branch
      %184 = sbr.rel (0) target = $region65
    $region64: #{stag_forward.1} parent=1 // pred_region
      %s186 = ssub.s32 16, 16
      %187 = vsyncadd [#allocation6], %s186
      %s189 = sshll.u32 [#allocation7], 4
      %s190 = int_to_ptr.vmem [resolvable:$true] %s189
      %192 = dma.hbm_to_vmem [thread:$0]  %s31, 16, %s190, [#allocation6]
    $region65: #{stag_forward.1} parent=1 // pred_fallthru
      _
    // Predicated region
    $region66: #{stag_forward.1} parent=1 // pred_check
      _
    $region67: #{stag_forward.1} parent=1 // pred_check_branch
      %194 = sbr.rel (0) target = $region69
    $region68: #{stag_forward.1} parent=1 // pred_region
      %s196 = ssub.s32 16, 16
      %197 = vsyncadd [#allocation9], %s196
      %s199 = sshll.u32 [#allocation8], 4
      %s200 = int_to_ptr.vmem [resolvable:$true] %s199
      %202 = dma.hbm_to_vmem [thread:$0]  %s33, 16, %s200, [#allocation9]
    $region69: #{stag_forward.1} parent=1 // pred_fallthru
      _
    // Predicated region
    $region70: #{stag_forward.1} parent=1 // pred_check
      _
    $region71: #{stag_forward.1} parent=1 // pred_check_branch
      %204 = sbr.rel (0) target = $region73
    $region72: #{stag_forward.1} parent=1 // pred_region
      %s206 = ssub.s32 256, 256
      %207 = vsyncadd [#allocation9], %s206
      %s208 = sshll.u32 [#allocation10], 4
      %s209 = int_to_ptr.vmem [resolvable:$true] %s208
      %214 = dma.hbm_to_vmem [thread:$0]  %s35, 256, %s209, [#allocation9], 128, 128, 8
    $region73: #{stag_forward.1} parent=1 // pred_fallthru
      _
    // Predicated region
    $region74: #{stag_forward.1} parent=1 // pred_check
      _
    $region75: #{stag_forward.1} parent=1 // pred_check_branch
      %216 = sbr.rel (0) target = $region77
    $region76: #{stag_forward.1} parent=1 // pred_region
      %s218 = ssub.s32 16, 16
      %219 = vsyncadd [#allocation12], %s218
      %s221 = sshll.u32 [#allocation11], 4
      %s222 = int_to_ptr.vmem [resolvable:$true] %s221
      %224 = dma.hbm_to_vmem [thread:$0]  %s37, 16, %s222, [#allocation12]
    $region77: #{stag_forward.1} parent=1 // pred_fallthru
      _
    // Predicated region
    $region78: #{stag_forward.1} parent=1 // pred_check
      _
    $region79: #{stag_forward.1} parent=1 // pred_check_branch
      %226 = sbr.rel (0) target = $region81
    $region80: #{stag_forward.1} parent=1 // pred_region
      %s228 = ssub.s32 256, 256
      %229 = vsyncadd [#allocation12], %s228
      %s230 = sshll.u32 [#allocation13], 4
      %s231 = int_to_ptr.vmem [resolvable:$true] %s230
      %236 = dma.hbm_to_vmem [thread:$0]  %s39, 256, %s231, [#allocation12], 128, 128, 8
    $region81: #{stag_forward.1} parent=1 // pred_fallthru
      _
    // Predicated region
    $region82: #{stag_forward.1} parent=1 // pred_check
      _
    $region83: #{stag_forward.1} parent=1 // pred_check_branch
      %238 = sbr.rel (0) target = $region85
    $region84: #{stag_forward.1} parent=1 // pred_region
      %s240 = ssub.s32 16, 16
      %241 = vsyncadd [#allocation15], %s240
      %s243 = sshll.u32 [#allocation14], 4
      %s244 = int_to_ptr.vmem [resolvable:$true] %s243
      %246 = dma.hbm_to_vmem [thread:$0]  %s41, 16, %s244, [#allocation15]
    $region85: #{stag_forward.1} parent=1 // pred_fallthru
      _
    // Predicated region
    $region86: #{stag_forward.1} parent=1 // pred_check
      _
    $region87: #{stag_forward.1} parent=1 // pred_check_branch
      %248 = sbr.rel (0) target = $region89
    $region88: #{stag_forward.1} parent=1 // pred_region
      %s250 = ssub.s32 16, 16
      %251 = vsyncadd [#allocation15], %s250
      %s253 = sshll.u32 [#allocation16], 4
      %s254 = int_to_ptr.vmem [resolvable:$true] %s253
      %256 = dma.hbm_to_vmem [thread:$0]  %s43, 16, %s254, [#allocation15]
    $region89: #{stag_forward.1} parent=1 // pred_fallthru
      _
    // Predicated region
    $region90: #{stag_forward.1} parent=1 // pred_check
      _
    $region91: #{stag_forward.1} parent=1 // pred_check_branch
      %258 = sbr.rel (0) target = $region93
    $region92: #{stag_forward.1} parent=1 // pred_region
      %s260 = ssub.s32 16, 16
      %261 = vsyncadd [#allocation18], %s260
      %s263 = sshll.u32 [#allocation17], 4
      %s264 = int_to_ptr.vmem [resolvable:$true] %s263
      %266 = dma.hbm_to_vmem [thread:$0]  %s45, 16, %s264, [#allocation18]
    $region93: #{stag_forward.1} parent=1 // pred_fallthru
      _
    // Predicated region
    $region94: #{stag_forward.1} parent=1 // pred_check
      _
    $region95: #{stag_forward.1} parent=1 // pred_check_branch
      %268 = sbr.rel (0) target = $region97
    $region96: #{stag_forward.1} parent=1 // pred_region
      _
    $region97: #{stag_forward.1} parent=1 // pred_fallthru
      _
    // Predicated region
    $region98: #{stag_forward.1} parent=1 // pred_check
      _
    $region99: #{stag_forward.1} parent=1 // pred_check_branch
      %270 = sbr.rel (0) target = $region101
    $region100: #{stag_forward.1} parent=1 // pred_region
      %s272 = ssub.s32 128, 128
      %273 = vsyncadd [#allocation18], %s272
      %s275 = sshll.u32 [#allocation19], 4
      %s276 = int_to_ptr.vmem [resolvable:$true] %s275
      %278 = dma.hbm_to_vmem [thread:$0]  %s49, 128, %s276, [#allocation18]
    $region101: #{stag_forward.1} parent=1 // pred_fallthru
      _
    // Predicated region
    $region102: #{stag_forward.1} parent=1 // pred_check
      _
    $region103: #{stag_forward.1} parent=1 // pred_check_branch
      %280 = sbr.rel (0) target = $region105
    $region104: #{stag_forward.1} parent=1 // pred_region
      %s282 = ssub.s32 512, 512
      %283 = vsyncadd [#allocation21], %s282
      %s284 = sshll.u32 [#allocation20], 4
      %s285 = int_to_ptr.vmem [resolvable:$true] %s284
      %290 = dma.hbm_to_vmem [thread:$0]  %s51, 512, %s285, [#allocation21], 128, 128, 8
    $region105: #{stag_forward.1} parent=1 // pred_fallthru
      _
    // Predicated region
    $region106: #{stag_forward.1} parent=1 // pred_check
      _
    $region107: #{stag_forward.1} parent=1 // pred_check_branch
      %292 = sbr.rel (0) target = $region109
    $region108: #{stag_forward.1} parent=1 // pred_region
      %s294 = ssub.s32 16, 16
      %295 = vsyncadd [#allocation21], %s294
      %s297 = sshll.u32 [#allocation22], 4
      %s298 = int_to_ptr.vmem [resolvable:$true] %s297
      %300 = dma.hbm_to_vmem [thread:$0]  %s53, 16, %s298, [#allocation21]
    $region109: #{stag_forward.1} parent=1 // pred_fallthru
      _
    // Predicated region
    $region110: #{stag_forward.1} parent=1 // pred_check
      _
    $region111: #{stag_forward.1} parent=1 // pred_check_branch
      %302 = sbr.rel (0) target = $region113
    $region112: #{stag_forward.1} parent=1 // pred_region
      %s304 = ssub.s32 16, 16
      %305 = vsyncadd [#allocation24], %s304
      %s307 = sshll.u32 [#allocation23], 4
      %s308 = int_to_ptr.vmem [resolvable:$true] %s307
      %310 = dma.hbm_to_vmem [thread:$0]  %s55, 16, %s308, [#allocation24]
    $region113: #{stag_forward.1} parent=1 // pred_fallthru
      _
    // Predicated region
    $region114: #{stag_forward.1} parent=1 // pred_check
      _
    $region115: #{stag_forward.1} parent=1 // pred_check_branch
      %312 = sbr.rel (0) target = $region117
    $region116: #{stag_forward.1} parent=1 // pred_region
      %s314 = ssub.s32 16, 16
      %315 = vsyncadd [#allocation24], %s314
      %s317 = sshll.u32 [#allocation25], 4
      %s318 = int_to_ptr.vmem [resolvable:$true] %s317
      %320 = dma.hbm_to_vmem [thread:$0]  %s57, 16, %s318, [#allocation24]
    $region117: #{stag_forward.1} parent=1 // pred_fallthru
      _
    // Predicated region
    $region118: #{stag_forward.1} parent=1 // pred_check
      _
    $region119: #{stag_forward.1} parent=1 // pred_check_branch
      %322 = sbr.rel (0) target = $region121
    $region120: #{stag_forward.1} parent=1 // pred_region
      %s324 = ssub.s32 256, 256
      %325 = vsyncadd [#allocation27], %s324
      %s326 = sshll.u32 [#allocation26], 4
      %s327 = int_to_ptr.vmem [resolvable:$true] %s326
      %332 = dma.hbm_to_vmem [thread:$0]  %s59, 256, %s327, [#allocation27], 128, 128, 8
    $region121: #{stag_forward.1} parent=1 // pred_fallthru
      _
    // Predicated region
    $region122: #{stag_forward.1} parent=1 // pred_check
      _
    $region123: #{stag_forward.1} parent=1 // pred_check_branch
      %334 = sbr.rel (0) target = $region125
    $region124: #{stag_forward.1} parent=1 // pred_region
      %s336 = ssub.s32 16, 16
      %337 = vsyncadd [#allocation27], %s336
      %s339 = sshll.u32 [#allocation28], 4
      %s340 = int_to_ptr.vmem [resolvable:$true] %s339
      %342 = dma.hbm_to_vmem [thread:$0]  %s61, 16, %s340, [#allocation27]
    $region125: #{stag_forward.1} parent=1 // pred_fallthru
      _
    // Predicated region
    $region126: #{stag_forward.1} parent=1 // pred_check
      _
    $region127: #{stag_forward.1} parent=1 // pred_check_branch
      %344 = sbr.rel (0) target = $region129
    $region128: #{stag_forward.1} parent=1 // pred_region
      %s346 = ssub.s32 16, 16
      %347 = vsyncadd [#allocation30], %s346
      %s349 = sshll.u32 [#allocation29], 4
      %s350 = int_to_ptr.vmem [resolvable:$true] %s349
      %352 = dma.hbm_to_vmem [thread:$0]  %s63, 16, %s350, [#allocation30]
    $region129: #{stag_forward.1} parent=1 // pred_fallthru
      _
    // Predicated region
    $region130: #{stag_forward.1} parent=1 // pred_check
      _
    $region131: #{stag_forward.1} parent=1 // pred_check_branch
      %354 = sbr.rel (0) target = $region133
    $region132: #{stag_forward.1} parent=1 // pred_region
      %s356 = ssub.s32 16, 16
      %357 = vsyncadd [#allocation30], %s356
      %s359 = sshll.u32 [#allocation31], 4
      %s360 = int_to_ptr.vmem [resolvable:$true] %s359
      %362 = dma.hbm_to_vmem [thread:$0]  %s65, 16, %s360, [#allocation30]
    $region133: #{stag_forward.1} parent=1 // pred_fallthru
      _
    // Predicated region
    $region134: #{stag_forward.1} parent=1 // pred_check
      _
    $region135: #{stag_forward.1} parent=1 // pred_check_branch
      %364 = sbr.rel (0) target = $region137
    $region136: #{stag_forward.1} parent=1 // pred_region
      _
    $region137: #{stag_forward.1} parent=1 // pred_fallthru
      _
    // Predicated region
    $region138: #{stag_forward.1} parent=1 // pred_check
      _
    $region139: #{stag_forward.1} parent=1 // pred_check_branch
      %366 = sbr.rel (0) target = $region141
    $region140: #{stag_forward.1} parent=1 // pred_region
      %s368 = ssub.s32 128, 128
      %369 = vsyncadd [#allocation33], %s368
      %s371 = sshll.u32 [#allocation32], 4
      %s372 = int_to_ptr.vmem [resolvable:$true] %s371
      %374 = dma.hbm_to_vmem [thread:$0]  %s69, 128, %s372, [#allocation33]
    $region141: #{stag_forward.1} parent=1 // pred_fallthru
      _
    // Predicated region
    $region142: #{stag_forward.1} parent=1 // pred_check
      _
    $region143: #{stag_forward.1} parent=1 // pred_check_branch
      %376 = sbr.rel (0) target = $region145
    $region144: #{stag_forward.1} parent=1 // pred_region
      %s378 = ssub.s32 512, 512
      %379 = vsyncadd [#allocation33], %s378
      %s380 = sshll.u32 [#allocation34], 4
      %s381 = int_to_ptr.vmem [resolvable:$true] %s380
      %386 = dma.hbm_to_vmem [thread:$0]  %s71, 512, %s381, [#allocation33], 128, 128, 8
    $region145: #{stag_forward.1} parent=1 // pred_fallthru
      _
    // Predicated region
    $region146: #{stag_forward.1} parent=1 // pred_check
      _
    $region147: #{stag_forward.1} parent=1 // pred_check_branch
      %388 = sbr.rel (0) target = $region149
    $region148: #{stag_forward.1} parent=1 // pred_region
      %s390 = ssub.s32 16, 16
      %391 = vsyncadd [#allocation36], %s390
      %s393 = sshll.u32 [#allocation35], 4
      %s394 = int_to_ptr.vmem [resolvable:$true] %s393
      %396 = dma.hbm_to_vmem [thread:$0]  %s73, 16, %s394, [#allocation36]
    $region149: #{stag_forward.1} parent=1 // pred_fallthru
      _
    // Predicated region
    $region150: #{stag_forward.1} parent=1 // pred_check
      _
    $region151: #{stag_forward.1} parent=1 // pred_check_branch
      %398 = sbr.rel (0) target = $region153
    $region152: #{stag_forward.1} parent=1 // pred_region
      %s400 = ssub.s32 16, 16
      %401 = vsyncadd [#allocation36], %s400
      %s403 = sshll.u32 [#allocation37], 4
      %s404 = int_to_ptr.vmem [resolvable:$true] %s403
      %406 = dma.hbm_to_vmem [thread:$0]  %s75, 16, %s404, [#allocation36]
    $region153: #{stag_forward.1} parent=1 // pred_fallthru
      _
    // Predicated region
    $region154: #{stag_forward.1} parent=1 // pred_check
      _
    $region155: #{stag_forward.1} parent=1 // pred_check_branch
      %408 = sbr.rel (0) target = $region157
    $region156: #{stag_forward.1} parent=1 // pred_region
      %s410 = ssub.s32 16, 16
      %411 = vsyncadd [#allocation39], %s410
      %s413 = sshll.u32 [#allocation38], 4
      %s414 = int_to_ptr.vmem [resolvable:$true] %s413
      %416 = dma.hbm_to_vmem [thread:$0]  %s77, 16, %s414, [#allocation39]
    $region157: #{stag_forward.1} parent=1 // pred_fallthru
      _
    // Predicated region
    $region158: #{stag_forward.1} parent=1 // pred_check
      _
    $region159: #{stag_forward.1} parent=1 // pred_check_branch
      %418 = sbr.rel (0) target = $region161
    $region160: #{stag_forward.1} parent=1 // pred_region
      %s420 = ssub.s32 256, 256
      %421 = vsyncadd [#allocation39], %s420
      %s422 = sshll.u32 [#allocation40], 4
      %s423 = int_to_ptr.vmem [resolvable:$true] %s422
      %428 = dma.hbm_to_vmem [thread:$0]  %s79, 256, %s423, [#allocation39], 128, 128, 8
    $region161: #{stag_forward.1} parent=1 // pred_fallthru
      _
    // Predicated region
    $region162: #{stag_forward.1} parent=1 // pred_check
      _
    $region163: #{stag_forward.1} parent=1 // pred_check_branch
      %430 = sbr.rel (0) target = $region165
    $region164: #{stag_forward.1} parent=1 // pred_region
      %s432 = ssub.s32 16, 16
      %433 = vsyncadd [#allocation42], %s432
      %s435 = sshll.u32 [#allocation41], 4
      %s436 = int_to_ptr.vmem [resolvable:$true] %s435
      %438 = dma.hbm_to_vmem [thread:$0]  %s81, 16, %s436, [#allocation42]
    $region165: #{stag_forward.1} parent=1 // pred_fallthru
      _
    // Predicated region
    $region166: #{stag_forward.1} parent=1 // pred_check
      _
    $region167: #{stag_forward.1} parent=1 // pred_check_branch
      %440 = sbr.rel (0) target = $region169
    $region168: #{stag_forward.1} parent=1 // pred_region
      %s442 = ssub.s32 16, 16
      %443 = vsyncadd [#allocation42], %s442
      %s445 = sshll.u32 [#allocation43], 4
      %s446 = int_to_ptr.vmem [resolvable:$true] %s445
      %448 = dma.hbm_to_vmem [thread:$0]  %s83, 16, %s446, [#allocation42]
    $region169: #{stag_forward.1} parent=1 // pred_fallthru
      _
    // Predicated region
    $region170: #{stag_forward.1} parent=1 // pred_check
      _
    $region171: #{stag_forward.1} parent=1 // pred_check_branch
      %450 = sbr.rel (0) target = $region173
    $region172: #{stag_forward.1} parent=1 // pred_region
      %s452 = ssub.s32 16, 16
      %453 = vsyncadd [#allocation45], %s452
      %s455 = sshll.u32 [#allocation44], 4
      %s456 = int_to_ptr.vmem [resolvable:$true] %s455
      %458 = dma.hbm_to_vmem [thread:$0]  %s85, 16, %s456, [#allocation45]
    $region173: #{stag_forward.1} parent=1 // pred_fallthru
      _
    // Predicated region
    $region174: #{stag_forward.1} parent=1 // pred_check
      _
    $region175: #{stag_forward.1} parent=1 // pred_check_branch
      %460 = sbr.rel (0) target = $region177
    $region176: #{stag_forward.1} parent=1 // pred_region
      %s462 = ssub.s32 2048, 2048
      %463 = vsyncadd [#allocation45], %s462
      %s464 = sshll.u32 [#allocation46], 4
      %s465 = int_to_ptr.vmem [resolvable:$true] %s464
      %470 = dma.hbm_to_vmem [thread:$0]  %s87, 2048, %s465, [#allocation45], 1024, 1024, 64
    $region177: #{stag_forward.1} parent=1 // pred_fallthru
      _
    // Predicated region
    $region178: #{stag_forward.1} parent=1 // pred_check
      _
    $region179: #{stag_forward.1} parent=1 // pred_check_branch
      %472 = sbr.rel (0) target = $region181
    $region180: #{stag_forward.1} parent=1 // pred_region
      %s474 = ssub.s32 128, 128
      %475 = vsyncadd [#allocation48], %s474
      %s477 = sshll.u32 [#allocation47], 4
      %s478 = int_to_ptr.vmem [resolvable:$true] %s477
      %480 = dma.hbm_to_vmem [thread:$0]  %s89, 128, %s478, [#allocation48]
    $region181: #{stag_forward.1} parent=1 // pred_fallthru
      _
    // Predicated region
    $region182: #{stag_forward.1} parent=1 // pred_check
      _
    $region183: #{stag_forward.1} parent=1 // pred_check_branch
      %482 = sbr.rel (0) target = $region185
    $region184: #{stag_forward.1} parent=1 // pred_region
      _
    $region185: #{stag_forward.1} parent=1 // pred_fallthru
      _
    // Predicated region
    $region186: #{stag_forward.1} parent=1 // pred_check
      _
    $region187: #{stag_forward.1} parent=1 // pred_check_branch
      %484 = sbr.rel (0) target = $region189
    $region188: #{stag_forward.1} parent=1 // pred_region
      %s486 = ssub.s32 16, 16
      %487 = vsyncadd [#allocation48], %s486
      %s489 = sshll.u32 [#allocation49], 4
      %s490 = int_to_ptr.vmem [resolvable:$true] %s489
      %492 = dma.hbm_to_vmem [thread:$0]  %s93, 16, %s490, [#allocation48]
    $region189: #{stag_forward.1} parent=1 // pred_fallthru
      _
    // Predicated region
    $region190: #{stag_forward.1} parent=1 // pred_check
      _
    $region191: #{stag_forward.1} parent=1 // pred_check_branch
      %494 = sbr.rel (0) target = $region193
    $region192: #{stag_forward.1} parent=1 // pred_region
      %s496 = ssub.s32 16, 16
      %497 = vsyncadd [#allocation51], %s496
      %s499 = sshll.u32 [#allocation50], 4
      %s500 = int_to_ptr.vmem [resolvable:$true] %s499
      %502 = dma.hbm_to_vmem [thread:$0]  %s95, 16, %s500, [#allocation51]
    $region193: #{stag_forward.1} parent=1 // pred_fallthru
      _
    // Predicated region
    $region194: #{stag_forward.1} parent=1 // pred_check
      _
    $region195: #{stag_forward.1} parent=1 // pred_check_branch
      %504 = sbr.rel (0) target = $region197
    $region196: #{stag_forward.1} parent=1 // pred_region
      %s506 = ssub.s32 16, 16
      %507 = vsyncadd [#allocation51], %s506
      %s509 = sshll.u32 [#allocation52], 4
      %s510 = int_to_ptr.vmem [resolvable:$true] %s509
      %512 = dma.hbm_to_vmem [thread:$0]  %s97, 16, %s510, [#allocation51]
    $region197: #{stag_forward.1} parent=1 // pred_fallthru
      _
    // Predicated region
    $region198: #{stag_forward.1} parent=1 // pred_check
      _
    $region199: #{stag_forward.1} parent=1 // pred_check_branch
      %514 = sbr.rel (0) target = $region201
    $region200: #{stag_forward.1} parent=1 // pred_region
      _
    $region201: #{stag_forward.1} parent=1 // pred_fallthru
      _
    // Predicated region
    $region202: #{stag_forward.1} parent=1 // pred_check
      _
    $region203: #{stag_forward.1} parent=1 // pred_check_branch
      %516 = sbr.rel (0) target = $region205
    $region204: #{stag_forward.1} parent=1 // pred_region
      %s518 = ssub.s32 16, 16
      %519 = vsyncadd [#allocation54], %s518
      %s521 = sshll.u32 [#allocation53], 4
      %s522 = int_to_ptr.vmem [resolvable:$true] %s521
      %524 = dma.hbm_to_vmem [thread:$0]  %s101, 16, %s522, [#allocation54]
    $region205: #{stag_forward.1} parent=1 // pred_fallthru
      _
    // Predicated region
    $region206: #{stag_forward.1} parent=1 // pred_check
      _
    $region207: #{stag_forward.1} parent=1 // pred_check_branch
      %526 = sbr.rel (0) target = $region209
    $region208: #{stag_forward.1} parent=1 // pred_region
      %s528 = ssub.s32 16, 16
      %529 = vsyncadd [#allocation54], %s528
      %s531 = sshll.u32 [#allocation55], 4
      %s532 = int_to_ptr.vmem [resolvable:$true] %s531
      %534 = dma.hbm_to_vmem [thread:$0]  %s103, 16, %s532, [#allocation54]
    $region209: #{stag_forward.1} parent=1 // pred_fallthru
      _
    // Predicated region
    $region210: #{stag_forward.1} parent=1 // pred_check
      _
    $region211: #{stag_forward.1} parent=1 // pred_check_branch
      %536 = sbr.rel (0) target = $region213
    $region212: #{stag_forward.1} parent=1 // pred_region
      %s538 = ssub.s32 16, 16
      %539 = vsyncadd [#allocation57], %s538
      %s541 = sshll.u32 [#allocation56], 4
      %s542 = int_to_ptr.vmem [resolvable:$true] %s541
      %544 = dma.hbm_to_vmem [thread:$0]  %s105, 16, %s542, [#allocation57]
    $region213: #{stag_forward.1} parent=1 // pred_fallthru
      _
    // Predicated region
    $region214: #{stag_forward.1} parent=1 // pred_check
      _
    $region215: #{stag_forward.1} parent=1 // pred_check_branch
      %546 = sbr.rel (0) target = $region217
    $region216: #{stag_forward.1} parent=1 // pred_region
      _
    $region217: #{stag_forward.1} parent=1 // pred_fallthru
      _
    // Predicated region
    $region218: #{stag_forward.1} parent=1 // pred_check
      _
    $region219: #{stag_forward.1} parent=1 // pred_check_branch
      %548 = sbr.rel (0) target = $region221
    $region220: #{stag_forward.1} parent=1 // pred_region
      _
    $region221: #{stag_forward.1} parent=1 // pred_fallthru
      _
    // Predicated region
    $region222: #{stag_forward.1} parent=1 // pred_check
      _
    $region223: #{stag_forward.1} parent=1 // pred_check_branch
      %550 = sbr.rel (0) target = $region225
    $region224: #{stag_forward.1} parent=1 // pred_region
      %551 = dma.done [#allocation4], 16
    $region225: #{stag_forward.1} parent=1 // pred_fallthru
      _
    // Predicated region
    $region226: #{stag_forward.1} parent=1 // pred_check
      _
    $region227: #{stag_forward.1} parent=1 // pred_check_branch
      %553 = sbr.rel (0) target = $region229
    $region228: #{stag_forward.1} parent=1 // pred_region
      %554 = dma.done [#allocation6], 16
    $region229: #{stag_forward.1} parent=1 // pred_fallthru
      _
    // Predicated region
    $region230: #{stag_forward.1} parent=1 // pred_check
      _
    $region231: #{stag_forward.1} parent=1 // pred_check_branch
      %556 = sbr.rel (0) target = $region233
    $region232: #{stag_forward.1} parent=1 // pred_region
      %557 = dma.done [#allocation6], 16
    $region233: #{stag_forward.1} parent=1 // pred_fallthru
      _
    // Predicated region
    $region234: #{stag_forward.1} parent=1 // pred_check
      _
    $region235: #{stag_forward.1} parent=1 // pred_check_branch
      %559 = sbr.rel (0) target = $region237
    $region236: #{stag_forward.1} parent=1 // pred_region
      %560 = dma.done [#allocation9], 16
    $region237: #{stag_forward.1} parent=1 // pred_fallthru
      _
    // Predicated region
    $region238: #{stag_forward.1} parent=1 // pred_check
      _
    $region239: #{stag_forward.1} parent=1 // pred_check_branch
      %562 = sbr.rel (0) target = $region241
    $region240: #{stag_forward.1} parent=1 // pred_region
      %563 = dma.done [#allocation9], 256
    $region241: #{stag_forward.1} parent=1 // pred_fallthru
      _
    // Predicated region
    $region242: #{stag_forward.1} parent=1 // pred_check
      _
    $region243: #{stag_forward.1} parent=1 // pred_check_branch
      %565 = sbr.rel (0) target = $region245
    $region244: #{stag_forward.1} parent=1 // pred_region
      %566 = dma.done [#allocation12], 16
    $region245: #{stag_forward.1} parent=1 // pred_fallthru
      _
    // Predicated region
    $region246: #{stag_forward.1} parent=1 // pred_check
      _
    $region247: #{stag_forward.1} parent=1 // pred_check_branch
      %568 = sbr.rel (0) target = $region249
    $region248: #{stag_forward.1} parent=1 // pred_region
      %569 = dma.done [#allocation12], 256
    $region249: #{stag_forward.1} parent=1 // pred_fallthru
      _
    // Predicated region
    $region250: #{stag_forward.1} parent=1 // pred_check
      _
    $region251: #{stag_forward.1} parent=1 // pred_check_branch
      %571 = sbr.rel (0) target = $region253
    $region252: #{stag_forward.1} parent=1 // pred_region
      %572 = dma.done [#allocation15], 16
    $region253: #{stag_forward.1} parent=1 // pred_fallthru
      _
    // Predicated region
    $region254: #{stag_forward.1} parent=1 // pred_check
      _
    $region255: #{stag_forward.1} parent=1 // pred_check_branch
      %574 = sbr.rel (0) target = $region257
    $region256: #{stag_forward.1} parent=1 // pred_region
      %575 = dma.done [#allocation15], 16
    $region257: #{stag_forward.1} parent=1 // pred_fallthru
      _
    // Predicated region
    $region258: #{stag_forward.1} parent=1 // pred_check
      _
    $region259: #{stag_forward.1} parent=1 // pred_check_branch
      %577 = sbr.rel (0) target = $region261
    $region260: #{stag_forward.1} parent=1 // pred_region
      %578 = dma.done [#allocation18], 16
    $region261: #{stag_forward.1} parent=1 // pred_fallthru
      _
    // Predicated region
    $region262: #{stag_forward.1} parent=1 // pred_check
      _
    $region263: #{stag_forward.1} parent=1 // pred_check_branch
      %580 = sbr.rel (0) target = $region265
    $region264: #{stag_forward.1} parent=1 // pred_region
      %581 = dma.done [#allocation18], 128
    $region265: #{stag_forward.1} parent=1 // pred_fallthru
      _
    // Predicated region
    $region266: #{stag_forward.1} parent=1 // pred_check
      _
    $region267: #{stag_forward.1} parent=1 // pred_check_branch
      %583 = sbr.rel (0) target = $region269
    $region268: #{stag_forward.1} parent=1 // pred_region
      %584 = dma.done [#allocation21], 512
    $region269: #{stag_forward.1} parent=1 // pred_fallthru
      _
    // Predicated region
    $region270: #{stag_forward.1} parent=1 // pred_check
      _
    $region271: #{stag_forward.1} parent=1 // pred_check_branch
      %586 = sbr.rel (0) target = $region273
    $region272: #{stag_forward.1} parent=1 // pred_region
      %587 = dma.done [#allocation21], 16
    $region273: #{stag_forward.1} parent=1 // pred_fallthru
      _
    // Predicated region
    $region274: #{stag_forward.1} parent=1 // pred_check
      _
    $region275: #{stag_forward.1} parent=1 // pred_check_branch
      %589 = sbr.rel (0) target = $region277
    $region276: #{stag_forward.1} parent=1 // pred_region
      %590 = dma.done [#allocation24], 16
    $region277: #{stag_forward.1} parent=1 // pred_fallthru
      _
    // Predicated region
    $region278: #{stag_forward.1} parent=1 // pred_check
      _
    $region279: #{stag_forward.1} parent=1 // pred_check_branch
      %592 = sbr.rel (0) target = $region281
    $region280: #{stag_forward.1} parent=1 // pred_region
      %593 = dma.done [#allocation24], 16
    $region281: #{stag_forward.1} parent=1 // pred_fallthru
      _
    // Predicated region
    $region282: #{stag_forward.1} parent=1 // pred_check
      _
    $region283: #{stag_forward.1} parent=1 // pred_check_branch
      %595 = sbr.rel (0) target = $region285
    $region284: #{stag_forward.1} parent=1 // pred_region
      %596 = dma.done [#allocation27], 256
    $region285: #{stag_forward.1} parent=1 // pred_fallthru
      _
    // Predicated region
    $region286: #{stag_forward.1} parent=1 // pred_check
      _
    $region287: #{stag_forward.1} parent=1 // pred_check_branch
      %598 = sbr.rel (0) target = $region289
    $region288: #{stag_forward.1} parent=1 // pred_region
      %599 = dma.done [#allocation27], 16
    $region289: #{stag_forward.1} parent=1 // pred_fallthru
      _
    // Predicated region
    $region290: #{stag_forward.1} parent=1 // pred_check
      _
    $region291: #{stag_forward.1} parent=1 // pred_check_branch
      %601 = sbr.rel (0) target = $region293
    $region292: #{stag_forward.1} parent=1 // pred_region
      %602 = dma.done [#allocation30], 16
    $region293: #{stag_forward.1} parent=1 // pred_fallthru
      _
    // Predicated region
    $region294: #{stag_forward.1} parent=1 // pred_check
      _
    $region295: #{stag_forward.1} parent=1 // pred_check_branch
      %604 = sbr.rel (0) target = $region297
    $region296: #{stag_forward.1} parent=1 // pred_region
      %605 = dma.done [#allocation30], 16
    $region297: #{stag_forward.1} parent=1 // pred_fallthru
      _
    // Predicated region
    $region298: #{stag_forward.1} parent=1 // pred_check
      _
    $region299: #{stag_forward.1} parent=1 // pred_check_branch
      %607 = sbr.rel (0) target = $region301
    $region300: #{stag_forward.1} parent=1 // pred_region
      %608 = dma.done [#allocation33], 128
    $region301: #{stag_forward.1} parent=1 // pred_fallthru
      _
    // Predicated region
    $region302: #{stag_forward.1} parent=1 // pred_check
      _
    $region303: #{stag_forward.1} parent=1 // pred_check_branch
      %610 = sbr.rel (0) target = $region305
    $region304: #{stag_forward.1} parent=1 // pred_region
      %611 = dma.done [#allocation33], 512
    $region305: #{stag_forward.1} parent=1 // pred_fallthru
      _
    // Predicated region
    $region306: #{stag_forward.1} parent=1 // pred_check
      _
    $region307: #{stag_forward.1} parent=1 // pred_check_branch
      %613 = sbr.rel (0) target = $region309
    $region308: #{stag_forward.1} parent=1 // pred_region
      %614 = dma.done [#allocation36], 16
    $region309: #{stag_forward.1} parent=1 // pred_fallthru
      _
    // Predicated region
    $region310: #{stag_forward.1} parent=1 // pred_check
      _
    $region311: #{stag_forward.1} parent=1 // pred_check_branch
      %616 = sbr.rel (0) target = $region313
    $region312: #{stag_forward.1} parent=1 // pred_region
      %617 = dma.done [#allocation36], 16
    $region313: #{stag_forward.1} parent=1 // pred_fallthru
      _
    // Predicated region
    $region314: #{stag_forward.1} parent=1 // pred_check
      _
    $region315: #{stag_forward.1} parent=1 // pred_check_branch
      %619 = sbr.rel (0) target = $region317
    $region316: #{stag_forward.1} parent=1 // pred_region
      %620 = dma.done [#allocation39], 16
    $region317: #{stag_forward.1} parent=1 // pred_fallthru
      _
    // Predicated region
    $region318: #{stag_forward.1} parent=1 // pred_check
      _
    $region319: #{stag_forward.1} parent=1 // pred_check_branch
      %622 = sbr.rel (0) target = $region321
    $region320: #{stag_forward.1} parent=1 // pred_region
      %623 = dma.done [#allocation39], 256
    $region321: #{stag_forward.1} parent=1 // pred_fallthru
      _
    // Predicated region
    $region322: #{stag_forward.1} parent=1 // pred_check
      _
    $region323: #{stag_forward.1} parent=1 // pred_check_branch
      %625 = sbr.rel (0) target = $region325
    $region324: #{stag_forward.1} parent=1 // pred_region
      %626 = dma.done [#allocation42], 16
    $region325: #{stag_forward.1} parent=1 // pred_fallthru
      _
    // Predicated region
    $region326: #{stag_forward.1} parent=1 // pred_check
      _
    $region327: #{stag_forward.1} parent=1 // pred_check_branch
      %628 = sbr.rel (0) target = $region329
    $region328: #{stag_forward.1} parent=1 // pred_region
      %629 = dma.done [#allocation42], 16
    $region329: #{stag_forward.1} parent=1 // pred_fallthru
      _
    // Predicated region
    $region330: #{stag_forward.1} parent=1 // pred_check
      _
    $region331: #{stag_forward.1} parent=1 // pred_check_branch
      %631 = sbr.rel (0) target = $region333
    $region332: #{stag_forward.1} parent=1 // pred_region
      %632 = dma.done [#allocation45], 16
    $region333: #{stag_forward.1} parent=1 // pred_fallthru
      _
    // Predicated region
    $region334: #{stag_forward.1} parent=1 // pred_check
      _
    $region335: #{stag_forward.1} parent=1 // pred_check_branch
      %634 = sbr.rel (0) target = $region337
    $region336: #{stag_forward.1} parent=1 // pred_region
      %635 = dma.done [#allocation45], 2048
    $region337: #{stag_forward.1} parent=1 // pred_fallthru
      _
    // Predicated region
    $region338: #{stag_forward.1} parent=1 // pred_check
      _
    $region339: #{stag_forward.1} parent=1 // pred_check_branch
      %637 = sbr.rel (0) target = $region341
    $region340: #{stag_forward.1} parent=1 // pred_region
      %638 = dma.done [#allocation48], 128
    $region341: #{stag_forward.1} parent=1 // pred_fallthru
      _
    // Predicated region
    $region342: #{stag_forward.1} parent=1 // pred_check
      _
    $region343: #{stag_forward.1} parent=1 // pred_check_branch
      %640 = sbr.rel (0) target = $region345
    $region344: #{stag_forward.1} parent=1 // pred_region
      %641 = dma.done [#allocation48], 16
    $region345: #{stag_forward.1} parent=1 // pred_fallthru
      _
    // Predicated region
    $region346: #{stag_forward.1} parent=1 // pred_check
      _
    $region347: #{stag_forward.1} parent=1 // pred_check_branch
      %643 = sbr.rel (0) target = $region349
    $region348: #{stag_forward.1} parent=1 // pred_region
      %644 = dma.done [#allocation51], 16
    $region349: #{stag_forward.1} parent=1 // pred_fallthru
      _
    // Predicated region
    $region350: #{stag_forward.1} parent=1 // pred_check
      _
    $region351: #{stag_forward.1} parent=1 // pred_check_branch
      %646 = sbr.rel (0) target = $region353
    $region352: #{stag_forward.1} parent=1 // pred_region
      %647 = dma.done [#allocation51], 16
    $region353: #{stag_forward.1} parent=1 // pred_fallthru
      _
    // Predicated region
    $region354: #{stag_forward.1} parent=1 // pred_check
      _
    $region355: #{stag_forward.1} parent=1 // pred_check_branch
      %649 = sbr.rel (0) target = $region357
    $region356: #{stag_forward.1} parent=1 // pred_region
      %650 = dma.done [#allocation54], 16
    $region357: #{stag_forward.1} parent=1 // pred_fallthru
      _
    // Predicated region
    $region358: #{stag_forward.1} parent=1 // pred_check
      _
    $region359: #{stag_forward.1} parent=1 // pred_check_branch
      %652 = sbr.rel (0) target = $region361
    $region360: #{stag_forward.1} parent=1 // pred_region
      %653 = dma.done [#allocation54], 16
    $region361: #{stag_forward.1} parent=1 // pred_fallthru
      _
    // Predicated region
    $region362: #{stag_forward.1} parent=1 // pred_check
      _
    $region363: #{stag_forward.1} parent=1 // pred_check_branch
      %655 = sbr.rel (0) target = $region365
    $region364: #{stag_forward.1} parent=1 // pred_region
      %656 = dma.done [#allocation57], 16
    $region365: #{stag_forward.1} parent=1 // pred_fallthru
      _
    %v657 = vld [vmem:[%s1] sm:$0xff]
    %v658 = vld [vmem:[%s3] sm:$0xff]
    %v659 = vld [vmem:[%s3 + $0x8] sm:$0xff]
    %v660 = vld [vmem:[%s5] sm:$0xff]
    %v661 = vld [vmem:[%s5 + $0x8] sm:$0xff]
    %v662 = vld [vmem:[%s7] sm:$0xff]
    %v663 = vld [vmem:[%s7 + $0x8] sm:$0xff]
    %v664 = vld [vmem:[%s9] sm:$0xff]
    %v665 = vlaneseq
    %v666 = vand.u32 %v665, 127
    %667 = vset.pattern.permute.xlu0 0
    %668 = vperm.xlu0 %667, %v660
    %v669 = vpop.permute.xlu0 %668
    %670 = vset.pattern.permute.xlu0 0
    %671 = vperm.xlu0 %670, %v661
    %v672 = vpop.permute.xlu0 %671
    %vm673 = vcmp.eq.s32.totalorder %v669, %v666
    %vm674 = vcmp.eq.s32.totalorder %v672, %v666
    %v675 = vsel %vm673, 1, 0
    %v676 = vsel %vm674, 1, 0
    %v677 = vcvt.s32.f32 %v675
    %v678 = vcvt.s32.f32 %v676
    %679 = vset.pattern.permute.xlu0 0
    %680 = vperm.xlu0 %679, %v662
    %v681 = vpop.permute.xlu0 %680
    %682 = vset.pattern.permute.xlu0 0
    %683 = vperm.xlu0 %682, %v663
    %v684 = vpop.permute.xlu0 %683
    %vm685 = vcmp.eq.s32.totalorder %v681, %v666
    %vm686 = vcmp.eq.s32.totalorder %v684, %v666
    %v687 = vsel %vm685, 1, 0
    %v688 = vsel %vm686, 1, 0
    %v689 = vcvt.s32.f32 %v687
    %v690 = vcvt.s32.f32 %v688
    %691 = vset.pattern.permute.xlu0 0
    %692 = vperm.xlu0 %691, %v664
    %v693 = vpop.permute.xlu0 %692
    %vm694 = vcmp.eq.s32.totalorder %v693, %v666
    %v695 = vsel %vm694, 1, 0
    %v696 = vcvt.s32.f32 %v695
    %vm697 = vcmask 15360
    %v698 = vsel %vm697, %v696, 0.0
    %v699 = vrot.slane %v698, 4
    %v700 = vadd.f32 %v698, %v699
    %v701 = vrot.slane %v700, 2
    %v702 = vadd.f32 %v700, %v701
    %v703 = vrot.slane %v702, 1
    %v704 = vadd.f32 %v702, %v703
    %v705 = vmax.f32 %v704, 1.0
    %v706 = vld [vmem:[%s11] sm:$0xff]
    %v707 = vld [vmem:[%s11 + $0x8] sm:$0xff]
    %v708 = vld [vmem:[%s11 + $0x10] sm:$0x7]
    %v709 = vld [vmem:[%s13] sm:$0x1]
    %v711 = vlaneseq
    %v712 = vshrl.u32 %v711, 7
    %v713 = vsub.s32 0, %v712
    %v714 = vrot.slane %v709, %v713
    %vm716 = vcmask 154624
    %v718 = vsel %vm716, %v657, 0
    %vm720 = vcmask 1042432
    %v722 = vsel %vm720, %v708, 0
    %724 = vmatprep.subr.mxu0 0.0
    %725 = vmatpush1.msra.mxu0 %v706
    %726 = vmatprep.subr.mxu0 0.0
    %727 = vmatpush1.msra.mxu0 %v707
    %728 = vmatprep.subr.mxu0 0.0
    %729 = vmatpush1.msra.mxu0 %v722
    %730 = vmatprep.subr.mxu0 0.0
    %731 = vmatpush1.msra.mxu0 0.0
    %732 = vmatprep.subr.mxu0 0.0
    %733 = vmatpush1.msra.mxu0 0.0
    %734 = vmatprep.subr.mxu0 0.0
    %735 = vmatpush1.msra.mxu0 0.0
    %736 = vmatprep.subr.mxu0 0.0
    %737 = vmatpush1.msra.mxu0 0.0
    %738 = vmatprep.subr.mxu0 0.0
    %739 = vmatpush1.msra.mxu0 0.0
    %740 = vmatprep.subr.mxu0 0.0
    %741 = vmatpush1.msra.mxu0 0.0
    %742 = vmatprep.subr.mxu0 0.0
    %743 = vmatpush1.msra.mxu0 0.0
    %744 = vmatprep.subr.mxu0 0.0
    %745 = vmatpush1.msra.mxu0 0.0
    %746 = vmatprep.subr.mxu0 0.0
    %747 = vmatpush1.msra.mxu0 0.0
    %748 = vmatprep.subr.mxu0 0.0
    %749 = vmatpush1.msra.mxu0 0.0
    %750 = vmatprep.subr.mxu0 0.0
    %751 = vmatpush1.msra.mxu0 0.0
    %752 = vmatprep.subr.mxu0 0.0
    %753 = vmatpush1.msra.mxu0 0.0
    %754 = vmatprep.subr.mxu0 0.0
    %755 = vmatpush1.msra.mxu0 0.0
    %756 = vmatprep.subr.mxu0 0.0
    %757 = vmatpush1.msra.mxu0 0.0
    %758 = vmatprep.subr.mxu0 0.0
    %759 = vmatpush1.msra.mxu0 0.0
    %760 = vmatprep.subr.mxu0 0.0
    %761 = vmatpush1.msra.mxu0 0.0
    %762 = vmatprep.subr.mxu0 0.0
    %763 = vmatpush1.msra.mxu0 0.0
    %764 = vmatprep.subr.mxu0 0.0
    %765 = vmatpush1.msra.mxu0 0.0
    %766 = vmatprep.subr.mxu0 0.0
    %767 = vmatpush1.msra.mxu0 0.0
    %768 = vmatprep.subr.mxu0 0.0
    %769 = vmatpush1.msra.mxu0 0.0
    %770 = vmatprep.subr.mxu0 0.0
    %771 = vmatpush1.msra.mxu0 0.0
    %772 = vmatprep.subr.mxu0 0.0
    %773 = vmatpush1.msra.mxu0 0.0
    %774 = vmatprep.subr.mxu0 0.0
    %775 = vmatpush1.msra.mxu0 0.0
    %776 = vmatprep.subr.mxu0 0.0
    %777 = vmatpush1.msra.mxu0 0.0
    %778 = vmatprep.subr.mxu0 0.0
    %779 = vmatpush1.msra.mxu0 0.0
    %780 = vmatprep.subr.mxu0 0.0
    %781 = vmatpush1.msra.mxu0 0.0
    %782 = vmatprep.subr.mxu0 0.0
    %783 = vmatpush1.msra.mxu0 0.0
    %784 = vmatprep.subr.mxu0 0.0
    %785 = vmatpush1.msra.mxu0 0.0
    %786 = vmatprep.subr.mxu0 0.0
    %787 = vmatpush1.msra.mxu0 0.0
    %788 = vmatprep.mubr.f32.mxu0 0.0
    %789 = vmatmul.mubr.f32.gmra.mrb[0].mxu0 %v718
    %v790 = vpop.f32.mrb[0].mxu0
    %v791 = vadd.f32 %v714, %v790
    %v792 = vpop.f32.mrb[0].mxu0
    %793 = vdwg.mxu0
    %v794 = vld [vmem:[%s15] sm:$0x1]
    %v795 = vld [vmem:[%s17] sm:$0x1]
    %v796 = vmul.f32 %v705, 32.0
    %vm797 = vcmask 261120
    %v798 = vsel %vm797, %v791, 0.0
    %799 = vadd.xlane.f32.xlu0 %v798
    %v800 = vpop.xlane.xlu0 %799
    %v801 = vmul.f32 %v696, %v800
    %v802 = vsel %vm697, %v801, 0.0
    %v803 = vrot.slane %v802, 4
    %v804 = vadd.f32 %v802, %v803
    %v805 = vrot.slane %v804, 2
    %v806 = vadd.f32 %v804, %v805
    %v807 = vrot.slane %v806, 1
    %v808 = vadd.f32 %v806, %v807
    %v809 = vrcp.pop %v796
    %v810 = vmul.f32 %v808, %v809
    %v811 = vmul.f32 %v696, %v810
    %v812 = vsel %vm697, %v811, 0.0
    %813 = vadd.xlane.f32.xlu0 %v812
    %v814 = vpop.xlane.xlu0 %813
    %v815 = vsub.f32 %v791, %v814
    %v816 = vmul.f32 %v815, %v815
    %v817 = vsel %vm797, %v816, 0.0
    %818 = vadd.xlane.f32.xlu0 %v817
    %v819 = vpop.xlane.xlu0 %818
    %v820 = vmul.f32 %v696, %v819
    %v821 = vsel %vm697, %v820, 0.0
    %v822 = vrot.slane %v821, 4
    %v823 = vadd.f32 %v821, %v822
    %v824 = vrot.slane %v823, 2
    %v825 = vadd.f32 %v823, %v824
    %v826 = vrot.slane %v825, 1
    %v827 = vadd.f32 %v825, %v826
    %v828 = vmul.f32 %v827, %v809
    %v829 = vmul.f32 %v696, %v828
    %v830 = vsel %vm697, %v829, 0.0
    %831 = vadd.xlane.f32.xlu0 %v830
    %v832 = vpop.xlane.xlu0 %831
    %v833 = vadd.f32 %v832, 1e-05
    %v834 = vrsqrt.pop %v833
    %v835 = vmul.f32 %v815, %v834
    %v837 = vlaneseq
    %v838 = vshrl.u32 %v837, 7
    %v839 = vsub.s32 0, %v838
    %v840 = vrot.slane %v794, %v839
    %v842 = vmul.f32 %v835, %v840
    %v844 = vlaneseq
    %v845 = vshrl.u32 %v844, 7
    %v846 = vsub.s32 0, %v845
    %v847 = vrot.slane %v795, %v846
    %v849 = vadd.f32 %v842, %v847
    %vm850 = vcmp.gt.f32.partialorder %v849, 0.0
    %v851 = vmul.f32 %v849, 0.01
    %v852 = vsel %vm850, %v849, %v851
    %v853 = vld [vmem:[%s19] sm:$0xff]
    %v854 = vld [vmem:[%s19 + $0x8] sm:$0xff]
    %v855 = vld [vmem:[%s19 + $0x10] sm:$0xff]
    %v856 = vld [vmem:[%s19 + $0x18] sm:$0xff]
    %v857 = vld [vmem:[#allocation3] sm:$0x1]
    %v859 = vlaneseq
    %v860 = vshrl.u32 %v859, 7
    %v861 = vsub.s32 0, %v860
    %v862 = vrot.slane %v857, %v861
    %v865 = vsel %vm797, %v852, 0
    %867 = vmatprep.subr.mxu0 0.0
    %868 = vmatpush1.msra.mxu0 %v853
    %869 = vmatprep.subr.mxu0 0.0
    %870 = vmatpush1.msra.mxu0 %v854
    %871 = vmatprep.subr.mxu0 0.0
    %872 = vmatpush1.msra.mxu0 %v855
    %873 = vmatprep.subr.mxu0 0.0
    %874 = vmatpush1.msra.mxu0 %v856
    %875 = vmatprep.subr.mxu0 0.0
    %876 = vmatpush1.msra.mxu0 0.0
    %877 = vmatprep.subr.mxu0 0.0
    %878 = vmatpush1.msra.mxu0 0.0
    %879 = vmatprep.subr.mxu0 0.0
    %880 = vmatpush1.msra.mxu0 0.0
    %881 = vmatprep.subr.mxu0 0.0
    %882 = vmatpush1.msra.mxu0 0.0
    %883 = vmatprep.subr.mxu0 0.0
    %884 = vmatpush1.msra.mxu0 0.0
    %885 = vmatprep.subr.mxu0 0.0
    %886 = vmatpush1.msra.mxu0 0.0
    %887 = vmatprep.subr.mxu0 0.0
    %888 = vmatpush1.msra.mxu0 0.0
    %889 = vmatprep.subr.mxu0 0.0
    %890 = vmatpush1.msra.mxu0 0.0
    %891 = vmatprep.subr.mxu0 0.0
    %892 = vmatpush1.msra.mxu0 0.0
    %893 = vmatprep.subr.mxu0 0.0
    %894 = vmatpush1.msra.mxu0 0.0
    %895 = vmatprep.subr.mxu0 0.0
    %896 = vmatpush1.msra.mxu0 0.0
    %897 = vmatprep.subr.mxu0 0.0
    %898 = vmatpush1.msra.mxu0 0.0
    %899 = vmatprep.subr.mxu0 0.0
    %900 = vmatpush1.msra.mxu0 0.0
    %901 = vmatprep.subr.mxu0 0.0
    %902 = vmatpush1.msra.mxu0 0.0
    %903 = vmatprep.subr.mxu0 0.0
    %904 = vmatpush1.msra.mxu0 0.0
    %905 = vmatprep.subr.mxu0 0.0
    %906 = vmatpush1.msra.mxu0 0.0
    %907 = vmatprep.subr.mxu0 0.0
    %908 = vmatpush1.msra.mxu0 0.0
    %909 = vmatprep.subr.mxu0 0.0
    %910 = vmatpush1.msra.mxu0 0.0
    %911 = vmatprep.subr.mxu0 0.0
    %912 = vmatpush1.msra.mxu0 0.0
    %913 = vmatprep.subr.mxu0 0.0
    %914 = vmatpush1.msra.mxu0 0.0
    %915 = vmatprep.subr.mxu0 0.0
    %916 = vmatpush1.msra.mxu0 0.0
    %917 = vmatprep.subr.mxu0 0.0
    %918 = vmatpush1.msra.mxu0 0.0
    %919 = vmatprep.subr.mxu0 0.0
    %920 = vmatpush1.msra.mxu0 0.0
    %921 = vmatprep.subr.mxu0 0.0
    %922 = vmatpush1.msra.mxu0 0.0
    %923 = vmatprep.subr.mxu0 0.0
    %924 = vmatpush1.msra.mxu0 0.0
    %925 = vmatprep.subr.mxu0 0.0
    %926 = vmatpush1.msra.mxu0 0.0
    %927 = vmatprep.subr.mxu0 0.0
    %928 = vmatpush1.msra.mxu0 0.0
    %929 = vmatprep.subr.mxu0 0.0
    %930 = vmatpush1.msra.mxu0 0.0
    %931 = vmatprep.mubr.f32.mxu0 0.0
    %932 = vmatmul.mubr.f32.gmra.mrb[0].mxu0 %v865
    %v933 = vpop.f32.mrb[0].mxu0
    %v934 = vadd.f32 %v862, %v933
    %v935 = vpop.f32.mrb[0].mxu0
    %936 = vdwg.mxu0
    %vm937 = vcmask 64512
    %v939 = vsel %vm937, %v677, 0
    %v942 = vsel %vm937, %v678, 0
    %944 = vmatprep.subr.mxu0 0.0
    %945 = vmatpush1.msra.mxu0 %v934
    %946 = vmatprep.subr.mxu0 0.0
    %947 = vmatpush1.msra.mxu0 0.0
    %948 = vmatprep.subr.mxu0 0.0
    %949 = vmatpush1.msra.mxu0 0.0
    %950 = vmatprep.subr.mxu0 0.0
    %951 = vmatpush1.msra.mxu0 0.0
    %952 = vmatprep.subr.mxu0 0.0
    %953 = vmatpush1.msra.mxu0 0.0
    %954 = vmatprep.subr.mxu0 0.0
    %955 = vmatpush1.msra.mxu0 0.0
    %956 = vmatprep.subr.mxu0 0.0
    %957 = vmatpush1.msra.mxu0 0.0
    %958 = vmatprep.subr.mxu0 0.0
    %959 = vmatpush1.msra.mxu0 0.0
    %960 = vmatprep.subr.mxu0 0.0
    %961 = vmatpush1.msra.mxu0 0.0
    %962 = vmatprep.subr.mxu0 0.0
    %963 = vmatpush1.msra.mxu0 0.0
    %964 = vmatprep.subr.mxu0 0.0
    %965 = vmatpush1.msra.mxu0 0.0
    %966 = vmatprep.subr.mxu0 0.0
    %967 = vmatpush1.msra.mxu0 0.0
    %968 = vmatprep.subr.mxu0 0.0
    %969 = vmatpush1.msra.mxu0 0.0
    %970 = vmatprep.subr.mxu0 0.0
    %971 = vmatpush1.msra.mxu0 0.0
    %972 = vmatprep.subr.mxu0 0.0
    %973 = vmatpush1.msra.mxu0 0.0
    %974 = vmatprep.subr.mxu0 0.0
    %975 = vmatpush1.msra.mxu0 0.0
    %976 = vmatprep.subr.mxu0 0.0
    %977 = vmatpush1.msra.mxu0 0.0
    %978 = vmatprep.subr.mxu0 0.0
    %979 = vmatpush1.msra.mxu0 0.0
    %980 = vmatprep.subr.mxu0 0.0
    %981 = vmatpush1.msra.mxu0 0.0
    %982 = vmatprep.subr.mxu0 0.0
    %983 = vmatpush1.msra.mxu0 0.0
    %984 = vmatprep.subr.mxu0 0.0
    %985 = vmatpush1.msra.mxu0 0.0
    %986 = vmatprep.subr.mxu0 0.0
    %987 = vmatpush1.msra.mxu0 0.0
    %988 = vmatprep.subr.mxu0 0.0
    %989 = vmatpush1.msra.mxu0 0.0
    %990 = vmatprep.subr.mxu0 0.0
    %991 = vmatpush1.msra.mxu0 0.0
    %992 = vmatprep.subr.mxu0 0.0
    %993 = vmatpush1.msra.mxu0 0.0
    %994 = vmatprep.subr.mxu0 0.0
    %995 = vmatpush1.msra.mxu0 0.0
    %996 = vmatprep.subr.mxu0 0.0
    %997 = vmatpush1.msra.mxu0 0.0
    %998 = vmatprep.subr.mxu0 0.0
    %999 = vmatpush1.msra.mxu0 0.0
    %1000 = vmatprep.subr.mxu0 0.0
    %1001 = vmatpush1.msra.mxu0 0.0
    %1002 = vmatprep.subr.mxu0 0.0
    %1003 = vmatpush1.msra.mxu0 0.0
    %1004 = vmatprep.subr.mxu0 0.0
    %1005 = vmatpush1.msra.mxu0 0.0
    %1006 = vmatprep.subr.mxu0 0.0
    %1007 = vmatpush1.msra.mxu0 0.0
    %1008 = vmatprep.mubr.f32.mxu0 0.0
    %1009 = vmatmul.mubr.f32.gmra.mrb[0].mxu0 %v939
    %v1010 = vpop.f32.mrb[0].mxu0
    %v1011 = vadd.f32 0.0, %v1010
    %v1012 = vpop.f32.mrb[0].mxu0
    %1013 = vmatprep.mubr.f32.mxu0 0.0
    %1014 = vmatmul.mubr.f32.gmra.mrb[0].mxu0 %v942
    %v1015 = vpop.f32.mrb[0].mxu0
    %v1016 = vadd.f32 0.0, %v1015
    %v1017 = vpop.f32.mrb[0].mxu0
    %1018 = vdwg.mxu0
    %v1020 = vsel %vm937, %v689, 0
    %v1023 = vsel %vm937, %v690, 0
    %1025 = vmatprep.subr.mxu0 0.0
    %1026 = vmatpush1.msra.mxu0 %v934
    %1027 = vmatprep.subr.mxu0 0.0
    %1028 = vmatpush1.msra.mxu0 0.0
    %1029 = vmatprep.subr.mxu0 0.0
    %1030 = vmatpush1.msra.mxu0 0.0
    %1031 = vmatprep.subr.mxu0 0.0
    %1032 = vmatpush1.msra.mxu0 0.0
    %1033 = vmatprep.subr.mxu0 0.0
    %1034 = vmatpush1.msra.mxu0 0.0
    %1035 = vmatprep.subr.mxu0 0.0
    %1036 = vmatpush1.msra.mxu0 0.0
    %1037 = vmatprep.subr.mxu0 0.0
    %1038 = vmatpush1.msra.mxu0 0.0
    %1039 = vmatprep.subr.mxu0 0.0
    %1040 = vmatpush1.msra.mxu0 0.0
    %1041 = vmatprep.subr.mxu0 0.0
    %1042 = vmatpush1.msra.mxu0 0.0
    %1043 = vmatprep.subr.mxu0 0.0
    %1044 = vmatpush1.msra.mxu0 0.0
    %1045 = vmatprep.subr.mxu0 0.0
    %1046 = vmatpush1.msra.mxu0 0.0
    %1047 = vmatprep.subr.mxu0 0.0
    %1048 = vmatpush1.msra.mxu0 0.0
    %1049 = vmatprep.subr.mxu0 0.0
    %1050 = vmatpush1.msra.mxu0 0.0
    %1051 = vmatprep.subr.mxu0 0.0
    %1052 = vmatpush1.msra.mxu0 0.0
    %1053 = vmatprep.subr.mxu0 0.0
    %1054 = vmatpush1.msra.mxu0 0.0
    %1055 = vmatprep.subr.mxu0 0.0
    %1056 = vmatpush1.msra.mxu0 0.0
    %1057 = vmatprep.subr.mxu0 0.0
    %1058 = vmatpush1.msra.mxu0 0.0
    %1059 = vmatprep.subr.mxu0 0.0
    %1060 = vmatpush1.msra.mxu0 0.0
    %1061 = vmatprep.subr.mxu0 0.0
    %1062 = vmatpush1.msra.mxu0 0.0
    %1063 = vmatprep.subr.mxu0 0.0
    %1064 = vmatpush1.msra.mxu0 0.0
    %1065 = vmatprep.subr.mxu0 0.0
    %1066 = vmatpush1.msra.mxu0 0.0
    %1067 = vmatprep.subr.mxu0 0.0
    %1068 = vmatpush1.msra.mxu0 0.0
    %1069 = vmatprep.subr.mxu0 0.0
    %1070 = vmatpush1.msra.mxu0 0.0
    %1071 = vmatprep.subr.mxu0 0.0
    %1072 = vmatpush1.msra.mxu0 0.0
    %1073 = vmatprep.subr.mxu0 0.0
    %1074 = vmatpush1.msra.mxu0 0.0
    %1075 = vmatprep.subr.mxu0 0.0
    %1076 = vmatpush1.msra.mxu0 0.0
    %1077 = vmatprep.subr.mxu0 0.0
    %1078 = vmatpush1.msra.mxu0 0.0
    %1079 = vmatprep.subr.mxu0 0.0
    %1080 = vmatpush1.msra.mxu0 0.0
    %1081 = vmatprep.subr.mxu0 0.0
    %1082 = vmatpush1.msra.mxu0 0.0
    %1083 = vmatprep.subr.mxu0 0.0
    %1084 = vmatpush1.msra.mxu0 0.0
    %1085 = vmatprep.subr.mxu0 0.0
    %1086 = vmatpush1.msra.mxu0 0.0
    %1087 = vmatprep.subr.mxu0 0.0
    %1088 = vmatpush1.msra.mxu0 0.0
    %1089 = vmatprep.mubr.f32.mxu0 0.0
    %1090 = vmatmul.mubr.f32.gmra.mrb[0].mxu0 %v1020
    %v1091 = vpop.f32.mrb[0].mxu0
    %v1092 = vadd.f32 0.0, %v1091
    %v1093 = vpop.f32.mrb[0].mxu0
    %1094 = vmatprep.mubr.f32.mxu0 0.0
    %1095 = vmatmul.mubr.f32.gmra.mrb[0].mxu0 %v1023
    %v1096 = vpop.f32.mrb[0].mxu0
    %v1097 = vadd.f32 0.0, %v1096
    %v1098 = vpop.f32.mrb[0].mxu0
    %1099 = vdwg.mxu0
    %v1100 = vld [vmem:[%s23] sm:$0xff]
    %v1101 = vld [vmem:[%s23 + $0x8] sm:$0xff]
    %v1102 = vld [vmem:[%s23 + $0x10] sm:$0xff]
    %v1103 = vld [vmem:[%s23 + $0x18] sm:$0xff]
    %v1104 = vld [vmem:[%s25] sm:$0xff]
    %v1105 = vld [vmem:[%s25 + $0x8] sm:$0xff]
    %v1106 = vld [vmem:[%s25 + $0x10] sm:$0xff]
    %v1107 = vld [vmem:[%s25 + $0x18] sm:$0xff]
    %v1108 = vld [vmem:[%s27] sm:$0xff]
    %v1109 = vld [vmem:[%s27 + $0x8] sm:$0xff]
    %v1110 = vld [vmem:[%s27 + $0x10] sm:$0x7]
    %v1111 = vld [vmem:[#allocation5] sm:$0x1]
    %v1113 = vsel %vm797, %v1092, 0
    %v1116 = vsel %vm797, %v1097, 0
    %1118 = vmatprep.subr.mxu0 0.0
    %1119 = vmatpush1.msra.mxu0 %v1104
    %1120 = vmatprep.subr.mxu0 0.0
    %1121 = vmatpush1.msra.mxu0 %v1105
    %1122 = vmatprep.subr.mxu0 0.0
    %1123 = vmatpush1.msra.mxu0 %v1106
    %1124 = vmatprep.subr.mxu0 0.0
    %1125 = vmatpush1.msra.mxu0 %v1107
    %1126 = vmatprep.subr.mxu0 0.0
    %1127 = vmatpush1.msra.mxu0 0.0
    %1128 = vmatprep.subr.mxu0 0.0
    %1129 = vmatpush1.msra.mxu0 0.0
    %1130 = vmatprep.subr.mxu0 0.0
    %1131 = vmatpush1.msra.mxu0 0.0
    %1132 = vmatprep.subr.mxu0 0.0
    %1133 = vmatpush1.msra.mxu0 0.0
    %1134 = vmatprep.subr.mxu0 0.0
    %1135 = vmatpush1.msra.mxu0 0.0
    %1136 = vmatprep.subr.mxu0 0.0
    %1137 = vmatpush1.msra.mxu0 0.0
    %1138 = vmatprep.subr.mxu0 0.0
    %1139 = vmatpush1.msra.mxu0 0.0
    %1140 = vmatprep.subr.mxu0 0.0
    %1141 = vmatpush1.msra.mxu0 0.0
    %1142 = vmatprep.subr.mxu0 0.0
    %1143 = vmatpush1.msra.mxu0 0.0
    %1144 = vmatprep.subr.mxu0 0.0
    %1145 = vmatpush1.msra.mxu0 0.0
    %1146 = vmatprep.subr.mxu0 0.0
    %1147 = vmatpush1.msra.mxu0 0.0
    %1148 = vmatprep.subr.mxu0 0.0
    %1149 = vmatpush1.msra.mxu0 0.0
    %1150 = vmatprep.subr.mxu0 0.0
    %1151 = vmatpush1.msra.mxu0 0.0
    %1152 = vmatprep.subr.mxu0 0.0
    %1153 = vmatpush1.msra.mxu0 0.0
    %1154 = vmatprep.subr.mxu0 0.0
    %1155 = vmatpush1.msra.mxu0 0.0
    %1156 = vmatprep.subr.mxu0 0.0
    %1157 = vmatpush1.msra.mxu0 0.0
    %1158 = vmatprep.subr.mxu0 0.0
    %1159 = vmatpush1.msra.mxu0 0.0
    %1160 = vmatprep.subr.mxu0 0.0
    %1161 = vmatpush1.msra.mxu0 0.0
    %1162 = vmatprep.subr.mxu0 0.0
    %1163 = vmatpush1.msra.mxu0 0.0
    %1164 = vmatprep.subr.mxu0 0.0
    %1165 = vmatpush1.msra.mxu0 0.0
    %1166 = vmatprep.subr.mxu0 0.0
    %1167 = vmatpush1.msra.mxu0 0.0
    %1168 = vmatprep.subr.mxu0 0.0
    %1169 = vmatpush1.msra.mxu0 0.0
    %1170 = vmatprep.subr.mxu0 0.0
    %1171 = vmatpush1.msra.mxu0 0.0
    %1172 = vmatprep.subr.mxu0 0.0
    %1173 = vmatpush1.msra.mxu0 0.0
    %1174 = vmatprep.subr.mxu0 0.0
    %1175 = vmatpush1.msra.mxu0 0.0
    %1176 = vmatprep.subr.mxu0 0.0
    %1177 = vmatpush1.msra.mxu0 0.0
    %1178 = vmatprep.subr.mxu0 0.0
    %1179 = vmatpush1.msra.mxu0 0.0
    %1180 = vmatprep.subr.mxu0 0.0
    %1181 = vmatpush1.msra.mxu0 0.0
    %1182 = vmatprep.mubr.f32.mxu0 0.0
    %1183 = vmatmul.mubr.f32.gmra.mrb[0].mxu0 %v1113
    %v1184 = vpop.f32.mrb[0].mxu0
    %v1185 = vadd.f32 0.0, %v1184
    %v1186 = vpop.f32.mrb[0].mxu0
    %1187 = vmatprep.mubr.f32.mxu0 0.0
    %1188 = vmatmul.mubr.f32.gmra.mrb[0].mxu0 %v1116
    %v1189 = vpop.f32.mrb[0].mxu0
    %v1190 = vadd.f32 0.0, %v1189
    %v1191 = vpop.f32.mrb[0].mxu0
    %1192 = vdwg.mxu0
    %v1194 = vsel %vm797, %v1011, 0
    %v1197 = vsel %vm797, %v1016, 0
    %1199 = vmatprep.subr.mxu0 0.0
    %1200 = vmatpush1.msra.mxu0 %v1100
    %1201 = vmatprep.subr.mxu0 0.0
    %1202 = vmatpush1.msra.mxu0 %v1101
    %1203 = vmatprep.subr.mxu0 0.0
    %1204 = vmatpush1.msra.mxu0 %v1102
    %1205 = vmatprep.subr.mxu0 0.0
    %1206 = vmatpush1.msra.mxu0 %v1103
    %1207 = vmatprep.subr.mxu0 0.0
    %1208 = vmatpush1.msra.mxu0 0.0
    %1209 = vmatprep.subr.mxu0 0.0
    %1210 = vmatpush1.msra.mxu0 0.0
    %1211 = vmatprep.subr.mxu0 0.0
    %1212 = vmatpush1.msra.mxu0 0.0
    %1213 = vmatprep.subr.mxu0 0.0
    %1214 = vmatpush1.msra.mxu0 0.0
    %1215 = vmatprep.subr.mxu0 0.0
    %1216 = vmatpush1.msra.mxu0 0.0
    %1217 = vmatprep.subr.mxu0 0.0
    %1218 = vmatpush1.msra.mxu0 0.0
    %1219 = vmatprep.subr.mxu0 0.0
    %1220 = vmatpush1.msra.mxu0 0.0
    %1221 = vmatprep.subr.mxu0 0.0
    %1222 = vmatpush1.msra.mxu0 0.0
    %1223 = vmatprep.subr.mxu0 0.0
    %1224 = vmatpush1.msra.mxu0 0.0
    %1225 = vmatprep.subr.mxu0 0.0
    %1226 = vmatpush1.msra.mxu0 0.0
    %1227 = vmatprep.subr.mxu0 0.0
    %1228 = vmatpush1.msra.mxu0 0.0
    %1229 = vmatprep.subr.mxu0 0.0
    %1230 = vmatpush1.msra.mxu0 0.0
    %1231 = vmatprep.subr.mxu0 0.0
    %1232 = vmatpush1.msra.mxu0 0.0
    %1233 = vmatprep.subr.mxu0 0.0
    %1234 = vmatpush1.msra.mxu0 0.0
    %1235 = vmatprep.subr.mxu0 0.0
    %1236 = vmatpush1.msra.mxu0 0.0
    %1237 = vmatprep.subr.mxu0 0.0
    %1238 = vmatpush1.msra.mxu0 0.0
    %1239 = vmatprep.subr.mxu0 0.0
    %1240 = vmatpush1.msra.mxu0 0.0
    %1241 = vmatprep.subr.mxu0 0.0
    %1242 = vmatpush1.msra.mxu0 0.0
    %1243 = vmatprep.subr.mxu0 0.0
    %1244 = vmatpush1.msra.mxu0 0.0
    %1245 = vmatprep.subr.mxu0 0.0
    %1246 = vmatpush1.msra.mxu0 0.0
    %1247 = vmatprep.subr.mxu0 0.0
    %1248 = vmatpush1.msra.mxu0 0.0
    %1249 = vmatprep.subr.mxu0 0.0
    %1250 = vmatpush1.msra.mxu0 0.0
    %1251 = vmatprep.subr.mxu0 0.0
    %1252 = vmatpush1.msra.mxu0 0.0
    %1253 = vmatprep.subr.mxu0 0.0
    %1254 = vmatpush1.msra.mxu0 0.0
    %1255 = vmatprep.subr.mxu0 0.0
    %1256 = vmatpush1.msra.mxu0 0.0
    %1257 = vmatprep.subr.mxu0 0.0
    %1258 = vmatpush1.msra.mxu0 0.0
    %1259 = vmatprep.subr.mxu0 0.0
    %1260 = vmatpush1.msra.mxu0 0.0
    %1261 = vmatprep.subr.mxu0 0.0
    %1262 = vmatpush1.msra.mxu0 0.0
    %1263 = vmatprep.mubr.f32.mxu0 0.0
    %1264 = vmatmul.mubr.f32.gmra.mrb[0].mxu0 %v1194
    %v1265 = vpop.f32.mrb[0].mxu0
    %v1266 = vadd.f32 %v1185, %v1265
    %v1267 = vpop.f32.mrb[0].mxu0
    %1268 = vmatprep.mubr.f32.mxu0 0.0
    %1269 = vmatmul.mubr.f32.gmra.mrb[0].mxu0 %v1197
    %v1270 = vpop.f32.mrb[0].mxu0
    %v1271 = vadd.f32 %v1190, %v1270
    %v1272 = vpop.f32.mrb[0].mxu0
    %1273 = vdwg.mxu0
    %v1275 = vsel %vm716, %v658, 0
    %v1278 = vsel %vm716, %v659, 0
    %v1281 = vsel %vm720, %v1110, 0
    %1283 = vmatprep.subr.mxu0 0.0
    %1284 = vmatpush1.msra.mxu0 %v1108
    %1285 = vmatprep.subr.mxu0 0.0
    %1286 = vmatpush1.msra.mxu0 %v1109
    %1287 = vmatprep.subr.mxu0 0.0
    %1288 = vmatpush1.msra.mxu0 %v1281
    %1289 = vmatprep.subr.mxu0 0.0
    %1290 = vmatpush1.msra.mxu0 0.0
    %1291 = vmatprep.subr.mxu0 0.0
    %1292 = vmatpush1.msra.mxu0 0.0
    %1293 = vmatprep.subr.mxu0 0.0
    %1294 = vmatpush1.msra.mxu0 0.0
    %1295 = vmatprep.subr.mxu0 0.0
    %1296 = vmatpush1.msra.mxu0 0.0
    %1297 = vmatprep.subr.mxu0 0.0
    %1298 = vmatpush1.msra.mxu0 0.0
    %1299 = vmatprep.subr.mxu0 0.0
    %1300 = vmatpush1.msra.mxu0 0.0
    %1301 = vmatprep.subr.mxu0 0.0
    %1302 = vmatpush1.msra.mxu0 0.0
    %1303 = vmatprep.subr.mxu0 0.0
    %1304 = vmatpush1.msra.mxu0 0.0
    %1305 = vmatprep.subr.mxu0 0.0
    %1306 = vmatpush1.msra.mxu0 0.0
    %1307 = vmatprep.subr.mxu0 0.0
    %1308 = vmatpush1.msra.mxu0 0.0
    %1309 = vmatprep.subr.mxu0 0.0
    %1310 = vmatpush1.msra.mxu0 0.0
    %1311 = vmatprep.subr.mxu0 0.0
    %1312 = vmatpush1.msra.mxu0 0.0
    %1313 = vmatprep.subr.mxu0 0.0
    %1314 = vmatpush1.msra.mxu0 0.0
    %1315 = vmatprep.subr.mxu0 0.0
    %1316 = vmatpush1.msra.mxu0 0.0
    %1317 = vmatprep.subr.mxu0 0.0
    %1318 = vmatpush1.msra.mxu0 0.0
    %1319 = vmatprep.subr.mxu0 0.0
    %1320 = vmatpush1.msra.mxu0 0.0
    %1321 = vmatprep.subr.mxu0 0.0
    %1322 = vmatpush1.msra.mxu0 0.0
    %1323 = vmatprep.subr.mxu0 0.0
    %1324 = vmatpush1.msra.mxu0 0.0
    %1325 = vmatprep.subr.mxu0 0.0
    %1326 = vmatpush1.msra.mxu0 0.0
    %1327 = vmatprep.subr.mxu0 0.0
    %1328 = vmatpush1.msra.mxu0 0.0
    %1329 = vmatprep.subr.mxu0 0.0
    %1330 = vmatpush1.msra.mxu0 0.0
    %1331 = vmatprep.subr.mxu0 0.0
    %1332 = vmatpush1.msra.mxu0 0.0
    %1333 = vmatprep.subr.mxu0 0.0
    %1334 = vmatpush1.msra.mxu0 0.0
    %1335 = vmatprep.subr.mxu0 0.0
    %1336 = vmatpush1.msra.mxu0 0.0
    %1337 = vmatprep.subr.mxu0 0.0
    %1338 = vmatpush1.msra.mxu0 0.0
    %1339 = vmatprep.subr.mxu0 0.0
    %1340 = vmatpush1.msra.mxu0 0.0
    %1341 = vmatprep.subr.mxu0 0.0
    %1342 = vmatpush1.msra.mxu0 0.0
    %1343 = vmatprep.subr.mxu0 0.0
    %1344 = vmatpush1.msra.mxu0 0.0
    %1345 = vmatprep.subr.mxu0 0.0
    %1346 = vmatpush1.msra.mxu0 0.0
    %1347 = vmatprep.mubr.f32.mxu0 0.0
    %1348 = vmatmul.mubr.f32.gmra.mrb[0].mxu0 %v1275
    %v1349 = vpop.f32.mrb[0].mxu0
    %v1350 = vadd.f32 0.0, %v1349
    %v1351 = vpop.f32.mrb[0].mxu0
    %1352 = vmatprep.mubr.f32.mxu0 0.0
    %1353 = vmatmul.mubr.f32.gmra.mrb[0].mxu0 %v1278
    %v1354 = vpop.f32.mrb[0].mxu0
    %v1355 = vadd.f32 0.0, %v1354
    %v1356 = vpop.f32.mrb[0].mxu0
    %1357 = vdwg.mxu0
    %v1358 = vadd.f32 %v1266, %v1350
    %v1359 = vadd.f32 %v1271, %v1355
    %v1361 = vlaneseq
    %v1362 = vshrl.u32 %v1361, 7
    %v1363 = vsub.s32 0, %v1362
    %v1364 = vrot.slane %v1111, %v1363
    %v1366 = vadd.f32 %v1358, %v1364
    %v1367 = vadd.f32 %v1359, %v1364
    %v1368 = vld [vmem:[#allocation7] sm:$0x1]
    %v1369 = vld [vmem:[#allocation8] sm:$0x1]
    %vm1370 = vcmask 130048
    %v1371 = vsel %vm1370, %v1366, 0.0
    %1372 = vadd.xlane.f32.xlu0 %v1371
    %v1373 = vpop.xlane.xlu0 %1372
    %v1374 = vsel %vm1370, %v1367, 0.0
    %1375 = vadd.xlane.f32.xlu0 %v1374
    %v1376 = vpop.xlane.xlu0 %1375
    %v1377 = vrcp.pop 16.0
    %v1378 = vmul.f32 %v1373, %v1377
    %v1379 = vmul.f32 %v1376, %v1377
    %v1380 = vsub.f32 %v1366, %v1378
    %v1381 = vsub.f32 %v1367, %v1379
    %v1382 = vmul.f32 %v1380, %v1380
    %v1383 = vmul.f32 %v1381, %v1381
    %v1384 = vsel %vm1370, %v1382, 0.0
    %1385 = vadd.xlane.f32.xlu0 %v1384
    %v1386 = vpop.xlane.xlu0 %1385
    %v1387 = vsel %vm1370, %v1383, 0.0
    %1388 = vadd.xlane.f32.xlu0 %v1387
    %v1389 = vpop.xlane.xlu0 %1388
    %v1390 = vmul.f32 %v1386, %v1377
    %v1391 = vmul.f32 %v1389, %v1377
    %v1392 = vadd.f32 %v1390, 1e-05
    %v1393 = vadd.f32 %v1391, 1e-05
    %v1394 = vrsqrt.pop %v1392
    %v1395 = vrsqrt.pop %v1393
    %v1396 = vmul.f32 %v1380, %v1394
    %v1397 = vmul.f32 %v1381, %v1395
    %v1399 = vlaneseq
    %v1400 = vshrl.u32 %v1399, 7
    %v1401 = vsub.s32 0, %v1400
    %v1402 = vrot.slane %v1368, %v1401
    %v1404 = vmul.f32 %v1396, %v1402
    %v1405 = vmul.f32 %v1397, %v1402
    %v1407 = vlaneseq
    %v1408 = vshrl.u32 %v1407, 7
    %v1409 = vsub.s32 0, %v1408
    %v1410 = vrot.slane %v1369, %v1409
    %v1412 = vadd.f32 %v1404, %v1410
    %v1413 = vadd.f32 %v1405, %v1410
    %vm1414 = vcmp.gt.f32.partialorder %v1412, 0.0
    %vm1415 = vcmp.gt.f32.partialorder %v1413, 0.0
    %v1416 = vmul.f32 %v1412, 0.01
    %v1417 = vmul.f32 %v1413, 0.01
    %v1418 = vsel %vm1414, %v1412, %v1416
    %v1419 = vsel %vm1415, %v1413, %v1417
    %v1420 = vld [vmem:[#allocation10] sm:$0xff]
    %v1421 = vld [vmem:[#allocation10 + $0x8] sm:$0xff]
    %v1422 = vld [vmem:[#allocation11] sm:$0x1]
    %v1424 = vlaneseq
    %v1425 = vshrl.u32 %v1424, 7
    %v1426 = vsub.s32 0, %v1425
    %v1427 = vrot.slane %v1422, %v1426
    %v1430 = vsel %vm1370, %v1418, 0
    %v1433 = vsel %vm1370, %v1419, 0
    %1435 = vmatprep.subr.mxu0 0.0
    %1436 = vmatpush1.msra.mxu0 %v1420
    %1437 = vmatprep.subr.mxu0 0.0
    %1438 = vmatpush1.msra.mxu0 %v1421
    %1439 = vmatprep.subr.mxu0 0.0
    %1440 = vmatpush1.msra.mxu0 0.0
    %1441 = vmatprep.subr.mxu0 0.0
    %1442 = vmatpush1.msra.mxu0 0.0
    %1443 = vmatprep.subr.mxu0 0.0
    %1444 = vmatpush1.msra.mxu0 0.0
    %1445 = vmatprep.subr.mxu0 0.0
    %1446 = vmatpush1.msra.mxu0 0.0
    %1447 = vmatprep.subr.mxu0 0.0
    %1448 = vmatpush1.msra.mxu0 0.0
    %1449 = vmatprep.subr.mxu0 0.0
    %1450 = vmatpush1.msra.mxu0 0.0
    %1451 = vmatprep.subr.mxu0 0.0
    %1452 = vmatpush1.msra.mxu0 0.0
    %1453 = vmatprep.subr.mxu0 0.0
    %1454 = vmatpush1.msra.mxu0 0.0
    %1455 = vmatprep.subr.mxu0 0.0
    %1456 = vmatpush1.msra.mxu0 0.0
    %1457 = vmatprep.subr.mxu0 0.0
    %1458 = vmatpush1.msra.mxu0 0.0
    %1459 = vmatprep.subr.mxu0 0.0
    %1460 = vmatpush1.msra.mxu0 0.0
    %1461 = vmatprep.subr.mxu0 0.0
    %1462 = vmatpush1.msra.mxu0 0.0
    %1463 = vmatprep.subr.mxu0 0.0
    %1464 = vmatpush1.msra.mxu0 0.0
    %1465 = vmatprep.subr.mxu0 0.0
    %1466 = vmatpush1.msra.mxu0 0.0
    %1467 = vmatprep.subr.mxu0 0.0
    %1468 = vmatpush1.msra.mxu0 0.0
    %1469 = vmatprep.subr.mxu0 0.0
    %1470 = vmatpush1.msra.mxu0 0.0
    %1471 = vmatprep.subr.mxu0 0.0
    %1472 = vmatpush1.msra.mxu0 0.0
    %1473 = vmatprep.subr.mxu0 0.0
    %1474 = vmatpush1.msra.mxu0 0.0
    %1475 = vmatprep.subr.mxu0 0.0
    %1476 = vmatpush1.msra.mxu0 0.0
    %1477 = vmatprep.subr.mxu0 0.0
    %1478 = vmatpush1.msra.mxu0 0.0
    %1479 = vmatprep.subr.mxu0 0.0
    %1480 = vmatpush1.msra.mxu0 0.0
    %1481 = vmatprep.subr.mxu0 0.0
    %1482 = vmatpush1.msra.mxu0 0.0
    %1483 = vmatprep.subr.mxu0 0.0
    %1484 = vmatpush1.msra.mxu0 0.0
    %1485 = vmatprep.subr.mxu0 0.0
    %1486 = vmatpush1.msra.mxu0 0.0
    %1487 = vmatprep.subr.mxu0 0.0
    %1488 = vmatpush1.msra.mxu0 0.0
    %1489 = vmatprep.subr.mxu0 0.0
    %1490 = vmatpush1.msra.mxu0 0.0
    %1491 = vmatprep.subr.mxu0 0.0
    %1492 = vmatpush1.msra.mxu0 0.0
    %1493 = vmatprep.subr.mxu0 0.0
    %1494 = vmatpush1.msra.mxu0 0.0
    %1495 = vmatprep.subr.mxu0 0.0
    %1496 = vmatpush1.msra.mxu0 0.0
    %1497 = vmatprep.subr.mxu0 0.0
    %1498 = vmatpush1.msra.mxu0 0.0
    %1499 = vmatprep.mubr.f32.mxu0 0.0
    %1500 = vmatmul.mubr.f32.gmra.mrb[0].mxu0 %v1430
    %v1501 = vpop.f32.mrb[0].mxu0
    %v1502 = vadd.f32 %v1427, %v1501
    %v1503 = vpop.f32.mrb[0].mxu0
    %1504 = vmatprep.mubr.f32.mxu0 0.0
    %1505 = vmatmul.mubr.f32.gmra.mrb[0].mxu0 %v1433
    %v1506 = vpop.f32.mrb[0].mxu0
    %v1507 = vadd.f32 %v1427, %v1506
    %v1508 = vpop.f32.mrb[0].mxu0
    %1509 = vdwg.mxu0
    %v1510 = vld [vmem:[#allocation13] sm:$0xff]
    %v1511 = vld [vmem:[#allocation13 + $0x8] sm:$0xff]
    %v1512 = vld [vmem:[#allocation14] sm:$0x1]
    %v1514 = vlaneseq
    %v1515 = vshrl.u32 %v1514, 7
    %v1516 = vsub.s32 0, %v1515
    %v1517 = vrot.slane %v1512, %v1516
    %v1520 = vsel %vm1370, %v1502, 0
    %v1523 = vsel %vm1370, %v1507, 0
    %1525 = vmatprep.subr.mxu0 0.0
    %1526 = vmatpush1.msra.mxu0 %v1510
    %1527 = vmatprep.subr.mxu0 0.0
    %1528 = vmatpush1.msra.mxu0 %v1511
    %1529 = vmatprep.subr.mxu0 0.0
    %1530 = vmatpush1.msra.mxu0 0.0
    %1531 = vmatprep.subr.mxu0 0.0
    %1532 = vmatpush1.msra.mxu0 0.0
    %1533 = vmatprep.subr.mxu0 0.0
    %1534 = vmatpush1.msra.mxu0 0.0
    %1535 = vmatprep.subr.mxu0 0.0
    %1536 = vmatpush1.msra.mxu0 0.0
    %1537 = vmatprep.subr.mxu0 0.0
    %1538 = vmatpush1.msra.mxu0 0.0
    %1539 = vmatprep.subr.mxu0 0.0
    %1540 = vmatpush1.msra.mxu0 0.0
    %1541 = vmatprep.subr.mxu0 0.0
    %1542 = vmatpush1.msra.mxu0 0.0
    %1543 = vmatprep.subr.mxu0 0.0
    %1544 = vmatpush1.msra.mxu0 0.0
    %1545 = vmatprep.subr.mxu0 0.0
    %1546 = vmatpush1.msra.mxu0 0.0
    %1547 = vmatprep.subr.mxu0 0.0
    %1548 = vmatpush1.msra.mxu0 0.0
    %1549 = vmatprep.subr.mxu0 0.0
    %1550 = vmatpush1.msra.mxu0 0.0
    %1551 = vmatprep.subr.mxu0 0.0
    %1552 = vmatpush1.msra.mxu0 0.0
    %1553 = vmatprep.subr.mxu0 0.0
    %1554 = vmatpush1.msra.mxu0 0.0
    %1555 = vmatprep.subr.mxu0 0.0
    %1556 = vmatpush1.msra.mxu0 0.0
    %1557 = vmatprep.subr.mxu0 0.0
    %1558 = vmatpush1.msra.mxu0 0.0
    %1559 = vmatprep.subr.mxu0 0.0
    %1560 = vmatpush1.msra.mxu0 0.0
    %1561 = vmatprep.subr.mxu0 0.0
    %1562 = vmatpush1.msra.mxu0 0.0
    %1563 = vmatprep.subr.mxu0 0.0
    %1564 = vmatpush1.msra.mxu0 0.0
    %1565 = vmatprep.subr.mxu0 0.0
    %1566 = vmatpush1.msra.mxu0 0.0
    %1567 = vmatprep.subr.mxu0 0.0
    %1568 = vmatpush1.msra.mxu0 0.0
    %1569 = vmatprep.subr.mxu0 0.0
    %1570 = vmatpush1.msra.mxu0 0.0
    %1571 = vmatprep.subr.mxu0 0.0
    %1572 = vmatpush1.msra.mxu0 0.0
    %1573 = vmatprep.subr.mxu0 0.0
    %1574 = vmatpush1.msra.mxu0 0.0
    %1575 = vmatprep.subr.mxu0 0.0
    %1576 = vmatpush1.msra.mxu0 0.0
    %1577 = vmatprep.subr.mxu0 0.0
    %1578 = vmatpush1.msra.mxu0 0.0
    %1579 = vmatprep.subr.mxu0 0.0
    %1580 = vmatpush1.msra.mxu0 0.0
    %1581 = vmatprep.subr.mxu0 0.0
    %1582 = vmatpush1.msra.mxu0 0.0
    %1583 = vmatprep.subr.mxu0 0.0
    %1584 = vmatpush1.msra.mxu0 0.0
    %1585 = vmatprep.subr.mxu0 0.0
    %1586 = vmatpush1.msra.mxu0 0.0
    %1587 = vmatprep.subr.mxu0 0.0
    %1588 = vmatpush1.msra.mxu0 0.0
    %1589 = vmatprep.mubr.f32.mxu0 0.0
    %1590 = vmatmul.mubr.f32.gmra.mrb[0].mxu0 %v1520
    %v1591 = vpop.f32.mrb[0].mxu0
    %v1592 = vadd.f32 %v1517, %v1591
    %v1593 = vpop.f32.mrb[0].mxu0
    %1594 = vmatprep.mubr.f32.mxu0 0.0
    %1595 = vmatmul.mubr.f32.gmra.mrb[0].mxu0 %v1523
    %v1596 = vpop.f32.mrb[0].mxu0
    %v1597 = vadd.f32 %v1517, %v1596
    %v1598 = vpop.f32.mrb[0].mxu0
    %1599 = vdwg.mxu0
    %v1600 = vld [vmem:[#allocation16] sm:$0x1]
    %v1601 = vld [vmem:[#allocation17] sm:$0x1]
    %v1602 = vsel %vm1370, %v1592, 0.0
    %1603 = vadd.xlane.f32.xlu0 %v1602
    %v1604 = vpop.xlane.xlu0 %1603
    %v1605 = vsel %vm1370, %v1597, 0.0
    %1606 = vadd.xlane.f32.xlu0 %v1605
    %v1607 = vpop.xlane.xlu0 %1606
    %v1608 = vmul.f32 %v1604, %v1377
    %v1609 = vmul.f32 %v1607, %v1377
    %v1610 = vsub.f32 %v1592, %v1608
    %v1611 = vsub.f32 %v1597, %v1609
    %v1612 = vmul.f32 %v1610, %v1610
    %v1613 = vmul.f32 %v1611, %v1611
    %v1614 = vsel %vm1370, %v1612, 0.0
    %1615 = vadd.xlane.f32.xlu0 %v1614
    %v1616 = vpop.xlane.xlu0 %1615
    %v1617 = vsel %vm1370, %v1613, 0.0
    %1618 = vadd.xlane.f32.xlu0 %v1617
    %v1619 = vpop.xlane.xlu0 %1618
    %v1620 = vmul.f32 %v1616, %v1377
    %v1621 = vmul.f32 %v1619, %v1377
    %v1622 = vadd.f32 %v1620, 1e-05
    %v1623 = vadd.f32 %v1621, 1e-05
    %v1624 = vrsqrt.pop %v1622
    %v1625 = vrsqrt.pop %v1623
    %v1626 = vmul.f32 %v1610, %v1624
    %v1627 = vmul.f32 %v1611, %v1625
    %v1629 = vlaneseq
    %v1630 = vshrl.u32 %v1629, 7
    %v1631 = vsub.s32 0, %v1630
    %v1632 = vrot.slane %v1600, %v1631
    %v1634 = vmul.f32 %v1626, %v1632
    %v1635 = vmul.f32 %v1627, %v1632
    %v1637 = vlaneseq
    %v1638 = vshrl.u32 %v1637, 7
    %v1639 = vsub.s32 0, %v1638
    %v1640 = vrot.slane %v1601, %v1639
    %v1642 = vadd.f32 %v1634, %v1640
    %v1643 = vadd.f32 %v1635, %v1640
    %vm1644 = vcmp.gt.f32.partialorder %v1642, 0.0
    %vm1645 = vcmp.gt.f32.partialorder %v1643, 0.0
    %v1646 = vmul.f32 %v1642, 0.01
    %v1647 = vmul.f32 %v1643, 0.01
    %v1648 = vsel %vm1644, %v1642, %v1646
    %v1649 = vsel %vm1645, %v1643, %v1647
    %v1650 = vld [vmem:[%s47] sm:$0xff]
    %v1651 = vld [vmem:[%s47 + $0x8] sm:$0xff]
    %v1652 = vld [vmem:[%s47 + $0x10] sm:$0xff]
    %v1653 = vld [vmem:[%s47 + $0x18] sm:$0xff]
    %v1654 = vld [vmem:[%s47 + $0x20] sm:$0xff]
    %v1655 = vld [vmem:[%s47 + $0x28] sm:$0xff]
    %v1656 = vld [vmem:[%s47 + $0x30] sm:$0xff]
    %v1657 = vld [vmem:[%s47 + $0x38] sm:$0xff]
    %v1658 = vld [vmem:[%s47 + $0x40] sm:$0xff]
    %v1659 = vld [vmem:[%s47 + $0x48] sm:$0xff]
    %v1660 = vld [vmem:[%s47 + $0x50] sm:$0xff]
    %v1661 = vld [vmem:[%s47 + $0x58] sm:$0xff]
    %v1662 = vld [vmem:[%s47 + $0x60] sm:$0xff]
    %v1663 = vld [vmem:[%s47 + $0x68] sm:$0xff]
    %v1664 = vld [vmem:[%s47 + $0x70] sm:$0xff]
    %v1665 = vld [vmem:[%s47 + $0x78] sm:$0xff]
    %v1666 = vld [vmem:[#allocation19] sm:$0xff]
    %v1668 = vlaneseq
    %v1669 = vshrl.u32 %v1668, 7
    %v1670 = vsub.s32 0, %v1669
    %v1671 = vrot.slane %v1666, %v1670
    %v1672 = vlaneseq
    %v1673 = vshrl.u32 %v1672, 7
    %v1674 = vsub.s32 1, %v1673
    %v1675 = vrot.slane %v1666, %v1674
    %v1676 = vlaneseq
    %v1677 = vshrl.u32 %v1676, 7
    %v1678 = vsub.s32 2, %v1677
    %v1679 = vrot.slane %v1666, %v1678
    %v1680 = vlaneseq
    %v1681 = vshrl.u32 %v1680, 7
    %v1682 = vsub.s32 3, %v1681
    %v1683 = vrot.slane %v1666, %v1682
    %v1684 = vlaneseq
    %v1685 = vshrl.u32 %v1684, 7
    %v1686 = vsub.s32 4, %v1685
    %v1687 = vrot.slane %v1666, %v1686
    %v1688 = vlaneseq
    %v1689 = vshrl.u32 %v1688, 7
    %v1690 = vsub.s32 5, %v1689
    %v1691 = vrot.slane %v1666, %v1690
    %v1692 = vlaneseq
    %v1693 = vshrl.u32 %v1692, 7
    %v1694 = vsub.s32 6, %v1693
    %v1695 = vrot.slane %v1666, %v1694
    %v1696 = vlaneseq
    %v1697 = vshrl.u32 %v1696, 7
    %v1698 = vsub.s32 7, %v1697
    %v1699 = vrot.slane %v1666, %v1698
    %v1709 = vsel %vm1370, %v1648, 0
    %v1712 = vsel %vm1370, %v1649, 0
    %1714 = vmatprep.subr.mxu0 %v1651
    %1715 = vmatpush1.msra.mxu0 %v1650
    %1716 = vmatprep.subr.mxu0 %v1659
    %1717 = vmatpush1.msra.mxu0 %v1658
    %1718 = vmatprep.subr.mxu0 0.0
    %1719 = vmatpush1.msra.mxu0 0.0
    %1720 = vmatprep.subr.mxu0 0.0
    %1721 = vmatpush1.msra.mxu0 0.0
    %1722 = vmatprep.subr.mxu0 0.0
    %1723 = vmatpush1.msra.mxu0 0.0
    %1724 = vmatprep.subr.mxu0 0.0
    %1725 = vmatpush1.msra.mxu0 0.0
    %1726 = vmatprep.subr.mxu0 0.0
    %1727 = vmatpush1.msra.mxu0 0.0
    %1728 = vmatprep.subr.mxu0 0.0
    %1729 = vmatpush1.msra.mxu0 0.0
    %1730 = vmatprep.subr.mxu0 0.0
    %1731 = vmatpush1.msra.mxu0 0.0
    %1732 = vmatprep.subr.mxu0 0.0
    %1733 = vmatpush1.msra.mxu0 0.0
    %1734 = vmatprep.subr.mxu0 0.0
    %1735 = vmatpush1.msra.mxu0 0.0
    %1736 = vmatprep.subr.mxu0 0.0
    %1737 = vmatpush1.msra.mxu0 0.0
    %1738 = vmatprep.subr.mxu0 0.0
    %1739 = vmatpush1.msra.mxu0 0.0
    %1740 = vmatprep.subr.mxu0 0.0
    %1741 = vmatpush1.msra.mxu0 0.0
    %1742 = vmatprep.subr.mxu0 0.0
    %1743 = vmatpush1.msra.mxu0 0.0
    %1744 = vmatprep.subr.mxu0 0.0
    %1745 = vmatpush1.msra.mxu0 0.0
    %1746 = vmatprep.subr.mxu0 0.0
    %1747 = vmatpush1.msra.mxu0 0.0
    %1748 = vmatprep.subr.mxu0 0.0
    %1749 = vmatpush1.msra.mxu0 0.0
    %1750 = vmatprep.subr.mxu0 0.0
    %1751 = vmatpush1.msra.mxu0 0.0
    %1752 = vmatprep.subr.mxu0 0.0
    %1753 = vmatpush1.msra.mxu0 0.0
    %1754 = vmatprep.subr.mxu0 0.0
    %1755 = vmatpush1.msra.mxu0 0.0
    %1756 = vmatprep.subr.mxu0 0.0
    %1757 = vmatpush1.msra.mxu0 0.0
    %1758 = vmatprep.subr.mxu0 0.0
    %1759 = vmatpush1.msra.mxu0 0.0
    %1760 = vmatprep.subr.mxu0 0.0
    %1761 = vmatpush1.msra.mxu0 0.0
    %1762 = vmatprep.subr.mxu0 0.0
    %1763 = vmatpush1.msra.mxu0 0.0
    %1764 = vmatprep.subr.mxu0 0.0
    %1765 = vmatpush1.msra.mxu0 0.0
    %1766 = vmatprep.subr.mxu0 0.0
    %1767 = vmatpush1.msra.mxu0 0.0
    %1768 = vmatprep.subr.mxu0 0.0
    %1769 = vmatpush1.msra.mxu0 0.0
    %1770 = vmatprep.subr.mxu0 0.0
    %1771 = vmatpush1.msra.mxu0 0.0
    %1772 = vmatprep.subr.mxu0 0.0
    %1773 = vmatpush1.msra.mxu0 0.0
    %1774 = vmatprep.subr.mxu0 0.0
    %1775 = vmatpush1.msra.mxu0 0.0
    %1776 = vmatprep.subr.mxu0 0.0
    %1777 = vmatpush1.msra.mxu0 0.0
    %1778 = vmatprep.mubr.f32.mxu0 0.0
    %1779 = vmatmul.mubr.f32.gmra.mrb[0].mxu0 %v1709
    %v1780 = vpop.f32.mrb[0].mxu0
    %v1781 = vadd.f32 %v1671, %v1780
    %v1782 = vpop.f32.mrb[0].mxu0
    %v1783 = vadd.f32 %v1675, %v1782
    %1784 = vmatprep.mubr.f32.mxu0 0.0
    %1785 = vmatmul.mubr.f32.gmra.mrb[0].mxu0 %v1712
    %v1786 = vpop.f32.mrb[0].mxu0
    %v1787 = vadd.f32 %v1671, %v1786
    %v1788 = vpop.f32.mrb[0].mxu0
    %v1789 = vadd.f32 %v1675, %v1788
    %1790 = vdwg.mxu0
    %1791 = vmatprep.subr.mxu0 %v1653
    %1792 = vmatpush1.msra.mxu0 %v1652
    %1793 = vmatprep.subr.mxu0 %v1661
    %1794 = vmatpush1.msra.mxu0 %v1660
    %1795 = vmatprep.subr.mxu0 0.0
    %1796 = vmatpush1.msra.mxu0 0.0
    %1797 = vmatprep.subr.mxu0 0.0
    %1798 = vmatpush1.msra.mxu0 0.0
    %1799 = vmatprep.subr.mxu0 0.0
    %1800 = vmatpush1.msra.mxu0 0.0
    %1801 = vmatprep.subr.mxu0 0.0
    %1802 = vmatpush1.msra.mxu0 0.0
    %1803 = vmatprep.subr.mxu0 0.0
    %1804 = vmatpush1.msra.mxu0 0.0
    %1805 = vmatprep.subr.mxu0 0.0
    %1806 = vmatpush1.msra.mxu0 0.0
    %1807 = vmatprep.subr.mxu0 0.0
    %1808 = vmatpush1.msra.mxu0 0.0
    %1809 = vmatprep.subr.mxu0 0.0
    %1810 = vmatpush1.msra.mxu0 0.0
    %1811 = vmatprep.subr.mxu0 0.0
    %1812 = vmatpush1.msra.mxu0 0.0
    %1813 = vmatprep.subr.mxu0 0.0
    %1814 = vmatpush1.msra.mxu0 0.0
    %1815 = vmatprep.subr.mxu0 0.0
    %1816 = vmatpush1.msra.mxu0 0.0
    %1817 = vmatprep.subr.mxu0 0.0
    %1818 = vmatpush1.msra.mxu0 0.0
    %1819 = vmatprep.subr.mxu0 0.0
    %1820 = vmatpush1.msra.mxu0 0.0
    %1821 = vmatprep.subr.mxu0 0.0
    %1822 = vmatpush1.msra.mxu0 0.0
    %1823 = vmatprep.subr.mxu0 0.0
    %1824 = vmatpush1.msra.mxu0 0.0
    %1825 = vmatprep.subr.mxu0 0.0
    %1826 = vmatpush1.msra.mxu0 0.0
    %1827 = vmatprep.subr.mxu0 0.0
    %1828 = vmatpush1.msra.mxu0 0.0
    %1829 = vmatprep.subr.mxu0 0.0
    %1830 = vmatpush1.msra.mxu0 0.0
    %1831 = vmatprep.subr.mxu0 0.0
    %1832 = vmatpush1.msra.mxu0 0.0
    %1833 = vmatprep.subr.mxu0 0.0
    %1834 = vmatpush1.msra.mxu0 0.0
    %1835 = vmatprep.subr.mxu0 0.0
    %1836 = vmatpush1.msra.mxu0 0.0
    %1837 = vmatprep.subr.mxu0 0.0
    %1838 = vmatpush1.msra.mxu0 0.0
    %1839 = vmatprep.subr.mxu0 0.0
    %1840 = vmatpush1.msra.mxu0 0.0
    %1841 = vmatprep.subr.mxu0 0.0
    %1842 = vmatpush1.msra.mxu0 0.0
    %1843 = vmatprep.subr.mxu0 0.0
    %1844 = vmatpush1.msra.mxu0 0.0
    %1845 = vmatprep.subr.mxu0 0.0
    %1846 = vmatpush1.msra.mxu0 0.0
    %1847 = vmatprep.subr.mxu0 0.0
    %1848 = vmatpush1.msra.mxu0 0.0
    %1849 = vmatprep.subr.mxu0 0.0
    %1850 = vmatpush1.msra.mxu0 0.0
    %1851 = vmatprep.subr.mxu0 0.0
    %1852 = vmatpush1.msra.mxu0 0.0
    %1853 = vmatprep.subr.mxu0 0.0
    %1854 = vmatpush1.msra.mxu0 0.0
    %1855 = vmatprep.mubr.f32.mxu0 0.0
    %1856 = vmatmul.mubr.f32.gmra.mrb[0].mxu0 %v1709
    %v1857 = vpop.f32.mrb[0].mxu0
    %v1858 = vadd.f32 %v1679, %v1857
    %v1859 = vpop.f32.mrb[0].mxu0
    %v1860 = vadd.f32 %v1683, %v1859
    %1861 = vmatprep.mubr.f32.mxu0 0.0
    %1862 = vmatmul.mubr.f32.gmra.mrb[0].mxu0 %v1712
    %v1863 = vpop.f32.mrb[0].mxu0
    %v1864 = vadd.f32 %v1679, %v1863
    %v1865 = vpop.f32.mrb[0].mxu0
    %v1866 = vadd.f32 %v1683, %v1865
    %1867 = vdwg.mxu0
    %1868 = vmatprep.subr.mxu0 %v1655
    %1869 = vmatpush1.msra.mxu0 %v1654
    %1870 = vmatprep.subr.mxu0 %v1663
    %1871 = vmatpush1.msra.mxu0 %v1662
    %1872 = vmatprep.subr.mxu0 0.0
    %1873 = vmatpush1.msra.mxu0 0.0
    %1874 = vmatprep.subr.mxu0 0.0
    %1875 = vmatpush1.msra.mxu0 0.0
    %1876 = vmatprep.subr.mxu0 0.0
    %1877 = vmatpush1.msra.mxu0 0.0
    %1878 = vmatprep.subr.mxu0 0.0
    %1879 = vmatpush1.msra.mxu0 0.0
    %1880 = vmatprep.subr.mxu0 0.0
    %1881 = vmatpush1.msra.mxu0 0.0
    %1882 = vmatprep.subr.mxu0 0.0
    %1883 = vmatpush1.msra.mxu0 0.0
    %1884 = vmatprep.subr.mxu0 0.0
    %1885 = vmatpush1.msra.mxu0 0.0
    %1886 = vmatprep.subr.mxu0 0.0
    %1887 = vmatpush1.msra.mxu0 0.0
    %1888 = vmatprep.subr.mxu0 0.0
    %1889 = vmatpush1.msra.mxu0 0.0
    %1890 = vmatprep.subr.mxu0 0.0
    %1891 = vmatpush1.msra.mxu0 0.0
    %1892 = vmatprep.subr.mxu0 0.0
    %1893 = vmatpush1.msra.mxu0 0.0
    %1894 = vmatprep.subr.mxu0 0.0
    %1895 = vmatpush1.msra.mxu0 0.0
    %1896 = vmatprep.subr.mxu0 0.0
    %1897 = vmatpush1.msra.mxu0 0.0
    %1898 = vmatprep.subr.mxu0 0.0
    %1899 = vmatpush1.msra.mxu0 0.0
    %1900 = vmatprep.subr.mxu0 0.0
    %1901 = vmatpush1.msra.mxu0 0.0
    %1902 = vmatprep.subr.mxu0 0.0
    %1903 = vmatpush1.msra.mxu0 0.0
    %1904 = vmatprep.subr.mxu0 0.0
    %1905 = vmatpush1.msra.mxu0 0.0
    %1906 = vmatprep.subr.mxu0 0.0
    %1907 = vmatpush1.msra.mxu0 0.0
    %1908 = vmatprep.subr.mxu0 0.0
    %1909 = vmatpush1.msra.mxu0 0.0
    %1910 = vmatprep.subr.mxu0 0.0
    %1911 = vmatpush1.msra.mxu0 0.0
    %1912 = vmatprep.subr.mxu0 0.0
    %1913 = vmatpush1.msra.mxu0 0.0
    %1914 = vmatprep.subr.mxu0 0.0
    %1915 = vmatpush1.msra.mxu0 0.0
    %1916 = vmatprep.subr.mxu0 0.0
    %1917 = vmatpush1.msra.mxu0 0.0
    %1918 = vmatprep.subr.mxu0 0.0
    %1919 = vmatpush1.msra.mxu0 0.0
    %1920 = vmatprep.subr.mxu0 0.0
    %1921 = vmatpush1.msra.mxu0 0.0
    %1922 = vmatprep.subr.mxu0 0.0
    %1923 = vmatpush1.msra.mxu0 0.0
    %1924 = vmatprep.subr.mxu0 0.0
    %1925 = vmatpush1.msra.mxu0 0.0
    %1926 = vmatprep.subr.mxu0 0.0
    %1927 = vmatpush1.msra.mxu0 0.0
    %1928 = vmatprep.subr.mxu0 0.0
    %1929 = vmatpush1.msra.mxu0 0.0
    %1930 = vmatprep.subr.mxu0 0.0
    %1931 = vmatpush1.msra.mxu0 0.0
    %1932 = vmatprep.mubr.f32.mxu0 0.0
    %1933 = vmatmul.mubr.f32.gmra.mrb[0].mxu0 %v1709
    %v1934 = vpop.f32.mrb[0].mxu0
    %v1935 = vadd.f32 %v1687, %v1934
    %v1936 = vpop.f32.mrb[0].mxu0
    %v1937 = vadd.f32 %v1691, %v1936
    %1938 = vmatprep.mubr.f32.mxu0 0.0
    %1939 = vmatmul.mubr.f32.gmra.mrb[0].mxu0 %v1712
    %v1940 = vpop.f32.mrb[0].mxu0
    %v1941 = vadd.f32 %v1687, %v1940
    %v1942 = vpop.f32.mrb[0].mxu0
    %v1943 = vadd.f32 %v1691, %v1942
    %1944 = vdwg.mxu0
    %1945 = vmatprep.subr.mxu0 %v1657
    %1946 = vmatpush1.msra.mxu0 %v1656
    %1947 = vmatprep.subr.mxu0 %v1665
    %1948 = vmatpush1.msra.mxu0 %v1664
    %1949 = vmatprep.subr.mxu0 0.0
    %1950 = vmatpush1.msra.mxu0 0.0
    %1951 = vmatprep.subr.mxu0 0.0
    %1952 = vmatpush1.msra.mxu0 0.0
    %1953 = vmatprep.subr.mxu0 0.0
    %1954 = vmatpush1.msra.mxu0 0.0
    %1955 = vmatprep.subr.mxu0 0.0
    %1956 = vmatpush1.msra.mxu0 0.0
    %1957 = vmatprep.subr.mxu0 0.0
    %1958 = vmatpush1.msra.mxu0 0.0
    %1959 = vmatprep.subr.mxu0 0.0
    %1960 = vmatpush1.msra.mxu0 0.0
    %1961 = vmatprep.subr.mxu0 0.0
    %1962 = vmatpush1.msra.mxu0 0.0
    %1963 = vmatprep.subr.mxu0 0.0
    %1964 = vmatpush1.msra.mxu0 0.0
    %1965 = vmatprep.subr.mxu0 0.0
    %1966 = vmatpush1.msra.mxu0 0.0
    %1967 = vmatprep.subr.mxu0 0.0
    %1968 = vmatpush1.msra.mxu0 0.0
    %1969 = vmatprep.subr.mxu0 0.0
    %1970 = vmatpush1.msra.mxu0 0.0
    %1971 = vmatprep.subr.mxu0 0.0
    %1972 = vmatpush1.msra.mxu0 0.0
    %1973 = vmatprep.subr.mxu0 0.0
    %1974 = vmatpush1.msra.mxu0 0.0
    %1975 = vmatprep.subr.mxu0 0.0
    %1976 = vmatpush1.msra.mxu0 0.0
    %1977 = vmatprep.subr.mxu0 0.0
    %1978 = vmatpush1.msra.mxu0 0.0
    %1979 = vmatprep.subr.mxu0 0.0
    %1980 = vmatpush1.msra.mxu0 0.0
    %1981 = vmatprep.subr.mxu0 0.0
    %1982 = vmatpush1.msra.mxu0 0.0
    %1983 = vmatprep.subr.mxu0 0.0
    %1984 = vmatpush1.msra.mxu0 0.0
    %1985 = vmatprep.subr.mxu0 0.0
    %1986 = vmatpush1.msra.mxu0 0.0
    %1987 = vmatprep.subr.mxu0 0.0
    %1988 = vmatpush1.msra.mxu0 0.0
    %1989 = vmatprep.subr.mxu0 0.0
    %1990 = vmatpush1.msra.mxu0 0.0
    %1991 = vmatprep.subr.mxu0 0.0
    %1992 = vmatpush1.msra.mxu0 0.0
    %1993 = vmatprep.subr.mxu0 0.0
    %1994 = vmatpush1.msra.mxu0 0.0
    %1995 = vmatprep.subr.mxu0 0.0
    %1996 = vmatpush1.msra.mxu0 0.0
    %1997 = vmatprep.subr.mxu0 0.0
    %1998 = vmatpush1.msra.mxu0 0.0
    %1999 = vmatprep.subr.mxu0 0.0
    %2000 = vmatpush1.msra.mxu0 0.0
    %2001 = vmatprep.subr.mxu0 0.0
    %2002 = vmatpush1.msra.mxu0 0.0
    %2003 = vmatprep.subr.mxu0 0.0
    %2004 = vmatpush1.msra.mxu0 0.0
    %2005 = vmatprep.subr.mxu0 0.0
    %2006 = vmatpush1.msra.mxu0 0.0
    %2007 = vmatprep.subr.mxu0 0.0
    %2008 = vmatpush1.msra.mxu0 0.0
    %2009 = vmatprep.mubr.f32.mxu0 0.0
    %2010 = vmatmul.mubr.f32.gmra.mrb[0].mxu0 %v1709
    %v2011 = vpop.f32.mrb[0].mxu0
    %v2012 = vadd.f32 %v1695, %v2011
    %v2013 = vpop.f32.mrb[0].mxu0
    %v2014 = vadd.f32 %v1699, %v2013
    %2015 = vmatprep.mubr.f32.mxu0 0.0
    %2016 = vmatmul.mubr.f32.gmra.mrb[0].mxu0 %v1712
    %v2017 = vpop.f32.mrb[0].mxu0
    %v2018 = vadd.f32 %v1695, %v2017
    %v2019 = vpop.f32.mrb[0].mxu0
    %v2020 = vadd.f32 %v1699, %v2019
    %2021 = vdwg.mxu0
    %v2022 = vld [vmem:[#allocation20] sm:$0xff]
    %v2023 = vld [vmem:[#allocation20 + $0x8] sm:$0xff]
    %v2024 = vld [vmem:[#allocation20 + $0x10] sm:$0xff]
    %v2025 = vld [vmem:[#allocation20 + $0x18] sm:$0xff]
    %v2026 = vld [vmem:[#allocation22] sm:$0x1]
    %v2028 = vlaneseq
    %v2029 = vshrl.u32 %v2028, 7
    %v2030 = vsub.s32 0, %v2029
    %v2031 = vrot.slane %v2026, %v2030
    %v2034 = vsel %vm797, %v934, 0
    %2036 = vmatprep.subr.mxu0 0.0
    %2037 = vmatpush1.msra.mxu0 %v2022
    %2038 = vmatprep.subr.mxu0 0.0
    %2039 = vmatpush1.msra.mxu0 %v2023
    %2040 = vmatprep.subr.mxu0 0.0
    %2041 = vmatpush1.msra.mxu0 %v2024
    %2042 = vmatprep.subr.mxu0 0.0
    %2043 = vmatpush1.msra.mxu0 %v2025
    %2044 = vmatprep.subr.mxu0 0.0
    %2045 = vmatpush1.msra.mxu0 0.0
    %2046 = vmatprep.subr.mxu0 0.0
    %2047 = vmatpush1.msra.mxu0 0.0
    %2048 = vmatprep.subr.mxu0 0.0
    %2049 = vmatpush1.msra.mxu0 0.0
    %2050 = vmatprep.subr.mxu0 0.0
    %2051 = vmatpush1.msra.mxu0 0.0
    %2052 = vmatprep.subr.mxu0 0.0
    %2053 = vmatpush1.msra.mxu0 0.0
    %2054 = vmatprep.subr.mxu0 0.0
    %2055 = vmatpush1.msra.mxu0 0.0
    %2056 = vmatprep.subr.mxu0 0.0
    %2057 = vmatpush1.msra.mxu0 0.0
    %2058 = vmatprep.subr.mxu0 0.0
    %2059 = vmatpush1.msra.mxu0 0.0
    %2060 = vmatprep.subr.mxu0 0.0
    %2061 = vmatpush1.msra.mxu0 0.0
    %2062 = vmatprep.subr.mxu0 0.0
    %2063 = vmatpush1.msra.mxu0 0.0
    %2064 = vmatprep.subr.mxu0 0.0
    %2065 = vmatpush1.msra.mxu0 0.0
    %2066 = vmatprep.subr.mxu0 0.0
    %2067 = vmatpush1.msra.mxu0 0.0
    %2068 = vmatprep.subr.mxu0 0.0
    %2069 = vmatpush1.msra.mxu0 0.0
    %2070 = vmatprep.subr.mxu0 0.0
    %2071 = vmatpush1.msra.mxu0 0.0
    %2072 = vmatprep.subr.mxu0 0.0
    %2073 = vmatpush1.msra.mxu0 0.0
    %2074 = vmatprep.subr.mxu0 0.0
    %2075 = vmatpush1.msra.mxu0 0.0
    %2076 = vmatprep.subr.mxu0 0.0
    %2077 = vmatpush1.msra.mxu0 0.0
    %2078 = vmatprep.subr.mxu0 0.0
    %2079 = vmatpush1.msra.mxu0 0.0
    %2080 = vmatprep.subr.mxu0 0.0
    %2081 = vmatpush1.msra.mxu0 0.0
    %2082 = vmatprep.subr.mxu0 0.0
    %2083 = vmatpush1.msra.mxu0 0.0
    %2084 = vmatprep.subr.mxu0 0.0
    %2085 = vmatpush1.msra.mxu0 0.0
    %2086 = vmatprep.subr.mxu0 0.0
    %2087 = vmatpush1.msra.mxu0 0.0
    %2088 = vmatprep.subr.mxu0 0.0
    %2089 = vmatpush1.msra.mxu0 0.0
    %2090 = vmatprep.subr.mxu0 0.0
    %2091 = vmatpush1.msra.mxu0 0.0
    %2092 = vmatprep.subr.mxu0 0.0
    %2093 = vmatpush1.msra.mxu0 0.0
    %2094 = vmatprep.subr.mxu0 0.0
    %2095 = vmatpush1.msra.mxu0 0.0
    %2096 = vmatprep.subr.mxu0 0.0
    %2097 = vmatpush1.msra.mxu0 0.0
    %2098 = vmatprep.subr.mxu0 0.0
    %2099 = vmatpush1.msra.mxu0 0.0
    %2100 = vmatprep.mubr.f32.mxu0 0.0
    %2101 = vmatmul.mubr.f32.gmra.mrb[0].mxu0 %v2034
    %v2102 = vpop.f32.mrb[0].mxu0
    %v2103 = vadd.f32 %v2031, %v2102
    %v2104 = vpop.f32.mrb[0].mxu0
    %2105 = vdwg.mxu0
    %2106 = vmatprep.subr.mxu0 0.0
    %2107 = vmatpush1.msra.mxu0 %v2103
    %2108 = vmatprep.subr.mxu0 0.0
    %2109 = vmatpush1.msra.mxu0 0.0
    %2110 = vmatprep.subr.mxu0 0.0
    %2111 = vmatpush1.msra.mxu0 0.0
    %2112 = vmatprep.subr.mxu0 0.0
    %2113 = vmatpush1.msra.mxu0 0.0
    %2114 = vmatprep.subr.mxu0 0.0
    %2115 = vmatpush1.msra.mxu0 0.0
    %2116 = vmatprep.subr.mxu0 0.0
    %2117 = vmatpush1.msra.mxu0 0.0
    %2118 = vmatprep.subr.mxu0 0.0
    %2119 = vmatpush1.msra.mxu0 0.0
    %2120 = vmatprep.subr.mxu0 0.0
    %2121 = vmatpush1.msra.mxu0 0.0
    %2122 = vmatprep.subr.mxu0 0.0
    %2123 = vmatpush1.msra.mxu0 0.0
    %2124 = vmatprep.subr.mxu0 0.0
    %2125 = vmatpush1.msra.mxu0 0.0
    %2126 = vmatprep.subr.mxu0 0.0
    %2127 = vmatpush1.msra.mxu0 0.0
    %2128 = vmatprep.subr.mxu0 0.0
    %2129 = vmatpush1.msra.mxu0 0.0
    %2130 = vmatprep.subr.mxu0 0.0
    %2131 = vmatpush1.msra.mxu0 0.0
    %2132 = vmatprep.subr.mxu0 0.0
    %2133 = vmatpush1.msra.mxu0 0.0
    %2134 = vmatprep.subr.mxu0 0.0
    %2135 = vmatpush1.msra.mxu0 0.0
    %2136 = vmatprep.subr.mxu0 0.0
    %2137 = vmatpush1.msra.mxu0 0.0
    %2138 = vmatprep.subr.mxu0 0.0
    %2139 = vmatpush1.msra.mxu0 0.0
    %2140 = vmatprep.subr.mxu0 0.0
    %2141 = vmatpush1.msra.mxu0 0.0
    %2142 = vmatprep.subr.mxu0 0.0
    %2143 = vmatpush1.msra.mxu0 0.0
    %2144 = vmatprep.subr.mxu0 0.0
    %2145 = vmatpush1.msra.mxu0 0.0
    %2146 = vmatprep.subr.mxu0 0.0
    %2147 = vmatpush1.msra.mxu0 0.0
    %2148 = vmatprep.subr.mxu0 0.0
    %2149 = vmatpush1.msra.mxu0 0.0
    %2150 = vmatprep.subr.mxu0 0.0
    %2151 = vmatpush1.msra.mxu0 0.0
    %2152 = vmatprep.subr.mxu0 0.0
    %2153 = vmatpush1.msra.mxu0 0.0
    %2154 = vmatprep.subr.mxu0 0.0
    %2155 = vmatpush1.msra.mxu0 0.0
    %2156 = vmatprep.subr.mxu0 0.0
    %2157 = vmatpush1.msra.mxu0 0.0
    %2158 = vmatprep.subr.mxu0 0.0
    %2159 = vmatpush1.msra.mxu0 0.0
    %2160 = vmatprep.subr.mxu0 0.0
    %2161 = vmatpush1.msra.mxu0 0.0
    %2162 = vmatprep.subr.mxu0 0.0
    %2163 = vmatpush1.msra.mxu0 0.0
    %2164 = vmatprep.subr.mxu0 0.0
    %2165 = vmatpush1.msra.mxu0 0.0
    %2166 = vmatprep.subr.mxu0 0.0
    %2167 = vmatpush1.msra.mxu0 0.0
    %2168 = vmatprep.subr.mxu0 0.0
    %2169 = vmatpush1.msra.mxu0 0.0
    %2170 = vmatprep.mubr.f32.mxu0 0.0
    %2171 = vmatmul.mubr.f32.gmra.mrb[0].mxu0 %v1020
    %v2172 = vpop.f32.mrb[0].mxu0
    %v2173 = vadd.f32 0.0, %v2172
    %v2174 = vpop.f32.mrb[0].mxu0
    %2175 = vmatprep.mubr.f32.mxu0 0.0
    %2176 = vmatmul.mubr.f32.gmra.mrb[0].mxu0 %v1023
    %v2177 = vpop.f32.mrb[0].mxu0
    %v2178 = vadd.f32 0.0, %v2177
    %v2179 = vpop.f32.mrb[0].mxu0
    %2180 = vdwg.mxu0
    %2182 = vrot.lane.b32.xlu0 %v2103, 96
    %v2183 = vpop.permute.xlu0 %2182
    %2185 = vmatprep.subr.mxu0 0.0
    %2186 = vmatpush1.msra.mxu0 %v2183
    %2187 = vmatprep.subr.mxu0 0.0
    %2188 = vmatpush1.msra.mxu0 0.0
    %2189 = vmatprep.subr.mxu0 0.0
    %2190 = vmatpush1.msra.mxu0 0.0
    %2191 = vmatprep.subr.mxu0 0.0
    %2192 = vmatpush1.msra.mxu0 0.0
    %2193 = vmatprep.subr.mxu0 0.0
    %2194 = vmatpush1.msra.mxu0 0.0
    %2195 = vmatprep.subr.mxu0 0.0
    %2196 = vmatpush1.msra.mxu0 0.0
    %2197 = vmatprep.subr.mxu0 0.0
    %2198 = vmatpush1.msra.mxu0 0.0
    %2199 = vmatprep.subr.mxu0 0.0
    %2200 = vmatpush1.msra.mxu0 0.0
    %2201 = vmatprep.subr.mxu0 0.0
    %2202 = vmatpush1.msra.mxu0 0.0
    %2203 = vmatprep.subr.mxu0 0.0
    %2204 = vmatpush1.msra.mxu0 0.0
    %2205 = vmatprep.subr.mxu0 0.0
    %2206 = vmatpush1.msra.mxu0 0.0
    %2207 = vmatprep.subr.mxu0 0.0
    %2208 = vmatpush1.msra.mxu0 0.0
    %2209 = vmatprep.subr.mxu0 0.0
    %2210 = vmatpush1.msra.mxu0 0.0
    %2211 = vmatprep.subr.mxu0 0.0
    %2212 = vmatpush1.msra.mxu0 0.0
    %2213 = vmatprep.subr.mxu0 0.0
    %2214 = vmatpush1.msra.mxu0 0.0
    %2215 = vmatprep.subr.mxu0 0.0
    %2216 = vmatpush1.msra.mxu0 0.0
    %2217 = vmatprep.subr.mxu0 0.0
    %2218 = vmatpush1.msra.mxu0 0.0
    %2219 = vmatprep.subr.mxu0 0.0
    %2220 = vmatpush1.msra.mxu0 0.0
    %2221 = vmatprep.subr.mxu0 0.0
    %2222 = vmatpush1.msra.mxu0 0.0
    %2223 = vmatprep.subr.mxu0 0.0
    %2224 = vmatpush1.msra.mxu0 0.0
    %2225 = vmatprep.subr.mxu0 0.0
    %2226 = vmatpush1.msra.mxu0 0.0
    %2227 = vmatprep.subr.mxu0 0.0
    %2228 = vmatpush1.msra.mxu0 0.0
    %2229 = vmatprep.subr.mxu0 0.0
    %2230 = vmatpush1.msra.mxu0 0.0
    %2231 = vmatprep.subr.mxu0 0.0
    %2232 = vmatpush1.msra.mxu0 0.0
    %2233 = vmatprep.subr.mxu0 0.0
    %2234 = vmatpush1.msra.mxu0 0.0
    %2235 = vmatprep.subr.mxu0 0.0
    %2236 = vmatpush1.msra.mxu0 0.0
    %2237 = vmatprep.subr.mxu0 0.0
    %2238 = vmatpush1.msra.mxu0 0.0
    %2239 = vmatprep.subr.mxu0 0.0
    %2240 = vmatpush1.msra.mxu0 0.0
    %2241 = vmatprep.subr.mxu0 0.0
    %2242 = vmatpush1.msra.mxu0 0.0
    %2243 = vmatprep.subr.mxu0 0.0
    %2244 = vmatpush1.msra.mxu0 0.0
    %2245 = vmatprep.subr.mxu0 0.0
    %2246 = vmatpush1.msra.mxu0 0.0
    %2247 = vmatprep.subr.mxu0 0.0
    %2248 = vmatpush1.msra.mxu0 0.0
    %2249 = vmatprep.mubr.f32.mxu0 0.0
    %2250 = vmatmul.mubr.f32.gmra.mrb[0].mxu0 %v939
    %v2251 = vpop.f32.mrb[0].mxu0
    %v2252 = vadd.f32 0.0, %v2251
    %v2253 = vpop.f32.mrb[0].mxu0
    %2254 = vmatprep.mubr.f32.mxu0 0.0
    %2255 = vmatmul.mubr.f32.gmra.mrb[0].mxu0 %v942
    %v2256 = vpop.f32.mrb[0].mxu0
    %v2257 = vadd.f32 0.0, %v2256
    %v2258 = vpop.f32.mrb[0].mxu0
    %2259 = vdwg.mxu0
    %v2260 = vmul.f32 %v2173, %v2252
    %v2261 = vmul.f32 %v2178, %v2257
    %v2262 = vsel %vm797, %v2260, 0.0
    %2263 = vadd.xlane.f32.xlu0 %v2262
    %v2264 = vpop.xlane.xlu0 %2263
    %v2265 = vsel %vm797, %v2261, 0.0
    %2266 = vadd.xlane.f32.xlu0 %v2265
    %v2267 = vpop.xlane.xlu0 %2266
    %v2268 = vmul.f32 %v2264, 0.17677669
    %v2269 = vmul.f32 %v2267, 0.17677669
    %vm2270 = vcmp.gt.f32.partialorder %v689, 0.0
    %vm2271 = vcmp.gt.f32.partialorder %v690, 0.0
    %v2272 = vsel %vm2270, %v2268, -1e+30
    %v2273 = vsel %vm2271, %v2269, -1e+30
    %v2274 = vsel %vm937, %v2272, -inf
    %v2275 = vsel %vm937, %v2273, -inf
    %v2276 = vmax.f32 %v2274, %v2275
    %v2277 = vrot.slane %v2276, 4
    %v2278 = vmax.f32 %v2276, %v2277
    %v2279 = vrot.slane %v2278, 2
    %v2280 = vmax.f32 %v2278, %v2279
    %v2281 = vrot.slane %v2280, 1
    %v2282 = vmax.f32 %v2280, %v2281
    %v2283 = vmul.f32 %v689, %v2282
    %v2284 = vmul.f32 %v690, %v2282
    %v2285 = vsel %vm937, %v2283, 0.0
    %2286 = vadd.xlane.f32.xlu0 %v2285
    %v2287 = vpop.xlane.xlu0 %2286
    %v2288 = vsel %vm937, %v2284, 0.0
    %2289 = vadd.xlane.f32.xlu0 %v2288
    %v2290 = vpop.xlane.xlu0 %2289
    %v2291 = vsub.f32 %v2268, %v2287
    %v2292 = vsub.f32 %v2269, %v2290
    %v2293 = vmul.f32 %v2291, 1.442695
    %v2294 = vpow.pop %v2293
    %v2295 = vmul.f32 %v2292, 1.442695
    %v2296 = vpow.pop %v2295
    %v2297 = vmul.f32 %v689, %v2294
    %v2298 = vmul.f32 %v690, %v2296
    %v2299 = vsel %vm937, %v2297, 0.0
    %v2300 = vsel %vm937, %v2298, 0.0
    %v2301 = vadd.f32 %v2299, %v2300
    %v2302 = vrot.slane %v2301, 4
    %v2303 = vadd.f32 %v2301, %v2302
    %v2304 = vrot.slane %v2303, 2
    %v2305 = vadd.f32 %v2303, %v2304
    %v2306 = vrot.slane %v2305, 1
    %v2307 = vadd.f32 %v2305, %v2306
    %v2308 = vmul.f32 %v689, %v2307
    %v2309 = vmul.f32 %v690, %v2307
    %v2310 = vsel %vm937, %v2308, 0.0
    %2311 = vadd.xlane.f32.xlu0 %v2310
    %v2312 = vpop.xlane.xlu0 %2311
    %v2313 = vsel %vm937, %v2309, 0.0
    %2314 = vadd.xlane.f32.xlu0 %v2313
    %v2315 = vpop.xlane.xlu0 %2314
    %v2316 = vrcp.pop %v2312
    %v2317 = vmul.f32 %v2294, %v2316
    %v2318 = vrcp.pop %v2315
    %v2319 = vmul.f32 %v2296, %v2318
    %2320 = vset.pattern.permute.xlu0 0
    %2321 = vperm.xlu0 %2320, %v1011
    %v2322 = vpop.permute.xlu0 %2321
    %2324 = vset.pattern.permute.xlu0 0
    %2325 = vperm.xlu0 %2324, %v1016
    %v2326 = vpop.permute.xlu0 %2325
    %v2328 = vmul.f32 %v2322, %v1781
    %v2329 = vmul.f32 %v2326, %v1787
    %v2330 = vadd.f32 %v2328, 0.0
    %v2331 = vadd.f32 %v2329, 0.0
    %2332 = vset.pattern.permute.xlu0 1
    %2333 = vperm.xlu0 %2332, %v1011
    %v2334 = vpop.permute.xlu0 %2333
    %2336 = vset.pattern.permute.xlu0 1
    %2337 = vperm.xlu0 %2336, %v1016
    %v2338 = vpop.permute.xlu0 %2337
    %v2340 = vmul.f32 %v2334, %v1781
    %v2341 = vmul.f32 %v2338, %v1787
    %2344 = vrot.lane.b32.xlu0 %v2340, 96
    %v2345 = vpop.permute.xlu0 %2344
    %2346 = vrot.lane.b32.xlu0 %v2341, 96
    %v2347 = vpop.permute.xlu0 %2346
    %v2350 = vadd.f32 %v2330, %v2345
    %v2351 = vadd.f32 %v2331, %v2347
    %2352 = vset.pattern.permute.xlu0 2
    %2353 = vperm.xlu0 %2352, %v1011
    %v2354 = vpop.permute.xlu0 %2353
    %2356 = vset.pattern.permute.xlu0 2
    %2357 = vperm.xlu0 %2356, %v1016
    %v2358 = vpop.permute.xlu0 %2357
    %v2360 = vmul.f32 %v2354, %v1781
    %v2361 = vmul.f32 %v2358, %v1787
    %2364 = vrot.lane.b32.xlu0 %v2360, 64
    %v2365 = vpop.permute.xlu0 %2364
    %2366 = vrot.lane.b32.xlu0 %v2361, 64
    %v2367 = vpop.permute.xlu0 %2366
    %v2370 = vadd.f32 %v2350, %v2365
    %v2371 = vadd.f32 %v2351, %v2367
    %2372 = vset.pattern.permute.xlu0 3
    %2373 = vperm.xlu0 %2372, %v1011
    %v2374 = vpop.permute.xlu0 %2373
    %2376 = vset.pattern.permute.xlu0 3
    %2377 = vperm.xlu0 %2376, %v1016
    %v2378 = vpop.permute.xlu0 %2377
    %v2380 = vmul.f32 %v2374, %v1781
    %v2381 = vmul.f32 %v2378, %v1787
    %2384 = vrot.lane.b32.xlu0 %v2380, 32
    %v2385 = vpop.permute.xlu0 %2384
    %2386 = vrot.lane.b32.xlu0 %v2381, 32
    %v2387 = vpop.permute.xlu0 %2386
    %v2390 = vadd.f32 %v2370, %v2385
    %v2391 = vadd.f32 %v2371, %v2387
    %2392 = vset.pattern.permute.xlu0 4
    %2393 = vperm.xlu0 %2392, %v1011
    %v2394 = vpop.permute.xlu0 %2393
    %2396 = vset.pattern.permute.xlu0 4
    %2397 = vperm.xlu0 %2396, %v1016
    %v2398 = vpop.permute.xlu0 %2397
    %v2400 = vmul.f32 %v2394, %v1783
    %v2401 = vmul.f32 %v2398, %v1789
    %v2402 = vadd.f32 %v2390, %v2400
    %v2403 = vadd.f32 %v2391, %v2401
    %2404 = vset.pattern.permute.xlu0 5
    %2405 = vperm.xlu0 %2404, %v1011
    %v2406 = vpop.permute.xlu0 %2405
    %2408 = vset.pattern.permute.xlu0 5
    %2409 = vperm.xlu0 %2408, %v1016
    %v2410 = vpop.permute.xlu0 %2409
    %v2412 = vmul.f32 %v2406, %v1783
    %v2413 = vmul.f32 %v2410, %v1789
    %2416 = vrot.lane.b32.xlu0 %v2412, 96
    %v2417 = vpop.permute.xlu0 %2416
    %2418 = vrot.lane.b32.xlu0 %v2413, 96
    %v2419 = vpop.permute.xlu0 %2418
    %v2422 = vadd.f32 %v2402, %v2417
    %v2423 = vadd.f32 %v2403, %v2419
    %2424 = vset.pattern.permute.xlu0 6
    %2425 = vperm.xlu0 %2424, %v1011
    %v2426 = vpop.permute.xlu0 %2425
    %2428 = vset.pattern.permute.xlu0 6
    %2429 = vperm.xlu0 %2428, %v1016
    %v2430 = vpop.permute.xlu0 %2429
    %v2432 = vmul.f32 %v2426, %v1783
    %v2433 = vmul.f32 %v2430, %v1789
    %2436 = vrot.lane.b32.xlu0 %v2432, 64
    %v2437 = vpop.permute.xlu0 %2436
    %2438 = vrot.lane.b32.xlu0 %v2433, 64
    %v2439 = vpop.permute.xlu0 %2438
    %v2442 = vadd.f32 %v2422, %v2437
    %v2443 = vadd.f32 %v2423, %v2439
    %2444 = vset.pattern.permute.xlu0 7
    %2445 = vperm.xlu0 %2444, %v1011
    %v2446 = vpop.permute.xlu0 %2445
    %2448 = vset.pattern.permute.xlu0 7
    %2449 = vperm.xlu0 %2448, %v1016
    %v2450 = vpop.permute.xlu0 %2449
    %v2452 = vmul.f32 %v2446, %v1783
    %v2453 = vmul.f32 %v2450, %v1789
    %2456 = vrot.lane.b32.xlu0 %v2452, 32
    %v2457 = vpop.permute.xlu0 %2456
    %2458 = vrot.lane.b32.xlu0 %v2453, 32
    %v2459 = vpop.permute.xlu0 %2458
    %v2462 = vadd.f32 %v2442, %v2457
    %v2463 = vadd.f32 %v2443, %v2459
    %2464 = vset.pattern.permute.xlu0 8
    %2465 = vperm.xlu0 %2464, %v1011
    %v2466 = vpop.permute.xlu0 %2465
    %2468 = vset.pattern.permute.xlu0 8
    %2469 = vperm.xlu0 %2468, %v1016
    %v2470 = vpop.permute.xlu0 %2469
    %v2472 = vmul.f32 %v2466, %v1858
    %v2473 = vmul.f32 %v2470, %v1864
    %v2474 = vadd.f32 %v2462, %v2472
    %v2475 = vadd.f32 %v2463, %v2473
    %2476 = vset.pattern.permute.xlu0 9
    %2477 = vperm.xlu0 %2476, %v1011
    %v2478 = vpop.permute.xlu0 %2477
    %2480 = vset.pattern.permute.xlu0 9
    %2481 = vperm.xlu0 %2480, %v1016
    %v2482 = vpop.permute.xlu0 %2481
    %v2484 = vmul.f32 %v2478, %v1858
    %v2485 = vmul.f32 %v2482, %v1864
    %2488 = vrot.lane.b32.xlu0 %v2484, 96
    %v2489 = vpop.permute.xlu0 %2488
    %2490 = vrot.lane.b32.xlu0 %v2485, 96
    %v2491 = vpop.permute.xlu0 %2490
    %v2494 = vadd.f32 %v2474, %v2489
    %v2495 = vadd.f32 %v2475, %v2491
    %2496 = vset.pattern.permute.xlu0 10
    %2497 = vperm.xlu0 %2496, %v1011
    %v2498 = vpop.permute.xlu0 %2497
    %2500 = vset.pattern.permute.xlu0 10
    %2501 = vperm.xlu0 %2500, %v1016
    %v2502 = vpop.permute.xlu0 %2501
    %v2504 = vmul.f32 %v2498, %v1858
    %v2505 = vmul.f32 %v2502, %v1864
    %2508 = vrot.lane.b32.xlu0 %v2504, 64
    %v2509 = vpop.permute.xlu0 %2508
    %2510 = vrot.lane.b32.xlu0 %v2505, 64
    %v2511 = vpop.permute.xlu0 %2510
    %v2514 = vadd.f32 %v2494, %v2509
    %v2515 = vadd.f32 %v2495, %v2511
    %2516 = vset.pattern.permute.xlu0 11
    %2517 = vperm.xlu0 %2516, %v1011
    %v2518 = vpop.permute.xlu0 %2517
    %2520 = vset.pattern.permute.xlu0 11
    %2521 = vperm.xlu0 %2520, %v1016
    %v2522 = vpop.permute.xlu0 %2521
    %v2524 = vmul.f32 %v2518, %v1858
    %v2525 = vmul.f32 %v2522, %v1864
    %2528 = vrot.lane.b32.xlu0 %v2524, 32
    %v2529 = vpop.permute.xlu0 %2528
    %2530 = vrot.lane.b32.xlu0 %v2525, 32
    %v2531 = vpop.permute.xlu0 %2530
    %v2534 = vadd.f32 %v2514, %v2529
    %v2535 = vadd.f32 %v2515, %v2531
    %2536 = vset.pattern.permute.xlu0 12
    %2537 = vperm.xlu0 %2536, %v1011
    %v2538 = vpop.permute.xlu0 %2537
    %2540 = vset.pattern.permute.xlu0 12
    %2541 = vperm.xlu0 %2540, %v1016
    %v2542 = vpop.permute.xlu0 %2541
    %v2544 = vmul.f32 %v2538, %v1860
    %v2545 = vmul.f32 %v2542, %v1866
    %v2546 = vadd.f32 %v2534, %v2544
    %v2547 = vadd.f32 %v2535, %v2545
    %2548 = vset.pattern.permute.xlu0 13
    %2549 = vperm.xlu0 %2548, %v1011
    %v2550 = vpop.permute.xlu0 %2549
    %2552 = vset.pattern.permute.xlu0 13
    %2553 = vperm.xlu0 %2552, %v1016
    %v2554 = vpop.permute.xlu0 %2553
    %v2556 = vmul.f32 %v2550, %v1860
    %v2557 = vmul.f32 %v2554, %v1866
    %2560 = vrot.lane.b32.xlu0 %v2556, 96
    %v2561 = vpop.permute.xlu0 %2560
    %2562 = vrot.lane.b32.xlu0 %v2557, 96
    %v2563 = vpop.permute.xlu0 %2562
    %v2566 = vadd.f32 %v2546, %v2561
    %v2567 = vadd.f32 %v2547, %v2563
    %2568 = vset.pattern.permute.xlu0 14
    %2569 = vperm.xlu0 %2568, %v1011
    %v2570 = vpop.permute.xlu0 %2569
    %2572 = vset.pattern.permute.xlu0 14
    %2573 = vperm.xlu0 %2572, %v1016
    %v2574 = vpop.permute.xlu0 %2573
    %v2576 = vmul.f32 %v2570, %v1860
    %v2577 = vmul.f32 %v2574, %v1866
    %2580 = vrot.lane.b32.xlu0 %v2576, 64
    %v2581 = vpop.permute.xlu0 %2580
    %2582 = vrot.lane.b32.xlu0 %v2577, 64
    %v2583 = vpop.permute.xlu0 %2582
    %v2586 = vadd.f32 %v2566, %v2581
    %v2587 = vadd.f32 %v2567, %v2583
    %2588 = vset.pattern.permute.xlu0 15
    %2589 = vperm.xlu0 %2588, %v1011
    %v2590 = vpop.permute.xlu0 %2589
    %2592 = vset.pattern.permute.xlu0 15
    %2593 = vperm.xlu0 %2592, %v1016
    %v2594 = vpop.permute.xlu0 %2593
    %v2596 = vmul.f32 %v2590, %v1860
    %v2597 = vmul.f32 %v2594, %v1866
    %2600 = vrot.lane.b32.xlu0 %v2596, 32
    %v2601 = vpop.permute.xlu0 %2600
    %2602 = vrot.lane.b32.xlu0 %v2597, 32
    %v2603 = vpop.permute.xlu0 %2602
    %v2606 = vadd.f32 %v2586, %v2601
    %v2607 = vadd.f32 %v2587, %v2603
    %2608 = vset.pattern.permute.xlu0 16
    %2609 = vperm.xlu0 %2608, %v1011
    %v2610 = vpop.permute.xlu0 %2609
    %2612 = vset.pattern.permute.xlu0 16
    %2613 = vperm.xlu0 %2612, %v1016
    %v2614 = vpop.permute.xlu0 %2613
    %v2616 = vmul.f32 %v2610, %v1935
    %v2617 = vmul.f32 %v2614, %v1941
    %v2618 = vadd.f32 %v2606, %v2616
    %v2619 = vadd.f32 %v2607, %v2617
    %2620 = vset.pattern.permute.xlu0 17
    %2621 = vperm.xlu0 %2620, %v1011
    %v2622 = vpop.permute.xlu0 %2621
    %2624 = vset.pattern.permute.xlu0 17
    %2625 = vperm.xlu0 %2624, %v1016
    %v2626 = vpop.permute.xlu0 %2625
    %v2628 = vmul.f32 %v2622, %v1935
    %v2629 = vmul.f32 %v2626, %v1941
    %2632 = vrot.lane.b32.xlu0 %v2628, 96
    %v2633 = vpop.permute.xlu0 %2632
    %2634 = vrot.lane.b32.xlu0 %v2629, 96
    %v2635 = vpop.permute.xlu0 %2634
    %v2638 = vadd.f32 %v2618, %v2633
    %v2639 = vadd.f32 %v2619, %v2635
    %2640 = vset.pattern.permute.xlu0 18
    %2641 = vperm.xlu0 %2640, %v1011
    %v2642 = vpop.permute.xlu0 %2641
    %2644 = vset.pattern.permute.xlu0 18
    %2645 = vperm.xlu0 %2644, %v1016
    %v2646 = vpop.permute.xlu0 %2645
    %v2648 = vmul.f32 %v2642, %v1935
    %v2649 = vmul.f32 %v2646, %v1941
    %2652 = vrot.lane.b32.xlu0 %v2648, 64
    %v2653 = vpop.permute.xlu0 %2652
    %2654 = vrot.lane.b32.xlu0 %v2649, 64
    %v2655 = vpop.permute.xlu0 %2654
    %v2658 = vadd.f32 %v2638, %v2653
    %v2659 = vadd.f32 %v2639, %v2655
    %2660 = vset.pattern.permute.xlu0 19
    %2661 = vperm.xlu0 %2660, %v1011
    %v2662 = vpop.permute.xlu0 %2661
    %2664 = vset.pattern.permute.xlu0 19
    %2665 = vperm.xlu0 %2664, %v1016
    %v2666 = vpop.permute.xlu0 %2665
    %v2668 = vmul.f32 %v2662, %v1935
    %v2669 = vmul.f32 %v2666, %v1941
    %2672 = vrot.lane.b32.xlu0 %v2668, 32
    %v2673 = vpop.permute.xlu0 %2672
    %2674 = vrot.lane.b32.xlu0 %v2669, 32
    %v2675 = vpop.permute.xlu0 %2674
    %v2678 = vadd.f32 %v2658, %v2673
    %v2679 = vadd.f32 %v2659, %v2675
    %2680 = vset.pattern.permute.xlu0 20
    %2681 = vperm.xlu0 %2680, %v1011
    %v2682 = vpop.permute.xlu0 %2681
    %2684 = vset.pattern.permute.xlu0 20
    %2685 = vperm.xlu0 %2684, %v1016
    %v2686 = vpop.permute.xlu0 %2685
    %v2688 = vmul.f32 %v2682, %v1937
    %v2689 = vmul.f32 %v2686, %v1943
    %v2690 = vadd.f32 %v2678, %v2688
    %v2691 = vadd.f32 %v2679, %v2689
    %2692 = vset.pattern.permute.xlu0 21
    %2693 = vperm.xlu0 %2692, %v1011
    %v2694 = vpop.permute.xlu0 %2693
    %2696 = vset.pattern.permute.xlu0 21
    %2697 = vperm.xlu0 %2696, %v1016
    %v2698 = vpop.permute.xlu0 %2697
    %v2700 = vmul.f32 %v2694, %v1937
    %v2701 = vmul.f32 %v2698, %v1943
    %2704 = vrot.lane.b32.xlu0 %v2700, 96
    %v2705 = vpop.permute.xlu0 %2704
    %2706 = vrot.lane.b32.xlu0 %v2701, 96
    %v2707 = vpop.permute.xlu0 %2706
    %v2710 = vadd.f32 %v2690, %v2705
    %v2711 = vadd.f32 %v2691, %v2707
    %2712 = vset.pattern.permute.xlu0 22
    %2713 = vperm.xlu0 %2712, %v1011
    %v2714 = vpop.permute.xlu0 %2713
    %2716 = vset.pattern.permute.xlu0 22
    %2717 = vperm.xlu0 %2716, %v1016
    %v2718 = vpop.permute.xlu0 %2717
    %v2720 = vmul.f32 %v2714, %v1937
    %v2721 = vmul.f32 %v2718, %v1943
    %2724 = vrot.lane.b32.xlu0 %v2720, 64
    %v2725 = vpop.permute.xlu0 %2724
    %2726 = vrot.lane.b32.xlu0 %v2721, 64
    %v2727 = vpop.permute.xlu0 %2726
    %v2730 = vadd.f32 %v2710, %v2725
    %v2731 = vadd.f32 %v2711, %v2727
    %2732 = vset.pattern.permute.xlu0 23
    %2733 = vperm.xlu0 %2732, %v1011
    %v2734 = vpop.permute.xlu0 %2733
    %2736 = vset.pattern.permute.xlu0 23
    %2737 = vperm.xlu0 %2736, %v1016
    %v2738 = vpop.permute.xlu0 %2737
    %v2740 = vmul.f32 %v2734, %v1937
    %v2741 = vmul.f32 %v2738, %v1943
    %2744 = vrot.lane.b32.xlu0 %v2740, 32
    %v2745 = vpop.permute.xlu0 %2744
    %2746 = vrot.lane.b32.xlu0 %v2741, 32
    %v2747 = vpop.permute.xlu0 %2746
    %v2750 = vadd.f32 %v2730, %v2745
    %v2751 = vadd.f32 %v2731, %v2747
    %2752 = vset.pattern.permute.xlu0 24
    %2753 = vperm.xlu0 %2752, %v1011
    %v2754 = vpop.permute.xlu0 %2753
    %2756 = vset.pattern.permute.xlu0 24
    %2757 = vperm.xlu0 %2756, %v1016
    %v2758 = vpop.permute.xlu0 %2757
    %v2760 = vmul.f32 %v2754, %v2012
    %v2761 = vmul.f32 %v2758, %v2018
    %v2762 = vadd.f32 %v2750, %v2760
    %v2763 = vadd.f32 %v2751, %v2761
    %2764 = vset.pattern.permute.xlu0 25
    %2765 = vperm.xlu0 %2764, %v1011
    %v2766 = vpop.permute.xlu0 %2765
    %2768 = vset.pattern.permute.xlu0 25
    %2769 = vperm.xlu0 %2768, %v1016
    %v2770 = vpop.permute.xlu0 %2769
    %v2772 = vmul.f32 %v2766, %v2012
    %v2773 = vmul.f32 %v2770, %v2018
    %2776 = vrot.lane.b32.xlu0 %v2772, 96
    %v2777 = vpop.permute.xlu0 %2776
    %2778 = vrot.lane.b32.xlu0 %v2773, 96
    %v2779 = vpop.permute.xlu0 %2778
    %v2782 = vadd.f32 %v2762, %v2777
    %v2783 = vadd.f32 %v2763, %v2779
    %2784 = vset.pattern.permute.xlu0 26
    %2785 = vperm.xlu0 %2784, %v1011
    %v2786 = vpop.permute.xlu0 %2785
    %2788 = vset.pattern.permute.xlu0 26
    %2789 = vperm.xlu0 %2788, %v1016
    %v2790 = vpop.permute.xlu0 %2789
    %v2792 = vmul.f32 %v2786, %v2012
    %v2793 = vmul.f32 %v2790, %v2018
    %2796 = vrot.lane.b32.xlu0 %v2792, 64
    %v2797 = vpop.permute.xlu0 %2796
    %2798 = vrot.lane.b32.xlu0 %v2793, 64
    %v2799 = vpop.permute.xlu0 %2798
    %v2802 = vadd.f32 %v2782, %v2797
    %v2803 = vadd.f32 %v2783, %v2799
    %2804 = vset.pattern.permute.xlu0 27
    %2805 = vperm.xlu0 %2804, %v1011
    %v2806 = vpop.permute.xlu0 %2805
    %2808 = vset.pattern.permute.xlu0 27
    %2809 = vperm.xlu0 %2808, %v1016
    %v2810 = vpop.permute.xlu0 %2809
    %v2812 = vmul.f32 %v2806, %v2012
    %v2813 = vmul.f32 %v2810, %v2018
    %2816 = vrot.lane.b32.xlu0 %v2812, 32
    %v2817 = vpop.permute.xlu0 %2816
    %2818 = vrot.lane.b32.xlu0 %v2813, 32
    %v2819 = vpop.permute.xlu0 %2818
    %v2822 = vadd.f32 %v2802, %v2817
    %v2823 = vadd.f32 %v2803, %v2819
    %2824 = vset.pattern.permute.xlu0 28
    %2825 = vperm.xlu0 %2824, %v1011
    %v2826 = vpop.permute.xlu0 %2825
    %2828 = vset.pattern.permute.xlu0 28
    %2829 = vperm.xlu0 %2828, %v1016
    %v2830 = vpop.permute.xlu0 %2829
    %v2832 = vmul.f32 %v2826, %v2014
    %v2833 = vmul.f32 %v2830, %v2020
    %v2834 = vadd.f32 %v2822, %v2832
    %v2835 = vadd.f32 %v2823, %v2833
    %2836 = vset.pattern.permute.xlu0 29
    %2837 = vperm.xlu0 %2836, %v1011
    %v2838 = vpop.permute.xlu0 %2837
    %2840 = vset.pattern.permute.xlu0 29
    %2841 = vperm.xlu0 %2840, %v1016
    %v2842 = vpop.permute.xlu0 %2841
    %v2844 = vmul.f32 %v2838, %v2014
    %v2845 = vmul.f32 %v2842, %v2020
    %2848 = vrot.lane.b32.xlu0 %v2844, 96
    %v2849 = vpop.permute.xlu0 %2848
    %2850 = vrot.lane.b32.xlu0 %v2845, 96
    %v2851 = vpop.permute.xlu0 %2850
    %v2854 = vadd.f32 %v2834, %v2849
    %v2855 = vadd.f32 %v2835, %v2851
    %2856 = vset.pattern.permute.xlu0 30
    %2857 = vperm.xlu0 %2856, %v1011
    %v2858 = vpop.permute.xlu0 %2857
    %2860 = vset.pattern.permute.xlu0 30
    %2861 = vperm.xlu0 %2860, %v1016
    %v2862 = vpop.permute.xlu0 %2861
    %v2864 = vmul.f32 %v2858, %v2014
    %v2865 = vmul.f32 %v2862, %v2020
    %2868 = vrot.lane.b32.xlu0 %v2864, 64
    %v2869 = vpop.permute.xlu0 %2868
    %2870 = vrot.lane.b32.xlu0 %v2865, 64
    %v2871 = vpop.permute.xlu0 %2870
    %v2874 = vadd.f32 %v2854, %v2869
    %v2875 = vadd.f32 %v2855, %v2871
    %2876 = vset.pattern.permute.xlu0 31
    %2877 = vperm.xlu0 %2876, %v1011
    %v2878 = vpop.permute.xlu0 %2877
    %2880 = vset.pattern.permute.xlu0 31
    %2881 = vperm.xlu0 %2880, %v1016
    %v2882 = vpop.permute.xlu0 %2881
    %v2884 = vmul.f32 %v2878, %v2014
    %v2885 = vmul.f32 %v2882, %v2020
    %2888 = vrot.lane.b32.xlu0 %v2884, 32
    %v2889 = vpop.permute.xlu0 %2888
    %2890 = vrot.lane.b32.xlu0 %v2885, 32
    %v2891 = vpop.permute.xlu0 %2890
    %v2894 = vadd.f32 %v2874, %v2889
    %v2895 = vadd.f32 %v2875, %v2891
    %v2896 = vmul.f32 %v2894, %v2317
    %v2897 = vmul.f32 %v2895, %v2319
    %2898 = vxpose.xlu0.b32.start [1/16] %v689, 128
    %2899 = vxpose.xlu0.b32.cont [2/16] %v690, 128
    %2900 = vxpose.xlu0.b32.cont [3/16] 0.0, 128
    %2901 = vxpose.xlu0.b32.cont [4/16] 0.0, 128
    %2902 = vxpose.xlu0.b32.cont [5/16] 0.0, 128
    %2903 = vxpose.xlu0.b32.cont [6/16] 0.0, 128
    %2904 = vxpose.xlu0.b32.cont [7/16] 0.0, 128
    %2905 = vxpose.xlu0.b32.cont [8/16] 0.0, 128
    %2906 = vxpose.xlu0.b32.cont [9/16] 0.0, 128
    %2907 = vxpose.xlu0.b32.cont [10/16] 0.0, 128
    %2908 = vxpose.xlu0.b32.cont [11/16] 0.0, 128
    %2909 = vxpose.xlu0.b32.cont [12/16] 0.0, 128
    %2910 = vxpose.xlu0.b32.cont [13/16] 0.0, 128
    %2911 = vxpose.xlu0.b32.cont [14/16] 0.0, 128
    %2912 = vxpose.xlu0.b32.cont [15/16] 0.0, 128
    %2913 = vxpose.xlu0.b32.end [16/16] 0.0, 128
    %v2914 = vpop.trf.xlu0
    %v2915 = vpop.trf.xlu0
    %v2916 = vpop.trf.xlu0
    %v2917 = vpop.trf.xlu0
    %v2918 = vpop.trf.xlu0
    %v2919 = vpop.trf.xlu0
    %v2920 = vpop.trf.xlu0
    %v2921 = vpop.trf.xlu0
    %v2922 = vpop.trf.xlu0
    %v2923 = vpop.trf.xlu0
    %v2924 = vpop.trf.xlu0
    %v2925 = vpop.trf.xlu0
    %v2926 = vpop.trf.xlu0
    %v2927 = vpop.trf.xlu0
    %v2928 = vpop.trf.xlu0
    %v2929 = vpop.trf.xlu0
    %2930 = vrot.lane.b32.xlu0 %v2103, 64
    %v2931 = vpop.permute.xlu0 %2930
    %v2934 = vsel %vm1370, %v2914, 0
    %2936 = vmatprep.subr.mxu0 0.0
    %2937 = vmatpush1.msra.mxu0 %v2896
    %2938 = vmatprep.subr.mxu0 0.0
    %2939 = vmatpush1.msra.mxu0 %v2897
    %2940 = vmatprep.subr.mxu0 0.0
    %2941 = vmatpush1.msra.mxu0 0.0
    %2942 = vmatprep.subr.mxu0 0.0
    %2943 = vmatpush1.msra.mxu0 0.0
    %2944 = vmatprep.subr.mxu0 0.0
    %2945 = vmatpush1.msra.mxu0 0.0
    %2946 = vmatprep.subr.mxu0 0.0
    %2947 = vmatpush1.msra.mxu0 0.0
    %2948 = vmatprep.subr.mxu0 0.0
    %2949 = vmatpush1.msra.mxu0 0.0
    %2950 = vmatprep.subr.mxu0 0.0
    %2951 = vmatpush1.msra.mxu0 0.0
    %2952 = vmatprep.subr.mxu0 0.0
    %2953 = vmatpush1.msra.mxu0 0.0
    %2954 = vmatprep.subr.mxu0 0.0
    %2955 = vmatpush1.msra.mxu0 0.0
    %2956 = vmatprep.subr.mxu0 0.0
    %2957 = vmatpush1.msra.mxu0 0.0
    %2958 = vmatprep.subr.mxu0 0.0
    %2959 = vmatpush1.msra.mxu0 0.0
    %2960 = vmatprep.subr.mxu0 0.0
    %2961 = vmatpush1.msra.mxu0 0.0
    %2962 = vmatprep.subr.mxu0 0.0
    %2963 = vmatpush1.msra.mxu0 0.0
    %2964 = vmatprep.subr.mxu0 0.0
    %2965 = vmatpush1.msra.mxu0 0.0
    %2966 = vmatprep.subr.mxu0 0.0
    %2967 = vmatpush1.msra.mxu0 0.0
    %2968 = vmatprep.subr.mxu0 0.0
    %2969 = vmatpush1.msra.mxu0 0.0
    %2970 = vmatprep.subr.mxu0 0.0
    %2971 = vmatpush1.msra.mxu0 0.0
    %2972 = vmatprep.subr.mxu0 0.0
    %2973 = vmatpush1.msra.mxu0 0.0
    %2974 = vmatprep.subr.mxu0 0.0
    %2975 = vmatpush1.msra.mxu0 0.0
    %2976 = vmatprep.subr.mxu0 0.0
    %2977 = vmatpush1.msra.mxu0 0.0
    %2978 = vmatprep.subr.mxu0 0.0
    %2979 = vmatpush1.msra.mxu0 0.0
    %2980 = vmatprep.subr.mxu0 0.0
    %2981 = vmatpush1.msra.mxu0 0.0
    %2982 = vmatprep.subr.mxu0 0.0
    %2983 = vmatpush1.msra.mxu0 0.0
    %2984 = vmatprep.subr.mxu0 0.0
    %2985 = vmatpush1.msra.mxu0 0.0
    %2986 = vmatprep.subr.mxu0 0.0
    %2987 = vmatpush1.msra.mxu0 0.0
    %2988 = vmatprep.subr.mxu0 0.0
    %2989 = vmatpush1.msra.mxu0 0.0
    %2990 = vmatprep.subr.mxu0 0.0
    %2991 = vmatpush1.msra.mxu0 0.0
    %2992 = vmatprep.subr.mxu0 0.0
    %2993 = vmatpush1.msra.mxu0 0.0
    %2994 = vmatprep.subr.mxu0 0.0
    %2995 = vmatpush1.msra.mxu0 0.0
    %2996 = vmatprep.subr.mxu0 0.0
    %2997 = vmatpush1.msra.mxu0 0.0
    %2998 = vmatprep.subr.mxu0 0.0
    %2999 = vmatpush1.msra.mxu0 0.0
    %3000 = vmatprep.mubr.f32.mxu0 0.0
    %3001 = vmatmul.mubr.f32.gmra.mrb[0].mxu0 %v2934
    %v3002 = vpop.f32.mrb[0].mxu0
    %v3003 = vadd.f32 %v2931, %v3002
    %v3004 = vpop.f32.mrb[0].mxu0
    %3005 = vdwg.mxu0
    %v3006 = vld [vmem:[#allocation23] sm:$0x1]
    %v3007 = vld [vmem:[#allocation25] sm:$0x1]
    %v3008 = vsel %vm797, %v3003, 0.0
    %3009 = vadd.xlane.f32.xlu0 %v3008
    %v3010 = vpop.xlane.xlu0 %3009
    %v3011 = vmul.f32 %v696, %v3010
    %v3012 = vsel %vm697, %v3011, 0.0
    %v3013 = vrot.slane %v3012, 4
    %v3014 = vadd.f32 %v3012, %v3013
    %v3015 = vrot.slane %v3014, 2
    %v3016 = vadd.f32 %v3014, %v3015
    %v3017 = vrot.slane %v3016, 1
    %v3018 = vadd.f32 %v3016, %v3017
    %v3019 = vmul.f32 %v3018, %v809
    %v3020 = vmul.f32 %v696, %v3019
    %v3021 = vsel %vm697, %v3020, 0.0
    %3022 = vadd.xlane.f32.xlu0 %v3021
    %v3023 = vpop.xlane.xlu0 %3022
    %v3024 = vsub.f32 %v3003, %v3023
    %v3025 = vmul.f32 %v3024, %v3024
    %v3026 = vsel %vm797, %v3025, 0.0
    %3027 = vadd.xlane.f32.xlu0 %v3026
    %v3028 = vpop.xlane.xlu0 %3027
    %v3029 = vmul.f32 %v696, %v3028
    %v3030 = vsel %vm697, %v3029, 0.0
    %v3031 = vrot.slane %v3030, 4
    %v3032 = vadd.f32 %v3030, %v3031
    %v3033 = vrot.slane %v3032, 2
    %v3034 = vadd.f32 %v3032, %v3033
    %v3035 = vrot.slane %v3034, 1
    %v3036 = vadd.f32 %v3034, %v3035
    %v3037 = vmul.f32 %v3036, %v809
    %v3038 = vmul.f32 %v696, %v3037
    %v3039 = vsel %vm697, %v3038, 0.0
    %3040 = vadd.xlane.f32.xlu0 %v3039
    %v3041 = vpop.xlane.xlu0 %3040
    %v3042 = vadd.f32 %v3041, 1e-05
    %v3043 = vrsqrt.pop %v3042
    %v3044 = vmul.f32 %v3024, %v3043
    %v3046 = vlaneseq
    %v3047 = vshrl.u32 %v3046, 7
    %v3048 = vsub.s32 0, %v3047
    %v3049 = vrot.slane %v3006, %v3048
    %v3051 = vmul.f32 %v3044, %v3049
    %v3053 = vlaneseq
    %v3054 = vshrl.u32 %v3053, 7
    %v3055 = vsub.s32 0, %v3054
    %v3056 = vrot.slane %v3007, %v3055
    %v3058 = vadd.f32 %v3051, %v3056
    %vm3059 = vcmp.gt.f32.partialorder %v3058, 0.0
    %v3060 = vmul.f32 %v3058, 0.01
    %v3061 = vsel %vm3059, %v3058, %v3060
    %v3062 = vld [vmem:[#allocation26] sm:$0xff]
    %v3063 = vld [vmem:[#allocation26 + $0x8] sm:$0xff]
    %v3064 = vld [vmem:[#allocation28] sm:$0x1]
    %v3066 = vlaneseq
    %v3067 = vshrl.u32 %v3066, 7
    %v3068 = vsub.s32 0, %v3067
    %v3069 = vrot.slane %v3064, %v3068
    %3071 = vmatprep.subr.mxu0 0.0
    %3072 = vmatpush1.msra.mxu0 %v3062
    %3073 = vmatprep.subr.mxu0 0.0
    %3074 = vmatpush1.msra.mxu0 %v3063
    %3075 = vmatprep.subr.mxu0 0.0
    %3076 = vmatpush1.msra.mxu0 0.0
    %3077 = vmatprep.subr.mxu0 0.0
    %3078 = vmatpush1.msra.mxu0 0.0
    %3079 = vmatprep.subr.mxu0 0.0
    %3080 = vmatpush1.msra.mxu0 0.0
    %3081 = vmatprep.subr.mxu0 0.0
    %3082 = vmatpush1.msra.mxu0 0.0
    %3083 = vmatprep.subr.mxu0 0.0
    %3084 = vmatpush1.msra.mxu0 0.0
    %3085 = vmatprep.subr.mxu0 0.0
    %3086 = vmatpush1.msra.mxu0 0.0
    %3087 = vmatprep.subr.mxu0 0.0
    %3088 = vmatpush1.msra.mxu0 0.0
    %3089 = vmatprep.subr.mxu0 0.0
    %3090 = vmatpush1.msra.mxu0 0.0
    %3091 = vmatprep.subr.mxu0 0.0
    %3092 = vmatpush1.msra.mxu0 0.0
    %3093 = vmatprep.subr.mxu0 0.0
    %3094 = vmatpush1.msra.mxu0 0.0
    %3095 = vmatprep.subr.mxu0 0.0
    %3096 = vmatpush1.msra.mxu0 0.0
    %3097 = vmatprep.subr.mxu0 0.0
    %3098 = vmatpush1.msra.mxu0 0.0
    %3099 = vmatprep.subr.mxu0 0.0
    %3100 = vmatpush1.msra.mxu0 0.0
    %3101 = vmatprep.subr.mxu0 0.0
    %3102 = vmatpush1.msra.mxu0 0.0
    %3103 = vmatprep.subr.mxu0 0.0
    %3104 = vmatpush1.msra.mxu0 0.0
    %3105 = vmatprep.subr.mxu0 0.0
    %3106 = vmatpush1.msra.mxu0 0.0
    %3107 = vmatprep.subr.mxu0 0.0
    %3108 = vmatpush1.msra.mxu0 0.0
    %3109 = vmatprep.subr.mxu0 0.0
    %3110 = vmatpush1.msra.mxu0 0.0
    %3111 = vmatprep.subr.mxu0 0.0
    %3112 = vmatpush1.msra.mxu0 0.0
    %3113 = vmatprep.subr.mxu0 0.0
    %3114 = vmatpush1.msra.mxu0 0.0
    %3115 = vmatprep.subr.mxu0 0.0
    %3116 = vmatpush1.msra.mxu0 0.0
    %3117 = vmatprep.subr.mxu0 0.0
    %3118 = vmatpush1.msra.mxu0 0.0
    %3119 = vmatprep.subr.mxu0 0.0
    %3120 = vmatpush1.msra.mxu0 0.0
    %3121 = vmatprep.subr.mxu0 0.0
    %3122 = vmatpush1.msra.mxu0 0.0
    %3123 = vmatprep.subr.mxu0 0.0
    %3124 = vmatpush1.msra.mxu0 0.0
    %3125 = vmatprep.subr.mxu0 0.0
    %3126 = vmatpush1.msra.mxu0 0.0
    %3127 = vmatprep.subr.mxu0 0.0
    %3128 = vmatpush1.msra.mxu0 0.0
    %3129 = vmatprep.subr.mxu0 0.0
    %3130 = vmatpush1.msra.mxu0 0.0
    %3131 = vmatprep.subr.mxu0 0.0
    %3132 = vmatpush1.msra.mxu0 0.0
    %3133 = vmatprep.subr.mxu0 0.0
    %3134 = vmatpush1.msra.mxu0 0.0
    %3135 = vmatprep.mubr.f32.mxu0 0.0
    %3136 = vmatmul.mubr.f32.gmra.mrb[0].mxu0 %v1520
    %v3137 = vpop.f32.mrb[0].mxu0
    %v3138 = vadd.f32 %v3069, %v3137
    %v3139 = vpop.f32.mrb[0].mxu0
    %3140 = vmatprep.mubr.f32.mxu0 0.0
    %3141 = vmatmul.mubr.f32.gmra.mrb[0].mxu0 %v1523
    %v3142 = vpop.f32.mrb[0].mxu0
    %v3143 = vadd.f32 %v3069, %v3142
    %v3144 = vpop.f32.mrb[0].mxu0
    %3145 = vdwg.mxu0
    %v3146 = vld [vmem:[#allocation29] sm:$0x1]
    %v3147 = vld [vmem:[#allocation31] sm:$0x1]
    %v3148 = vsel %vm1370, %v3138, 0.0
    %3149 = vadd.xlane.f32.xlu0 %v3148
    %v3150 = vpop.xlane.xlu0 %3149
    %v3151 = vsel %vm1370, %v3143, 0.0
    %3152 = vadd.xlane.f32.xlu0 %v3151
    %v3153 = vpop.xlane.xlu0 %3152
    %v3154 = vmul.f32 %v3150, %v1377
    %v3155 = vmul.f32 %v3153, %v1377
    %v3156 = vsub.f32 %v3138, %v3154
    %v3157 = vsub.f32 %v3143, %v3155
    %v3158 = vmul.f32 %v3156, %v3156
    %v3159 = vmul.f32 %v3157, %v3157
    %v3160 = vsel %vm1370, %v3158, 0.0
    %3161 = vadd.xlane.f32.xlu0 %v3160
    %v3162 = vpop.xlane.xlu0 %3161
    %v3163 = vsel %vm1370, %v3159, 0.0
    %3164 = vadd.xlane.f32.xlu0 %v3163
    %v3165 = vpop.xlane.xlu0 %3164
    %v3166 = vmul.f32 %v3162, %v1377
    %v3167 = vmul.f32 %v3165, %v1377
    %v3168 = vadd.f32 %v3166, 1e-05
    %v3169 = vadd.f32 %v3167, 1e-05
    %v3170 = vrsqrt.pop %v3168
    %v3171 = vrsqrt.pop %v3169
    %v3172 = vmul.f32 %v3156, %v3170
    %v3173 = vmul.f32 %v3157, %v3171
    %v3175 = vlaneseq
    %v3176 = vshrl.u32 %v3175, 7
    %v3177 = vsub.s32 0, %v3176
    %v3178 = vrot.slane %v3146, %v3177
    %v3180 = vmul.f32 %v3172, %v3178
    %v3181 = vmul.f32 %v3173, %v3178
    %v3183 = vlaneseq
    %v3184 = vshrl.u32 %v3183, 7
    %v3185 = vsub.s32 0, %v3184
    %v3186 = vrot.slane %v3147, %v3185
    %v3188 = vadd.f32 %v3180, %v3186
    %v3189 = vadd.f32 %v3181, %v3186
    %vm3190 = vcmp.gt.f32.partialorder %v3188, 0.0
    %vm3191 = vcmp.gt.f32.partialorder %v3189, 0.0
    %v3192 = vmul.f32 %v3188, 0.01
    %v3193 = vmul.f32 %v3189, 0.01
    %v3194 = vsel %vm3190, %v3188, %v3192
    %v3195 = vsel %vm3191, %v3189, %v3193
    %v3196 = vld [vmem:[%s67] sm:$0xff]
    %v3197 = vld [vmem:[%s67 + $0x8] sm:$0xff]
    %v3198 = vld [vmem:[%s67 + $0x10] sm:$0xff]
    %v3199 = vld [vmem:[%s67 + $0x18] sm:$0xff]
    %v3200 = vld [vmem:[%s67 + $0x20] sm:$0xff]
    %v3201 = vld [vmem:[%s67 + $0x28] sm:$0xff]
    %v3202 = vld [vmem:[%s67 + $0x30] sm:$0xff]
    %v3203 = vld [vmem:[%s67 + $0x38] sm:$0xff]
    %v3204 = vld [vmem:[%s67 + $0x40] sm:$0xff]
    %v3205 = vld [vmem:[%s67 + $0x48] sm:$0xff]
    %v3206 = vld [vmem:[%s67 + $0x50] sm:$0xff]
    %v3207 = vld [vmem:[%s67 + $0x58] sm:$0xff]
    %v3208 = vld [vmem:[%s67 + $0x60] sm:$0xff]
    %v3209 = vld [vmem:[%s67 + $0x68] sm:$0xff]
    %v3210 = vld [vmem:[%s67 + $0x70] sm:$0xff]
    %v3211 = vld [vmem:[%s67 + $0x78] sm:$0xff]
    %v3212 = vld [vmem:[#allocation32] sm:$0xff]
    %v3214 = vlaneseq
    %v3215 = vshrl.u32 %v3214, 7
    %v3216 = vsub.s32 0, %v3215
    %v3217 = vrot.slane %v3212, %v3216
    %v3218 = vlaneseq
    %v3219 = vshrl.u32 %v3218, 7
    %v3220 = vsub.s32 1, %v3219
    %v3221 = vrot.slane %v3212, %v3220
    %v3222 = vlaneseq
    %v3223 = vshrl.u32 %v3222, 7
    %v3224 = vsub.s32 2, %v3223
    %v3225 = vrot.slane %v3212, %v3224
    %v3226 = vlaneseq
    %v3227 = vshrl.u32 %v3226, 7
    %v3228 = vsub.s32 3, %v3227
    %v3229 = vrot.slane %v3212, %v3228
    %v3230 = vlaneseq
    %v3231 = vshrl.u32 %v3230, 7
    %v3232 = vsub.s32 4, %v3231
    %v3233 = vrot.slane %v3212, %v3232
    %v3234 = vlaneseq
    %v3235 = vshrl.u32 %v3234, 7
    %v3236 = vsub.s32 5, %v3235
    %v3237 = vrot.slane %v3212, %v3236
    %v3238 = vlaneseq
    %v3239 = vshrl.u32 %v3238, 7
    %v3240 = vsub.s32 6, %v3239
    %v3241 = vrot.slane %v3212, %v3240
    %v3242 = vlaneseq
    %v3243 = vshrl.u32 %v3242, 7
    %v3244 = vsub.s32 7, %v3243
    %v3245 = vrot.slane %v3212, %v3244
    %v3255 = vsel %vm1370, %v3194, 0
    %v3258 = vsel %vm1370, %v3195, 0
    %3260 = vmatprep.subr.mxu0 %v3197
    %3261 = vmatpush1.msra.mxu0 %v3196
    %3262 = vmatprep.subr.mxu0 %v3205
    %3263 = vmatpush1.msra.mxu0 %v3204
    %3264 = vmatprep.subr.mxu0 0.0
    %3265 = vmatpush1.msra.mxu0 0.0
    %3266 = vmatprep.subr.mxu0 0.0
    %3267 = vmatpush1.msra.mxu0 0.0
    %3268 = vmatprep.subr.mxu0 0.0
    %3269 = vmatpush1.msra.mxu0 0.0
    %3270 = vmatprep.subr.mxu0 0.0
    %3271 = vmatpush1.msra.mxu0 0.0
    %3272 = vmatprep.subr.mxu0 0.0
    %3273 = vmatpush1.msra.mxu0 0.0
    %3274 = vmatprep.subr.mxu0 0.0
    %3275 = vmatpush1.msra.mxu0 0.0
    %3276 = vmatprep.subr.mxu0 0.0
    %3277 = vmatpush1.msra.mxu0 0.0
    %3278 = vmatprep.subr.mxu0 0.0
    %3279 = vmatpush1.msra.mxu0 0.0
    %3280 = vmatprep.subr.mxu0 0.0
    %3281 = vmatpush1.msra.mxu0 0.0
    %3282 = vmatprep.subr.mxu0 0.0
    %3283 = vmatpush1.msra.mxu0 0.0
    %3284 = vmatprep.subr.mxu0 0.0
    %3285 = vmatpush1.msra.mxu0 0.0
    %3286 = vmatprep.subr.mxu0 0.0
    %3287 = vmatpush1.msra.mxu0 0.0
    %3288 = vmatprep.subr.mxu0 0.0
    %3289 = vmatpush1.msra.mxu0 0.0
    %3290 = vmatprep.subr.mxu0 0.0
    %3291 = vmatpush1.msra.mxu0 0.0
    %3292 = vmatprep.subr.mxu0 0.0
    %3293 = vmatpush1.msra.mxu0 0.0
    %3294 = vmatprep.subr.mxu0 0.0
    %3295 = vmatpush1.msra.mxu0 0.0
    %3296 = vmatprep.subr.mxu0 0.0
    %3297 = vmatpush1.msra.mxu0 0.0
    %3298 = vmatprep.subr.mxu0 0.0
    %3299 = vmatpush1.msra.mxu0 0.0
    %3300 = vmatprep.subr.mxu0 0.0
    %3301 = vmatpush1.msra.mxu0 0.0
    %3302 = vmatprep.subr.mxu0 0.0
    %3303 = vmatpush1.msra.mxu0 0.0
    %3304 = vmatprep.subr.mxu0 0.0
    %3305 = vmatpush1.msra.mxu0 0.0
    %3306 = vmatprep.subr.mxu0 0.0
    %3307 = vmatpush1.msra.mxu0 0.0
    %3308 = vmatprep.subr.mxu0 0.0
    %3309 = vmatpush1.msra.mxu0 0.0
    %3310 = vmatprep.subr.mxu0 0.0
    %3311 = vmatpush1.msra.mxu0 0.0
    %3312 = vmatprep.subr.mxu0 0.0
    %3313 = vmatpush1.msra.mxu0 0.0
    %3314 = vmatprep.subr.mxu0 0.0
    %3315 = vmatpush1.msra.mxu0 0.0
    %3316 = vmatprep.subr.mxu0 0.0
    %3317 = vmatpush1.msra.mxu0 0.0
    %3318 = vmatprep.subr.mxu0 0.0
    %3319 = vmatpush1.msra.mxu0 0.0
    %3320 = vmatprep.subr.mxu0 0.0
    %3321 = vmatpush1.msra.mxu0 0.0
    %3322 = vmatprep.subr.mxu0 0.0
    %3323 = vmatpush1.msra.mxu0 0.0
    %3324 = vmatprep.mubr.f32.mxu0 0.0
    %3325 = vmatmul.mubr.f32.gmra.mrb[0].mxu0 %v3255
    %v3326 = vpop.f32.mrb[0].mxu0
    %v3327 = vadd.f32 %v3217, %v3326
    %v3328 = vpop.f32.mrb[0].mxu0
    %v3329 = vadd.f32 %v3221, %v3328
    %3330 = vmatprep.mubr.f32.mxu0 0.0
    %3331 = vmatmul.mubr.f32.gmra.mrb[0].mxu0 %v3258
    %v3332 = vpop.f32.mrb[0].mxu0
    %v3333 = vadd.f32 %v3217, %v3332
    %v3334 = vpop.f32.mrb[0].mxu0
    %v3335 = vadd.f32 %v3221, %v3334
    %3336 = vdwg.mxu0
    %3337 = vmatprep.subr.mxu0 %v3199
    %3338 = vmatpush1.msra.mxu0 %v3198
    %3339 = vmatprep.subr.mxu0 %v3207
    %3340 = vmatpush1.msra.mxu0 %v3206
    %3341 = vmatprep.subr.mxu0 0.0
    %3342 = vmatpush1.msra.mxu0 0.0
    %3343 = vmatprep.subr.mxu0 0.0
    %3344 = vmatpush1.msra.mxu0 0.0
    %3345 = vmatprep.subr.mxu0 0.0
    %3346 = vmatpush1.msra.mxu0 0.0
    %3347 = vmatprep.subr.mxu0 0.0
    %3348 = vmatpush1.msra.mxu0 0.0
    %3349 = vmatprep.subr.mxu0 0.0
    %3350 = vmatpush1.msra.mxu0 0.0
    %3351 = vmatprep.subr.mxu0 0.0
    %3352 = vmatpush1.msra.mxu0 0.0
    %3353 = vmatprep.subr.mxu0 0.0
    %3354 = vmatpush1.msra.mxu0 0.0
    %3355 = vmatprep.subr.mxu0 0.0
    %3356 = vmatpush1.msra.mxu0 0.0
    %3357 = vmatprep.subr.mxu0 0.0
    %3358 = vmatpush1.msra.mxu0 0.0
    %3359 = vmatprep.subr.mxu0 0.0
    %3360 = vmatpush1.msra.mxu0 0.0
    %3361 = vmatprep.subr.mxu0 0.0
    %3362 = vmatpush1.msra.mxu0 0.0
    %3363 = vmatprep.subr.mxu0 0.0
    %3364 = vmatpush1.msra.mxu0 0.0
    %3365 = vmatprep.subr.mxu0 0.0
    %3366 = vmatpush1.msra.mxu0 0.0
    %3367 = vmatprep.subr.mxu0 0.0
    %3368 = vmatpush1.msra.mxu0 0.0
    %3369 = vmatprep.subr.mxu0 0.0
    %3370 = vmatpush1.msra.mxu0 0.0
    %3371 = vmatprep.subr.mxu0 0.0
    %3372 = vmatpush1.msra.mxu0 0.0
    %3373 = vmatprep.subr.mxu0 0.0
    %3374 = vmatpush1.msra.mxu0 0.0
    %3375 = vmatprep.subr.mxu0 0.0
    %3376 = vmatpush1.msra.mxu0 0.0
    %3377 = vmatprep.subr.mxu0 0.0
    %3378 = vmatpush1.msra.mxu0 0.0
    %3379 = vmatprep.subr.mxu0 0.0
    %3380 = vmatpush1.msra.mxu0 0.0
    %3381 = vmatprep.subr.mxu0 0.0
    %3382 = vmatpush1.msra.mxu0 0.0
    %3383 = vmatprep.subr.mxu0 0.0
    %3384 = vmatpush1.msra.mxu0 0.0
    %3385 = vmatprep.subr.mxu0 0.0
    %3386 = vmatpush1.msra.mxu0 0.0
    %3387 = vmatprep.subr.mxu0 0.0
    %3388 = vmatpush1.msra.mxu0 0.0
    %3389 = vmatprep.subr.mxu0 0.0
    %3390 = vmatpush1.msra.mxu0 0.0
    %3391 = vmatprep.subr.mxu0 0.0
    %3392 = vmatpush1.msra.mxu0 0.0
    %3393 = vmatprep.subr.mxu0 0.0
    %3394 = vmatpush1.msra.mxu0 0.0
    %3395 = vmatprep.subr.mxu0 0.0
    %3396 = vmatpush1.msra.mxu0 0.0
    %3397 = vmatprep.subr.mxu0 0.0
    %3398 = vmatpush1.msra.mxu0 0.0
    %3399 = vmatprep.subr.mxu0 0.0
    %3400 = vmatpush1.msra.mxu0 0.0
    %3401 = vmatprep.mubr.f32.mxu0 0.0
    %3402 = vmatmul.mubr.f32.gmra.mrb[0].mxu0 %v3255
    %v3403 = vpop.f32.mrb[0].mxu0
    %v3404 = vadd.f32 %v3225, %v3403
    %v3405 = vpop.f32.mrb[0].mxu0
    %v3406 = vadd.f32 %v3229, %v3405
    %3407 = vmatprep.mubr.f32.mxu0 0.0
    %3408 = vmatmul.mubr.f32.gmra.mrb[0].mxu0 %v3258
    %v3409 = vpop.f32.mrb[0].mxu0
    %v3410 = vadd.f32 %v3225, %v3409
    %v3411 = vpop.f32.mrb[0].mxu0
    %v3412 = vadd.f32 %v3229, %v3411
    %3413 = vdwg.mxu0
    %3414 = vmatprep.subr.mxu0 %v3201
    %3415 = vmatpush1.msra.mxu0 %v3200
    %3416 = vmatprep.subr.mxu0 %v3209
    %3417 = vmatpush1.msra.mxu0 %v3208
    %3418 = vmatprep.subr.mxu0 0.0
    %3419 = vmatpush1.msra.mxu0 0.0
    %3420 = vmatprep.subr.mxu0 0.0
    %3421 = vmatpush1.msra.mxu0 0.0
    %3422 = vmatprep.subr.mxu0 0.0
    %3423 = vmatpush1.msra.mxu0 0.0
    %3424 = vmatprep.subr.mxu0 0.0
    %3425 = vmatpush1.msra.mxu0 0.0
    %3426 = vmatprep.subr.mxu0 0.0
    %3427 = vmatpush1.msra.mxu0 0.0
    %3428 = vmatprep.subr.mxu0 0.0
    %3429 = vmatpush1.msra.mxu0 0.0
    %3430 = vmatprep.subr.mxu0 0.0
    %3431 = vmatpush1.msra.mxu0 0.0
    %3432 = vmatprep.subr.mxu0 0.0
    %3433 = vmatpush1.msra.mxu0 0.0
    %3434 = vmatprep.subr.mxu0 0.0
    %3435 = vmatpush1.msra.mxu0 0.0
    %3436 = vmatprep.subr.mxu0 0.0
    %3437 = vmatpush1.msra.mxu0 0.0
    %3438 = vmatprep.subr.mxu0 0.0
    %3439 = vmatpush1.msra.mxu0 0.0
    %3440 = vmatprep.subr.mxu0 0.0
    %3441 = vmatpush1.msra.mxu0 0.0
    %3442 = vmatprep.subr.mxu0 0.0
    %3443 = vmatpush1.msra.mxu0 0.0
    %3444 = vmatprep.subr.mxu0 0.0
    %3445 = vmatpush1.msra.mxu0 0.0
    %3446 = vmatprep.subr.mxu0 0.0
    %3447 = vmatpush1.msra.mxu0 0.0
    %3448 = vmatprep.subr.mxu0 0.0
    %3449 = vmatpush1.msra.mxu0 0.0
    %3450 = vmatprep.subr.mxu0 0.0
    %3451 = vmatpush1.msra.mxu0 0.0
    %3452 = vmatprep.subr.mxu0 0.0
    %3453 = vmatpush1.msra.mxu0 0.0
    %3454 = vmatprep.subr.mxu0 0.0
    %3455 = vmatpush1.msra.mxu0 0.0
    %3456 = vmatprep.subr.mxu0 0.0
    %3457 = vmatpush1.msra.mxu0 0.0
    %3458 = vmatprep.subr.mxu0 0.0
    %3459 = vmatpush1.msra.mxu0 0.0
    %3460 = vmatprep.subr.mxu0 0.0
    %3461 = vmatpush1.msra.mxu0 0.0
    %3462 = vmatprep.subr.mxu0 0.0
    %3463 = vmatpush1.msra.mxu0 0.0
    %3464 = vmatprep.subr.mxu0 0.0
    %3465 = vmatpush1.msra.mxu0 0.0
    %3466 = vmatprep.subr.mxu0 0.0
    %3467 = vmatpush1.msra.mxu0 0.0
    %3468 = vmatprep.subr.mxu0 0.0
    %3469 = vmatpush1.msra.mxu0 0.0
    %3470 = vmatprep.subr.mxu0 0.0
    %3471 = vmatpush1.msra.mxu0 0.0
    %3472 = vmatprep.subr.mxu0 0.0
    %3473 = vmatpush1.msra.mxu0 0.0
    %3474 = vmatprep.subr.mxu0 0.0
    %3475 = vmatpush1.msra.mxu0 0.0
    %3476 = vmatprep.subr.mxu0 0.0
    %3477 = vmatpush1.msra.mxu0 0.0
    %3478 = vmatprep.mubr.f32.mxu0 0.0
    %3479 = vmatmul.mubr.f32.gmra.mrb[0].mxu0 %v3255
    %v3480 = vpop.f32.mrb[0].mxu0
    %v3481 = vadd.f32 %v3233, %v3480
    %v3482 = vpop.f32.mrb[0].mxu0
    %v3483 = vadd.f32 %v3237, %v3482
    %3484 = vmatprep.mubr.f32.mxu0 0.0
    %3485 = vmatmul.mubr.f32.gmra.mrb[0].mxu0 %v3258
    %v3486 = vpop.f32.mrb[0].mxu0
    %v3487 = vadd.f32 %v3233, %v3486
    %v3488 = vpop.f32.mrb[0].mxu0
    %v3489 = vadd.f32 %v3237, %v3488
    %3490 = vdwg.mxu0
    %3491 = vmatprep.subr.mxu0 %v3203
    %3492 = vmatpush1.msra.mxu0 %v3202
    %3493 = vmatprep.subr.mxu0 %v3211
    %3494 = vmatpush1.msra.mxu0 %v3210
    %3495 = vmatprep.subr.mxu0 0.0
    %3496 = vmatpush1.msra.mxu0 0.0
    %3497 = vmatprep.subr.mxu0 0.0
    %3498 = vmatpush1.msra.mxu0 0.0
    %3499 = vmatprep.subr.mxu0 0.0
    %3500 = vmatpush1.msra.mxu0 0.0
    %3501 = vmatprep.subr.mxu0 0.0
    %3502 = vmatpush1.msra.mxu0 0.0
    %3503 = vmatprep.subr.mxu0 0.0
    %3504 = vmatpush1.msra.mxu0 0.0
    %3505 = vmatprep.subr.mxu0 0.0
    %3506 = vmatpush1.msra.mxu0 0.0
    %3507 = vmatprep.subr.mxu0 0.0
    %3508 = vmatpush1.msra.mxu0 0.0
    %3509 = vmatprep.subr.mxu0 0.0
    %3510 = vmatpush1.msra.mxu0 0.0
    %3511 = vmatprep.subr.mxu0 0.0
    %3512 = vmatpush1.msra.mxu0 0.0
    %3513 = vmatprep.subr.mxu0 0.0
    %3514 = vmatpush1.msra.mxu0 0.0
    %3515 = vmatprep.subr.mxu0 0.0
    %3516 = vmatpush1.msra.mxu0 0.0
    %3517 = vmatprep.subr.mxu0 0.0
    %3518 = vmatpush1.msra.mxu0 0.0
    %3519 = vmatprep.subr.mxu0 0.0
    %3520 = vmatpush1.msra.mxu0 0.0
    %3521 = vmatprep.subr.mxu0 0.0
    %3522 = vmatpush1.msra.mxu0 0.0
    %3523 = vmatprep.subr.mxu0 0.0
    %3524 = vmatpush1.msra.mxu0 0.0
    %3525 = vmatprep.subr.mxu0 0.0
    %3526 = vmatpush1.msra.mxu0 0.0
    %3527 = vmatprep.subr.mxu0 0.0
    %3528 = vmatpush1.msra.mxu0 0.0
    %3529 = vmatprep.subr.mxu0 0.0
    %3530 = vmatpush1.msra.mxu0 0.0
    %3531 = vmatprep.subr.mxu0 0.0
    %3532 = vmatpush1.msra.mxu0 0.0
    %3533 = vmatprep.subr.mxu0 0.0
    %3534 = vmatpush1.msra.mxu0 0.0
    %3535 = vmatprep.subr.mxu0 0.0
    %3536 = vmatpush1.msra.mxu0 0.0
    %3537 = vmatprep.subr.mxu0 0.0
    %3538 = vmatpush1.msra.mxu0 0.0
    %3539 = vmatprep.subr.mxu0 0.0
    %3540 = vmatpush1.msra.mxu0 0.0
    %3541 = vmatprep.subr.mxu0 0.0
    %3542 = vmatpush1.msra.mxu0 0.0
    %3543 = vmatprep.subr.mxu0 0.0
    %3544 = vmatpush1.msra.mxu0 0.0
    %3545 = vmatprep.subr.mxu0 0.0
    %3546 = vmatpush1.msra.mxu0 0.0
    %3547 = vmatprep.subr.mxu0 0.0
    %3548 = vmatpush1.msra.mxu0 0.0
    %3549 = vmatprep.subr.mxu0 0.0
    %3550 = vmatpush1.msra.mxu0 0.0
    %3551 = vmatprep.subr.mxu0 0.0
    %3552 = vmatpush1.msra.mxu0 0.0
    %3553 = vmatprep.subr.mxu0 0.0
    %3554 = vmatpush1.msra.mxu0 0.0
    %3555 = vmatprep.mubr.f32.mxu0 0.0
    %3556 = vmatmul.mubr.f32.gmra.mrb[0].mxu0 %v3255
    %v3557 = vpop.f32.mrb[0].mxu0
    %v3558 = vadd.f32 %v3241, %v3557
    %v3559 = vpop.f32.mrb[0].mxu0
    %v3560 = vadd.f32 %v3245, %v3559
    %3561 = vmatprep.mubr.f32.mxu0 0.0
    %3562 = vmatmul.mubr.f32.gmra.mrb[0].mxu0 %v3258
    %v3563 = vpop.f32.mrb[0].mxu0
    %v3564 = vadd.f32 %v3241, %v3563
    %v3565 = vpop.f32.mrb[0].mxu0
    %v3566 = vadd.f32 %v3245, %v3565
    %3567 = vdwg.mxu0
    %v3568 = vld [vmem:[#allocation34] sm:$0xff]
    %v3569 = vld [vmem:[#allocation34 + $0x8] sm:$0xff]
    %v3570 = vld [vmem:[#allocation34 + $0x10] sm:$0xff]
    %v3571 = vld [vmem:[#allocation34 + $0x18] sm:$0xff]
    %v3572 = vld [vmem:[#allocation35] sm:$0x1]
    %v3574 = vlaneseq
    %v3575 = vshrl.u32 %v3574, 7
    %v3576 = vsub.s32 0, %v3575
    %v3577 = vrot.slane %v3572, %v3576
    %v3580 = vsel %vm797, %v3061, 0
    %3582 = vmatprep.subr.mxu0 0.0
    %3583 = vmatpush1.msra.mxu0 %v3568
    %3584 = vmatprep.subr.mxu0 0.0
    %3585 = vmatpush1.msra.mxu0 %v3569
    %3586 = vmatprep.subr.mxu0 0.0
    %3587 = vmatpush1.msra.mxu0 %v3570
    %3588 = vmatprep.subr.mxu0 0.0
    %3589 = vmatpush1.msra.mxu0 %v3571
    %3590 = vmatprep.subr.mxu0 0.0
    %3591 = vmatpush1.msra.mxu0 0.0
    %3592 = vmatprep.subr.mxu0 0.0
    %3593 = vmatpush1.msra.mxu0 0.0
    %3594 = vmatprep.subr.mxu0 0.0
    %3595 = vmatpush1.msra.mxu0 0.0
    %3596 = vmatprep.subr.mxu0 0.0
    %3597 = vmatpush1.msra.mxu0 0.0
    %3598 = vmatprep.subr.mxu0 0.0
    %3599 = vmatpush1.msra.mxu0 0.0
    %3600 = vmatprep.subr.mxu0 0.0
    %3601 = vmatpush1.msra.mxu0 0.0
    %3602 = vmatprep.subr.mxu0 0.0
    %3603 = vmatpush1.msra.mxu0 0.0
    %3604 = vmatprep.subr.mxu0 0.0
    %3605 = vmatpush1.msra.mxu0 0.0
    %3606 = vmatprep.subr.mxu0 0.0
    %3607 = vmatpush1.msra.mxu0 0.0
    %3608 = vmatprep.subr.mxu0 0.0
    %3609 = vmatpush1.msra.mxu0 0.0
    %3610 = vmatprep.subr.mxu0 0.0
    %3611 = vmatpush1.msra.mxu0 0.0
    %3612 = vmatprep.subr.mxu0 0.0
    %3613 = vmatpush1.msra.mxu0 0.0
    %3614 = vmatprep.subr.mxu0 0.0
    %3615 = vmatpush1.msra.mxu0 0.0
    %3616 = vmatprep.subr.mxu0 0.0
    %3617 = vmatpush1.msra.mxu0 0.0
    %3618 = vmatprep.subr.mxu0 0.0
    %3619 = vmatpush1.msra.mxu0 0.0
    %3620 = vmatprep.subr.mxu0 0.0
    %3621 = vmatpush1.msra.mxu0 0.0
    %3622 = vmatprep.subr.mxu0 0.0
    %3623 = vmatpush1.msra.mxu0 0.0
    %3624 = vmatprep.subr.mxu0 0.0
    %3625 = vmatpush1.msra.mxu0 0.0
    %3626 = vmatprep.subr.mxu0 0.0
    %3627 = vmatpush1.msra.mxu0 0.0
    %3628 = vmatprep.subr.mxu0 0.0
    %3629 = vmatpush1.msra.mxu0 0.0
    %3630 = vmatprep.subr.mxu0 0.0
    %3631 = vmatpush1.msra.mxu0 0.0
    %3632 = vmatprep.subr.mxu0 0.0
    %3633 = vmatpush1.msra.mxu0 0.0
    %3634 = vmatprep.subr.mxu0 0.0
    %3635 = vmatpush1.msra.mxu0 0.0
    %3636 = vmatprep.subr.mxu0 0.0
    %3637 = vmatpush1.msra.mxu0 0.0
    %3638 = vmatprep.subr.mxu0 0.0
    %3639 = vmatpush1.msra.mxu0 0.0
    %3640 = vmatprep.subr.mxu0 0.0
    %3641 = vmatpush1.msra.mxu0 0.0
    %3642 = vmatprep.subr.mxu0 0.0
    %3643 = vmatpush1.msra.mxu0 0.0
    %3644 = vmatprep.subr.mxu0 0.0
    %3645 = vmatpush1.msra.mxu0 0.0
    %3646 = vmatprep.mubr.f32.mxu0 0.0
    %3647 = vmatmul.mubr.f32.gmra.mrb[0].mxu0 %v3580
    %v3648 = vpop.f32.mrb[0].mxu0
    %v3649 = vadd.f32 %v3577, %v3648
    %v3650 = vpop.f32.mrb[0].mxu0
    %3651 = vdwg.mxu0
    %3652 = vmatprep.subr.mxu0 0.0
    %3653 = vmatpush1.msra.mxu0 %v3649
    %3654 = vmatprep.subr.mxu0 0.0
    %3655 = vmatpush1.msra.mxu0 0.0
    %3656 = vmatprep.subr.mxu0 0.0
    %3657 = vmatpush1.msra.mxu0 0.0
    %3658 = vmatprep.subr.mxu0 0.0
    %3659 = vmatpush1.msra.mxu0 0.0
    %3660 = vmatprep.subr.mxu0 0.0
    %3661 = vmatpush1.msra.mxu0 0.0
    %3662 = vmatprep.subr.mxu0 0.0
    %3663 = vmatpush1.msra.mxu0 0.0
    %3664 = vmatprep.subr.mxu0 0.0
    %3665 = vmatpush1.msra.mxu0 0.0
    %3666 = vmatprep.subr.mxu0 0.0
    %3667 = vmatpush1.msra.mxu0 0.0
    %3668 = vmatprep.subr.mxu0 0.0
    %3669 = vmatpush1.msra.mxu0 0.0
    %3670 = vmatprep.subr.mxu0 0.0
    %3671 = vmatpush1.msra.mxu0 0.0
    %3672 = vmatprep.subr.mxu0 0.0
    %3673 = vmatpush1.msra.mxu0 0.0
    %3674 = vmatprep.subr.mxu0 0.0
    %3675 = vmatpush1.msra.mxu0 0.0
    %3676 = vmatprep.subr.mxu0 0.0
    %3677 = vmatpush1.msra.mxu0 0.0
    %3678 = vmatprep.subr.mxu0 0.0
    %3679 = vmatpush1.msra.mxu0 0.0
    %3680 = vmatprep.subr.mxu0 0.0
    %3681 = vmatpush1.msra.mxu0 0.0
    %3682 = vmatprep.subr.mxu0 0.0
    %3683 = vmatpush1.msra.mxu0 0.0
    %3684 = vmatprep.subr.mxu0 0.0
    %3685 = vmatpush1.msra.mxu0 0.0
    %3686 = vmatprep.subr.mxu0 0.0
    %3687 = vmatpush1.msra.mxu0 0.0
    %3688 = vmatprep.subr.mxu0 0.0
    %3689 = vmatpush1.msra.mxu0 0.0
    %3690 = vmatprep.subr.mxu0 0.0
    %3691 = vmatpush1.msra.mxu0 0.0
    %3692 = vmatprep.subr.mxu0 0.0
    %3693 = vmatpush1.msra.mxu0 0.0
    %3694 = vmatprep.subr.mxu0 0.0
    %3695 = vmatpush1.msra.mxu0 0.0
    %3696 = vmatprep.subr.mxu0 0.0
    %3697 = vmatpush1.msra.mxu0 0.0
    %3698 = vmatprep.subr.mxu0 0.0
    %3699 = vmatpush1.msra.mxu0 0.0
    %3700 = vmatprep.subr.mxu0 0.0
    %3701 = vmatpush1.msra.mxu0 0.0
    %3702 = vmatprep.subr.mxu0 0.0
    %3703 = vmatpush1.msra.mxu0 0.0
    %3704 = vmatprep.subr.mxu0 0.0
    %3705 = vmatpush1.msra.mxu0 0.0
    %3706 = vmatprep.subr.mxu0 0.0
    %3707 = vmatpush1.msra.mxu0 0.0
    %3708 = vmatprep.subr.mxu0 0.0
    %3709 = vmatpush1.msra.mxu0 0.0
    %3710 = vmatprep.subr.mxu0 0.0
    %3711 = vmatpush1.msra.mxu0 0.0
    %3712 = vmatprep.subr.mxu0 0.0
    %3713 = vmatpush1.msra.mxu0 0.0
    %3714 = vmatprep.subr.mxu0 0.0
    %3715 = vmatpush1.msra.mxu0 0.0
    %3716 = vmatprep.mubr.f32.mxu0 0.0
    %3717 = vmatmul.mubr.f32.gmra.mrb[0].mxu0 %v1020
    %v3718 = vpop.f32.mrb[0].mxu0
    %v3719 = vadd.f32 0.0, %v3718
    %v3720 = vpop.f32.mrb[0].mxu0
    %3721 = vmatprep.mubr.f32.mxu0 0.0
    %3722 = vmatmul.mubr.f32.gmra.mrb[0].mxu0 %v1023
    %v3723 = vpop.f32.mrb[0].mxu0
    %v3724 = vadd.f32 0.0, %v3723
    %v3725 = vpop.f32.mrb[0].mxu0
    %3726 = vdwg.mxu0
    %3728 = vrot.lane.b32.xlu0 %v3649, 96
    %v3729 = vpop.permute.xlu0 %3728
    %3731 = vmatprep.subr.mxu0 0.0
    %3732 = vmatpush1.msra.mxu0 %v3729
    %3733 = vmatprep.subr.mxu0 0.0
    %3734 = vmatpush1.msra.mxu0 0.0
    %3735 = vmatprep.subr.mxu0 0.0
    %3736 = vmatpush1.msra.mxu0 0.0
    %3737 = vmatprep.subr.mxu0 0.0
    %3738 = vmatpush1.msra.mxu0 0.0
    %3739 = vmatprep.subr.mxu0 0.0
    %3740 = vmatpush1.msra.mxu0 0.0
    %3741 = vmatprep.subr.mxu0 0.0
    %3742 = vmatpush1.msra.mxu0 0.0
    %3743 = vmatprep.subr.mxu0 0.0
    %3744 = vmatpush1.msra.mxu0 0.0
    %3745 = vmatprep.subr.mxu0 0.0
    %3746 = vmatpush1.msra.mxu0 0.0
    %3747 = vmatprep.subr.mxu0 0.0
    %3748 = vmatpush1.msra.mxu0 0.0
    %3749 = vmatprep.subr.mxu0 0.0
    %3750 = vmatpush1.msra.mxu0 0.0
    %3751 = vmatprep.subr.mxu0 0.0
    %3752 = vmatpush1.msra.mxu0 0.0
    %3753 = vmatprep.subr.mxu0 0.0
    %3754 = vmatpush1.msra.mxu0 0.0
    %3755 = vmatprep.subr.mxu0 0.0
    %3756 = vmatpush1.msra.mxu0 0.0
    %3757 = vmatprep.subr.mxu0 0.0
    %3758 = vmatpush1.msra.mxu0 0.0
    %3759 = vmatprep.subr.mxu0 0.0
    %3760 = vmatpush1.msra.mxu0 0.0
    %3761 = vmatprep.subr.mxu0 0.0
    %3762 = vmatpush1.msra.mxu0 0.0
    %3763 = vmatprep.subr.mxu0 0.0
    %3764 = vmatpush1.msra.mxu0 0.0
    %3765 = vmatprep.subr.mxu0 0.0
    %3766 = vmatpush1.msra.mxu0 0.0
    %3767 = vmatprep.subr.mxu0 0.0
    %3768 = vmatpush1.msra.mxu0 0.0
    %3769 = vmatprep.subr.mxu0 0.0
    %3770 = vmatpush1.msra.mxu0 0.0
    %3771 = vmatprep.subr.mxu0 0.0
    %3772 = vmatpush1.msra.mxu0 0.0
    %3773 = vmatprep.subr.mxu0 0.0
    %3774 = vmatpush1.msra.mxu0 0.0
    %3775 = vmatprep.subr.mxu0 0.0
    %3776 = vmatpush1.msra.mxu0 0.0
    %3777 = vmatprep.subr.mxu0 0.0
    %3778 = vmatpush1.msra.mxu0 0.0
    %3779 = vmatprep.subr.mxu0 0.0
    %3780 = vmatpush1.msra.mxu0 0.0
    %3781 = vmatprep.subr.mxu0 0.0
    %3782 = vmatpush1.msra.mxu0 0.0
    %3783 = vmatprep.subr.mxu0 0.0
    %3784 = vmatpush1.msra.mxu0 0.0
    %3785 = vmatprep.subr.mxu0 0.0
    %3786 = vmatpush1.msra.mxu0 0.0
    %3787 = vmatprep.subr.mxu0 0.0
    %3788 = vmatpush1.msra.mxu0 0.0
    %3789 = vmatprep.subr.mxu0 0.0
    %3790 = vmatpush1.msra.mxu0 0.0
    %3791 = vmatprep.subr.mxu0 0.0
    %3792 = vmatpush1.msra.mxu0 0.0
    %3793 = vmatprep.subr.mxu0 0.0
    %3794 = vmatpush1.msra.mxu0 0.0
    %3795 = vmatprep.mubr.f32.mxu0 0.0
    %3796 = vmatmul.mubr.f32.gmra.mrb[0].mxu0 %v939
    %v3797 = vpop.f32.mrb[0].mxu0
    %v3798 = vadd.f32 0.0, %v3797
    %v3799 = vpop.f32.mrb[0].mxu0
    %3800 = vmatprep.mubr.f32.mxu0 0.0
    %3801 = vmatmul.mubr.f32.gmra.mrb[0].mxu0 %v942
    %v3802 = vpop.f32.mrb[0].mxu0
    %v3803 = vadd.f32 0.0, %v3802
    %v3804 = vpop.f32.mrb[0].mxu0
    %3805 = vdwg.mxu0
    %3806 = vmatprep.subr.mxu0 0.0
    %3807 = vmatpush1.msra.mxu0 %v3061
    %3808 = vmatprep.subr.mxu0 0.0
    %3809 = vmatpush1.msra.mxu0 0.0
    %3810 = vmatprep.subr.mxu0 0.0
    %3811 = vmatpush1.msra.mxu0 0.0
    %3812 = vmatprep.subr.mxu0 0.0
    %3813 = vmatpush1.msra.mxu0 0.0
    %3814 = vmatprep.subr.mxu0 0.0
    %3815 = vmatpush1.msra.mxu0 0.0
    %3816 = vmatprep.subr.mxu0 0.0
    %3817 = vmatpush1.msra.mxu0 0.0
    %3818 = vmatprep.subr.mxu0 0.0
    %3819 = vmatpush1.msra.mxu0 0.0
    %3820 = vmatprep.subr.mxu0 0.0
    %3821 = vmatpush1.msra.mxu0 0.0
    %3822 = vmatprep.subr.mxu0 0.0
    %3823 = vmatpush1.msra.mxu0 0.0
    %3824 = vmatprep.subr.mxu0 0.0
    %3825 = vmatpush1.msra.mxu0 0.0
    %3826 = vmatprep.subr.mxu0 0.0
    %3827 = vmatpush1.msra.mxu0 0.0
    %3828 = vmatprep.subr.mxu0 0.0
    %3829 = vmatpush1.msra.mxu0 0.0
    %3830 = vmatprep.subr.mxu0 0.0
    %3831 = vmatpush1.msra.mxu0 0.0
    %3832 = vmatprep.subr.mxu0 0.0
    %3833 = vmatpush1.msra.mxu0 0.0
    %3834 = vmatprep.subr.mxu0 0.0
    %3835 = vmatpush1.msra.mxu0 0.0
    %3836 = vmatprep.subr.mxu0 0.0
    %3837 = vmatpush1.msra.mxu0 0.0
    %3838 = vmatprep.subr.mxu0 0.0
    %3839 = vmatpush1.msra.mxu0 0.0
    %3840 = vmatprep.subr.mxu0 0.0
    %3841 = vmatpush1.msra.mxu0 0.0
    %3842 = vmatprep.subr.mxu0 0.0
    %3843 = vmatpush1.msra.mxu0 0.0
    %3844 = vmatprep.subr.mxu0 0.0
    %3845 = vmatpush1.msra.mxu0 0.0
    %3846 = vmatprep.subr.mxu0 0.0
    %3847 = vmatpush1.msra.mxu0 0.0
    %3848 = vmatprep.subr.mxu0 0.0
    %3849 = vmatpush1.msra.mxu0 0.0
    %3850 = vmatprep.subr.mxu0 0.0
    %3851 = vmatpush1.msra.mxu0 0.0
    %3852 = vmatprep.subr.mxu0 0.0
    %3853 = vmatpush1.msra.mxu0 0.0
    %3854 = vmatprep.subr.mxu0 0.0
    %3855 = vmatpush1.msra.mxu0 0.0
    %3856 = vmatprep.subr.mxu0 0.0
    %3857 = vmatpush1.msra.mxu0 0.0
    %3858 = vmatprep.subr.mxu0 0.0
    %3859 = vmatpush1.msra.mxu0 0.0
    %3860 = vmatprep.subr.mxu0 0.0
    %3861 = vmatpush1.msra.mxu0 0.0
    %3862 = vmatprep.subr.mxu0 0.0
    %3863 = vmatpush1.msra.mxu0 0.0
    %3864 = vmatprep.subr.mxu0 0.0
    %3865 = vmatpush1.msra.mxu0 0.0
    %3866 = vmatprep.subr.mxu0 0.0
    %3867 = vmatpush1.msra.mxu0 0.0
    %3868 = vmatprep.subr.mxu0 0.0
    %3869 = vmatpush1.msra.mxu0 0.0
    %3870 = vmatprep.mubr.f32.mxu0 0.0
    %3871 = vmatmul.mubr.f32.gmra.mrb[0].mxu0 %v939
    %v3872 = vpop.f32.mrb[0].mxu0
    %v3873 = vadd.f32 0.0, %v3872
    %v3874 = vpop.f32.mrb[0].mxu0
    %3875 = vmatprep.mubr.f32.mxu0 0.0
    %3876 = vmatmul.mubr.f32.gmra.mrb[0].mxu0 %v942
    %v3877 = vpop.f32.mrb[0].mxu0
    %v3878 = vadd.f32 0.0, %v3877
    %v3879 = vpop.f32.mrb[0].mxu0
    %3880 = vdwg.mxu0
    %v3881 = vmul.f32 %v3719, %v3798
    %v3882 = vmul.f32 %v3724, %v3803
    %v3883 = vsel %vm797, %v3881, 0.0
    %3884 = vadd.xlane.f32.xlu0 %v3883
    %v3885 = vpop.xlane.xlu0 %3884
    %v3886 = vsel %vm797, %v3882, 0.0
    %3887 = vadd.xlane.f32.xlu0 %v3886
    %v3888 = vpop.xlane.xlu0 %3887
    %v3889 = vmul.f32 %v3885, 0.17677669
    %v3890 = vmul.f32 %v3888, 0.17677669
    %v3891 = vsel %vm2270, %v3889, -1e+30
    %v3892 = vsel %vm2271, %v3890, -1e+30
    %v3893 = vsel %vm937, %v3891, -inf
    %v3894 = vsel %vm937, %v3892, -inf
    %v3895 = vmax.f32 %v3893, %v3894
    %v3896 = vrot.slane %v3895, 4
    %v3897 = vmax.f32 %v3895, %v3896
    %v3898 = vrot.slane %v3897, 2
    %v3899 = vmax.f32 %v3897, %v3898
    %v3900 = vrot.slane %v3899, 1
    %v3901 = vmax.f32 %v3899, %v3900
    %v3902 = vmul.f32 %v689, %v3901
    %v3903 = vmul.f32 %v690, %v3901
    %v3904 = vsel %vm937, %v3902, 0.0
    %3905 = vadd.xlane.f32.xlu0 %v3904
    %v3906 = vpop.xlane.xlu0 %3905
    %v3907 = vsel %vm937, %v3903, 0.0
    %3908 = vadd.xlane.f32.xlu0 %v3907
    %v3909 = vpop.xlane.xlu0 %3908
    %v3910 = vsub.f32 %v3889, %v3906
    %v3911 = vsub.f32 %v3890, %v3909
    %v3912 = vmul.f32 %v3910, 1.442695
    %v3913 = vpow.pop %v3912
    %v3914 = vmul.f32 %v3911, 1.442695
    %v3915 = vpow.pop %v3914
    %v3916 = vmul.f32 %v689, %v3913
    %v3917 = vmul.f32 %v690, %v3915
    %v3918 = vsel %vm937, %v3916, 0.0
    %v3919 = vsel %vm937, %v3917, 0.0
    %v3920 = vadd.f32 %v3918, %v3919
    %v3921 = vrot.slane %v3920, 4
    %v3922 = vadd.f32 %v3920, %v3921
    %v3923 = vrot.slane %v3922, 2
    %v3924 = vadd.f32 %v3922, %v3923
    %v3925 = vrot.slane %v3924, 1
    %v3926 = vadd.f32 %v3924, %v3925
    %v3927 = vmul.f32 %v689, %v3926
    %v3928 = vmul.f32 %v690, %v3926
    %v3929 = vsel %vm937, %v3927, 0.0
    %3930 = vadd.xlane.f32.xlu0 %v3929
    %v3931 = vpop.xlane.xlu0 %3930
    %v3932 = vsel %vm937, %v3928, 0.0
    %3933 = vadd.xlane.f32.xlu0 %v3932
    %v3934 = vpop.xlane.xlu0 %3933
    %v3935 = vrcp.pop %v3931
    %v3936 = vmul.f32 %v3913, %v3935
    %v3937 = vrcp.pop %v3934
    %v3938 = vmul.f32 %v3915, %v3937
    %3940 = vset.pattern.permute.xlu0 0
    %3941 = vperm.xlu0 %3940, %v3873
    %v3942 = vpop.permute.xlu0 %3941
    %3945 = vset.pattern.permute.xlu0 0
    %3946 = vperm.xlu0 %3945, %v3878
    %v3947 = vpop.permute.xlu0 %3946
    %v3949 = vmul.f32 %v3942, %v3327
    %v3950 = vmul.f32 %v3947, %v3333
    %v3951 = vadd.f32 %v3949, 0.0
    %v3952 = vadd.f32 %v3950, 0.0
    %3953 = vset.pattern.permute.xlu0 1
    %3954 = vperm.xlu0 %3953, %v3873
    %v3955 = vpop.permute.xlu0 %3954
    %3957 = vset.pattern.permute.xlu0 1
    %3958 = vperm.xlu0 %3957, %v3878
    %v3959 = vpop.permute.xlu0 %3958
    %v3961 = vmul.f32 %v3955, %v3327
    %v3962 = vmul.f32 %v3959, %v3333
    %3965 = vrot.lane.b32.xlu0 %v3961, 96
    %v3966 = vpop.permute.xlu0 %3965
    %3967 = vrot.lane.b32.xlu0 %v3962, 96
    %v3968 = vpop.permute.xlu0 %3967
    %v3971 = vadd.f32 %v3951, %v3966
    %v3972 = vadd.f32 %v3952, %v3968
    %3973 = vset.pattern.permute.xlu0 2
    %3974 = vperm.xlu0 %3973, %v3873
    %v3975 = vpop.permute.xlu0 %3974
    %3977 = vset.pattern.permute.xlu0 2
    %3978 = vperm.xlu0 %3977, %v3878
    %v3979 = vpop.permute.xlu0 %3978
    %v3981 = vmul.f32 %v3975, %v3327
    %v3982 = vmul.f32 %v3979, %v3333
    %3985 = vrot.lane.b32.xlu0 %v3981, 64
    %v3986 = vpop.permute.xlu0 %3985
    %3987 = vrot.lane.b32.xlu0 %v3982, 64
    %v3988 = vpop.permute.xlu0 %3987
    %v3991 = vadd.f32 %v3971, %v3986
    %v3992 = vadd.f32 %v3972, %v3988
    %3993 = vset.pattern.permute.xlu0 3
    %3994 = vperm.xlu0 %3993, %v3873
    %v3995 = vpop.permute.xlu0 %3994
    %3997 = vset.pattern.permute.xlu0 3
    %3998 = vperm.xlu0 %3997, %v3878
    %v3999 = vpop.permute.xlu0 %3998
    %v4001 = vmul.f32 %v3995, %v3327
    %v4002 = vmul.f32 %v3999, %v3333
    %4005 = vrot.lane.b32.xlu0 %v4001, 32
    %v4006 = vpop.permute.xlu0 %4005
    %4007 = vrot.lane.b32.xlu0 %v4002, 32
    %v4008 = vpop.permute.xlu0 %4007
    %v4011 = vadd.f32 %v3991, %v4006
    %v4012 = vadd.f32 %v3992, %v4008
    %4013 = vset.pattern.permute.xlu0 4
    %4014 = vperm.xlu0 %4013, %v3873
    %v4015 = vpop.permute.xlu0 %4014
    %4017 = vset.pattern.permute.xlu0 4
    %4018 = vperm.xlu0 %4017, %v3878
    %v4019 = vpop.permute.xlu0 %4018
    %v4021 = vmul.f32 %v4015, %v3329
    %v4022 = vmul.f32 %v4019, %v3335
    %v4023 = vadd.f32 %v4011, %v4021
    %v4024 = vadd.f32 %v4012, %v4022
    %4025 = vset.pattern.permute.xlu0 5
    %4026 = vperm.xlu0 %4025, %v3873
    %v4027 = vpop.permute.xlu0 %4026
    %4029 = vset.pattern.permute.xlu0 5
    %4030 = vperm.xlu0 %4029, %v3878
    %v4031 = vpop.permute.xlu0 %4030
    %v4033 = vmul.f32 %v4027, %v3329
    %v4034 = vmul.f32 %v4031, %v3335
    %4037 = vrot.lane.b32.xlu0 %v4033, 96
    %v4038 = vpop.permute.xlu0 %4037
    %4039 = vrot.lane.b32.xlu0 %v4034, 96
    %v4040 = vpop.permute.xlu0 %4039
    %v4043 = vadd.f32 %v4023, %v4038
    %v4044 = vadd.f32 %v4024, %v4040
    %4045 = vset.pattern.permute.xlu0 6
    %4046 = vperm.xlu0 %4045, %v3873
    %v4047 = vpop.permute.xlu0 %4046
    %4049 = vset.pattern.permute.xlu0 6
    %4050 = vperm.xlu0 %4049, %v3878
    %v4051 = vpop.permute.xlu0 %4050
    %v4053 = vmul.f32 %v4047, %v3329
    %v4054 = vmul.f32 %v4051, %v3335
    %4057 = vrot.lane.b32.xlu0 %v4053, 64
    %v4058 = vpop.permute.xlu0 %4057
    %4059 = vrot.lane.b32.xlu0 %v4054, 64
    %v4060 = vpop.permute.xlu0 %4059
    %v4063 = vadd.f32 %v4043, %v4058
    %v4064 = vadd.f32 %v4044, %v4060
    %4065 = vset.pattern.permute.xlu0 7
    %4066 = vperm.xlu0 %4065, %v3873
    %v4067 = vpop.permute.xlu0 %4066
    %4069 = vset.pattern.permute.xlu0 7
    %4070 = vperm.xlu0 %4069, %v3878
    %v4071 = vpop.permute.xlu0 %4070
    %v4073 = vmul.f32 %v4067, %v3329
    %v4074 = vmul.f32 %v4071, %v3335
    %4077 = vrot.lane.b32.xlu0 %v4073, 32
    %v4078 = vpop.permute.xlu0 %4077
    %4079 = vrot.lane.b32.xlu0 %v4074, 32
    %v4080 = vpop.permute.xlu0 %4079
    %v4083 = vadd.f32 %v4063, %v4078
    %v4084 = vadd.f32 %v4064, %v4080
    %4085 = vset.pattern.permute.xlu0 8
    %4086 = vperm.xlu0 %4085, %v3873
    %v4087 = vpop.permute.xlu0 %4086
    %4089 = vset.pattern.permute.xlu0 8
    %4090 = vperm.xlu0 %4089, %v3878
    %v4091 = vpop.permute.xlu0 %4090
    %v4093 = vmul.f32 %v4087, %v3404
    %v4094 = vmul.f32 %v4091, %v3410
    %v4095 = vadd.f32 %v4083, %v4093
    %v4096 = vadd.f32 %v4084, %v4094
    %4097 = vset.pattern.permute.xlu0 9
    %4098 = vperm.xlu0 %4097, %v3873
    %v4099 = vpop.permute.xlu0 %4098
    %4101 = vset.pattern.permute.xlu0 9
    %4102 = vperm.xlu0 %4101, %v3878
    %v4103 = vpop.permute.xlu0 %4102
    %v4105 = vmul.f32 %v4099, %v3404
    %v4106 = vmul.f32 %v4103, %v3410
    %4109 = vrot.lane.b32.xlu0 %v4105, 96
    %v4110 = vpop.permute.xlu0 %4109
    %4111 = vrot.lane.b32.xlu0 %v4106, 96
    %v4112 = vpop.permute.xlu0 %4111
    %v4115 = vadd.f32 %v4095, %v4110
    %v4116 = vadd.f32 %v4096, %v4112
    %4117 = vset.pattern.permute.xlu0 10
    %4118 = vperm.xlu0 %4117, %v3873
    %v4119 = vpop.permute.xlu0 %4118
    %4121 = vset.pattern.permute.xlu0 10
    %4122 = vperm.xlu0 %4121, %v3878
    %v4123 = vpop.permute.xlu0 %4122
    %v4125 = vmul.f32 %v4119, %v3404
    %v4126 = vmul.f32 %v4123, %v3410
    %4129 = vrot.lane.b32.xlu0 %v4125, 64
    %v4130 = vpop.permute.xlu0 %4129
    %4131 = vrot.lane.b32.xlu0 %v4126, 64
    %v4132 = vpop.permute.xlu0 %4131
    %v4135 = vadd.f32 %v4115, %v4130
    %v4136 = vadd.f32 %v4116, %v4132
    %4137 = vset.pattern.permute.xlu0 11
    %4138 = vperm.xlu0 %4137, %v3873
    %v4139 = vpop.permute.xlu0 %4138
    %4141 = vset.pattern.permute.xlu0 11
    %4142 = vperm.xlu0 %4141, %v3878
    %v4143 = vpop.permute.xlu0 %4142
    %v4145 = vmul.f32 %v4139, %v3404
    %v4146 = vmul.f32 %v4143, %v3410
    %4149 = vrot.lane.b32.xlu0 %v4145, 32
    %v4150 = vpop.permute.xlu0 %4149
    %4151 = vrot.lane.b32.xlu0 %v4146, 32
    %v4152 = vpop.permute.xlu0 %4151
    %v4155 = vadd.f32 %v4135, %v4150
    %v4156 = vadd.f32 %v4136, %v4152
    %4157 = vset.pattern.permute.xlu0 12
    %4158 = vperm.xlu0 %4157, %v3873
    %v4159 = vpop.permute.xlu0 %4158
    %4161 = vset.pattern.permute.xlu0 12
    %4162 = vperm.xlu0 %4161, %v3878
    %v4163 = vpop.permute.xlu0 %4162
    %v4165 = vmul.f32 %v4159, %v3406
    %v4166 = vmul.f32 %v4163, %v3412
    %v4167 = vadd.f32 %v4155, %v4165
    %v4168 = vadd.f32 %v4156, %v4166
    %4169 = vset.pattern.permute.xlu0 13
    %4170 = vperm.xlu0 %4169, %v3873
    %v4171 = vpop.permute.xlu0 %4170
    %4173 = vset.pattern.permute.xlu0 13
    %4174 = vperm.xlu0 %4173, %v3878
    %v4175 = vpop.permute.xlu0 %4174
    %v4177 = vmul.f32 %v4171, %v3406
    %v4178 = vmul.f32 %v4175, %v3412
    %4181 = vrot.lane.b32.xlu0 %v4177, 96
    %v4182 = vpop.permute.xlu0 %4181
    %4183 = vrot.lane.b32.xlu0 %v4178, 96
    %v4184 = vpop.permute.xlu0 %4183
    %v4187 = vadd.f32 %v4167, %v4182
    %v4188 = vadd.f32 %v4168, %v4184
    %4189 = vset.pattern.permute.xlu0 14
    %4190 = vperm.xlu0 %4189, %v3873
    %v4191 = vpop.permute.xlu0 %4190
    %4193 = vset.pattern.permute.xlu0 14
    %4194 = vperm.xlu0 %4193, %v3878
    %v4195 = vpop.permute.xlu0 %4194
    %v4197 = vmul.f32 %v4191, %v3406
    %v4198 = vmul.f32 %v4195, %v3412
    %4201 = vrot.lane.b32.xlu0 %v4197, 64
    %v4202 = vpop.permute.xlu0 %4201
    %4203 = vrot.lane.b32.xlu0 %v4198, 64
    %v4204 = vpop.permute.xlu0 %4203
    %v4207 = vadd.f32 %v4187, %v4202
    %v4208 = vadd.f32 %v4188, %v4204
    %4209 = vset.pattern.permute.xlu0 15
    %4210 = vperm.xlu0 %4209, %v3873
    %v4211 = vpop.permute.xlu0 %4210
    %4213 = vset.pattern.permute.xlu0 15
    %4214 = vperm.xlu0 %4213, %v3878
    %v4215 = vpop.permute.xlu0 %4214
    %v4217 = vmul.f32 %v4211, %v3406
    %v4218 = vmul.f32 %v4215, %v3412
    %4221 = vrot.lane.b32.xlu0 %v4217, 32
    %v4222 = vpop.permute.xlu0 %4221
    %4223 = vrot.lane.b32.xlu0 %v4218, 32
    %v4224 = vpop.permute.xlu0 %4223
    %v4227 = vadd.f32 %v4207, %v4222
    %v4228 = vadd.f32 %v4208, %v4224
    %4229 = vset.pattern.permute.xlu0 16
    %4230 = vperm.xlu0 %4229, %v3873
    %v4231 = vpop.permute.xlu0 %4230
    %4233 = vset.pattern.permute.xlu0 16
    %4234 = vperm.xlu0 %4233, %v3878
    %v4235 = vpop.permute.xlu0 %4234
    %v4237 = vmul.f32 %v4231, %v3481
    %v4238 = vmul.f32 %v4235, %v3487
    %v4239 = vadd.f32 %v4227, %v4237
    %v4240 = vadd.f32 %v4228, %v4238
    %4241 = vset.pattern.permute.xlu0 17
    %4242 = vperm.xlu0 %4241, %v3873
    %v4243 = vpop.permute.xlu0 %4242
    %4245 = vset.pattern.permute.xlu0 17
    %4246 = vperm.xlu0 %4245, %v3878
    %v4247 = vpop.permute.xlu0 %4246
    %v4249 = vmul.f32 %v4243, %v3481
    %v4250 = vmul.f32 %v4247, %v3487
    %4253 = vrot.lane.b32.xlu0 %v4249, 96
    %v4254 = vpop.permute.xlu0 %4253
    %4255 = vrot.lane.b32.xlu0 %v4250, 96
    %v4256 = vpop.permute.xlu0 %4255
    %v4259 = vadd.f32 %v4239, %v4254
    %v4260 = vadd.f32 %v4240, %v4256
    %4261 = vset.pattern.permute.xlu0 18
    %4262 = vperm.xlu0 %4261, %v3873
    %v4263 = vpop.permute.xlu0 %4262
    %4265 = vset.pattern.permute.xlu0 18
    %4266 = vperm.xlu0 %4265, %v3878
    %v4267 = vpop.permute.xlu0 %4266
    %v4269 = vmul.f32 %v4263, %v3481
    %v4270 = vmul.f32 %v4267, %v3487
    %4273 = vrot.lane.b32.xlu0 %v4269, 64
    %v4274 = vpop.permute.xlu0 %4273
    %4275 = vrot.lane.b32.xlu0 %v4270, 64
    %v4276 = vpop.permute.xlu0 %4275
    %v4279 = vadd.f32 %v4259, %v4274
    %v4280 = vadd.f32 %v4260, %v4276
    %4281 = vset.pattern.permute.xlu0 19
    %4282 = vperm.xlu0 %4281, %v3873
    %v4283 = vpop.permute.xlu0 %4282
    %4285 = vset.pattern.permute.xlu0 19
    %4286 = vperm.xlu0 %4285, %v3878
    %v4287 = vpop.permute.xlu0 %4286
    %v4289 = vmul.f32 %v4283, %v3481
    %v4290 = vmul.f32 %v4287, %v3487
    %4293 = vrot.lane.b32.xlu0 %v4289, 32
    %v4294 = vpop.permute.xlu0 %4293
    %4295 = vrot.lane.b32.xlu0 %v4290, 32
    %v4296 = vpop.permute.xlu0 %4295
    %v4299 = vadd.f32 %v4279, %v4294
    %v4300 = vadd.f32 %v4280, %v4296
    %4301 = vset.pattern.permute.xlu0 20
    %4302 = vperm.xlu0 %4301, %v3873
    %v4303 = vpop.permute.xlu0 %4302
    %4305 = vset.pattern.permute.xlu0 20
    %4306 = vperm.xlu0 %4305, %v3878
    %v4307 = vpop.permute.xlu0 %4306
    %v4309 = vmul.f32 %v4303, %v3483
    %v4310 = vmul.f32 %v4307, %v3489
    %v4311 = vadd.f32 %v4299, %v4309
    %v4312 = vadd.f32 %v4300, %v4310
    %4313 = vset.pattern.permute.xlu0 21
    %4314 = vperm.xlu0 %4313, %v3873
    %v4315 = vpop.permute.xlu0 %4314
    %4317 = vset.pattern.permute.xlu0 21
    %4318 = vperm.xlu0 %4317, %v3878
    %v4319 = vpop.permute.xlu0 %4318
    %v4321 = vmul.f32 %v4315, %v3483
    %v4322 = vmul.f32 %v4319, %v3489
    %4325 = vrot.lane.b32.xlu0 %v4321, 96
    %v4326 = vpop.permute.xlu0 %4325
    %4327 = vrot.lane.b32.xlu0 %v4322, 96
    %v4328 = vpop.permute.xlu0 %4327
    %v4331 = vadd.f32 %v4311, %v4326
    %v4332 = vadd.f32 %v4312, %v4328
    %4333 = vset.pattern.permute.xlu0 22
    %4334 = vperm.xlu0 %4333, %v3873
    %v4335 = vpop.permute.xlu0 %4334
    %4337 = vset.pattern.permute.xlu0 22
    %4338 = vperm.xlu0 %4337, %v3878
    %v4339 = vpop.permute.xlu0 %4338
    %v4341 = vmul.f32 %v4335, %v3483
    %v4342 = vmul.f32 %v4339, %v3489
    %4345 = vrot.lane.b32.xlu0 %v4341, 64
    %v4346 = vpop.permute.xlu0 %4345
    %4347 = vrot.lane.b32.xlu0 %v4342, 64
    %v4348 = vpop.permute.xlu0 %4347
    %v4351 = vadd.f32 %v4331, %v4346
    %v4352 = vadd.f32 %v4332, %v4348
    %4353 = vset.pattern.permute.xlu0 23
    %4354 = vperm.xlu0 %4353, %v3873
    %v4355 = vpop.permute.xlu0 %4354
    %4357 = vset.pattern.permute.xlu0 23
    %4358 = vperm.xlu0 %4357, %v3878
    %v4359 = vpop.permute.xlu0 %4358
    %v4361 = vmul.f32 %v4355, %v3483
    %v4362 = vmul.f32 %v4359, %v3489
    %4365 = vrot.lane.b32.xlu0 %v4361, 32
    %v4366 = vpop.permute.xlu0 %4365
    %4367 = vrot.lane.b32.xlu0 %v4362, 32
    %v4368 = vpop.permute.xlu0 %4367
    %v4371 = vadd.f32 %v4351, %v4366
    %v4372 = vadd.f32 %v4352, %v4368
    %4373 = vset.pattern.permute.xlu0 24
    %4374 = vperm.xlu0 %4373, %v3873
    %v4375 = vpop.permute.xlu0 %4374
    %4377 = vset.pattern.permute.xlu0 24
    %4378 = vperm.xlu0 %4377, %v3878
    %v4379 = vpop.permute.xlu0 %4378
    %v4381 = vmul.f32 %v4375, %v3558
    %v4382 = vmul.f32 %v4379, %v3564
    %v4383 = vadd.f32 %v4371, %v4381
    %v4384 = vadd.f32 %v4372, %v4382
    %4385 = vset.pattern.permute.xlu0 25
    %4386 = vperm.xlu0 %4385, %v3873
    %v4387 = vpop.permute.xlu0 %4386
    %4389 = vset.pattern.permute.xlu0 25
    %4390 = vperm.xlu0 %4389, %v3878
    %v4391 = vpop.permute.xlu0 %4390
    %v4393 = vmul.f32 %v4387, %v3558
    %v4394 = vmul.f32 %v4391, %v3564
    %4397 = vrot.lane.b32.xlu0 %v4393, 96
    %v4398 = vpop.permute.xlu0 %4397
    %4399 = vrot.lane.b32.xlu0 %v4394, 96
    %v4400 = vpop.permute.xlu0 %4399
    %v4403 = vadd.f32 %v4383, %v4398
    %v4404 = vadd.f32 %v4384, %v4400
    %4405 = vset.pattern.permute.xlu0 26
    %4406 = vperm.xlu0 %4405, %v3873
    %v4407 = vpop.permute.xlu0 %4406
    %4409 = vset.pattern.permute.xlu0 26
    %4410 = vperm.xlu0 %4409, %v3878
    %v4411 = vpop.permute.xlu0 %4410
    %v4413 = vmul.f32 %v4407, %v3558
    %v4414 = vmul.f32 %v4411, %v3564
    %4417 = vrot.lane.b32.xlu0 %v4413, 64
    %v4418 = vpop.permute.xlu0 %4417
    %4419 = vrot.lane.b32.xlu0 %v4414, 64
    %v4420 = vpop.permute.xlu0 %4419
    %v4423 = vadd.f32 %v4403, %v4418
    %v4424 = vadd.f32 %v4404, %v4420
    %4425 = vset.pattern.permute.xlu0 27
    %4426 = vperm.xlu0 %4425, %v3873
    %v4427 = vpop.permute.xlu0 %4426
    %4429 = vset.pattern.permute.xlu0 27
    %4430 = vperm.xlu0 %4429, %v3878
    %v4431 = vpop.permute.xlu0 %4430
    %v4433 = vmul.f32 %v4427, %v3558
    %v4434 = vmul.f32 %v4431, %v3564
    %4437 = vrot.lane.b32.xlu0 %v4433, 32
    %v4438 = vpop.permute.xlu0 %4437
    %4439 = vrot.lane.b32.xlu0 %v4434, 32
    %v4440 = vpop.permute.xlu0 %4439
    %v4443 = vadd.f32 %v4423, %v4438
    %v4444 = vadd.f32 %v4424, %v4440
    %4445 = vset.pattern.permute.xlu0 28
    %4446 = vperm.xlu0 %4445, %v3873
    %v4447 = vpop.permute.xlu0 %4446
    %4449 = vset.pattern.permute.xlu0 28
    %4450 = vperm.xlu0 %4449, %v3878
    %v4451 = vpop.permute.xlu0 %4450
    %v4453 = vmul.f32 %v4447, %v3560
    %v4454 = vmul.f32 %v4451, %v3566
    %v4455 = vadd.f32 %v4443, %v4453
    %v4456 = vadd.f32 %v4444, %v4454
    %4457 = vset.pattern.permute.xlu0 29
    %4458 = vperm.xlu0 %4457, %v3873
    %v4459 = vpop.permute.xlu0 %4458
    %4461 = vset.pattern.permute.xlu0 29
    %4462 = vperm.xlu0 %4461, %v3878
    %v4463 = vpop.permute.xlu0 %4462
    %v4465 = vmul.f32 %v4459, %v3560
    %v4466 = vmul.f32 %v4463, %v3566
    %4469 = vrot.lane.b32.xlu0 %v4465, 96
    %v4470 = vpop.permute.xlu0 %4469
    %4471 = vrot.lane.b32.xlu0 %v4466, 96
    %v4472 = vpop.permute.xlu0 %4471
    %v4475 = vadd.f32 %v4455, %v4470
    %v4476 = vadd.f32 %v4456, %v4472
    %4477 = vset.pattern.permute.xlu0 30
    %4478 = vperm.xlu0 %4477, %v3873
    %v4479 = vpop.permute.xlu0 %4478
    %4481 = vset.pattern.permute.xlu0 30
    %4482 = vperm.xlu0 %4481, %v3878
    %v4483 = vpop.permute.xlu0 %4482
    %v4485 = vmul.f32 %v4479, %v3560
    %v4486 = vmul.f32 %v4483, %v3566
    %4489 = vrot.lane.b32.xlu0 %v4485, 64
    %v4490 = vpop.permute.xlu0 %4489
    %4491 = vrot.lane.b32.xlu0 %v4486, 64
    %v4492 = vpop.permute.xlu0 %4491
    %v4495 = vadd.f32 %v4475, %v4490
    %v4496 = vadd.f32 %v4476, %v4492
    %4497 = vset.pattern.permute.xlu0 31
    %4498 = vperm.xlu0 %4497, %v3873
    %v4499 = vpop.permute.xlu0 %4498
    %4501 = vset.pattern.permute.xlu0 31
    %4502 = vperm.xlu0 %4501, %v3878
    %v4503 = vpop.permute.xlu0 %4502
    %v4505 = vmul.f32 %v4499, %v3560
    %v4506 = vmul.f32 %v4503, %v3566
    %4509 = vrot.lane.b32.xlu0 %v4505, 32
    %v4510 = vpop.permute.xlu0 %4509
    %4511 = vrot.lane.b32.xlu0 %v4506, 32
    %v4512 = vpop.permute.xlu0 %4511
    %v4515 = vadd.f32 %v4495, %v4510
    %v4516 = vadd.f32 %v4496, %v4512
    %v4517 = vmul.f32 %v4515, %v3936
    %v4518 = vmul.f32 %v4516, %v3938
    %4519 = vrot.lane.b32.xlu0 %v3649, 64
    %v4520 = vpop.permute.xlu0 %4519
    %4522 = vmatprep.subr.mxu0 0.0
    %4523 = vmatpush1.msra.mxu0 %v4517
    %4524 = vmatprep.subr.mxu0 0.0
    %4525 = vmatpush1.msra.mxu0 %v4518
    %4526 = vmatprep.subr.mxu0 0.0
    %4527 = vmatpush1.msra.mxu0 0.0
    %4528 = vmatprep.subr.mxu0 0.0
    %4529 = vmatpush1.msra.mxu0 0.0
    %4530 = vmatprep.subr.mxu0 0.0
    %4531 = vmatpush1.msra.mxu0 0.0
    %4532 = vmatprep.subr.mxu0 0.0
    %4533 = vmatpush1.msra.mxu0 0.0
    %4534 = vmatprep.subr.mxu0 0.0
    %4535 = vmatpush1.msra.mxu0 0.0
    %4536 = vmatprep.subr.mxu0 0.0
    %4537 = vmatpush1.msra.mxu0 0.0
    %4538 = vmatprep.subr.mxu0 0.0
    %4539 = vmatpush1.msra.mxu0 0.0
    %4540 = vmatprep.subr.mxu0 0.0
    %4541 = vmatpush1.msra.mxu0 0.0
    %4542 = vmatprep.subr.mxu0 0.0
    %4543 = vmatpush1.msra.mxu0 0.0
    %4544 = vmatprep.subr.mxu0 0.0
    %4545 = vmatpush1.msra.mxu0 0.0
    %4546 = vmatprep.subr.mxu0 0.0
    %4547 = vmatpush1.msra.mxu0 0.0
    %4548 = vmatprep.subr.mxu0 0.0
    %4549 = vmatpush1.msra.mxu0 0.0
    %4550 = vmatprep.subr.mxu0 0.0
    %4551 = vmatpush1.msra.mxu0 0.0
    %4552 = vmatprep.subr.mxu0 0.0
    %4553 = vmatpush1.msra.mxu0 0.0
    %4554 = vmatprep.subr.mxu0 0.0
    %4555 = vmatpush1.msra.mxu0 0.0
    %4556 = vmatprep.subr.mxu0 0.0
    %4557 = vmatpush1.msra.mxu0 0.0
    %4558 = vmatprep.subr.mxu0 0.0
    %4559 = vmatpush1.msra.mxu0 0.0
    %4560 = vmatprep.subr.mxu0 0.0
    %4561 = vmatpush1.msra.mxu0 0.0
    %4562 = vmatprep.subr.mxu0 0.0
    %4563 = vmatpush1.msra.mxu0 0.0
    %4564 = vmatprep.subr.mxu0 0.0
    %4565 = vmatpush1.msra.mxu0 0.0
    %4566 = vmatprep.subr.mxu0 0.0
    %4567 = vmatpush1.msra.mxu0 0.0
    %4568 = vmatprep.subr.mxu0 0.0
    %4569 = vmatpush1.msra.mxu0 0.0
    %4570 = vmatprep.subr.mxu0 0.0
    %4571 = vmatpush1.msra.mxu0 0.0
    %4572 = vmatprep.subr.mxu0 0.0
    %4573 = vmatpush1.msra.mxu0 0.0
    %4574 = vmatprep.subr.mxu0 0.0
    %4575 = vmatpush1.msra.mxu0 0.0
    %4576 = vmatprep.subr.mxu0 0.0
    %4577 = vmatpush1.msra.mxu0 0.0
    %4578 = vmatprep.subr.mxu0 0.0
    %4579 = vmatpush1.msra.mxu0 0.0
    %4580 = vmatprep.subr.mxu0 0.0
    %4581 = vmatpush1.msra.mxu0 0.0
    %4582 = vmatprep.subr.mxu0 0.0
    %4583 = vmatpush1.msra.mxu0 0.0
    %4584 = vmatprep.subr.mxu0 0.0
    %4585 = vmatpush1.msra.mxu0 0.0
    %4586 = vmatprep.mubr.f32.mxu0 0.0
    %4587 = vmatmul.mubr.f32.gmra.mrb[0].mxu0 %v2934
    %v4588 = vpop.f32.mrb[0].mxu0
    %v4589 = vadd.f32 %v4520, %v4588
    %v4590 = vpop.f32.mrb[0].mxu0
    %4591 = vdwg.mxu0
    %v4592 = vld [vmem:[#allocation37] sm:$0x1]
    %v4593 = vld [vmem:[#allocation38] sm:$0x1]
    %v4594 = vsel %vm797, %v4589, 0.0
    %4595 = vadd.xlane.f32.xlu0 %v4594
    %v4596 = vpop.xlane.xlu0 %4595
    %v4597 = vmul.f32 %v696, %v4596
    %v4598 = vsel %vm697, %v4597, 0.0
    %v4599 = vrot.slane %v4598, 4
    %v4600 = vadd.f32 %v4598, %v4599
    %v4601 = vrot.slane %v4600, 2
    %v4602 = vadd.f32 %v4600, %v4601
    %v4603 = vrot.slane %v4602, 1
    %v4604 = vadd.f32 %v4602, %v4603
    %v4605 = vmul.f32 %v4604, %v809
    %v4606 = vmul.f32 %v696, %v4605
    %v4607 = vsel %vm697, %v4606, 0.0
    %4608 = vadd.xlane.f32.xlu0 %v4607
    %v4609 = vpop.xlane.xlu0 %4608
    %v4610 = vsub.f32 %v4589, %v4609
    %v4611 = vmul.f32 %v4610, %v4610
    %v4612 = vsel %vm797, %v4611, 0.0
    %4613 = vadd.xlane.f32.xlu0 %v4612
    %v4614 = vpop.xlane.xlu0 %4613
    %v4615 = vmul.f32 %v696, %v4614
    %v4616 = vsel %vm697, %v4615, 0.0
    %v4617 = vrot.slane %v4616, 4
    %v4618 = vadd.f32 %v4616, %v4617
    %v4619 = vrot.slane %v4618, 2
    %v4620 = vadd.f32 %v4618, %v4619
    %v4621 = vrot.slane %v4620, 1
    %v4622 = vadd.f32 %v4620, %v4621
    %v4623 = vmul.f32 %v4622, %v809
    %v4624 = vmul.f32 %v696, %v4623
    %v4625 = vsel %vm697, %v4624, 0.0
    %4626 = vadd.xlane.f32.xlu0 %v4625
    %v4627 = vpop.xlane.xlu0 %4626
    %v4628 = vadd.f32 %v4627, 1e-05
    %v4629 = vrsqrt.pop %v4628
    %v4630 = vmul.f32 %v4610, %v4629
    %v4632 = vlaneseq
    %v4633 = vshrl.u32 %v4632, 7
    %v4634 = vsub.s32 0, %v4633
    %v4635 = vrot.slane %v4592, %v4634
    %v4637 = vmul.f32 %v4630, %v4635
    %v4639 = vlaneseq
    %v4640 = vshrl.u32 %v4639, 7
    %v4641 = vsub.s32 0, %v4640
    %v4642 = vrot.slane %v4593, %v4641
    %v4644 = vadd.f32 %v4637, %v4642
    %vm4645 = vcmp.gt.f32.partialorder %v4644, 0.0
    %v4646 = vmul.f32 %v4644, 0.01
    %v4647 = vsel %vm4645, %v4644, %v4646
    %v4648 = vld [vmem:[#allocation40] sm:$0xff]
    %v4649 = vld [vmem:[#allocation40 + $0x8] sm:$0xff]
    %v4650 = vld [vmem:[#allocation41] sm:$0x1]
    %v4652 = vlaneseq
    %v4653 = vshrl.u32 %v4652, 7
    %v4654 = vsub.s32 0, %v4653
    %v4655 = vrot.slane %v4650, %v4654
    %4657 = vmatprep.subr.mxu0 0.0
    %4658 = vmatpush1.msra.mxu0 %v4648
    %4659 = vmatprep.subr.mxu0 0.0
    %4660 = vmatpush1.msra.mxu0 %v4649
    %4661 = vmatprep.subr.mxu0 0.0
    %4662 = vmatpush1.msra.mxu0 0.0
    %4663 = vmatprep.subr.mxu0 0.0
    %4664 = vmatpush1.msra.mxu0 0.0
    %4665 = vmatprep.subr.mxu0 0.0
    %4666 = vmatpush1.msra.mxu0 0.0
    %4667 = vmatprep.subr.mxu0 0.0
    %4668 = vmatpush1.msra.mxu0 0.0
    %4669 = vmatprep.subr.mxu0 0.0
    %4670 = vmatpush1.msra.mxu0 0.0
    %4671 = vmatprep.subr.mxu0 0.0
    %4672 = vmatpush1.msra.mxu0 0.0
    %4673 = vmatprep.subr.mxu0 0.0
    %4674 = vmatpush1.msra.mxu0 0.0
    %4675 = vmatprep.subr.mxu0 0.0
    %4676 = vmatpush1.msra.mxu0 0.0
    %4677 = vmatprep.subr.mxu0 0.0
    %4678 = vmatpush1.msra.mxu0 0.0
    %4679 = vmatprep.subr.mxu0 0.0
    %4680 = vmatpush1.msra.mxu0 0.0
    %4681 = vmatprep.subr.mxu0 0.0
    %4682 = vmatpush1.msra.mxu0 0.0
    %4683 = vmatprep.subr.mxu0 0.0
    %4684 = vmatpush1.msra.mxu0 0.0
    %4685 = vmatprep.subr.mxu0 0.0
    %4686 = vmatpush1.msra.mxu0 0.0
    %4687 = vmatprep.subr.mxu0 0.0
    %4688 = vmatpush1.msra.mxu0 0.0
    %4689 = vmatprep.subr.mxu0 0.0
    %4690 = vmatpush1.msra.mxu0 0.0
    %4691 = vmatprep.subr.mxu0 0.0
    %4692 = vmatpush1.msra.mxu0 0.0
    %4693 = vmatprep.subr.mxu0 0.0
    %4694 = vmatpush1.msra.mxu0 0.0
    %4695 = vmatprep.subr.mxu0 0.0
    %4696 = vmatpush1.msra.mxu0 0.0
    %4697 = vmatprep.subr.mxu0 0.0
    %4698 = vmatpush1.msra.mxu0 0.0
    %4699 = vmatprep.subr.mxu0 0.0
    %4700 = vmatpush1.msra.mxu0 0.0
    %4701 = vmatprep.subr.mxu0 0.0
    %4702 = vmatpush1.msra.mxu0 0.0
    %4703 = vmatprep.subr.mxu0 0.0
    %4704 = vmatpush1.msra.mxu0 0.0
    %4705 = vmatprep.subr.mxu0 0.0
    %4706 = vmatpush1.msra.mxu0 0.0
    %4707 = vmatprep.subr.mxu0 0.0
    %4708 = vmatpush1.msra.mxu0 0.0
    %4709 = vmatprep.subr.mxu0 0.0
    %4710 = vmatpush1.msra.mxu0 0.0
    %4711 = vmatprep.subr.mxu0 0.0
    %4712 = vmatpush1.msra.mxu0 0.0
    %4713 = vmatprep.subr.mxu0 0.0
    %4714 = vmatpush1.msra.mxu0 0.0
    %4715 = vmatprep.subr.mxu0 0.0
    %4716 = vmatpush1.msra.mxu0 0.0
    %4717 = vmatprep.subr.mxu0 0.0
    %4718 = vmatpush1.msra.mxu0 0.0
    %4719 = vmatprep.subr.mxu0 0.0
    %4720 = vmatpush1.msra.mxu0 0.0
    %4721 = vmatprep.mubr.f32.mxu0 0.0
    %4722 = vmatmul.mubr.f32.gmra.mrb[0].mxu0 %v1520
    %v4723 = vpop.f32.mrb[0].mxu0
    %v4724 = vadd.f32 %v4655, %v4723
    %v4725 = vpop.f32.mrb[0].mxu0
    %4726 = vmatprep.mubr.f32.mxu0 0.0
    %4727 = vmatmul.mubr.f32.gmra.mrb[0].mxu0 %v1523
    %v4728 = vpop.f32.mrb[0].mxu0
    %v4729 = vadd.f32 %v4655, %v4728
    %v4730 = vpop.f32.mrb[0].mxu0
    %4731 = vdwg.mxu0
    %v4732 = vld [vmem:[#allocation43] sm:$0x1]
    %v4733 = vld [vmem:[#allocation44] sm:$0x1]
    %v4734 = vsel %vm1370, %v4724, 0.0
    %4735 = vadd.xlane.f32.xlu0 %v4734
    %v4736 = vpop.xlane.xlu0 %4735
    %v4737 = vsel %vm1370, %v4729, 0.0
    %4738 = vadd.xlane.f32.xlu0 %v4737
    %v4739 = vpop.xlane.xlu0 %4738
    %v4740 = vmul.f32 %v4736, %v1377
    %v4741 = vmul.f32 %v4739, %v1377
    %v4742 = vsub.f32 %v4724, %v4740
    %v4743 = vsub.f32 %v4729, %v4741
    %v4744 = vmul.f32 %v4742, %v4742
    %v4745 = vmul.f32 %v4743, %v4743
    %v4746 = vsel %vm1370, %v4744, 0.0
    %4747 = vadd.xlane.f32.xlu0 %v4746
    %v4748 = vpop.xlane.xlu0 %4747
    %v4749 = vsel %vm1370, %v4745, 0.0
    %4750 = vadd.xlane.f32.xlu0 %v4749
    %v4751 = vpop.xlane.xlu0 %4750
    %v4752 = vmul.f32 %v4748, %v1377
    %v4753 = vmul.f32 %v4751, %v1377
    %v4754 = vadd.f32 %v4752, 1e-05
    %v4755 = vadd.f32 %v4753, 1e-05
    %v4756 = vrsqrt.pop %v4754
    %v4757 = vrsqrt.pop %v4755
    %v4758 = vmul.f32 %v4742, %v4756
    %v4759 = vmul.f32 %v4743, %v4757
    %v4761 = vlaneseq
    %v4762 = vshrl.u32 %v4761, 7
    %v4763 = vsub.s32 0, %v4762
    %v4764 = vrot.slane %v4732, %v4763
    %v4766 = vmul.f32 %v4758, %v4764
    %v4767 = vmul.f32 %v4759, %v4764
    %v4769 = vlaneseq
    %v4770 = vshrl.u32 %v4769, 7
    %v4771 = vsub.s32 0, %v4770
    %v4772 = vrot.slane %v4733, %v4771
    %v4774 = vadd.f32 %v4766, %v4772
    %v4775 = vadd.f32 %v4767, %v4772
    %vm4776 = vcmp.gt.f32.partialorder %v4774, 0.0
    %vm4777 = vcmp.gt.f32.partialorder %v4775, 0.0
    %v4778 = vmul.f32 %v4774, 0.01
    %v4779 = vmul.f32 %v4775, 0.01
    %v4780 = vsel %vm4776, %v4774, %v4778
    %v4781 = vsel %vm4777, %v4775, %v4779
    %v4782 = vld [vmem:[#allocation46] sm:$0xff]
    %v4783 = vld [vmem:[#allocation46 + $0x8] sm:$0xff]
    %v4784 = vld [vmem:[#allocation46 + $0x10] sm:$0xff]
    %v4785 = vld [vmem:[#allocation46 + $0x18] sm:$0xff]
    %v4786 = vld [vmem:[#allocation46 + $0x20] sm:$0xff]
    %v4787 = vld [vmem:[#allocation46 + $0x28] sm:$0xff]
    %v4788 = vld [vmem:[#allocation46 + $0x30] sm:$0xff]
    %v4789 = vld [vmem:[#allocation46 + $0x38] sm:$0xff]
    %v4790 = vld [vmem:[#allocation46 + $0x40] sm:$0xff]
    %v4791 = vld [vmem:[#allocation46 + $0x48] sm:$0xff]
    %v4792 = vld [vmem:[#allocation46 + $0x50] sm:$0xff]
    %v4793 = vld [vmem:[#allocation46 + $0x58] sm:$0xff]
    %v4794 = vld [vmem:[#allocation46 + $0x60] sm:$0xff]
    %v4795 = vld [vmem:[#allocation46 + $0x68] sm:$0xff]
    %v4796 = vld [vmem:[#allocation46 + $0x70] sm:$0xff]
    %v4797 = vld [vmem:[#allocation46 + $0x78] sm:$0xff]
    %v4798 = vld [vmem:[#allocation47] sm:$0xff]
    %v4800 = vlaneseq
    %v4801 = vshrl.u32 %v4800, 7
    %v4802 = vsub.s32 0, %v4801
    %v4803 = vrot.slane %v4798, %v4802
    %v4804 = vlaneseq
    %v4805 = vshrl.u32 %v4804, 7
    %v4806 = vsub.s32 1, %v4805
    %v4807 = vrot.slane %v4798, %v4806
    %v4808 = vlaneseq
    %v4809 = vshrl.u32 %v4808, 7
    %v4810 = vsub.s32 2, %v4809
    %v4811 = vrot.slane %v4798, %v4810
    %v4812 = vlaneseq
    %v4813 = vshrl.u32 %v4812, 7
    %v4814 = vsub.s32 3, %v4813
    %v4815 = vrot.slane %v4798, %v4814
    %v4816 = vlaneseq
    %v4817 = vshrl.u32 %v4816, 7
    %v4818 = vsub.s32 4, %v4817
    %v4819 = vrot.slane %v4798, %v4818
    %v4820 = vlaneseq
    %v4821 = vshrl.u32 %v4820, 7
    %v4822 = vsub.s32 5, %v4821
    %v4823 = vrot.slane %v4798, %v4822
    %v4824 = vlaneseq
    %v4825 = vshrl.u32 %v4824, 7
    %v4826 = vsub.s32 6, %v4825
    %v4827 = vrot.slane %v4798, %v4826
    %v4828 = vlaneseq
    %v4829 = vshrl.u32 %v4828, 7
    %v4830 = vsub.s32 7, %v4829
    %v4831 = vrot.slane %v4798, %v4830
    %v4841 = vsel %vm1370, %v4780, 0
    %v4844 = vsel %vm1370, %v4781, 0
    %4846 = vmatprep.subr.mxu0 %v4783
    %4847 = vmatpush1.msra.mxu0 %v4782
    %4848 = vmatprep.subr.mxu0 %v4791
    %4849 = vmatpush1.msra.mxu0 %v4790
    %4850 = vmatprep.subr.mxu0 0.0
    %4851 = vmatpush1.msra.mxu0 0.0
    %4852 = vmatprep.subr.mxu0 0.0
    %4853 = vmatpush1.msra.mxu0 0.0
    %4854 = vmatprep.subr.mxu0 0.0
    %4855 = vmatpush1.msra.mxu0 0.0
    %4856 = vmatprep.subr.mxu0 0.0
    %4857 = vmatpush1.msra.mxu0 0.0
    %4858 = vmatprep.subr.mxu0 0.0
    %4859 = vmatpush1.msra.mxu0 0.0
    %4860 = vmatprep.subr.mxu0 0.0
    %4861 = vmatpush1.msra.mxu0 0.0
    %4862 = vmatprep.subr.mxu0 0.0
    %4863 = vmatpush1.msra.mxu0 0.0
    %4864 = vmatprep.subr.mxu0 0.0
    %4865 = vmatpush1.msra.mxu0 0.0
    %4866 = vmatprep.subr.mxu0 0.0
    %4867 = vmatpush1.msra.mxu0 0.0
    %4868 = vmatprep.subr.mxu0 0.0
    %4869 = vmatpush1.msra.mxu0 0.0
    %4870 = vmatprep.subr.mxu0 0.0
    %4871 = vmatpush1.msra.mxu0 0.0
    %4872 = vmatprep.subr.mxu0 0.0
    %4873 = vmatpush1.msra.mxu0 0.0
    %4874 = vmatprep.subr.mxu0 0.0
    %4875 = vmatpush1.msra.mxu0 0.0
    %4876 = vmatprep.subr.mxu0 0.0
    %4877 = vmatpush1.msra.mxu0 0.0
    %4878 = vmatprep.subr.mxu0 0.0
    %4879 = vmatpush1.msra.mxu0 0.0
    %4880 = vmatprep.subr.mxu0 0.0
    %4881 = vmatpush1.msra.mxu0 0.0
    %4882 = vmatprep.subr.mxu0 0.0
    %4883 = vmatpush1.msra.mxu0 0.0
    %4884 = vmatprep.subr.mxu0 0.0
    %4885 = vmatpush1.msra.mxu0 0.0
    %4886 = vmatprep.subr.mxu0 0.0
    %4887 = vmatpush1.msra.mxu0 0.0
    %4888 = vmatprep.subr.mxu0 0.0
    %4889 = vmatpush1.msra.mxu0 0.0
    %4890 = vmatprep.subr.mxu0 0.0
    %4891 = vmatpush1.msra.mxu0 0.0
    %4892 = vmatprep.subr.mxu0 0.0
    %4893 = vmatpush1.msra.mxu0 0.0
    %4894 = vmatprep.subr.mxu0 0.0
    %4895 = vmatpush1.msra.mxu0 0.0
    %4896 = vmatprep.subr.mxu0 0.0
    %4897 = vmatpush1.msra.mxu0 0.0
    %4898 = vmatprep.subr.mxu0 0.0
    %4899 = vmatpush1.msra.mxu0 0.0
    %4900 = vmatprep.subr.mxu0 0.0
    %4901 = vmatpush1.msra.mxu0 0.0
    %4902 = vmatprep.subr.mxu0 0.0
    %4903 = vmatpush1.msra.mxu0 0.0
    %4904 = vmatprep.subr.mxu0 0.0
    %4905 = vmatpush1.msra.mxu0 0.0
    %4906 = vmatprep.subr.mxu0 0.0
    %4907 = vmatpush1.msra.mxu0 0.0
    %4908 = vmatprep.subr.mxu0 0.0
    %4909 = vmatpush1.msra.mxu0 0.0
    %4910 = vmatprep.mubr.f32.mxu0 0.0
    %4911 = vmatmul.mubr.f32.gmra.mrb[0].mxu0 %v4841
    %v4912 = vpop.f32.mrb[0].mxu0
    %v4913 = vadd.f32 %v4803, %v4912
    %v4914 = vpop.f32.mrb[0].mxu0
    %v4915 = vadd.f32 %v4807, %v4914
    %4916 = vmatprep.mubr.f32.mxu0 0.0
    %4917 = vmatmul.mubr.f32.gmra.mrb[0].mxu0 %v4844
    %v4918 = vpop.f32.mrb[0].mxu0
    %v4919 = vadd.f32 %v4803, %v4918
    %v4920 = vpop.f32.mrb[0].mxu0
    %v4921 = vadd.f32 %v4807, %v4920
    %4922 = vdwg.mxu0
    %4923 = vmatprep.subr.mxu0 %v4785
    %4924 = vmatpush1.msra.mxu0 %v4784
    %4925 = vmatprep.subr.mxu0 %v4793
    %4926 = vmatpush1.msra.mxu0 %v4792
    %4927 = vmatprep.subr.mxu0 0.0
    %4928 = vmatpush1.msra.mxu0 0.0
    %4929 = vmatprep.subr.mxu0 0.0
    %4930 = vmatpush1.msra.mxu0 0.0
    %4931 = vmatprep.subr.mxu0 0.0
    %4932 = vmatpush1.msra.mxu0 0.0
    %4933 = vmatprep.subr.mxu0 0.0
    %4934 = vmatpush1.msra.mxu0 0.0
    %4935 = vmatprep.subr.mxu0 0.0
    %4936 = vmatpush1.msra.mxu0 0.0
    %4937 = vmatprep.subr.mxu0 0.0
    %4938 = vmatpush1.msra.mxu0 0.0
    %4939 = vmatprep.subr.mxu0 0.0
    %4940 = vmatpush1.msra.mxu0 0.0
    %4941 = vmatprep.subr.mxu0 0.0
    %4942 = vmatpush1.msra.mxu0 0.0
    %4943 = vmatprep.subr.mxu0 0.0
    %4944 = vmatpush1.msra.mxu0 0.0
    %4945 = vmatprep.subr.mxu0 0.0
    %4946 = vmatpush1.msra.mxu0 0.0
    %4947 = vmatprep.subr.mxu0 0.0
    %4948 = vmatpush1.msra.mxu0 0.0
    %4949 = vmatprep.subr.mxu0 0.0
    %4950 = vmatpush1.msra.mxu0 0.0
    %4951 = vmatprep.subr.mxu0 0.0
    %4952 = vmatpush1.msra.mxu0 0.0
    %4953 = vmatprep.subr.mxu0 0.0
    %4954 = vmatpush1.msra.mxu0 0.0
    %4955 = vmatprep.subr.mxu0 0.0
    %4956 = vmatpush1.msra.mxu0 0.0
    %4957 = vmatprep.subr.mxu0 0.0
    %4958 = vmatpush1.msra.mxu0 0.0
    %4959 = vmatprep.subr.mxu0 0.0
    %4960 = vmatpush1.msra.mxu0 0.0
    %4961 = vmatprep.subr.mxu0 0.0
    %4962 = vmatpush1.msra.mxu0 0.0
    %4963 = vmatprep.subr.mxu0 0.0
    %4964 = vmatpush1.msra.mxu0 0.0
    %4965 = vmatprep.subr.mxu0 0.0
    %4966 = vmatpush1.msra.mxu0 0.0
    %4967 = vmatprep.subr.mxu0 0.0
    %4968 = vmatpush1.msra.mxu0 0.0
    %4969 = vmatprep.subr.mxu0 0.0
    %4970 = vmatpush1.msra.mxu0 0.0
    %4971 = vmatprep.subr.mxu0 0.0
    %4972 = vmatpush1.msra.mxu0 0.0
    %4973 = vmatprep.subr.mxu0 0.0
    %4974 = vmatpush1.msra.mxu0 0.0
    %4975 = vmatprep.subr.mxu0 0.0
    %4976 = vmatpush1.msra.mxu0 0.0
    %4977 = vmatprep.subr.mxu0 0.0
    %4978 = vmatpush1.msra.mxu0 0.0
    %4979 = vmatprep.subr.mxu0 0.0
    %4980 = vmatpush1.msra.mxu0 0.0
    %4981 = vmatprep.subr.mxu0 0.0
    %4982 = vmatpush1.msra.mxu0 0.0
    %4983 = vmatprep.subr.mxu0 0.0
    %4984 = vmatpush1.msra.mxu0 0.0
    %4985 = vmatprep.subr.mxu0 0.0
    %4986 = vmatpush1.msra.mxu0 0.0
    %4987 = vmatprep.mubr.f32.mxu0 0.0
    %4988 = vmatmul.mubr.f32.gmra.mrb[0].mxu0 %v4841
    %v4989 = vpop.f32.mrb[0].mxu0
    %v4990 = vadd.f32 %v4811, %v4989
    %v4991 = vpop.f32.mrb[0].mxu0
    %v4992 = vadd.f32 %v4815, %v4991
    %4993 = vmatprep.mubr.f32.mxu0 0.0
    %4994 = vmatmul.mubr.f32.gmra.mrb[0].mxu0 %v4844
    %v4995 = vpop.f32.mrb[0].mxu0
    %v4996 = vadd.f32 %v4811, %v4995
    %v4997 = vpop.f32.mrb[0].mxu0
    %v4998 = vadd.f32 %v4815, %v4997
    %4999 = vdwg.mxu0
    %5000 = vmatprep.subr.mxu0 %v4787
    %5001 = vmatpush1.msra.mxu0 %v4786
    %5002 = vmatprep.subr.mxu0 %v4795
    %5003 = vmatpush1.msra.mxu0 %v4794
    %5004 = vmatprep.subr.mxu0 0.0
    %5005 = vmatpush1.msra.mxu0 0.0
    %5006 = vmatprep.subr.mxu0 0.0
    %5007 = vmatpush1.msra.mxu0 0.0
    %5008 = vmatprep.subr.mxu0 0.0
    %5009 = vmatpush1.msra.mxu0 0.0
    %5010 = vmatprep.subr.mxu0 0.0
    %5011 = vmatpush1.msra.mxu0 0.0
    %5012 = vmatprep.subr.mxu0 0.0
    %5013 = vmatpush1.msra.mxu0 0.0
    %5014 = vmatprep.subr.mxu0 0.0
    %5015 = vmatpush1.msra.mxu0 0.0
    %5016 = vmatprep.subr.mxu0 0.0
    %5017 = vmatpush1.msra.mxu0 0.0
    %5018 = vmatprep.subr.mxu0 0.0
    %5019 = vmatpush1.msra.mxu0 0.0
    %5020 = vmatprep.subr.mxu0 0.0
    %5021 = vmatpush1.msra.mxu0 0.0
    %5022 = vmatprep.subr.mxu0 0.0
    %5023 = vmatpush1.msra.mxu0 0.0
    %5024 = vmatprep.subr.mxu0 0.0
    %5025 = vmatpush1.msra.mxu0 0.0
    %5026 = vmatprep.subr.mxu0 0.0
    %5027 = vmatpush1.msra.mxu0 0.0
    %5028 = vmatprep.subr.mxu0 0.0
    %5029 = vmatpush1.msra.mxu0 0.0
    %5030 = vmatprep.subr.mxu0 0.0
    %5031 = vmatpush1.msra.mxu0 0.0
    %5032 = vmatprep.subr.mxu0 0.0
    %5033 = vmatpush1.msra.mxu0 0.0
    %5034 = vmatprep.subr.mxu0 0.0
    %5035 = vmatpush1.msra.mxu0 0.0
    %5036 = vmatprep.subr.mxu0 0.0
    %5037 = vmatpush1.msra.mxu0 0.0
    %5038 = vmatprep.subr.mxu0 0.0
    %5039 = vmatpush1.msra.mxu0 0.0
    %5040 = vmatprep.subr.mxu0 0.0
    %5041 = vmatpush1.msra.mxu0 0.0
    %5042 = vmatprep.subr.mxu0 0.0
    %5043 = vmatpush1.msra.mxu0 0.0
    %5044 = vmatprep.subr.mxu0 0.0
    %5045 = vmatpush1.msra.mxu0 0.0
    %5046 = vmatprep.subr.mxu0 0.0
    %5047 = vmatpush1.msra.mxu0 0.0
    %5048 = vmatprep.subr.mxu0 0.0
    %5049 = vmatpush1.msra.mxu0 0.0
    %5050 = vmatprep.subr.mxu0 0.0
    %5051 = vmatpush1.msra.mxu0 0.0
    %5052 = vmatprep.subr.mxu0 0.0
    %5053 = vmatpush1.msra.mxu0 0.0
    %5054 = vmatprep.subr.mxu0 0.0
    %5055 = vmatpush1.msra.mxu0 0.0
    %5056 = vmatprep.subr.mxu0 0.0
    %5057 = vmatpush1.msra.mxu0 0.0
    %5058 = vmatprep.subr.mxu0 0.0
    %5059 = vmatpush1.msra.mxu0 0.0
    %5060 = vmatprep.subr.mxu0 0.0
    %5061 = vmatpush1.msra.mxu0 0.0
    %5062 = vmatprep.subr.mxu0 0.0
    %5063 = vmatpush1.msra.mxu0 0.0
    %5064 = vmatprep.mubr.f32.mxu0 0.0
    %5065 = vmatmul.mubr.f32.gmra.mrb[0].mxu0 %v4841
    %v5066 = vpop.f32.mrb[0].mxu0
    %v5067 = vadd.f32 %v4819, %v5066
    %v5068 = vpop.f32.mrb[0].mxu0
    %v5069 = vadd.f32 %v4823, %v5068
    %5070 = vmatprep.mubr.f32.mxu0 0.0
    %5071 = vmatmul.mubr.f32.gmra.mrb[0].mxu0 %v4844
    %v5072 = vpop.f32.mrb[0].mxu0
    %v5073 = vadd.f32 %v4819, %v5072
    %v5074 = vpop.f32.mrb[0].mxu0
    %v5075 = vadd.f32 %v4823, %v5074
    %5076 = vdwg.mxu0
    %5077 = vmatprep.subr.mxu0 %v4789
    %5078 = vmatpush1.msra.mxu0 %v4788
    %5079 = vmatprep.subr.mxu0 %v4797
    %5080 = vmatpush1.msra.mxu0 %v4796
    %5081 = vmatprep.subr.mxu0 0.0
    %5082 = vmatpush1.msra.mxu0 0.0
    %5083 = vmatprep.subr.mxu0 0.0
    %5084 = vmatpush1.msra.mxu0 0.0
    %5085 = vmatprep.subr.mxu0 0.0
    %5086 = vmatpush1.msra.mxu0 0.0
    %5087 = vmatprep.subr.mxu0 0.0
    %5088 = vmatpush1.msra.mxu0 0.0
    %5089 = vmatprep.subr.mxu0 0.0
    %5090 = vmatpush1.msra.mxu0 0.0
    %5091 = vmatprep.subr.mxu0 0.0
    %5092 = vmatpush1.msra.mxu0 0.0
    %5093 = vmatprep.subr.mxu0 0.0
    %5094 = vmatpush1.msra.mxu0 0.0
    %5095 = vmatprep.subr.mxu0 0.0
    %5096 = vmatpush1.msra.mxu0 0.0
    %5097 = vmatprep.subr.mxu0 0.0
    %5098 = vmatpush1.msra.mxu0 0.0
    %5099 = vmatprep.subr.mxu0 0.0
    %5100 = vmatpush1.msra.mxu0 0.0
    %5101 = vmatprep.subr.mxu0 0.0
    %5102 = vmatpush1.msra.mxu0 0.0
    %5103 = vmatprep.subr.mxu0 0.0
    %5104 = vmatpush1.msra.mxu0 0.0
    %5105 = vmatprep.subr.mxu0 0.0
    %5106 = vmatpush1.msra.mxu0 0.0
    %5107 = vmatprep.subr.mxu0 0.0
    %5108 = vmatpush1.msra.mxu0 0.0
    %5109 = vmatprep.subr.mxu0 0.0
    %5110 = vmatpush1.msra.mxu0 0.0
    %5111 = vmatprep.subr.mxu0 0.0
    %5112 = vmatpush1.msra.mxu0 0.0
    %5113 = vmatprep.subr.mxu0 0.0
    %5114 = vmatpush1.msra.mxu0 0.0
    %5115 = vmatprep.subr.mxu0 0.0
    %5116 = vmatpush1.msra.mxu0 0.0
    %5117 = vmatprep.subr.mxu0 0.0
    %5118 = vmatpush1.msra.mxu0 0.0
    %5119 = vmatprep.subr.mxu0 0.0
    %5120 = vmatpush1.msra.mxu0 0.0
    %5121 = vmatprep.subr.mxu0 0.0
    %5122 = vmatpush1.msra.mxu0 0.0
    %5123 = vmatprep.subr.mxu0 0.0
    %5124 = vmatpush1.msra.mxu0 0.0
    %5125 = vmatprep.subr.mxu0 0.0
    %5126 = vmatpush1.msra.mxu0 0.0
    %5127 = vmatprep.subr.mxu0 0.0
    %5128 = vmatpush1.msra.mxu0 0.0
    %5129 = vmatprep.subr.mxu0 0.0
    %5130 = vmatpush1.msra.mxu0 0.0
    %5131 = vmatprep.subr.mxu0 0.0
    %5132 = vmatpush1.msra.mxu0 0.0
    %5133 = vmatprep.subr.mxu0 0.0
    %5134 = vmatpush1.msra.mxu0 0.0
    %5135 = vmatprep.subr.mxu0 0.0
    %5136 = vmatpush1.msra.mxu0 0.0
    %5137 = vmatprep.subr.mxu0 0.0
    %5138 = vmatpush1.msra.mxu0 0.0
    %5139 = vmatprep.subr.mxu0 0.0
    %5140 = vmatpush1.msra.mxu0 0.0
    %5141 = vmatprep.mubr.f32.mxu0 0.0
    %5142 = vmatmul.mubr.f32.gmra.mrb[0].mxu0 %v4841
    %v5143 = vpop.f32.mrb[0].mxu0
    %v5144 = vadd.f32 %v4827, %v5143
    %v5145 = vpop.f32.mrb[0].mxu0
    %v5146 = vadd.f32 %v4831, %v5145
    %5147 = vmatprep.mubr.f32.mxu0 0.0
    %5148 = vmatmul.mubr.f32.gmra.mrb[0].mxu0 %v4844
    %v5149 = vpop.f32.mrb[0].mxu0
    %v5150 = vadd.f32 %v4827, %v5149
    %v5151 = vpop.f32.mrb[0].mxu0
    %v5152 = vadd.f32 %v4831, %v5151
    %5153 = vdwg.mxu0
    %v5154 = vld [vmem:[%s91] sm:$0xff]
    %v5155 = vld [vmem:[%s91 + $0x8] sm:$0xff]
    %v5156 = vld [vmem:[%s91 + $0x10] sm:$0xff]
    %v5157 = vld [vmem:[%s91 + $0x18] sm:$0xff]
    %v5158 = vld [vmem:[#allocation49] sm:$0x1]
    %v5160 = vlaneseq
    %v5161 = vshrl.u32 %v5160, 7
    %v5162 = vsub.s32 0, %v5161
    %v5163 = vrot.slane %v5158, %v5162
    %v5166 = vsel %vm797, %v4647, 0
    %5168 = vmatprep.subr.mxu0 0.0
    %5169 = vmatpush1.msra.mxu0 %v5154
    %5170 = vmatprep.subr.mxu0 0.0
    %5171 = vmatpush1.msra.mxu0 %v5155
    %5172 = vmatprep.subr.mxu0 0.0
    %5173 = vmatpush1.msra.mxu0 %v5156
    %5174 = vmatprep.subr.mxu0 0.0
    %5175 = vmatpush1.msra.mxu0 %v5157
    %5176 = vmatprep.subr.mxu0 0.0
    %5177 = vmatpush1.msra.mxu0 0.0
    %5178 = vmatprep.subr.mxu0 0.0
    %5179 = vmatpush1.msra.mxu0 0.0
    %5180 = vmatprep.subr.mxu0 0.0
    %5181 = vmatpush1.msra.mxu0 0.0
    %5182 = vmatprep.subr.mxu0 0.0
    %5183 = vmatpush1.msra.mxu0 0.0
    %5184 = vmatprep.subr.mxu0 0.0
    %5185 = vmatpush1.msra.mxu0 0.0
    %5186 = vmatprep.subr.mxu0 0.0
    %5187 = vmatpush1.msra.mxu0 0.0
    %5188 = vmatprep.subr.mxu0 0.0
    %5189 = vmatpush1.msra.mxu0 0.0
    %5190 = vmatprep.subr.mxu0 0.0
    %5191 = vmatpush1.msra.mxu0 0.0
    %5192 = vmatprep.subr.mxu0 0.0
    %5193 = vmatpush1.msra.mxu0 0.0
    %5194 = vmatprep.subr.mxu0 0.0
    %5195 = vmatpush1.msra.mxu0 0.0
    %5196 = vmatprep.subr.mxu0 0.0
    %5197 = vmatpush1.msra.mxu0 0.0
    %5198 = vmatprep.subr.mxu0 0.0
    %5199 = vmatpush1.msra.mxu0 0.0
    %5200 = vmatprep.subr.mxu0 0.0
    %5201 = vmatpush1.msra.mxu0 0.0
    %5202 = vmatprep.subr.mxu0 0.0
    %5203 = vmatpush1.msra.mxu0 0.0
    %5204 = vmatprep.subr.mxu0 0.0
    %5205 = vmatpush1.msra.mxu0 0.0
    %5206 = vmatprep.subr.mxu0 0.0
    %5207 = vmatpush1.msra.mxu0 0.0
    %5208 = vmatprep.subr.mxu0 0.0
    %5209 = vmatpush1.msra.mxu0 0.0
    %5210 = vmatprep.subr.mxu0 0.0
    %5211 = vmatpush1.msra.mxu0 0.0
    %5212 = vmatprep.subr.mxu0 0.0
    %5213 = vmatpush1.msra.mxu0 0.0
    %5214 = vmatprep.subr.mxu0 0.0
    %5215 = vmatpush1.msra.mxu0 0.0
    %5216 = vmatprep.subr.mxu0 0.0
    %5217 = vmatpush1.msra.mxu0 0.0
    %5218 = vmatprep.subr.mxu0 0.0
    %5219 = vmatpush1.msra.mxu0 0.0
    %5220 = vmatprep.subr.mxu0 0.0
    %5221 = vmatpush1.msra.mxu0 0.0
    %5222 = vmatprep.subr.mxu0 0.0
    %5223 = vmatpush1.msra.mxu0 0.0
    %5224 = vmatprep.subr.mxu0 0.0
    %5225 = vmatpush1.msra.mxu0 0.0
    %5226 = vmatprep.subr.mxu0 0.0
    %5227 = vmatpush1.msra.mxu0 0.0
    %5228 = vmatprep.subr.mxu0 0.0
    %5229 = vmatpush1.msra.mxu0 0.0
    %5230 = vmatprep.subr.mxu0 0.0
    %5231 = vmatpush1.msra.mxu0 0.0
    %5232 = vmatprep.mubr.f32.mxu0 0.0
    %5233 = vmatmul.mubr.f32.gmra.mrb[0].mxu0 %v5166
    %v5234 = vpop.f32.mrb[0].mxu0
    %v5235 = vadd.f32 %v5163, %v5234
    %v5236 = vpop.f32.mrb[0].mxu0
    %5237 = vdwg.mxu0
    %5238 = vmatprep.subr.mxu0 0.0
    %5239 = vmatpush1.msra.mxu0 %v5235
    %5240 = vmatprep.subr.mxu0 0.0
    %5241 = vmatpush1.msra.mxu0 0.0
    %5242 = vmatprep.subr.mxu0 0.0
    %5243 = vmatpush1.msra.mxu0 0.0
    %5244 = vmatprep.subr.mxu0 0.0
    %5245 = vmatpush1.msra.mxu0 0.0
    %5246 = vmatprep.subr.mxu0 0.0
    %5247 = vmatpush1.msra.mxu0 0.0
    %5248 = vmatprep.subr.mxu0 0.0
    %5249 = vmatpush1.msra.mxu0 0.0
    %5250 = vmatprep.subr.mxu0 0.0
    %5251 = vmatpush1.msra.mxu0 0.0
    %5252 = vmatprep.subr.mxu0 0.0
    %5253 = vmatpush1.msra.mxu0 0.0
    %5254 = vmatprep.subr.mxu0 0.0
    %5255 = vmatpush1.msra.mxu0 0.0
    %5256 = vmatprep.subr.mxu0 0.0
    %5257 = vmatpush1.msra.mxu0 0.0
    %5258 = vmatprep.subr.mxu0 0.0
    %5259 = vmatpush1.msra.mxu0 0.0
    %5260 = vmatprep.subr.mxu0 0.0
    %5261 = vmatpush1.msra.mxu0 0.0
    %5262 = vmatprep.subr.mxu0 0.0
    %5263 = vmatpush1.msra.mxu0 0.0
    %5264 = vmatprep.subr.mxu0 0.0
    %5265 = vmatpush1.msra.mxu0 0.0
    %5266 = vmatprep.subr.mxu0 0.0
    %5267 = vmatpush1.msra.mxu0 0.0
    %5268 = vmatprep.subr.mxu0 0.0
    %5269 = vmatpush1.msra.mxu0 0.0
    %5270 = vmatprep.subr.mxu0 0.0
    %5271 = vmatpush1.msra.mxu0 0.0
    %5272 = vmatprep.subr.mxu0 0.0
    %5273 = vmatpush1.msra.mxu0 0.0
    %5274 = vmatprep.subr.mxu0 0.0
    %5275 = vmatpush1.msra.mxu0 0.0
    %5276 = vmatprep.subr.mxu0 0.0
    %5277 = vmatpush1.msra.mxu0 0.0
    %5278 = vmatprep.subr.mxu0 0.0
    %5279 = vmatpush1.msra.mxu0 0.0
    %5280 = vmatprep.subr.mxu0 0.0
    %5281 = vmatpush1.msra.mxu0 0.0
    %5282 = vmatprep.subr.mxu0 0.0
    %5283 = vmatpush1.msra.mxu0 0.0
    %5284 = vmatprep.subr.mxu0 0.0
    %5285 = vmatpush1.msra.mxu0 0.0
    %5286 = vmatprep.subr.mxu0 0.0
    %5287 = vmatpush1.msra.mxu0 0.0
    %5288 = vmatprep.subr.mxu0 0.0
    %5289 = vmatpush1.msra.mxu0 0.0
    %5290 = vmatprep.subr.mxu0 0.0
    %5291 = vmatpush1.msra.mxu0 0.0
    %5292 = vmatprep.subr.mxu0 0.0
    %5293 = vmatpush1.msra.mxu0 0.0
    %5294 = vmatprep.subr.mxu0 0.0
    %5295 = vmatpush1.msra.mxu0 0.0
    %5296 = vmatprep.subr.mxu0 0.0
    %5297 = vmatpush1.msra.mxu0 0.0
    %5298 = vmatprep.subr.mxu0 0.0
    %5299 = vmatpush1.msra.mxu0 0.0
    %5300 = vmatprep.subr.mxu0 0.0
    %5301 = vmatpush1.msra.mxu0 0.0
    %5302 = vmatprep.mubr.f32.mxu0 0.0
    %5303 = vmatmul.mubr.f32.gmra.mrb[0].mxu0 %v1020
    %v5304 = vpop.f32.mrb[0].mxu0
    %v5305 = vadd.f32 0.0, %v5304
    %v5306 = vpop.f32.mrb[0].mxu0
    %5307 = vmatprep.mubr.f32.mxu0 0.0
    %5308 = vmatmul.mubr.f32.gmra.mrb[0].mxu0 %v1023
    %v5309 = vpop.f32.mrb[0].mxu0
    %v5310 = vadd.f32 0.0, %v5309
    %v5311 = vpop.f32.mrb[0].mxu0
    %5312 = vdwg.mxu0
    %5314 = vrot.lane.b32.xlu0 %v5235, 96
    %v5315 = vpop.permute.xlu0 %5314
    %5317 = vmatprep.subr.mxu0 0.0
    %5318 = vmatpush1.msra.mxu0 %v5315
    %5319 = vmatprep.subr.mxu0 0.0
    %5320 = vmatpush1.msra.mxu0 0.0
    %5321 = vmatprep.subr.mxu0 0.0
    %5322 = vmatpush1.msra.mxu0 0.0
    %5323 = vmatprep.subr.mxu0 0.0
    %5324 = vmatpush1.msra.mxu0 0.0
    %5325 = vmatprep.subr.mxu0 0.0
    %5326 = vmatpush1.msra.mxu0 0.0
    %5327 = vmatprep.subr.mxu0 0.0
    %5328 = vmatpush1.msra.mxu0 0.0
    %5329 = vmatprep.subr.mxu0 0.0
    %5330 = vmatpush1.msra.mxu0 0.0
    %5331 = vmatprep.subr.mxu0 0.0
    %5332 = vmatpush1.msra.mxu0 0.0
    %5333 = vmatprep.subr.mxu0 0.0
    %5334 = vmatpush1.msra.mxu0 0.0
    %5335 = vmatprep.subr.mxu0 0.0
    %5336 = vmatpush1.msra.mxu0 0.0
    %5337 = vmatprep.subr.mxu0 0.0
    %5338 = vmatpush1.msra.mxu0 0.0
    %5339 = vmatprep.subr.mxu0 0.0
    %5340 = vmatpush1.msra.mxu0 0.0
    %5341 = vmatprep.subr.mxu0 0.0
    %5342 = vmatpush1.msra.mxu0 0.0
    %5343 = vmatprep.subr.mxu0 0.0
    %5344 = vmatpush1.msra.mxu0 0.0
    %5345 = vmatprep.subr.mxu0 0.0
    %5346 = vmatpush1.msra.mxu0 0.0
    %5347 = vmatprep.subr.mxu0 0.0
    %5348 = vmatpush1.msra.mxu0 0.0
    %5349 = vmatprep.subr.mxu0 0.0
    %5350 = vmatpush1.msra.mxu0 0.0
    %5351 = vmatprep.subr.mxu0 0.0
    %5352 = vmatpush1.msra.mxu0 0.0
    %5353 = vmatprep.subr.mxu0 0.0
    %5354 = vmatpush1.msra.mxu0 0.0
    %5355 = vmatprep.subr.mxu0 0.0
    %5356 = vmatpush1.msra.mxu0 0.0
    %5357 = vmatprep.subr.mxu0 0.0
    %5358 = vmatpush1.msra.mxu0 0.0
    %5359 = vmatprep.subr.mxu0 0.0
    %5360 = vmatpush1.msra.mxu0 0.0
    %5361 = vmatprep.subr.mxu0 0.0
    %5362 = vmatpush1.msra.mxu0 0.0
    %5363 = vmatprep.subr.mxu0 0.0
    %5364 = vmatpush1.msra.mxu0 0.0
    %5365 = vmatprep.subr.mxu0 0.0
    %5366 = vmatpush1.msra.mxu0 0.0
    %5367 = vmatprep.subr.mxu0 0.0
    %5368 = vmatpush1.msra.mxu0 0.0
    %5369 = vmatprep.subr.mxu0 0.0
    %5370 = vmatpush1.msra.mxu0 0.0
    %5371 = vmatprep.subr.mxu0 0.0
    %5372 = vmatpush1.msra.mxu0 0.0
    %5373 = vmatprep.subr.mxu0 0.0
    %5374 = vmatpush1.msra.mxu0 0.0
    %5375 = vmatprep.subr.mxu0 0.0
    %5376 = vmatpush1.msra.mxu0 0.0
    %5377 = vmatprep.subr.mxu0 0.0
    %5378 = vmatpush1.msra.mxu0 0.0
    %5379 = vmatprep.subr.mxu0 0.0
    %5380 = vmatpush1.msra.mxu0 0.0
    %5381 = vmatprep.mubr.f32.mxu0 0.0
    %5382 = vmatmul.mubr.f32.gmra.mrb[0].mxu0 %v939
    %v5383 = vpop.f32.mrb[0].mxu0
    %v5384 = vadd.f32 0.0, %v5383
    %v5385 = vpop.f32.mrb[0].mxu0
    %5386 = vmatprep.mubr.f32.mxu0 0.0
    %5387 = vmatmul.mubr.f32.gmra.mrb[0].mxu0 %v942
    %v5388 = vpop.f32.mrb[0].mxu0
    %v5389 = vadd.f32 0.0, %v5388
    %v5390 = vpop.f32.mrb[0].mxu0
    %5391 = vdwg.mxu0
    %5392 = vmatprep.subr.mxu0 0.0
    %5393 = vmatpush1.msra.mxu0 %v4647
    %5394 = vmatprep.subr.mxu0 0.0
    %5395 = vmatpush1.msra.mxu0 0.0
    %5396 = vmatprep.subr.mxu0 0.0
    %5397 = vmatpush1.msra.mxu0 0.0
    %5398 = vmatprep.subr.mxu0 0.0
    %5399 = vmatpush1.msra.mxu0 0.0
    %5400 = vmatprep.subr.mxu0 0.0
    %5401 = vmatpush1.msra.mxu0 0.0
    %5402 = vmatprep.subr.mxu0 0.0
    %5403 = vmatpush1.msra.mxu0 0.0
    %5404 = vmatprep.subr.mxu0 0.0
    %5405 = vmatpush1.msra.mxu0 0.0
    %5406 = vmatprep.subr.mxu0 0.0
    %5407 = vmatpush1.msra.mxu0 0.0
    %5408 = vmatprep.subr.mxu0 0.0
    %5409 = vmatpush1.msra.mxu0 0.0
    %5410 = vmatprep.subr.mxu0 0.0
    %5411 = vmatpush1.msra.mxu0 0.0
    %5412 = vmatprep.subr.mxu0 0.0
    %5413 = vmatpush1.msra.mxu0 0.0
    %5414 = vmatprep.subr.mxu0 0.0
    %5415 = vmatpush1.msra.mxu0 0.0
    %5416 = vmatprep.subr.mxu0 0.0
    %5417 = vmatpush1.msra.mxu0 0.0
    %5418 = vmatprep.subr.mxu0 0.0
    %5419 = vmatpush1.msra.mxu0 0.0
    %5420 = vmatprep.subr.mxu0 0.0
    %5421 = vmatpush1.msra.mxu0 0.0
    %5422 = vmatprep.subr.mxu0 0.0
    %5423 = vmatpush1.msra.mxu0 0.0
    %5424 = vmatprep.subr.mxu0 0.0
    %5425 = vmatpush1.msra.mxu0 0.0
    %5426 = vmatprep.subr.mxu0 0.0
    %5427 = vmatpush1.msra.mxu0 0.0
    %5428 = vmatprep.subr.mxu0 0.0
    %5429 = vmatpush1.msra.mxu0 0.0
    %5430 = vmatprep.subr.mxu0 0.0
    %5431 = vmatpush1.msra.mxu0 0.0
    %5432 = vmatprep.subr.mxu0 0.0
    %5433 = vmatpush1.msra.mxu0 0.0
    %5434 = vmatprep.subr.mxu0 0.0
    %5435 = vmatpush1.msra.mxu0 0.0
    %5436 = vmatprep.subr.mxu0 0.0
    %5437 = vmatpush1.msra.mxu0 0.0
    %5438 = vmatprep.subr.mxu0 0.0
    %5439 = vmatpush1.msra.mxu0 0.0
    %5440 = vmatprep.subr.mxu0 0.0
    %5441 = vmatpush1.msra.mxu0 0.0
    %5442 = vmatprep.subr.mxu0 0.0
    %5443 = vmatpush1.msra.mxu0 0.0
    %5444 = vmatprep.subr.mxu0 0.0
    %5445 = vmatpush1.msra.mxu0 0.0
    %5446 = vmatprep.subr.mxu0 0.0
    %5447 = vmatpush1.msra.mxu0 0.0
    %5448 = vmatprep.subr.mxu0 0.0
    %5449 = vmatpush1.msra.mxu0 0.0
    %5450 = vmatprep.subr.mxu0 0.0
    %5451 = vmatpush1.msra.mxu0 0.0
    %5452 = vmatprep.subr.mxu0 0.0
    %5453 = vmatpush1.msra.mxu0 0.0
    %5454 = vmatprep.subr.mxu0 0.0
    %5455 = vmatpush1.msra.mxu0 0.0
    %5456 = vmatprep.mubr.f32.mxu0 0.0
    %5457 = vmatmul.mubr.f32.gmra.mrb[0].mxu0 %v939
    %v5458 = vpop.f32.mrb[0].mxu0
    %v5459 = vadd.f32 0.0, %v5458
    %v5460 = vpop.f32.mrb[0].mxu0
    %5461 = vmatprep.mubr.f32.mxu0 0.0
    %5462 = vmatmul.mubr.f32.gmra.mrb[0].mxu0 %v942
    %v5463 = vpop.f32.mrb[0].mxu0
    %v5464 = vadd.f32 0.0, %v5463
    %v5465 = vpop.f32.mrb[0].mxu0
    %5466 = vdwg.mxu0
    %v5467 = vmul.f32 %v5305, %v5384
    %v5468 = vmul.f32 %v5310, %v5389
    %v5469 = vsel %vm797, %v5467, 0.0
    %5470 = vadd.xlane.f32.xlu0 %v5469
    %v5471 = vpop.xlane.xlu0 %5470
    %v5472 = vsel %vm797, %v5468, 0.0
    %5473 = vadd.xlane.f32.xlu0 %v5472
    %v5474 = vpop.xlane.xlu0 %5473
    %v5475 = vmul.f32 %v5471, 0.17677669
    %v5476 = vmul.f32 %v5474, 0.17677669
    %v5477 = vsel %vm2270, %v5475, -1e+30
    %v5478 = vsel %vm2271, %v5476, -1e+30
    %v5479 = vsel %vm937, %v5477, -inf
    %v5480 = vsel %vm937, %v5478, -inf
    %v5481 = vmax.f32 %v5479, %v5480
    %v5482 = vrot.slane %v5481, 4
    %v5483 = vmax.f32 %v5481, %v5482
    %v5484 = vrot.slane %v5483, 2
    %v5485 = vmax.f32 %v5483, %v5484
    %v5486 = vrot.slane %v5485, 1
    %v5487 = vmax.f32 %v5485, %v5486
    %v5488 = vmul.f32 %v689, %v5487
    %v5489 = vmul.f32 %v690, %v5487
    %v5490 = vsel %vm937, %v5488, 0.0
    %5491 = vadd.xlane.f32.xlu0 %v5490
    %v5492 = vpop.xlane.xlu0 %5491
    %v5493 = vsel %vm937, %v5489, 0.0
    %5494 = vadd.xlane.f32.xlu0 %v5493
    %v5495 = vpop.xlane.xlu0 %5494
    %v5496 = vsub.f32 %v5475, %v5492
    %v5497 = vsub.f32 %v5476, %v5495
    %v5498 = vmul.f32 %v5496, 1.442695
    %v5499 = vpow.pop %v5498
    %v5500 = vmul.f32 %v5497, 1.442695
    %v5501 = vpow.pop %v5500
    %v5502 = vmul.f32 %v689, %v5499
    %v5503 = vmul.f32 %v690, %v5501
    %v5504 = vsel %vm937, %v5502, 0.0
    %v5505 = vsel %vm937, %v5503, 0.0
    %v5506 = vadd.f32 %v5504, %v5505
    %v5507 = vrot.slane %v5506, 4
    %v5508 = vadd.f32 %v5506, %v5507
    %v5509 = vrot.slane %v5508, 2
    %v5510 = vadd.f32 %v5508, %v5509
    %v5511 = vrot.slane %v5510, 1
    %v5512 = vadd.f32 %v5510, %v5511
    %v5513 = vmul.f32 %v689, %v5512
    %v5514 = vmul.f32 %v690, %v5512
    %v5515 = vsel %vm937, %v5513, 0.0
    %5516 = vadd.xlane.f32.xlu0 %v5515
    %v5517 = vpop.xlane.xlu0 %5516
    %v5518 = vsel %vm937, %v5514, 0.0
    %5519 = vadd.xlane.f32.xlu0 %v5518
    %v5520 = vpop.xlane.xlu0 %5519
    %v5521 = vrcp.pop %v5517
    %v5522 = vmul.f32 %v5499, %v5521
    %v5523 = vrcp.pop %v5520
    %v5524 = vmul.f32 %v5501, %v5523
    %5526 = vset.pattern.permute.xlu0 0
    %5527 = vperm.xlu0 %5526, %v5459
    %v5528 = vpop.permute.xlu0 %5527
    %5531 = vset.pattern.permute.xlu0 0
    %5532 = vperm.xlu0 %5531, %v5464
    %v5533 = vpop.permute.xlu0 %5532
    %v5535 = vmul.f32 %v5528, %v4913
    %v5536 = vmul.f32 %v5533, %v4919
    %v5537 = vadd.f32 %v5535, 0.0
    %v5538 = vadd.f32 %v5536, 0.0
    %5539 = vset.pattern.permute.xlu0 1
    %5540 = vperm.xlu0 %5539, %v5459
    %v5541 = vpop.permute.xlu0 %5540
    %5543 = vset.pattern.permute.xlu0 1
    %5544 = vperm.xlu0 %5543, %v5464
    %v5545 = vpop.permute.xlu0 %5544
    %v5547 = vmul.f32 %v5541, %v4913
    %v5548 = vmul.f32 %v5545, %v4919
    %5551 = vrot.lane.b32.xlu0 %v5547, 96
    %v5552 = vpop.permute.xlu0 %5551
    %5553 = vrot.lane.b32.xlu0 %v5548, 96
    %v5554 = vpop.permute.xlu0 %5553
    %v5557 = vadd.f32 %v5537, %v5552
    %v5558 = vadd.f32 %v5538, %v5554
    %5559 = vset.pattern.permute.xlu0 2
    %5560 = vperm.xlu0 %5559, %v5459
    %v5561 = vpop.permute.xlu0 %5560
    %5563 = vset.pattern.permute.xlu0 2
    %5564 = vperm.xlu0 %5563, %v5464
    %v5565 = vpop.permute.xlu0 %5564
    %v5567 = vmul.f32 %v5561, %v4913
    %v5568 = vmul.f32 %v5565, %v4919
    %5571 = vrot.lane.b32.xlu0 %v5567, 64
    %v5572 = vpop.permute.xlu0 %5571
    %5573 = vrot.lane.b32.xlu0 %v5568, 64
    %v5574 = vpop.permute.xlu0 %5573
    %v5577 = vadd.f32 %v5557, %v5572
    %v5578 = vadd.f32 %v5558, %v5574
    %5579 = vset.pattern.permute.xlu0 3
    %5580 = vperm.xlu0 %5579, %v5459
    %v5581 = vpop.permute.xlu0 %5580
    %5583 = vset.pattern.permute.xlu0 3
    %5584 = vperm.xlu0 %5583, %v5464
    %v5585 = vpop.permute.xlu0 %5584
    %v5587 = vmul.f32 %v5581, %v4913
    %v5588 = vmul.f32 %v5585, %v4919
    %5591 = vrot.lane.b32.xlu0 %v5587, 32
    %v5592 = vpop.permute.xlu0 %5591
    %5593 = vrot.lane.b32.xlu0 %v5588, 32
    %v5594 = vpop.permute.xlu0 %5593
    %v5597 = vadd.f32 %v5577, %v5592
    %v5598 = vadd.f32 %v5578, %v5594
    %5599 = vset.pattern.permute.xlu0 4
    %5600 = vperm.xlu0 %5599, %v5459
    %v5601 = vpop.permute.xlu0 %5600
    %5603 = vset.pattern.permute.xlu0 4
    %5604 = vperm.xlu0 %5603, %v5464
    %v5605 = vpop.permute.xlu0 %5604
    %v5607 = vmul.f32 %v5601, %v4915
    %v5608 = vmul.f32 %v5605, %v4921
    %v5609 = vadd.f32 %v5597, %v5607
    %v5610 = vadd.f32 %v5598, %v5608
    %5611 = vset.pattern.permute.xlu0 5
    %5612 = vperm.xlu0 %5611, %v5459
    %v5613 = vpop.permute.xlu0 %5612
    %5615 = vset.pattern.permute.xlu0 5
    %5616 = vperm.xlu0 %5615, %v5464
    %v5617 = vpop.permute.xlu0 %5616
    %v5619 = vmul.f32 %v5613, %v4915
    %v5620 = vmul.f32 %v5617, %v4921
    %5623 = vrot.lane.b32.xlu0 %v5619, 96
    %v5624 = vpop.permute.xlu0 %5623
    %5625 = vrot.lane.b32.xlu0 %v5620, 96
    %v5626 = vpop.permute.xlu0 %5625
    %v5629 = vadd.f32 %v5609, %v5624
    %v5630 = vadd.f32 %v5610, %v5626
    %5631 = vset.pattern.permute.xlu0 6
    %5632 = vperm.xlu0 %5631, %v5459
    %v5633 = vpop.permute.xlu0 %5632
    %5635 = vset.pattern.permute.xlu0 6
    %5636 = vperm.xlu0 %5635, %v5464
    %v5637 = vpop.permute.xlu0 %5636
    %v5639 = vmul.f32 %v5633, %v4915
    %v5640 = vmul.f32 %v5637, %v4921
    %5643 = vrot.lane.b32.xlu0 %v5639, 64
    %v5644 = vpop.permute.xlu0 %5643
    %5645 = vrot.lane.b32.xlu0 %v5640, 64
    %v5646 = vpop.permute.xlu0 %5645
    %v5649 = vadd.f32 %v5629, %v5644
    %v5650 = vadd.f32 %v5630, %v5646
    %5651 = vset.pattern.permute.xlu0 7
    %5652 = vperm.xlu0 %5651, %v5459
    %v5653 = vpop.permute.xlu0 %5652
    %5655 = vset.pattern.permute.xlu0 7
    %5656 = vperm.xlu0 %5655, %v5464
    %v5657 = vpop.permute.xlu0 %5656
    %v5659 = vmul.f32 %v5653, %v4915
    %v5660 = vmul.f32 %v5657, %v4921
    %5663 = vrot.lane.b32.xlu0 %v5659, 32
    %v5664 = vpop.permute.xlu0 %5663
    %5665 = vrot.lane.b32.xlu0 %v5660, 32
    %v5666 = vpop.permute.xlu0 %5665
    %v5669 = vadd.f32 %v5649, %v5664
    %v5670 = vadd.f32 %v5650, %v5666
    %5671 = vset.pattern.permute.xlu0 8
    %5672 = vperm.xlu0 %5671, %v5459
    %v5673 = vpop.permute.xlu0 %5672
    %5675 = vset.pattern.permute.xlu0 8
    %5676 = vperm.xlu0 %5675, %v5464
    %v5677 = vpop.permute.xlu0 %5676
    %v5679 = vmul.f32 %v5673, %v4990
    %v5680 = vmul.f32 %v5677, %v4996
    %v5681 = vadd.f32 %v5669, %v5679
    %v5682 = vadd.f32 %v5670, %v5680
    %5683 = vset.pattern.permute.xlu0 9
    %5684 = vperm.xlu0 %5683, %v5459
    %v5685 = vpop.permute.xlu0 %5684
    %5687 = vset.pattern.permute.xlu0 9
    %5688 = vperm.xlu0 %5687, %v5464
    %v5689 = vpop.permute.xlu0 %5688
    %v5691 = vmul.f32 %v5685, %v4990
    %v5692 = vmul.f32 %v5689, %v4996
    %5695 = vrot.lane.b32.xlu0 %v5691, 96
    %v5696 = vpop.permute.xlu0 %5695
    %5697 = vrot.lane.b32.xlu0 %v5692, 96
    %v5698 = vpop.permute.xlu0 %5697
    %v5701 = vadd.f32 %v5681, %v5696
    %v5702 = vadd.f32 %v5682, %v5698
    %5703 = vset.pattern.permute.xlu0 10
    %5704 = vperm.xlu0 %5703, %v5459
    %v5705 = vpop.permute.xlu0 %5704
    %5707 = vset.pattern.permute.xlu0 10
    %5708 = vperm.xlu0 %5707, %v5464
    %v5709 = vpop.permute.xlu0 %5708
    %v5711 = vmul.f32 %v5705, %v4990
    %v5712 = vmul.f32 %v5709, %v4996
    %5715 = vrot.lane.b32.xlu0 %v5711, 64
    %v5716 = vpop.permute.xlu0 %5715
    %5717 = vrot.lane.b32.xlu0 %v5712, 64
    %v5718 = vpop.permute.xlu0 %5717
    %v5721 = vadd.f32 %v5701, %v5716
    %v5722 = vadd.f32 %v5702, %v5718
    %5723 = vset.pattern.permute.xlu0 11
    %5724 = vperm.xlu0 %5723, %v5459
    %v5725 = vpop.permute.xlu0 %5724
    %5727 = vset.pattern.permute.xlu0 11
    %5728 = vperm.xlu0 %5727, %v5464
    %v5729 = vpop.permute.xlu0 %5728
    %v5731 = vmul.f32 %v5725, %v4990
    %v5732 = vmul.f32 %v5729, %v4996
    %5735 = vrot.lane.b32.xlu0 %v5731, 32
    %v5736 = vpop.permute.xlu0 %5735
    %5737 = vrot.lane.b32.xlu0 %v5732, 32
    %v5738 = vpop.permute.xlu0 %5737
    %v5741 = vadd.f32 %v5721, %v5736
    %v5742 = vadd.f32 %v5722, %v5738
    %5743 = vset.pattern.permute.xlu0 12
    %5744 = vperm.xlu0 %5743, %v5459
    %v5745 = vpop.permute.xlu0 %5744
    %5747 = vset.pattern.permute.xlu0 12
    %5748 = vperm.xlu0 %5747, %v5464
    %v5749 = vpop.permute.xlu0 %5748
    %v5751 = vmul.f32 %v5745, %v4992
    %v5752 = vmul.f32 %v5749, %v4998
    %v5753 = vadd.f32 %v5741, %v5751
    %v5754 = vadd.f32 %v5742, %v5752
    %5755 = vset.pattern.permute.xlu0 13
    %5756 = vperm.xlu0 %5755, %v5459
    %v5757 = vpop.permute.xlu0 %5756
    %5759 = vset.pattern.permute.xlu0 13
    %5760 = vperm.xlu0 %5759, %v5464
    %v5761 = vpop.permute.xlu0 %5760
    %v5763 = vmul.f32 %v5757, %v4992
    %v5764 = vmul.f32 %v5761, %v4998
    %5767 = vrot.lane.b32.xlu0 %v5763, 96
    %v5768 = vpop.permute.xlu0 %5767
    %5769 = vrot.lane.b32.xlu0 %v5764, 96
    %v5770 = vpop.permute.xlu0 %5769
    %v5773 = vadd.f32 %v5753, %v5768
    %v5774 = vadd.f32 %v5754, %v5770
    %5775 = vset.pattern.permute.xlu0 14
    %5776 = vperm.xlu0 %5775, %v5459
    %v5777 = vpop.permute.xlu0 %5776
    %5779 = vset.pattern.permute.xlu0 14
    %5780 = vperm.xlu0 %5779, %v5464
    %v5781 = vpop.permute.xlu0 %5780
    %v5783 = vmul.f32 %v5777, %v4992
    %v5784 = vmul.f32 %v5781, %v4998
    %5787 = vrot.lane.b32.xlu0 %v5783, 64
    %v5788 = vpop.permute.xlu0 %5787
    %5789 = vrot.lane.b32.xlu0 %v5784, 64
    %v5790 = vpop.permute.xlu0 %5789
    %v5793 = vadd.f32 %v5773, %v5788
    %v5794 = vadd.f32 %v5774, %v5790
    %5795 = vset.pattern.permute.xlu0 15
    %5796 = vperm.xlu0 %5795, %v5459
    %v5797 = vpop.permute.xlu0 %5796
    %5799 = vset.pattern.permute.xlu0 15
    %5800 = vperm.xlu0 %5799, %v5464
    %v5801 = vpop.permute.xlu0 %5800
    %v5803 = vmul.f32 %v5797, %v4992
    %v5804 = vmul.f32 %v5801, %v4998
    %5807 = vrot.lane.b32.xlu0 %v5803, 32
    %v5808 = vpop.permute.xlu0 %5807
    %5809 = vrot.lane.b32.xlu0 %v5804, 32
    %v5810 = vpop.permute.xlu0 %5809
    %v5813 = vadd.f32 %v5793, %v5808
    %v5814 = vadd.f32 %v5794, %v5810
    %5815 = vset.pattern.permute.xlu0 16
    %5816 = vperm.xlu0 %5815, %v5459
    %v5817 = vpop.permute.xlu0 %5816
    %5819 = vset.pattern.permute.xlu0 16
    %5820 = vperm.xlu0 %5819, %v5464
    %v5821 = vpop.permute.xlu0 %5820
    %v5823 = vmul.f32 %v5817, %v5067
    %v5824 = vmul.f32 %v5821, %v5073
    %v5825 = vadd.f32 %v5813, %v5823
    %v5826 = vadd.f32 %v5814, %v5824
    %5827 = vset.pattern.permute.xlu0 17
    %5828 = vperm.xlu0 %5827, %v5459
    %v5829 = vpop.permute.xlu0 %5828
    %5831 = vset.pattern.permute.xlu0 17
    %5832 = vperm.xlu0 %5831, %v5464
    %v5833 = vpop.permute.xlu0 %5832
    %v5835 = vmul.f32 %v5829, %v5067
    %v5836 = vmul.f32 %v5833, %v5073
    %5839 = vrot.lane.b32.xlu0 %v5835, 96
    %v5840 = vpop.permute.xlu0 %5839
    %5841 = vrot.lane.b32.xlu0 %v5836, 96
    %v5842 = vpop.permute.xlu0 %5841
    %v5845 = vadd.f32 %v5825, %v5840
    %v5846 = vadd.f32 %v5826, %v5842
    %5847 = vset.pattern.permute.xlu0 18
    %5848 = vperm.xlu0 %5847, %v5459
    %v5849 = vpop.permute.xlu0 %5848
    %5851 = vset.pattern.permute.xlu0 18
    %5852 = vperm.xlu0 %5851, %v5464
    %v5853 = vpop.permute.xlu0 %5852
    %v5855 = vmul.f32 %v5849, %v5067
    %v5856 = vmul.f32 %v5853, %v5073
    %5859 = vrot.lane.b32.xlu0 %v5855, 64
    %v5860 = vpop.permute.xlu0 %5859
    %5861 = vrot.lane.b32.xlu0 %v5856, 64
    %v5862 = vpop.permute.xlu0 %5861
    %v5865 = vadd.f32 %v5845, %v5860
    %v5866 = vadd.f32 %v5846, %v5862
    %5867 = vset.pattern.permute.xlu0 19
    %5868 = vperm.xlu0 %5867, %v5459
    %v5869 = vpop.permute.xlu0 %5868
    %5871 = vset.pattern.permute.xlu0 19
    %5872 = vperm.xlu0 %5871, %v5464
    %v5873 = vpop.permute.xlu0 %5872
    %v5875 = vmul.f32 %v5869, %v5067
    %v5876 = vmul.f32 %v5873, %v5073
    %5879 = vrot.lane.b32.xlu0 %v5875, 32
    %v5880 = vpop.permute.xlu0 %5879
    %5881 = vrot.lane.b32.xlu0 %v5876, 32
    %v5882 = vpop.permute.xlu0 %5881
    %v5885 = vadd.f32 %v5865, %v5880
    %v5886 = vadd.f32 %v5866, %v5882
    %5887 = vset.pattern.permute.xlu0 20
    %5888 = vperm.xlu0 %5887, %v5459
    %v5889 = vpop.permute.xlu0 %5888
    %5891 = vset.pattern.permute.xlu0 20
    %5892 = vperm.xlu0 %5891, %v5464
    %v5893 = vpop.permute.xlu0 %5892
    %v5895 = vmul.f32 %v5889, %v5069
    %v5896 = vmul.f32 %v5893, %v5075
    %v5897 = vadd.f32 %v5885, %v5895
    %v5898 = vadd.f32 %v5886, %v5896
    %5899 = vset.pattern.permute.xlu0 21
    %5900 = vperm.xlu0 %5899, %v5459
    %v5901 = vpop.permute.xlu0 %5900
    %5903 = vset.pattern.permute.xlu0 21
    %5904 = vperm.xlu0 %5903, %v5464
    %v5905 = vpop.permute.xlu0 %5904
    %v5907 = vmul.f32 %v5901, %v5069
    %v5908 = vmul.f32 %v5905, %v5075
    %5911 = vrot.lane.b32.xlu0 %v5907, 96
    %v5912 = vpop.permute.xlu0 %5911
    %5913 = vrot.lane.b32.xlu0 %v5908, 96
    %v5914 = vpop.permute.xlu0 %5913
    %v5917 = vadd.f32 %v5897, %v5912
    %v5918 = vadd.f32 %v5898, %v5914
    %5919 = vset.pattern.permute.xlu0 22
    %5920 = vperm.xlu0 %5919, %v5459
    %v5921 = vpop.permute.xlu0 %5920
    %5923 = vset.pattern.permute.xlu0 22
    %5924 = vperm.xlu0 %5923, %v5464
    %v5925 = vpop.permute.xlu0 %5924
    %v5927 = vmul.f32 %v5921, %v5069
    %v5928 = vmul.f32 %v5925, %v5075
    %5931 = vrot.lane.b32.xlu0 %v5927, 64
    %v5932 = vpop.permute.xlu0 %5931
    %5933 = vrot.lane.b32.xlu0 %v5928, 64
    %v5934 = vpop.permute.xlu0 %5933
    %v5937 = vadd.f32 %v5917, %v5932
    %v5938 = vadd.f32 %v5918, %v5934
    %5939 = vset.pattern.permute.xlu0 23
    %5940 = vperm.xlu0 %5939, %v5459
    %v5941 = vpop.permute.xlu0 %5940
    %5943 = vset.pattern.permute.xlu0 23
    %5944 = vperm.xlu0 %5943, %v5464
    %v5945 = vpop.permute.xlu0 %5944
    %v5947 = vmul.f32 %v5941, %v5069
    %v5948 = vmul.f32 %v5945, %v5075
    %5951 = vrot.lane.b32.xlu0 %v5947, 32
    %v5952 = vpop.permute.xlu0 %5951
    %5953 = vrot.lane.b32.xlu0 %v5948, 32
    %v5954 = vpop.permute.xlu0 %5953
    %v5957 = vadd.f32 %v5937, %v5952
    %v5958 = vadd.f32 %v5938, %v5954
    %5959 = vset.pattern.permute.xlu0 24
    %5960 = vperm.xlu0 %5959, %v5459
    %v5961 = vpop.permute.xlu0 %5960
    %5963 = vset.pattern.permute.xlu0 24
    %5964 = vperm.xlu0 %5963, %v5464
    %v5965 = vpop.permute.xlu0 %5964
    %v5967 = vmul.f32 %v5961, %v5144
    %v5968 = vmul.f32 %v5965, %v5150
    %v5969 = vadd.f32 %v5957, %v5967
    %v5970 = vadd.f32 %v5958, %v5968
    %5971 = vset.pattern.permute.xlu0 25
    %5972 = vperm.xlu0 %5971, %v5459
    %v5973 = vpop.permute.xlu0 %5972
    %5975 = vset.pattern.permute.xlu0 25
    %5976 = vperm.xlu0 %5975, %v5464
    %v5977 = vpop.permute.xlu0 %5976
    %v5979 = vmul.f32 %v5973, %v5144
    %v5980 = vmul.f32 %v5977, %v5150
    %5983 = vrot.lane.b32.xlu0 %v5979, 96
    %v5984 = vpop.permute.xlu0 %5983
    %5985 = vrot.lane.b32.xlu0 %v5980, 96
    %v5986 = vpop.permute.xlu0 %5985
    %v5989 = vadd.f32 %v5969, %v5984
    %v5990 = vadd.f32 %v5970, %v5986
    %5991 = vset.pattern.permute.xlu0 26
    %5992 = vperm.xlu0 %5991, %v5459
    %v5993 = vpop.permute.xlu0 %5992
    %5995 = vset.pattern.permute.xlu0 26
    %5996 = vperm.xlu0 %5995, %v5464
    %v5997 = vpop.permute.xlu0 %5996
    %v5999 = vmul.f32 %v5993, %v5144
    %v6000 = vmul.f32 %v5997, %v5150
    %6003 = vrot.lane.b32.xlu0 %v5999, 64
    %v6004 = vpop.permute.xlu0 %6003
    %6005 = vrot.lane.b32.xlu0 %v6000, 64
    %v6006 = vpop.permute.xlu0 %6005
    %v6009 = vadd.f32 %v5989, %v6004
    %v6010 = vadd.f32 %v5990, %v6006
    %6011 = vset.pattern.permute.xlu0 27
    %6012 = vperm.xlu0 %6011, %v5459
    %v6013 = vpop.permute.xlu0 %6012
    %6015 = vset.pattern.permute.xlu0 27
    %6016 = vperm.xlu0 %6015, %v5464
    %v6017 = vpop.permute.xlu0 %6016
    %v6019 = vmul.f32 %v6013, %v5144
    %v6020 = vmul.f32 %v6017, %v5150
    %6023 = vrot.lane.b32.xlu0 %v6019, 32
    %v6024 = vpop.permute.xlu0 %6023
    %6025 = vrot.lane.b32.xlu0 %v6020, 32
    %v6026 = vpop.permute.xlu0 %6025
    %v6029 = vadd.f32 %v6009, %v6024
    %v6030 = vadd.f32 %v6010, %v6026
    %6031 = vset.pattern.permute.xlu0 28
    %6032 = vperm.xlu0 %6031, %v5459
    %v6033 = vpop.permute.xlu0 %6032
    %6035 = vset.pattern.permute.xlu0 28
    %6036 = vperm.xlu0 %6035, %v5464
    %v6037 = vpop.permute.xlu0 %6036
    %v6039 = vmul.f32 %v6033, %v5146
    %v6040 = vmul.f32 %v6037, %v5152
    %v6041 = vadd.f32 %v6029, %v6039
    %v6042 = vadd.f32 %v6030, %v6040
    %6043 = vset.pattern.permute.xlu0 29
    %6044 = vperm.xlu0 %6043, %v5459
    %v6045 = vpop.permute.xlu0 %6044
    %6047 = vset.pattern.permute.xlu0 29
    %6048 = vperm.xlu0 %6047, %v5464
    %v6049 = vpop.permute.xlu0 %6048
    %v6051 = vmul.f32 %v6045, %v5146
    %v6052 = vmul.f32 %v6049, %v5152
    %6055 = vrot.lane.b32.xlu0 %v6051, 96
    %v6056 = vpop.permute.xlu0 %6055
    %6057 = vrot.lane.b32.xlu0 %v6052, 96
    %v6058 = vpop.permute.xlu0 %6057
    %v6061 = vadd.f32 %v6041, %v6056
    %v6062 = vadd.f32 %v6042, %v6058
    %6063 = vset.pattern.permute.xlu0 30
    %6064 = vperm.xlu0 %6063, %v5459
    %v6065 = vpop.permute.xlu0 %6064
    %6067 = vset.pattern.permute.xlu0 30
    %6068 = vperm.xlu0 %6067, %v5464
    %v6069 = vpop.permute.xlu0 %6068
    %v6071 = vmul.f32 %v6065, %v5146
    %v6072 = vmul.f32 %v6069, %v5152
    %6075 = vrot.lane.b32.xlu0 %v6071, 64
    %v6076 = vpop.permute.xlu0 %6075
    %6077 = vrot.lane.b32.xlu0 %v6072, 64
    %v6078 = vpop.permute.xlu0 %6077
    %v6081 = vadd.f32 %v6061, %v6076
    %v6082 = vadd.f32 %v6062, %v6078
    %6083 = vset.pattern.permute.xlu0 31
    %6084 = vperm.xlu0 %6083, %v5459
    %v6085 = vpop.permute.xlu0 %6084
    %6087 = vset.pattern.permute.xlu0 31
    %6088 = vperm.xlu0 %6087, %v5464
    %v6089 = vpop.permute.xlu0 %6088
    %v6091 = vmul.f32 %v6085, %v5146
    %v6092 = vmul.f32 %v6089, %v5152
    %6095 = vrot.lane.b32.xlu0 %v6091, 32
    %v6096 = vpop.permute.xlu0 %6095
    %6097 = vrot.lane.b32.xlu0 %v6092, 32
    %v6098 = vpop.permute.xlu0 %6097
    %v6101 = vadd.f32 %v6081, %v6096
    %v6102 = vadd.f32 %v6082, %v6098
    %v6103 = vmul.f32 %v6101, %v5522
    %v6104 = vmul.f32 %v6102, %v5524
    %6105 = vrot.lane.b32.xlu0 %v5235, 64
    %v6106 = vpop.permute.xlu0 %6105
    %6108 = vmatprep.subr.mxu0 0.0
    %6109 = vmatpush1.msra.mxu0 %v6103
    %6110 = vmatprep.subr.mxu0 0.0
    %6111 = vmatpush1.msra.mxu0 %v6104
    %6112 = vmatprep.subr.mxu0 0.0
    %6113 = vmatpush1.msra.mxu0 0.0
    %6114 = vmatprep.subr.mxu0 0.0
    %6115 = vmatpush1.msra.mxu0 0.0
    %6116 = vmatprep.subr.mxu0 0.0
    %6117 = vmatpush1.msra.mxu0 0.0
    %6118 = vmatprep.subr.mxu0 0.0
    %6119 = vmatpush1.msra.mxu0 0.0
    %6120 = vmatprep.subr.mxu0 0.0
    %6121 = vmatpush1.msra.mxu0 0.0
    %6122 = vmatprep.subr.mxu0 0.0
    %6123 = vmatpush1.msra.mxu0 0.0
    %6124 = vmatprep.subr.mxu0 0.0
    %6125 = vmatpush1.msra.mxu0 0.0
    %6126 = vmatprep.subr.mxu0 0.0
    %6127 = vmatpush1.msra.mxu0 0.0
    %6128 = vmatprep.subr.mxu0 0.0
    %6129 = vmatpush1.msra.mxu0 0.0
    %6130 = vmatprep.subr.mxu0 0.0
    %6131 = vmatpush1.msra.mxu0 0.0
    %6132 = vmatprep.subr.mxu0 0.0
    %6133 = vmatpush1.msra.mxu0 0.0
    %6134 = vmatprep.subr.mxu0 0.0
    %6135 = vmatpush1.msra.mxu0 0.0
    %6136 = vmatprep.subr.mxu0 0.0
    %6137 = vmatpush1.msra.mxu0 0.0
    %6138 = vmatprep.subr.mxu0 0.0
    %6139 = vmatpush1.msra.mxu0 0.0
    %6140 = vmatprep.subr.mxu0 0.0
    %6141 = vmatpush1.msra.mxu0 0.0
    %6142 = vmatprep.subr.mxu0 0.0
    %6143 = vmatpush1.msra.mxu0 0.0
    %6144 = vmatprep.subr.mxu0 0.0
    %6145 = vmatpush1.msra.mxu0 0.0
    %6146 = vmatprep.subr.mxu0 0.0
    %6147 = vmatpush1.msra.mxu0 0.0
    %6148 = vmatprep.subr.mxu0 0.0
    %6149 = vmatpush1.msra.mxu0 0.0
    %6150 = vmatprep.subr.mxu0 0.0
    %6151 = vmatpush1.msra.mxu0 0.0
    %6152 = vmatprep.subr.mxu0 0.0
    %6153 = vmatpush1.msra.mxu0 0.0
    %6154 = vmatprep.subr.mxu0 0.0
    %6155 = vmatpush1.msra.mxu0 0.0
    %6156 = vmatprep.subr.mxu0 0.0
    %6157 = vmatpush1.msra.mxu0 0.0
    %6158 = vmatprep.subr.mxu0 0.0
    %6159 = vmatpush1.msra.mxu0 0.0
    %6160 = vmatprep.subr.mxu0 0.0
    %6161 = vmatpush1.msra.mxu0 0.0
    %6162 = vmatprep.subr.mxu0 0.0
    %6163 = vmatpush1.msra.mxu0 0.0
    %6164 = vmatprep.subr.mxu0 0.0
    %6165 = vmatpush1.msra.mxu0 0.0
    %6166 = vmatprep.subr.mxu0 0.0
    %6167 = vmatpush1.msra.mxu0 0.0
    %6168 = vmatprep.subr.mxu0 0.0
    %6169 = vmatpush1.msra.mxu0 0.0
    %6170 = vmatprep.subr.mxu0 0.0
    %6171 = vmatpush1.msra.mxu0 0.0
    %6172 = vmatprep.mubr.f32.mxu0 0.0
    %6173 = vmatmul.mubr.f32.gmra.mrb[0].mxu0 %v2934
    %v6174 = vpop.f32.mrb[0].mxu0
    %v6175 = vadd.f32 %v6106, %v6174
    %v6176 = vpop.f32.mrb[0].mxu0
    %6177 = vdwg.mxu0
    %v6178 = vld [vmem:[#allocation50] sm:$0x1]
    %v6179 = vld [vmem:[#allocation52] sm:$0x1]
    %v6180 = vsel %vm797, %v6175, 0.0
    %6181 = vadd.xlane.f32.xlu0 %v6180
    %v6182 = vpop.xlane.xlu0 %6181
    %v6183 = vmul.f32 %v696, %v6182
    %v6184 = vsel %vm697, %v6183, 0.0
    %v6185 = vrot.slane %v6184, 4
    %v6186 = vadd.f32 %v6184, %v6185
    %v6187 = vrot.slane %v6186, 2
    %v6188 = vadd.f32 %v6186, %v6187
    %v6189 = vrot.slane %v6188, 1
    %v6190 = vadd.f32 %v6188, %v6189
    %v6191 = vmul.f32 %v6190, %v809
    %v6192 = vmul.f32 %v696, %v6191
    %v6193 = vsel %vm697, %v6192, 0.0
    %6194 = vadd.xlane.f32.xlu0 %v6193
    %v6195 = vpop.xlane.xlu0 %6194
    %v6196 = vsub.f32 %v6175, %v6195
    %v6197 = vmul.f32 %v6196, %v6196
    %v6198 = vsel %vm797, %v6197, 0.0
    %6199 = vadd.xlane.f32.xlu0 %v6198
    %v6200 = vpop.xlane.xlu0 %6199
    %v6201 = vmul.f32 %v696, %v6200
    %v6202 = vsel %vm697, %v6201, 0.0
    %v6203 = vrot.slane %v6202, 4
    %v6204 = vadd.f32 %v6202, %v6203
    %v6205 = vrot.slane %v6204, 2
    %v6206 = vadd.f32 %v6204, %v6205
    %v6207 = vrot.slane %v6206, 1
    %v6208 = vadd.f32 %v6206, %v6207
    %v6209 = vmul.f32 %v6208, %v809
    %v6210 = vmul.f32 %v696, %v6209
    %v6211 = vsel %vm697, %v6210, 0.0
    %6212 = vadd.xlane.f32.xlu0 %v6211
    %v6213 = vpop.xlane.xlu0 %6212
    %v6214 = vadd.f32 %v6213, 1e-05
    %v6215 = vrsqrt.pop %v6214
    %v6216 = vmul.f32 %v6196, %v6215
    %v6218 = vlaneseq
    %v6219 = vshrl.u32 %v6218, 7
    %v6220 = vsub.s32 0, %v6219
    %v6221 = vrot.slane %v6178, %v6220
    %v6223 = vmul.f32 %v6216, %v6221
    %v6225 = vlaneseq
    %v6226 = vshrl.u32 %v6225, 7
    %v6227 = vsub.s32 0, %v6226
    %v6228 = vrot.slane %v6179, %v6227
    %v6230 = vadd.f32 %v6223, %v6228
    %v6231 = vrcp.pop %v705
    %v6232 = vmul.f32 %v696, %v6231
    %6233 = vxpose.xlu0.b32.start [1/16] %v6232, 128
    %6234 = vxpose.xlu0.b32.cont [2/16] 0.0, 128
    %6235 = vxpose.xlu0.b32.cont [3/16] 0.0, 128
    %6236 = vxpose.xlu0.b32.cont [4/16] 0.0, 128
    %6237 = vxpose.xlu0.b32.cont [5/16] 0.0, 128
    %6238 = vxpose.xlu0.b32.cont [6/16] 0.0, 128
    %6239 = vxpose.xlu0.b32.cont [7/16] 0.0, 128
    %6240 = vxpose.xlu0.b32.cont [8/16] 0.0, 128
    %6241 = vxpose.xlu0.b32.cont [9/16] 0.0, 128
    %6242 = vxpose.xlu0.b32.cont [10/16] 0.0, 128
    %6243 = vxpose.xlu0.b32.cont [11/16] 0.0, 128
    %6244 = vxpose.xlu0.b32.cont [12/16] 0.0, 128
    %6245 = vxpose.xlu0.b32.cont [13/16] 0.0, 128
    %6246 = vxpose.xlu0.b32.cont [14/16] 0.0, 128
    %6247 = vxpose.xlu0.b32.cont [15/16] 0.0, 128
    %6248 = vxpose.xlu0.b32.end [16/16] 0.0, 128
    %v6249 = vpop.trf.xlu0
    %v6250 = vpop.trf.xlu0
    %v6251 = vpop.trf.xlu0
    %v6252 = vpop.trf.xlu0
    %v6253 = vpop.trf.xlu0
    %v6254 = vpop.trf.xlu0
    %v6255 = vpop.trf.xlu0
    %v6256 = vpop.trf.xlu0
    %v6257 = vpop.trf.xlu0
    %v6258 = vpop.trf.xlu0
    %v6259 = vpop.trf.xlu0
    %v6260 = vpop.trf.xlu0
    %v6261 = vpop.trf.xlu0
    %v6262 = vpop.trf.xlu0
    %v6263 = vpop.trf.xlu0
    %v6264 = vpop.trf.xlu0
    %v6266 = vsel %vm937, %v6249, 0
    %6268 = vmatprep.subr.mxu0 0.0
    %6269 = vmatpush1.msra.mxu0 %v6230
    %6270 = vmatprep.subr.mxu0 0.0
    %6271 = vmatpush1.msra.mxu0 0.0
    %6272 = vmatprep.subr.mxu0 0.0
    %6273 = vmatpush1.msra.mxu0 0.0
    %6274 = vmatprep.subr.mxu0 0.0
    %6275 = vmatpush1.msra.mxu0 0.0
    %6276 = vmatprep.subr.mxu0 0.0
    %6277 = vmatpush1.msra.mxu0 0.0
    %6278 = vmatprep.subr.mxu0 0.0
    %6279 = vmatpush1.msra.mxu0 0.0
    %6280 = vmatprep.subr.mxu0 0.0
    %6281 = vmatpush1.msra.mxu0 0.0
    %6282 = vmatprep.subr.mxu0 0.0
    %6283 = vmatpush1.msra.mxu0 0.0
    %6284 = vmatprep.subr.mxu0 0.0
    %6285 = vmatpush1.msra.mxu0 0.0
    %6286 = vmatprep.subr.mxu0 0.0
    %6287 = vmatpush1.msra.mxu0 0.0
    %6288 = vmatprep.subr.mxu0 0.0
    %6289 = vmatpush1.msra.mxu0 0.0
    %6290 = vmatprep.subr.mxu0 0.0
    %6291 = vmatpush1.msra.mxu0 0.0
    %6292 = vmatprep.subr.mxu0 0.0
    %6293 = vmatpush1.msra.mxu0 0.0
    %6294 = vmatprep.subr.mxu0 0.0
    %6295 = vmatpush1.msra.mxu0 0.0
    %6296 = vmatprep.subr.mxu0 0.0
    %6297 = vmatpush1.msra.mxu0 0.0
    %6298 = vmatprep.subr.mxu0 0.0
    %6299 = vmatpush1.msra.mxu0 0.0
    %6300 = vmatprep.subr.mxu0 0.0
    %6301 = vmatpush1.msra.mxu0 0.0
    %6302 = vmatprep.subr.mxu0 0.0
    %6303 = vmatpush1.msra.mxu0 0.0
    %6304 = vmatprep.subr.mxu0 0.0
    %6305 = vmatpush1.msra.mxu0 0.0
    %6306 = vmatprep.subr.mxu0 0.0
    %6307 = vmatpush1.msra.mxu0 0.0
    %6308 = vmatprep.subr.mxu0 0.0
    %6309 = vmatpush1.msra.mxu0 0.0
    %6310 = vmatprep.subr.mxu0 0.0
    %6311 = vmatpush1.msra.mxu0 0.0
    %6312 = vmatprep.subr.mxu0 0.0
    %6313 = vmatpush1.msra.mxu0 0.0
    %6314 = vmatprep.subr.mxu0 0.0
    %6315 = vmatpush1.msra.mxu0 0.0
    %6316 = vmatprep.subr.mxu0 0.0
    %6317 = vmatpush1.msra.mxu0 0.0
    %6318 = vmatprep.subr.mxu0 0.0
    %6319 = vmatpush1.msra.mxu0 0.0
    %6320 = vmatprep.subr.mxu0 0.0
    %6321 = vmatpush1.msra.mxu0 0.0
    %6322 = vmatprep.subr.mxu0 0.0
    %6323 = vmatpush1.msra.mxu0 0.0
    %6324 = vmatprep.subr.mxu0 0.0
    %6325 = vmatpush1.msra.mxu0 0.0
    %6326 = vmatprep.subr.mxu0 0.0
    %6327 = vmatpush1.msra.mxu0 0.0
    %6328 = vmatprep.subr.mxu0 0.0
    %6329 = vmatpush1.msra.mxu0 0.0
    %6330 = vmatprep.subr.mxu0 0.0
    %6331 = vmatpush1.msra.mxu0 0.0
    %6332 = vmatprep.mubr.f32.mxu0 0.0
    %6333 = vmatmul.mubr.f32.gmra.mrb[0].mxu0 %v6266
    %v6334 = vpop.f32.mrb[0].mxu0
    %v6335 = vadd.f32 0.0, %v6334
    %v6336 = vpop.f32.mrb[0].mxu0
    %6337 = vdwg.mxu0
    %v6338 = vld [vmem:[%s99] sm:$0xff]
    %v6339 = vld [vmem:[%s99 + $0x8] sm:$0xff]
    %v6340 = vld [vmem:[%s99 + $0x10] sm:$0xff]
    %v6341 = vld [vmem:[%s99 + $0x18] sm:$0xff]
    %v6342 = vld [vmem:[#allocation53] sm:$0x1]
    %v6344 = vlaneseq
    %v6345 = vshrl.u32 %v6344, 7
    %v6346 = vsub.s32 0, %v6345
    %v6347 = vrot.slane %v6342, %v6346
    %v6350 = vsel %vm797, %v6335, 0
    %6352 = vmatprep.subr.mxu0 0.0
    %6353 = vmatpush1.msra.mxu0 %v6338
    %6354 = vmatprep.subr.mxu0 0.0
    %6355 = vmatpush1.msra.mxu0 %v6339
    %6356 = vmatprep.subr.mxu0 0.0
    %6357 = vmatpush1.msra.mxu0 %v6340
    %6358 = vmatprep.subr.mxu0 0.0
    %6359 = vmatpush1.msra.mxu0 %v6341
    %6360 = vmatprep.subr.mxu0 0.0
    %6361 = vmatpush1.msra.mxu0 0.0
    %6362 = vmatprep.subr.mxu0 0.0
    %6363 = vmatpush1.msra.mxu0 0.0
    %6364 = vmatprep.subr.mxu0 0.0
    %6365 = vmatpush1.msra.mxu0 0.0
    %6366 = vmatprep.subr.mxu0 0.0
    %6367 = vmatpush1.msra.mxu0 0.0
    %6368 = vmatprep.subr.mxu0 0.0
    %6369 = vmatpush1.msra.mxu0 0.0
    %6370 = vmatprep.subr.mxu0 0.0
    %6371 = vmatpush1.msra.mxu0 0.0
    %6372 = vmatprep.subr.mxu0 0.0
    %6373 = vmatpush1.msra.mxu0 0.0
    %6374 = vmatprep.subr.mxu0 0.0
    %6375 = vmatpush1.msra.mxu0 0.0
    %6376 = vmatprep.subr.mxu0 0.0
    %6377 = vmatpush1.msra.mxu0 0.0
    %6378 = vmatprep.subr.mxu0 0.0
    %6379 = vmatpush1.msra.mxu0 0.0
    %6380 = vmatprep.subr.mxu0 0.0
    %6381 = vmatpush1.msra.mxu0 0.0
    %6382 = vmatprep.subr.mxu0 0.0
    %6383 = vmatpush1.msra.mxu0 0.0
    %6384 = vmatprep.subr.mxu0 0.0
    %6385 = vmatpush1.msra.mxu0 0.0
    %6386 = vmatprep.subr.mxu0 0.0
    %6387 = vmatpush1.msra.mxu0 0.0
    %6388 = vmatprep.subr.mxu0 0.0
    %6389 = vmatpush1.msra.mxu0 0.0
    %6390 = vmatprep.subr.mxu0 0.0
    %6391 = vmatpush1.msra.mxu0 0.0
    %6392 = vmatprep.subr.mxu0 0.0
    %6393 = vmatpush1.msra.mxu0 0.0
    %6394 = vmatprep.subr.mxu0 0.0
    %6395 = vmatpush1.msra.mxu0 0.0
    %6396 = vmatprep.subr.mxu0 0.0
    %6397 = vmatpush1.msra.mxu0 0.0
    %6398 = vmatprep.subr.mxu0 0.0
    %6399 = vmatpush1.msra.mxu0 0.0
    %6400 = vmatprep.subr.mxu0 0.0
    %6401 = vmatpush1.msra.mxu0 0.0
    %6402 = vmatprep.subr.mxu0 0.0
    %6403 = vmatpush1.msra.mxu0 0.0
    %6404 = vmatprep.subr.mxu0 0.0
    %6405 = vmatpush1.msra.mxu0 0.0
    %6406 = vmatprep.subr.mxu0 0.0
    %6407 = vmatpush1.msra.mxu0 0.0
    %6408 = vmatprep.subr.mxu0 0.0
    %6409 = vmatpush1.msra.mxu0 0.0
    %6410 = vmatprep.subr.mxu0 0.0
    %6411 = vmatpush1.msra.mxu0 0.0
    %6412 = vmatprep.subr.mxu0 0.0
    %6413 = vmatpush1.msra.mxu0 0.0
    %6414 = vmatprep.subr.mxu0 0.0
    %6415 = vmatpush1.msra.mxu0 0.0
    %6416 = vmatprep.mubr.f32.mxu0 0.0
    %6417 = vmatmul.mubr.f32.gmra.mrb[0].mxu0 %v6350
    %v6418 = vpop.f32.mrb[0].mxu0
    %v6419 = vadd.f32 %v6347, %v6418
    %v6420 = vpop.f32.mrb[0].mxu0
    %6421 = vdwg.mxu0
    %v6422 = vld [vmem:[#allocation55] sm:$0x1]
    %v6423 = vld [vmem:[#allocation56] sm:$0x1]
    %vm6424 = vcmask 254976
    %v6425 = vsel %vm6424, %v6419, 0.0
    %6426 = vadd.xlane.f32.xlu0 %v6425
    %v6427 = vpop.xlane.xlu0 %6426
    %v6428 = vrcp.pop 32.0
    %v6429 = vmul.f32 %v6427, %v6428
    %v6430 = vsub.f32 %v6419, %v6429
    %v6431 = vmul.f32 %v6430, %v6430
    %v6432 = vsel %vm6424, %v6431, 0.0
    %6433 = vadd.xlane.f32.xlu0 %v6432
    %v6434 = vpop.xlane.xlu0 %6433
    %v6435 = vmul.f32 %v6434, %v6428
    %v6436 = vadd.f32 %v6435, 1e-05
    %v6437 = vrsqrt.pop %v6436
    %v6438 = vmul.f32 %v6430, %v6437
    %v6440 = vlaneseq
    %v6441 = vshrl.u32 %v6440, 7
    %v6442 = vsub.s32 0, %v6441
    %v6443 = vrot.slane %v6422, %v6442
    %v6445 = vmul.f32 %v6438, %v6443
    %v6447 = vlaneseq
    %v6448 = vshrl.u32 %v6447, 7
    %v6449 = vsub.s32 0, %v6448
    %v6450 = vrot.slane %v6423, %v6449
    %v6452 = vadd.f32 %v6445, %v6450
    %vm6453 = vcmp.gt.f32.partialorder %v6452, 0.0
    %v6454 = vmul.f32 %v6452, 0.01
    %v6455 = vsel %vm6453, %v6452, %v6454
    %v6456 = vld [vmem:[%s107] sm:$0xff]
    %v6457 = vld [vmem:[%s107 + $0x8] sm:$0xff]
    %v6458 = vld [vmem:[%s107 + $0x10] sm:$0xff]
    %v6459 = vld [vmem:[%s107 + $0x18] sm:$0xff]
    %v6460 = vld [vmem:[#allocation2] sm:$0x1]
    %v6462 = vlaneseq
    %v6463 = vshrl.u32 %v6462, 7
    %v6464 = vsub.s32 0, %v6463
    %v6465 = vrot.slane %v6460, %v6464
    %v6468 = vsel %vm797, %v6455, 0
    %6470 = vmatprep.subr.mxu0 0.0
    %6471 = vmatpush1.msra.mxu0 %v6456
    %6472 = vmatprep.subr.mxu0 0.0
    %6473 = vmatpush1.msra.mxu0 %v6457
    %6474 = vmatprep.subr.mxu0 0.0
    %6475 = vmatpush1.msra.mxu0 %v6458
    %6476 = vmatprep.subr.mxu0 0.0
    %6477 = vmatpush1.msra.mxu0 %v6459
    %6478 = vmatprep.subr.mxu0 0.0
    %6479 = vmatpush1.msra.mxu0 0.0
    %6480 = vmatprep.subr.mxu0 0.0
    %6481 = vmatpush1.msra.mxu0 0.0
    %6482 = vmatprep.subr.mxu0 0.0
    %6483 = vmatpush1.msra.mxu0 0.0
    %6484 = vmatprep.subr.mxu0 0.0
    %6485 = vmatpush1.msra.mxu0 0.0
    %6486 = vmatprep.subr.mxu0 0.0
    %6487 = vmatpush1.msra.mxu0 0.0
    %6488 = vmatprep.subr.mxu0 0.0
    %6489 = vmatpush1.msra.mxu0 0.0
    %6490 = vmatprep.subr.mxu0 0.0
    %6491 = vmatpush1.msra.mxu0 0.0
    %6492 = vmatprep.subr.mxu0 0.0
    %6493 = vmatpush1.msra.mxu0 0.0
    %6494 = vmatprep.subr.mxu0 0.0
    %6495 = vmatpush1.msra.mxu0 0.0
    %6496 = vmatprep.subr.mxu0 0.0
    %6497 = vmatpush1.msra.mxu0 0.0
    %6498 = vmatprep.subr.mxu0 0.0
    %6499 = vmatpush1.msra.mxu0 0.0
    %6500 = vmatprep.subr.mxu0 0.0
    %6501 = vmatpush1.msra.mxu0 0.0
    %6502 = vmatprep.subr.mxu0 0.0
    %6503 = vmatpush1.msra.mxu0 0.0
    %6504 = vmatprep.subr.mxu0 0.0
    %6505 = vmatpush1.msra.mxu0 0.0
    %6506 = vmatprep.subr.mxu0 0.0
    %6507 = vmatpush1.msra.mxu0 0.0
    %6508 = vmatprep.subr.mxu0 0.0
    %6509 = vmatpush1.msra.mxu0 0.0
    %6510 = vmatprep.subr.mxu0 0.0
    %6511 = vmatpush1.msra.mxu0 0.0
    %6512 = vmatprep.subr.mxu0 0.0
    %6513 = vmatpush1.msra.mxu0 0.0
    %6514 = vmatprep.subr.mxu0 0.0
    %6515 = vmatpush1.msra.mxu0 0.0
    %6516 = vmatprep.subr.mxu0 0.0
    %6517 = vmatpush1.msra.mxu0 0.0
    %6518 = vmatprep.subr.mxu0 0.0
    %6519 = vmatpush1.msra.mxu0 0.0
    %6520 = vmatprep.subr.mxu0 0.0
    %6521 = vmatpush1.msra.mxu0 0.0
    %6522 = vmatprep.subr.mxu0 0.0
    %6523 = vmatpush1.msra.mxu0 0.0
    %6524 = vmatprep.subr.mxu0 0.0
    %6525 = vmatpush1.msra.mxu0 0.0
    %6526 = vmatprep.subr.mxu0 0.0
    %6527 = vmatpush1.msra.mxu0 0.0
    %6528 = vmatprep.subr.mxu0 0.0
    %6529 = vmatpush1.msra.mxu0 0.0
    %6530 = vmatprep.subr.mxu0 0.0
    %6531 = vmatpush1.msra.mxu0 0.0
    %6532 = vmatprep.subr.mxu0 0.0
    %6533 = vmatpush1.msra.mxu0 0.0
    %6534 = vmatprep.mubr.f32.mxu0 0.0
    %6535 = vmatmul.mubr.f32.gmra.mrb[0].mxu0 %v6468
    %v6536 = vpop.f32.mrb[0].mxu0
    %v6537 = vadd.f32 %v6465, %v6536
    %v6538 = vpop.f32.mrb[0].mxu0
    %6539 = vdwg.mxu0
    %vm6540 = vcmask 1024
    %6541 = vst.msk [vmem:[%s111] sm:$0x3] %vm6540, %v6537
    // Predicated region
    $region366: #{stag_forward.1} parent=1 // pred_check
      _
    $region367: #{stag_forward.1} parent=1 // pred_check_branch
      %6543 = sbr.rel (0) target = $region369
    $region368: #{stag_forward.1} parent=1 // pred_region
      _
    $region369: #{stag_forward.1} parent=1 // pred_fallthru
      _
    // Predicated region
    $region370: #{stag_forward.1} parent=1 // pred_check
      _
    $region371: #{stag_forward.1} parent=1 // pred_check_branch
      %6545 = sbr.rel (0) target = $region373
    $region372: #{stag_forward.1} parent=1 // pred_region
      _
    $region373: #{stag_forward.1} parent=1 // pred_fallthru
      _
    %6546 = vsyncpa [#allocation4], 1
    %6547 = vsyncpa [#allocation6], 1
    %6548 = vsyncpa [#allocation9], 1
    %6549 = vsyncpa [#allocation12], 1
    %6550 = vsyncpa [#allocation15], 1
    %6551 = vsyncpa [#allocation18], 1
    %6552 = vsyncpa [#allocation21], 1
    %6553 = vsyncpa [#allocation24], 1
    %6554 = vsyncpa [#allocation27], 1
    %6555 = vsyncpa [#allocation30], 1
    %6556 = vsyncpa [#allocation33], 1
    %6557 = vsyncpa [#allocation36], 1
    %6558 = vsyncpa [#allocation39], 1
    %6559 = vsyncpa [#allocation42], 1
    %6560 = vsyncpa [#allocation45], 1
    %6561 = vsyncpa [#allocation48], 1
    %6562 = vsyncpa [#allocation51], 1
    %6563 = vsyncpa [#allocation54], 1
    %6564 = vsyncpa [#allocation57], 1

</llo_original>
